<compile_context>
chip_gen: v6e
topology: v6e:2x2x1
jax: 0.10.0
libtpu: 0.0.40
codegen_flags: <defaults>
</compile_context>

<pallas_src>
import jax
import jax.numpy as jnp
from jax import lax
from jax.experimental import pallas as pl
from jax.experimental.pallas import tpu as pltpu


_TAPS = tuple((dy, dx) for dy in range(3) for dx in range(3))


def _down_kernel(x_ref, sel_e_ref, sel_o_ref,
                 w1_ref, s1_ref, b1_ref, a1_ref,
                 w2_ref, s2_ref, b2_ref, a2_ref,
                 o_ref,
                 pad1_ref, pad2_ref, col1_ref, col2_ref):
    """Fused MaxPool(2x2) + (Conv3x3 + folded-BN + PReLU) x 2, one batch elem."""
    f32 = jnp.float32
    prec = lax.Precision.HIGHEST   # keep bit-close to the f32 reference
    c_in = x_ref.shape[1]
    hp = pad1_ref.shape[0] - 2
    wp = pad1_ref.shape[1] - 2
    c_mid = w1_ref.shape[1]
    c_out = w2_ref.shape[1]

    # ---- zero only the 1-pixel borders of the padded scratches -------------
    # (interiors are fully overwritten every step; borders are O(perimeter))
    for ref, c in ((pad1_ref, c_in), (pad2_ref, c_mid)):
        ref[0] = jnp.zeros((wp + 2, c), f32)
        ref[hp + 1] = jnp.zeros((wp + 2, c), f32)
        ref[:, 0, :] = jnp.zeros((hp + 2, c), f32)
        ref[:, wp + 1, :] = jnp.zeros((hp + 2, c), f32)

    # ---- MaxPool2d(2): NCHW block -> channels-last padded scratch ----------
    sel_e = sel_e_ref[...]                              # (w, wp) one-hot: even cols
    sel_o = sel_o_ref[...]                              # (w, wp) one-hot: odd cols
    for y in range(hp):
        r0 = x_ref[0, :, 2 * y, :]                      # (c_in, w)
        r1 = x_ref[0, :, 2 * y + 1, :]                  # (c_in, w)
        xh = jnp.maximum(r0, r1)                        # vertical max
        pe = jnp.dot(xh, sel_e, preferred_element_type=f32, precision=prec)
        po = jnp.dot(xh, sel_o, preferred_element_type=f32, precision=prec)
        p_row = jnp.maximum(pe, po)                     # (c_in, wp) horizontal max
        pad1_ref[1 + y, pl.ds(1, wp), :] = p_row.T      # channels-last interior row

    # ---- Conv3x3 (pad=1) as ONE im2col matmul (K = 9*C), fused BN + PReLU --
    def conv_block(pad_ref, col_ref, c, w_ref, s_ref, b_ref, a_ref):
        for t, (dy, dx) in enumerate(_TAPS):
            win = pad_ref[pl.ds(dy, hp), pl.ds(dx, wp), :]          # (hp, wp, c)
            col_ref[:, t * c:(t + 1) * c] = win.reshape(hp * wp, c)
        acc = jnp.dot(col_ref[...], w_ref[...],
                      preferred_element_type=f32, precision=prec)   # (hp*wp, c_out')
        acc = acc * s_ref[...] + b_ref[...]                          # folded BN
        return jnp.where(acc > 0, acc, a_ref[...] * acc)             # PReLU

    h1 = conv_block(pad1_ref, col1_ref, c_in, w1_ref, s1_ref, b1_ref, a1_ref)
    pad2_ref[pl.ds(1, hp), pl.ds(1, wp), :] = h1.reshape(hp, wp, c_mid)

    h2 = conv_block(pad2_ref, col2_ref, c_mid, w2_ref, s2_ref, b2_ref, a2_ref)

    # ---- lane-dense NCHW store: (c_out, hp*wp) ------------------------------
    o_ref[0] = h2.T.astype(o_ref.dtype)


@jax.jit
def down_forward(x, params):
    """x: (N, C_in, H, W) float32, NCHW (PyTorch convention)."""
    w1, s1, b1, a1, w2, s2, b2, a2 = params
    n, c_in, h, w = x.shape
    hp, wp = h // 2, w // 2
    c_mid = w1.shape[-1]
    c_out = w2.shape[-1]
    assert hp % 8 == 0 and wp % 8 == 0, (
        "kernel assumes pooled H/2 and W/2 are multiples of 8")

    # One-hot column-selection matrices for the horizontal half of the pool
    # (free to build; lets the kernel deinterleave even/odd columns on the MXU).
    cols = jnp.arange(wp)
    rows = jnp.arange(w)
    sel_e = (rows[:, None] == 2 * cols[None, :]).astype(jnp.float32)
    sel_o = (rows[:, None] == 2 * cols[None, :] + 1).astype(jnp.float32)

    # Rough VMEM working-set estimate (lane/sublane padded) -> raise the scoped
    # limit only when needed, capped at v7x's 64 MiB physical VMEM.
    fb = 4
    lane = lambda c: ((c + 127) // 128) * 128
    sub = lambda r: ((r + 7) // 8) * 8
    scratch = fb * ((hp + 2) * sub(wp + 2) * (lane(c_in) + lane(c_mid))
                    + sub(hp * wp) * (lane(9 * c_in) + lane(9 * c_mid)))
    io = fb * 2 * (c_in * h * w + c_out * hp * wp)          # double-buffered blocks
    wts = fb * (9 * c_in * c_mid + 9 * c_mid * c_out + 2 * w * wp
                + 3 * (c_mid + c_out))
    vmem_est = scratch + io + wts + (2 << 20)
    vmem_limit = None
    if vmem_est > 16 * 1024 * 1024:
        vmem_limit = int(min(max(vmem_est, 32 * 1024 * 1024), 64 * 1024 * 1024))

    out_flat = pl.pallas_call(
        _down_kernel,
        out_shape=jax.ShapeDtypeStruct((n, c_out, hp * wp), x.dtype),
        grid_spec=pltpu.PrefetchScalarGridSpec(
            num_scalar_prefetch=0,
            grid=(n,),
            in_specs=[
                pl.BlockSpec((1, c_in, h, w), lambda i: (i, 0, 0, 0)),
                pl.BlockSpec((w, wp), lambda i: (0, 0)),
                pl.BlockSpec((w, wp), lambda i: (0, 0)),
                pl.BlockSpec((9 * c_in, c_mid), lambda i: (0, 0)),
                pl.BlockSpec((1, c_mid), lambda i: (0, 0)),
                pl.BlockSpec((1, c_mid), lambda i: (0, 0)),
                pl.BlockSpec((1, c_mid), lambda i: (0, 0)),
                pl.BlockSpec((9 * c_mid, c_out), lambda i: (0, 0)),
                pl.BlockSpec((1, c_out), lambda i: (0, 0)),
                pl.BlockSpec((1, c_out), lambda i: (0, 0)),
                pl.BlockSpec((1, c_out), lambda i: (0, 0)),
            ],
            out_specs=pl.BlockSpec((1, c_out, hp * wp), lambda i: (i, 0, 0)),
            scratch_shapes=[
                pltpu.VMEM((hp + 2, wp + 2, c_in), jnp.float32),     # pad1 (chan-last)
                pltpu.VMEM((hp + 2, wp + 2, c_mid), jnp.float32),    # pad2 (chan-last)
                pltpu.VMEM((hp * wp, 9 * c_in), jnp.float32),        # im2col conv1
                pltpu.VMEM((hp * wp, 9 * c_mid), jnp.float32),       # im2col conv2
            ],
        ),
        compiler_params=pltpu.CompilerParams(
            dimension_semantics=("parallel",),       # batch elems independent
            vmem_limit_bytes=vmem_limit,
        ),
    )(x, sel_e, sel_o, w1, s1, b1, a1, w2, s2, b2, a2)

    # Free reshape (contiguous), no HBM transpose pass.
    return out_flat.reshape(n, c_out, hp, wp)


class DownPallas:
    """JAX/Pallas mirror of ibUNet's Down: MaxPool2d(2) + DoubleConv."""

    def __init__(self, in_channels, out_channels, key, eps=1e-5):
        self.in_channels = in_channels
        self.out_channels = out_channels
        self.eps = eps
        mid = out_channels  # DoubleConv default: mid_channels = out_channels
        ks = jax.random.split(key, 14)
        # Conv weights in PyTorch OIHW layout + biases.
        self.w1_oihw = 0.1 * jax.random.normal(ks[0], (mid, in_channels, 3, 3), jnp.float32)
        self.bias1 = 0.1 * jax.random.normal(ks[1], (mid,), jnp.float32)
        self.w2_oihw = 0.1 * jax.random.normal(ks[2], (out_channels, mid, 3, 3), jnp.float32)
        self.bias2 = 0.1 * jax.random.normal(ks[3], (out_channels,), jnp.float32)
        # BatchNorm affine params + running stats (inference mode).
        self.gamma1 = 1.0 + 0.1 * jax.random.normal(ks[4], (mid,), jnp.float32)
        self.beta1 = 0.1 * jax.random.normal(ks[5], (mid,), jnp.float32)
        self.mean1 = 0.1 * jax.random.normal(ks[6], (mid,), jnp.float32)
        self.var1 = jax.random.uniform(ks[7], (mid,), jnp.float32, 0.5, 1.5)
        self.gamma2 = 1.0 + 0.1 * jax.random.normal(ks[8], (out_channels,), jnp.float32)
        self.beta2 = 0.1 * jax.random.normal(ks[9], (out_channels,), jnp.float32)
        self.mean2 = 0.1 * jax.random.normal(ks[10], (out_channels,), jnp.float32)
        self.var2 = jax.random.uniform(ks[11], (out_channels,), jnp.float32, 0.5, 1.5)
        # Per-channel PReLU slopes (PyTorch default 0.25, jittered).
        self.alpha1 = 0.25 + 0.05 * jax.random.normal(ks[12], (mid,), jnp.float32)
        self.alpha2 = 0.25 + 0.05 * jax.random.normal(ks[13], (out_channels,), jnp.float32)

    def _kernel_params(self):
        # Fold conv bias + inference BatchNorm into per-channel scale/bias.
        s1 = self.gamma1 / jnp.sqrt(self.var1 + self.eps)
        b1 = (self.bias1 - self.mean1) * s1 + self.beta1
        s2 = self.gamma2 / jnp.sqrt(self.var2 + self.eps)
        b2 = (self.bias2 - self.mean2) * s2 + self.beta2
        # OIHW -> (ky, kx, I, O) -> (9*I, O): tap-major / channel-minor rows,
        # matching the im2col column order built in the kernel.
        w1 = jnp.transpose(self.w1_oihw, (2, 3, 1, 0)).reshape(9 * self.in_channels, -1)
        w2 = jnp.transpose(self.w2_oihw, (2, 3, 1, 0)).reshape(9 * self.out_channels, -1)
        return (w1, s1.reshape(1, -1), b1.reshape(1, -1), self.alpha1.reshape(1, -1),
                w2, s2.reshape(1, -1), b2.reshape(1, -1), self.alpha2.reshape(1, -1))

    def __call__(self, x):
        return down_forward(x, self._kernel_params())


def down_reference(x, m):
    """Pure-JAX (XLA) reference for correctness checking."""
    p = lax.reduce_window(x, -jnp.inf, lax.max, (1, 1, 2, 2), (1, 1, 2, 2), "VALID")

    def block(y, w_oihw, bias, gamma, beta, mean, var, alpha, eps):
        y = lax.conv_general_dilated(
            y, w_oihw, window_strides=(1, 1), padding="SAME",
            dimension_numbers=("NCHW", "OIHW", "NCHW"),
            precision=lax.Precision.HIGHEST)
        y = y + bias[None, :, None, None]
        y = (y - mean[None, :, None, None]) / jnp.sqrt(var + eps)[None, :, None, None]
        y = y * gamma[None, :, None, None] + beta[None, :, None, None]
        return jnp.where(y > 0, y, alpha[None, :, None, None] * y)

    y = block(p, m.w1_oihw, m.bias1, m.gamma1, m.beta1, m.mean1, m.var1, m.alpha1, m.eps)
    y = block(y, m.w2_oihw, m.bias2, m.gamma2, m.beta2, m.mean2, m.var2, m.alpha2, m.eps)
    return y


if __name__ == "__main__":
    key = jax.random.PRNGKey(0)
    k_x, k_p = jax.random.split(key)

    n, c_in, h, w = 2, 4, 16, 16
    c_out = 8
    x = jax.random.normal(k_x, (n, c_in, h, w), dtype=jnp.float32)

    down = DownPallas(c_in, c_out, key=k_p)

    y = jax.block_until_ready(down(x))
    assert y.shape == (n, c_out, h // 2, w // 2) and y.dtype == x.dtype

    y_ref = jax.block_until_ready(down_reference(x, down))
    max_err = float(jnp.max(jnp.abs(y - y_ref)))
    assert bool(jnp.allclose(y, y_ref, rtol=2e-3, atol=2e-3)), max_err

    print("KERNEL_OK")
</pallas_src>

<mosaic_0001>
module attributes {stable_mosaic.version = 11 : i64} {
  func.func @_down_kernel(%arg0: i32, %arg1: memref<1x4x16x16xf32, #tpu.memory_space<vmem>>, %arg2: memref<16x8xf32, #tpu.memory_space<vmem>>, %arg3: memref<16x8xf32, #tpu.memory_space<vmem>>, %arg4: memref<36x8xf32, #tpu.memory_space<vmem>>, %arg5: memref<1x8xf32, #tpu.memory_space<vmem>>, %arg6: memref<1x8xf32, #tpu.memory_space<vmem>>, %arg7: memref<1x8xf32, #tpu.memory_space<vmem>>, %arg8: memref<72x8xf32, #tpu.memory_space<vmem>>, %arg9: memref<1x8xf32, #tpu.memory_space<vmem>>, %arg10: memref<1x8xf32, #tpu.memory_space<vmem>>, %arg11: memref<1x8xf32, #tpu.memory_space<vmem>>, %arg12: memref<1x8x64xf32, #tpu.memory_space<vmem>>, %arg13: memref<10x10x4xf32, #tpu.memory_space<vmem>>, %arg14: memref<10x10x8xf32, #tpu.memory_space<vmem>>, %arg15: memref<64x36xf32, #tpu.memory_space<vmem>>, %arg16: memref<64x72xf32, #tpu.memory_space<vmem>>) attributes {dimension_semantics = [#tpu.dimension_semantics<parallel>], iteration_bounds = array<i64: 2>, scalar_prefetch = 0 : i64, scratch_operands = 4 : i64, tpu.core_type = #tpu.core_type<tc>, window_params = [{transform_indices = @transform_0, window_bounds = array<i64: 1, 4, 16, 16>}, {pipeline_mode = #tpu.pipeline_mode<synchronous>, transform_indices = @transform_1, window_bounds = array<i64: 16, 8>}, {pipeline_mode = #tpu.pipeline_mode<synchronous>, transform_indices = @transform_2, window_bounds = array<i64: 16, 8>}, {pipeline_mode = #tpu.pipeline_mode<synchronous>, transform_indices = @transform_3, window_bounds = array<i64: 36, 8>}, {pipeline_mode = #tpu.pipeline_mode<synchronous>, transform_indices = @transform_4, window_bounds = array<i64: 1, 8>}, {pipeline_mode = #tpu.pipeline_mode<synchronous>, transform_indices = @transform_5, window_bounds = array<i64: 1, 8>}, {pipeline_mode = #tpu.pipeline_mode<synchronous>, transform_indices = @transform_6, window_bounds = array<i64: 1, 8>}, {pipeline_mode = #tpu.pipeline_mode<synchronous>, transform_indices = @transform_7, window_bounds = array<i64: 72, 8>}, {pipeline_mode = #tpu.pipeline_mode<synchronous>, transform_indices = @transform_8, window_bounds = array<i64: 1, 8>}, {pipeline_mode = #tpu.pipeline_mode<synchronous>, transform_indices = @transform_9, window_bounds = array<i64: 1, 8>}, {pipeline_mode = #tpu.pipeline_mode<synchronous>, transform_indices = @transform_10, window_bounds = array<i64: 1, 8>}, {transform_indices = @transform_11, window_bounds = array<i64: 1, 8, 64>}]} {
    %cst = arith.constant 0.000000e+00 : f32
    %0 = vector.broadcast %cst : f32 to vector<10x4xf32>
    %c0 = arith.constant 0 : index
    %c0_0 = arith.constant 0 : index
    %c0_1 = arith.constant 0 : index
    %1 = vector.load %arg13[%c0, %c0_0, %c0_1] : memref<10x10x4xf32, #tpu.memory_space<vmem>>, vector<1x10x4xf32>
    %2 = vector.shape_cast %1 : vector<1x10x4xf32> to vector<10x4xf32>
    %3 = vector.shape_cast %0 : vector<10x4xf32> to vector<1x10x4xf32>
    tpu.vector_store %arg13[%c0, %c0_0, %c0_1], %3 {strides = array<i32>} : memref<10x10x4xf32, #tpu.memory_space<vmem>>, vector<1x10x4xf32>,
    %cst_2 = arith.constant 0.000000e+00 : f32
    %4 = vector.broadcast %cst_2 : f32 to vector<10x4xf32>
    %c9 = arith.constant 9 : index
    %c0_3 = arith.constant 0 : index
    %c0_4 = arith.constant 0 : index
    %5 = vector.load %arg13[%c9, %c0_3, %c0_4] : memref<10x10x4xf32, #tpu.memory_space<vmem>>, vector<1x10x4xf32>
    %6 = vector.shape_cast %5 : vector<1x10x4xf32> to vector<10x4xf32>
    %7 = vector.shape_cast %4 : vector<10x4xf32> to vector<1x10x4xf32>
    tpu.vector_store %arg13[%c9, %c0_3, %c0_4], %7 {strides = array<i32>} : memref<10x10x4xf32, #tpu.memory_space<vmem>>, vector<1x10x4xf32>,
    %cst_5 = arith.constant 0.000000e+00 : f32
    %8 = vector.broadcast %cst_5 : f32 to vector<10x4xf32>
    %c0_6 = arith.constant 0 : index
    %c0_7 = arith.constant 0 : index
    %c0_8 = arith.constant 0 : index
    %9 = vector.load %arg13[%c0_6, %c0_7, %c0_8] : memref<10x10x4xf32, #tpu.memory_space<vmem>>, vector<10x1x4xf32>
    %10 = vector.shape_cast %9 : vector<10x1x4xf32> to vector<10x4xf32>
    %11 = vector.shape_cast %8 : vector<10x4xf32> to vector<10x1x4xf32>
    tpu.vector_store %arg13[%c0_6, %c0_7, %c0_8], %11 {strides = array<i32>} : memref<10x10x4xf32, #tpu.memory_space<vmem>>, vector<10x1x4xf32>,
    %cst_9 = arith.constant 0.000000e+00 : f32
    %12 = vector.broadcast %cst_9 : f32 to vector<10x4xf32>
    %c0_10 = arith.constant 0 : index
    %c9_11 = arith.constant 9 : index
    %c0_12 = arith.constant 0 : index
    %13 = vector.load %arg13[%c0_10, %c9_11, %c0_12] : memref<10x10x4xf32, #tpu.memory_space<vmem>>, vector<10x1x4xf32>
    %14 = vector.shape_cast %13 : vector<10x1x4xf32> to vector<10x4xf32>
    %15 = vector.shape_cast %12 : vector<10x4xf32> to vector<10x1x4xf32>
    tpu.vector_store %arg13[%c0_10, %c9_11, %c0_12], %15 {strides = array<i32>} : memref<10x10x4xf32, #tpu.memory_space<vmem>>, vector<10x1x4xf32>,
    %cst_13 = arith.constant 0.000000e+00 : f32
    %16 = vector.broadcast %cst_13 : f32 to vector<10x8xf32>
    %c0_14 = arith.constant 0 : index
    %c0_15 = arith.constant 0 : index
    %c0_16 = arith.constant 0 : index
    %17 = vector.load %arg14[%c0_14, %c0_15, %c0_16] : memref<10x10x8xf32, #tpu.memory_space<vmem>>, vector<1x10x8xf32>
    %18 = vector.shape_cast %17 : vector<1x10x8xf32> to vector<10x8xf32>
    %19 = vector.shape_cast %16 : vector<10x8xf32> to vector<1x10x8xf32>
    tpu.vector_store %arg14[%c0_14, %c0_15, %c0_16], %19 {strides = array<i32>} : memref<10x10x8xf32, #tpu.memory_space<vmem>>, vector<1x10x8xf32>,
    %cst_17 = arith.constant 0.000000e+00 : f32
    %20 = vector.broadcast %cst_17 : f32 to vector<10x8xf32>
    %c9_18 = arith.constant 9 : index
    %c0_19 = arith.constant 0 : index
    %c0_20 = arith.constant 0 : index
    %21 = vector.load %arg14[%c9_18, %c0_19, %c0_20] : memref<10x10x8xf32, #tpu.memory_space<vmem>>, vector<1x10x8xf32>
    %22 = vector.shape_cast %21 : vector<1x10x8xf32> to vector<10x8xf32>
    %23 = vector.shape_cast %20 : vector<10x8xf32> to vector<1x10x8xf32>
    tpu.vector_store %arg14[%c9_18, %c0_19, %c0_20], %23 {strides = array<i32>} : memref<10x10x8xf32, #tpu.memory_space<vmem>>, vector<1x10x8xf32>,
    %cst_21 = arith.constant 0.000000e+00 : f32
    %24 = vector.broadcast %cst_21 : f32 to vector<10x8xf32>
    %c0_22 = arith.constant 0 : index
    %c0_23 = arith.constant 0 : index
    %c0_24 = arith.constant 0 : index
    %25 = vector.load %arg14[%c0_22, %c0_23, %c0_24] : memref<10x10x8xf32, #tpu.memory_space<vmem>>, vector<10x1x8xf32>
    %26 = vector.shape_cast %25 : vector<10x1x8xf32> to vector<10x8xf32>
    %27 = vector.shape_cast %24 : vector<10x8xf32> to vector<10x1x8xf32>
    tpu.vector_store %arg14[%c0_22, %c0_23, %c0_24], %27 {strides = array<i32>} : memref<10x10x8xf32, #tpu.memory_space<vmem>>, vector<10x1x8xf32>,
    %cst_25 = arith.constant 0.000000e+00 : f32
    %28 = vector.broadcast %cst_25 : f32 to vector<10x8xf32>
    %c0_26 = arith.constant 0 : index
    %c9_27 = arith.constant 9 : index
    %c0_28 = arith.constant 0 : index
    %29 = vector.load %arg14[%c0_26, %c9_27, %c0_28] : memref<10x10x8xf32, #tpu.memory_space<vmem>>, vector<10x1x8xf32>
    %30 = vector.shape_cast %29 : vector<10x1x8xf32> to vector<10x8xf32>
    %31 = vector.shape_cast %28 : vector<10x8xf32> to vector<10x1x8xf32>
    tpu.vector_store %arg14[%c0_26, %c9_27, %c0_28], %31 {strides = array<i32>} : memref<10x10x8xf32, #tpu.memory_space<vmem>>, vector<10x1x8xf32>,
    %c0_29 = arith.constant 0 : index
    %c0_30 = arith.constant 0 : index
    %32 = vector.load %arg2[%c0_29, %c0_30] : memref<16x8xf32, #tpu.memory_space<vmem>>, vector<16x8xf32>
    %c0_31 = arith.constant 0 : index
    %c0_32 = arith.constant 0 : index
    %33 = vector.load %arg3[%c0_31, %c0_32] : memref<16x8xf32, #tpu.memory_space<vmem>>, vector<16x8xf32>
    %c0_33 = arith.constant 0 : index
    %c0_34 = arith.constant 0 : index
    %c0_35 = arith.constant 0 : index
    %c0_36 = arith.constant 0 : index
    %34 = vector.load %arg1[%c0_33, %c0_34, %c0_35, %c0_36] : memref<1x4x16x16xf32, #tpu.memory_space<vmem>>, vector<1x4x1x16xf32>
    %35 = vector.shape_cast %34 : vector<1x4x1x16xf32> to vector<4x16xf32>
    %c0_37 = arith.constant 0 : index
    %c0_38 = arith.constant 0 : index
    %c1 = arith.constant 1 : index
    %c0_39 = arith.constant 0 : index
    %36 = vector.load %arg1[%c0_37, %c0_38, %c1, %c0_39] : memref<1x4x16x16xf32, #tpu.memory_space<vmem>>, vector<1x4x1x16xf32>
    %37 = vector.shape_cast %36 : vector<1x4x1x16xf32> to vector<4x16xf32>
    %38 = arith.maximumf %35, %37 : vector<4x16xf32>
    %cst_40 = arith.constant dense<0.000000e+00> : vector<4x8xf32>
    %39 = tpu.matmul %38, %32, %cst_40 {dimension_numbers = #tpu.dot_dimension_numbers<[1], [0], [0], [1], [0, 0, 1, 1], [], []>, precision = #tpu.contract_precision<fp32>} : vector<4x16xf32>, vector<16x8xf32>, vector<4x8xf32> -> vector<4x8xf32>
    %cst_41 = arith.constant dense<0.000000e+00> : vector<4x8xf32>
    %40 = tpu.matmul %38, %33, %cst_41 {dimension_numbers = #tpu.dot_dimension_numbers<[1], [0], [0], [1], [0, 0, 1, 1], [], []>, precision = #tpu.contract_precision<fp32>} : vector<4x16xf32>, vector<16x8xf32>, vector<4x8xf32> -> vector<4x8xf32>
    %41 = arith.maximumf %39, %40 : vector<4x8xf32>
    %42 = tpu.transpose %41, [1, 0] : vector<4x8xf32> -> vector<8x4xf32>
    %c1_42 = arith.constant 1 : index
    %c1_43 = arith.constant 1 : index
    %c0_44 = arith.constant 0 : index
    %43 = vector.load %arg13[%c1_42, %c1_43, %c0_44] : memref<10x10x4xf32, #tpu.memory_space<vmem>>, vector<1x8x4xf32>
    %44 = vector.shape_cast %43 : vector<1x8x4xf32> to vector<8x4xf32>
    %45 = vector.shape_cast %42 : vector<8x4xf32> to vector<1x8x4xf32>
    tpu.vector_store %arg13[%c1_42, %c1_43, %c0_44], %45 {strides = array<i32>} : memref<10x10x4xf32, #tpu.memory_space<vmem>>, vector<1x8x4xf32>,
    %c0_45 = arith.constant 0 : index
    %c0_46 = arith.constant 0 : index
    %c2 = arith.constant 2 : index
    %c0_47 = arith.constant 0 : index
    %46 = vector.load %arg1[%c0_45, %c0_46, %c2, %c0_47] : memref<1x4x16x16xf32, #tpu.memory_space<vmem>>, vector<1x4x1x16xf32>
    %47 = vector.shape_cast %46 : vector<1x4x1x16xf32> to vector<4x16xf32>
    %c0_48 = arith.constant 0 : index
    %c0_49 = arith.constant 0 : index
    %c3 = arith.constant 3 : index
    %c0_50 = arith.constant 0 : index
    %48 = vector.load %arg1[%c0_48, %c0_49, %c3, %c0_50] : memref<1x4x16x16xf32, #tpu.memory_space<vmem>>, vector<1x4x1x16xf32>
    %49 = vector.shape_cast %48 : vector<1x4x1x16xf32> to vector<4x16xf32>
    %50 = arith.maximumf %47, %49 : vector<4x16xf32>
    %cst_51 = arith.constant dense<0.000000e+00> : vector<4x8xf32>
    %51 = tpu.matmul %50, %32, %cst_51 {dimension_numbers = #tpu.dot_dimension_numbers<[1], [0], [0], [1], [0, 0, 1, 1], [], []>, precision = #tpu.contract_precision<fp32>} : vector<4x16xf32>, vector<16x8xf32>, vector<4x8xf32> -> vector<4x8xf32>
    %cst_52 = arith.constant dense<0.000000e+00> : vector<4x8xf32>
    %52 = tpu.matmul %50, %33, %cst_52 {dimension_numbers = #tpu.dot_dimension_numbers<[1], [0], [0], [1], [0, 0, 1, 1], [], []>, precision = #tpu.contract_precision<fp32>} : vector<4x16xf32>, vector<16x8xf32>, vector<4x8xf32> -> vector<4x8xf32>
    %53 = arith.maximumf %51, %52 : vector<4x8xf32>
    %54 = tpu.transpose %53, [1, 0] : vector<4x8xf32> -> vector<8x4xf32>
    %c2_53 = arith.constant 2 : index
    %c1_54 = arith.constant 1 : index
    %c0_55 = arith.constant 0 : index
    %55 = vector.load %arg13[%c2_53, %c1_54, %c0_55] : memref<10x10x4xf32, #tpu.memory_space<vmem>>, vector<1x8x4xf32>
    %56 = vector.shape_cast %55 : vector<1x8x4xf32> to vector<8x4xf32>
    %57 = vector.shape_cast %54 : vector<8x4xf32> to vector<1x8x4xf32>
    tpu.vector_store %arg13[%c2_53, %c1_54, %c0_55], %57 {strides = array<i32>} : memref<10x10x4xf32, #tpu.memory_space<vmem>>, vector<1x8x4xf32>,
    %c0_56 = arith.constant 0 : index
    %c0_57 = arith.constant 0 : index
    %c4 = arith.constant 4 : index
    %c0_58 = arith.constant 0 : index
    %58 = vector.load %arg1[%c0_56, %c0_57, %c4, %c0_58] : memref<1x4x16x16xf32, #tpu.memory_space<vmem>>, vector<1x4x1x16xf32>
    %59 = vector.shape_cast %58 : vector<1x4x1x16xf32> to vector<4x16xf32>
    %c0_59 = arith.constant 0 : index
    %c0_60 = arith.constant 0 : index
    %c5 = arith.constant 5 : index
    %c0_61 = arith.constant 0 : index
    %60 = vector.load %arg1[%c0_59, %c0_60, %c5, %c0_61] : memref<1x4x16x16xf32, #tpu.memory_space<vmem>>, vector<1x4x1x16xf32>
    %61 = vector.shape_cast %60 : vector<1x4x1x16xf32> to vector<4x16xf32>
    %62 = arith.maximumf %59, %61 : vector<4x16xf32>
    %cst_62 = arith.constant dense<0.000000e+00> : vector<4x8xf32>
    %63 = tpu.matmul %62, %32, %cst_62 {dimension_numbers = #tpu.dot_dimension_numbers<[1], [0], [0], [1], [0, 0, 1, 1], [], []>, precision = #tpu.contract_precision<fp32>} : vector<4x16xf32>, vector<16x8xf32>, vector<4x8xf32> -> vector<4x8xf32>
    %cst_63 = arith.constant dense<0.000000e+00> : vector<4x8xf32>
    %64 = tpu.matmul %62, %33, %cst_63 {dimension_numbers = #tpu.dot_dimension_numbers<[1], [0], [0], [1], [0, 0, 1, 1], [], []>, precision = #tpu.contract_precision<fp32>} : vector<4x16xf32>, vector<16x8xf32>, vector<4x8xf32> -> vector<4x8xf32>
    %65 = arith.maximumf %63, %64 : vector<4x8xf32>
    %66 = tpu.transpose %65, [1, 0] : vector<4x8xf32> -> vector<8x4xf32>
    %c3_64 = arith.constant 3 : index
    %c1_65 = arith.constant 1 : index
    %c0_66 = arith.constant 0 : index
    %67 = vector.load %arg13[%c3_64, %c1_65, %c0_66] : memref<10x10x4xf32, #tpu.memory_space<vmem>>, vector<1x8x4xf32>
    %68 = vector.shape_cast %67 : vector<1x8x4xf32> to vector<8x4xf32>
    %69 = vector.shape_cast %66 : vector<8x4xf32> to vector<1x8x4xf32>
    tpu.vector_store %arg13[%c3_64, %c1_65, %c0_66], %69 {strides = array<i32>} : memref<10x10x4xf32, #tpu.memory_space<vmem>>, vector<1x8x4xf32>,
    %c0_67 = arith.constant 0 : index
    %c0_68 = arith.constant 0 : index
    %c6 = arith.constant 6 : index
    %c0_69 = arith.constant 0 : index
    %70 = vector.load %arg1[%c0_67, %c0_68, %c6, %c0_69] : memref<1x4x16x16xf32, #tpu.memory_space<vmem>>, vector<1x4x1x16xf32>
    %71 = vector.shape_cast %70 : vector<1x4x1x16xf32> to vector<4x16xf32>
    %c0_70 = arith.constant 0 : index
    %c0_71 = arith.constant 0 : index
    %c7 = arith.constant 7 : index
    %c0_72 = arith.constant 0 : index
    %72 = vector.load %arg1[%c0_70, %c0_71, %c7, %c0_72] : memref<1x4x16x16xf32, #tpu.memory_space<vmem>>, vector<1x4x1x16xf32>
    %73 = vector.shape_cast %72 : vector<1x4x1x16xf32> to vector<4x16xf32>
    %74 = arith.maximumf %71, %73 : vector<4x16xf32>
    %cst_73 = arith.constant dense<0.000000e+00> : vector<4x8xf32>
    %75 = tpu.matmul %74, %32, %cst_73 {dimension_numbers = #tpu.dot_dimension_numbers<[1], [0], [0], [1], [0, 0, 1, 1], [], []>, precision = #tpu.contract_precision<fp32>} : vector<4x16xf32>, vector<16x8xf32>, vector<4x8xf32> -> vector<4x8xf32>
    %cst_74 = arith.constant dense<0.000000e+00> : vector<4x8xf32>
    %76 = tpu.matmul %74, %33, %cst_74 {dimension_numbers = #tpu.dot_dimension_numbers<[1], [0], [0], [1], [0, 0, 1, 1], [], []>, precision = #tpu.contract_precision<fp32>} : vector<4x16xf32>, vector<16x8xf32>, vector<4x8xf32> -> vector<4x8xf32>
    %77 = arith.maximumf %75, %76 : vector<4x8xf32>
    %78 = tpu.transpose %77, [1, 0] : vector<4x8xf32> -> vector<8x4xf32>
    %c4_75 = arith.constant 4 : index
    %c1_76 = arith.constant 1 : index
    %c0_77 = arith.constant 0 : index
    %79 = vector.load %arg13[%c4_75, %c1_76, %c0_77] : memref<10x10x4xf32, #tpu.memory_space<vmem>>, vector<1x8x4xf32>
    %80 = vector.shape_cast %79 : vector<1x8x4xf32> to vector<8x4xf32>
    %81 = vector.shape_cast %78 : vector<8x4xf32> to vector<1x8x4xf32>
    tpu.vector_store %arg13[%c4_75, %c1_76, %c0_77], %81 {strides = array<i32>} : memref<10x10x4xf32, #tpu.memory_space<vmem>>, vector<1x8x4xf32>,
    %c0_78 = arith.constant 0 : index
    %c0_79 = arith.constant 0 : index
    %c8 = arith.constant 8 : index
    %c0_80 = arith.constant 0 : index
    %82 = vector.load %arg1[%c0_78, %c0_79, %c8, %c0_80] : memref<1x4x16x16xf32, #tpu.memory_space<vmem>>, vector<1x4x1x16xf32>
    %83 = vector.shape_cast %82 : vector<1x4x1x16xf32> to vector<4x16xf32>
    %c0_81 = arith.constant 0 : index
    %c0_82 = arith.constant 0 : index
    %c9_83 = arith.constant 9 : index
    %c0_84 = arith.constant 0 : index
    %84 = vector.load %arg1[%c0_81, %c0_82, %c9_83, %c0_84] : memref<1x4x16x16xf32, #tpu.memory_space<vmem>>, vector<1x4x1x16xf32>
    %85 = vector.shape_cast %84 : vector<1x4x1x16xf32> to vector<4x16xf32>
    %86 = arith.maximumf %83, %85 : vector<4x16xf32>
    %cst_85 = arith.constant dense<0.000000e+00> : vector<4x8xf32>
    %87 = tpu.matmul %86, %32, %cst_85 {dimension_numbers = #tpu.dot_dimension_numbers<[1], [0], [0], [1], [0, 0, 1, 1], [], []>, precision = #tpu.contract_precision<fp32>} : vector<4x16xf32>, vector<16x8xf32>, vector<4x8xf32> -> vector<4x8xf32>
    %cst_86 = arith.constant dense<0.000000e+00> : vector<4x8xf32>
    %88 = tpu.matmul %86, %33, %cst_86 {dimension_numbers = #tpu.dot_dimension_numbers<[1], [0], [0], [1], [0, 0, 1, 1], [], []>, precision = #tpu.contract_precision<fp32>} : vector<4x16xf32>, vector<16x8xf32>, vector<4x8xf32> -> vector<4x8xf32>
    %89 = arith.maximumf %87, %88 : vector<4x8xf32>
    %90 = tpu.transpose %89, [1, 0] : vector<4x8xf32> -> vector<8x4xf32>
    %c5_87 = arith.constant 5 : index
    %c1_88 = arith.constant 1 : index
    %c0_89 = arith.constant 0 : index
    %91 = vector.load %arg13[%c5_87, %c1_88, %c0_89] : memref<10x10x4xf32, #tpu.memory_space<vmem>>, vector<1x8x4xf32>
    %92 = vector.shape_cast %91 : vector<1x8x4xf32> to vector<8x4xf32>
    %93 = vector.shape_cast %90 : vector<8x4xf32> to vector<1x8x4xf32>
    tpu.vector_store %arg13[%c5_87, %c1_88, %c0_89], %93 {strides = array<i32>} : memref<10x10x4xf32, #tpu.memory_space<vmem>>, vector<1x8x4xf32>,
    %c0_90 = arith.constant 0 : index
    %c0_91 = arith.constant 0 : index
    %c10 = arith.constant 10 : index
    %c0_92 = arith.constant 0 : index
    %94 = vector.load %arg1[%c0_90, %c0_91, %c10, %c0_92] : memref<1x4x16x16xf32, #tpu.memory_space<vmem>>, vector<1x4x1x16xf32>
    %95 = vector.shape_cast %94 : vector<1x4x1x16xf32> to vector<4x16xf32>
    %c0_93 = arith.constant 0 : index
    %c0_94 = arith.constant 0 : index
    %c11 = arith.constant 11 : index
    %c0_95 = arith.constant 0 : index
    %96 = vector.load %arg1[%c0_93, %c0_94, %c11, %c0_95] : memref<1x4x16x16xf32, #tpu.memory_space<vmem>>, vector<1x4x1x16xf32>
    %97 = vector.shape_cast %96 : vector<1x4x1x16xf32> to vector<4x16xf32>
    %98 = arith.maximumf %95, %97 : vector<4x16xf32>
    %cst_96 = arith.constant dense<0.000000e+00> : vector<4x8xf32>
    %99 = tpu.matmul %98, %32, %cst_96 {dimension_numbers = #tpu.dot_dimension_numbers<[1], [0], [0], [1], [0, 0, 1, 1], [], []>, precision = #tpu.contract_precision<fp32>} : vector<4x16xf32>, vector<16x8xf32>, vector<4x8xf32> -> vector<4x8xf32>
    %cst_97 = arith.constant dense<0.000000e+00> : vector<4x8xf32>
    %100 = tpu.matmul %98, %33, %cst_97 {dimension_numbers = #tpu.dot_dimension_numbers<[1], [0], [0], [1], [0, 0, 1, 1], [], []>, precision = #tpu.contract_precision<fp32>} : vector<4x16xf32>, vector<16x8xf32>, vector<4x8xf32> -> vector<4x8xf32>
    %101 = arith.maximumf %99, %100 : vector<4x8xf32>
    %102 = tpu.transpose %101, [1, 0] : vector<4x8xf32> -> vector<8x4xf32>
    %c6_98 = arith.constant 6 : index
    %c1_99 = arith.constant 1 : index
    %c0_100 = arith.constant 0 : index
    %103 = vector.load %arg13[%c6_98, %c1_99, %c0_100] : memref<10x10x4xf32, #tpu.memory_space<vmem>>, vector<1x8x4xf32>
    %104 = vector.shape_cast %103 : vector<1x8x4xf32> to vector<8x4xf32>
    %105 = vector.shape_cast %102 : vector<8x4xf32> to vector<1x8x4xf32>
    tpu.vector_store %arg13[%c6_98, %c1_99, %c0_100], %105 {strides = array<i32>} : memref<10x10x4xf32, #tpu.memory_space<vmem>>, vector<1x8x4xf32>,
    %c0_101 = arith.constant 0 : index
    %c0_102 = arith.constant 0 : index
    %c12 = arith.constant 12 : index
    %c0_103 = arith.constant 0 : index
    %106 = vector.load %arg1[%c0_101, %c0_102, %c12, %c0_103] : memref<1x4x16x16xf32, #tpu.memory_space<vmem>>, vector<1x4x1x16xf32>
    %107 = vector.shape_cast %106 : vector<1x4x1x16xf32> to vector<4x16xf32>
    %c0_104 = arith.constant 0 : index
    %c0_105 = arith.constant 0 : index
    %c13 = arith.constant 13 : index
    %c0_106 = arith.constant 0 : index
    %108 = vector.load %arg1[%c0_104, %c0_105, %c13, %c0_106] : memref<1x4x16x16xf32, #tpu.memory_space<vmem>>, vector<1x4x1x16xf32>
    %109 = vector.shape_cast %108 : vector<1x4x1x16xf32> to vector<4x16xf32>
    %110 = arith.maximumf %107, %109 : vector<4x16xf32>
    %cst_107 = arith.constant dense<0.000000e+00> : vector<4x8xf32>
    %111 = tpu.matmul %110, %32, %cst_107 {dimension_numbers = #tpu.dot_dimension_numbers<[1], [0], [0], [1], [0, 0, 1, 1], [], []>, precision = #tpu.contract_precision<fp32>} : vector<4x16xf32>, vector<16x8xf32>, vector<4x8xf32> -> vector<4x8xf32>
    %cst_108 = arith.constant dense<0.000000e+00> : vector<4x8xf32>
    %112 = tpu.matmul %110, %33, %cst_108 {dimension_numbers = #tpu.dot_dimension_numbers<[1], [0], [0], [1], [0, 0, 1, 1], [], []>, precision = #tpu.contract_precision<fp32>} : vector<4x16xf32>, vector<16x8xf32>, vector<4x8xf32> -> vector<4x8xf32>
    %113 = arith.maximumf %111, %112 : vector<4x8xf32>
    %114 = tpu.transpose %113, [1, 0] : vector<4x8xf32> -> vector<8x4xf32>
    %c7_109 = arith.constant 7 : index
    %c1_110 = arith.constant 1 : index
    %c0_111 = arith.constant 0 : index
    %115 = vector.load %arg13[%c7_109, %c1_110, %c0_111] : memref<10x10x4xf32, #tpu.memory_space<vmem>>, vector<1x8x4xf32>
    %116 = vector.shape_cast %115 : vector<1x8x4xf32> to vector<8x4xf32>
    %117 = vector.shape_cast %114 : vector<8x4xf32> to vector<1x8x4xf32>
    tpu.vector_store %arg13[%c7_109, %c1_110, %c0_111], %117 {strides = array<i32>} : memref<10x10x4xf32, #tpu.memory_space<vmem>>, vector<1x8x4xf32>,
    %c0_112 = arith.constant 0 : index
    %c0_113 = arith.constant 0 : index
    %c14 = arith.constant 14 : index
    %c0_114 = arith.constant 0 : index
    %118 = vector.load %arg1[%c0_112, %c0_113, %c14, %c0_114] : memref<1x4x16x16xf32, #tpu.memory_space<vmem>>, vector<1x4x1x16xf32>
    %119 = vector.shape_cast %118 : vector<1x4x1x16xf32> to vector<4x16xf32>
    %c0_115 = arith.constant 0 : index
    %c0_116 = arith.constant 0 : index
    %c15 = arith.constant 15 : index
    %c0_117 = arith.constant 0 : index
    %120 = vector.load %arg1[%c0_115, %c0_116, %c15, %c0_117] : memref<1x4x16x16xf32, #tpu.memory_space<vmem>>, vector<1x4x1x16xf32>
    %121 = vector.shape_cast %120 : vector<1x4x1x16xf32> to vector<4x16xf32>
    %122 = arith.maximumf %119, %121 : vector<4x16xf32>
    %cst_118 = arith.constant dense<0.000000e+00> : vector<4x8xf32>
    %123 = tpu.matmul %122, %32, %cst_118 {dimension_numbers = #tpu.dot_dimension_numbers<[1], [0], [0], [1], [0, 0, 1, 1], [], []>, precision = #tpu.contract_precision<fp32>} : vector<4x16xf32>, vector<16x8xf32>, vector<4x8xf32> -> vector<4x8xf32>
    %cst_119 = arith.constant dense<0.000000e+00> : vector<4x8xf32>
    %124 = tpu.matmul %122, %33, %cst_119 {dimension_numbers = #tpu.dot_dimension_numbers<[1], [0], [0], [1], [0, 0, 1, 1], [], []>, precision = #tpu.contract_precision<fp32>} : vector<4x16xf32>, vector<16x8xf32>, vector<4x8xf32> -> vector<4x8xf32>
    %125 = arith.maximumf %123, %124 : vector<4x8xf32>
    %126 = tpu.transpose %125, [1, 0] : vector<4x8xf32> -> vector<8x4xf32>
    %c8_120 = arith.constant 8 : index
    %c1_121 = arith.constant 1 : index
    %c0_122 = arith.constant 0 : index
    %127 = vector.load %arg13[%c8_120, %c1_121, %c0_122] : memref<10x10x4xf32, #tpu.memory_space<vmem>>, vector<1x8x4xf32>
    %128 = vector.shape_cast %127 : vector<1x8x4xf32> to vector<8x4xf32>
    %129 = vector.shape_cast %126 : vector<8x4xf32> to vector<1x8x4xf32>
    tpu.vector_store %arg13[%c8_120, %c1_121, %c0_122], %129 {strides = array<i32>} : memref<10x10x4xf32, #tpu.memory_space<vmem>>, vector<1x8x4xf32>,
    %c0_123 = arith.constant 0 : index
    %c0_124 = arith.constant 0 : index
    %c0_125 = arith.constant 0 : index
    %130 = vector.load %arg13[%c0_123, %c0_124, %c0_125] : memref<10x10x4xf32, #tpu.memory_space<vmem>>, vector<8x8x4xf32>
    %131 = vector.shape_cast %130 : vector<8x8x4xf32> to vector<64x4xf32>
    %c0_126 = arith.constant 0 : index
    %c0_127 = arith.constant 0 : index
    %132 = vector.load %arg15[%c0_126, %c0_127] : memref<64x36xf32, #tpu.memory_space<vmem>>, vector<64x4xf32>
    tpu.vector_store %arg15[%c0_126, %c0_127], %131 {strides = array<i32>} : memref<64x36xf32, #tpu.memory_space<vmem>>, vector<64x4xf32>,
    %c0_128 = arith.constant 0 : index
    %c1_129 = arith.constant 1 : index
    %c0_130 = arith.constant 0 : index
    %133 = vector.load %arg13[%c0_128, %c1_129, %c0_130] : memref<10x10x4xf32, #tpu.memory_space<vmem>>, vector<8x8x4xf32>
    %134 = vector.shape_cast %133 : vector<8x8x4xf32> to vector<64x4xf32>
    %c0_131 = arith.constant 0 : index
    %c4_132 = arith.constant 4 : index
    %135 = vector.load %arg15[%c0_131, %c4_132] : memref<64x36xf32, #tpu.memory_space<vmem>>, vector<64x4xf32>
    tpu.vector_store %arg15[%c0_131, %c4_132], %134 {strides = array<i32>} : memref<64x36xf32, #tpu.memory_space<vmem>>, vector<64x4xf32>,
    %c0_133 = arith.constant 0 : index
    %c2_134 = arith.constant 2 : index
    %c0_135 = arith.constant 0 : index
    %136 = vector.load %arg13[%c0_133, %c2_134, %c0_135] : memref<10x10x4xf32, #tpu.memory_space<vmem>>, vector<8x8x4xf32>
    %137 = vector.shape_cast %136 : vector<8x8x4xf32> to vector<64x4xf32>
    %c0_136 = arith.constant 0 : index
    %c8_137 = arith.constant 8 : index
    %138 = vector.load %arg15[%c0_136, %c8_137] : memref<64x36xf32, #tpu.memory_space<vmem>>, vector<64x4xf32>
    tpu.vector_store %arg15[%c0_136, %c8_137], %137 {strides = array<i32>} : memref<64x36xf32, #tpu.memory_space<vmem>>, vector<64x4xf32>,
    %c1_138 = arith.constant 1 : index
    %c0_139 = arith.constant 0 : index
    %c0_140 = arith.constant 0 : index
    %139 = vector.load %arg13[%c1_138, %c0_139, %c0_140] : memref<10x10x4xf32, #tpu.memory_space<vmem>>, vector<8x8x4xf32>
    %140 = vector.shape_cast %139 : vector<8x8x4xf32> to vector<64x4xf32>
    %c0_141 = arith.constant 0 : index
    %c12_142 = arith.constant 12 : index
    %141 = vector.load %arg15[%c0_141, %c12_142] : memref<64x36xf32, #tpu.memory_space<vmem>>, vector<64x4xf32>
    tpu.vector_store %arg15[%c0_141, %c12_142], %140 {strides = array<i32>} : memref<64x36xf32, #tpu.memory_space<vmem>>, vector<64x4xf32>,
    %c1_143 = arith.constant 1 : index
    %c1_144 = arith.constant 1 : index
    %c0_145 = arith.constant 0 : index
    %142 = vector.load %arg13[%c1_143, %c1_144, %c0_145] : memref<10x10x4xf32, #tpu.memory_space<vmem>>, vector<8x8x4xf32>
    %143 = vector.shape_cast %142 : vector<8x8x4xf32> to vector<64x4xf32>
    %c0_146 = arith.constant 0 : index
    %c16 = arith.constant 16 : index
    %144 = vector.load %arg15[%c0_146, %c16] : memref<64x36xf32, #tpu.memory_space<vmem>>, vector<64x4xf32>
    tpu.vector_store %arg15[%c0_146, %c16], %143 {strides = array<i32>} : memref<64x36xf32, #tpu.memory_space<vmem>>, vector<64x4xf32>,
    %c1_147 = arith.constant 1 : index
    %c2_148 = arith.constant 2 : index
    %c0_149 = arith.constant 0 : index
    %145 = vector.load %arg13[%c1_147, %c2_148, %c0_149] : memref<10x10x4xf32, #tpu.memory_space<vmem>>, vector<8x8x4xf32>
    %146 = vector.shape_cast %145 : vector<8x8x4xf32> to vector<64x4xf32>
    %c0_150 = arith.constant 0 : index
    %c20 = arith.constant 20 : index
    %147 = vector.load %arg15[%c0_150, %c20] : memref<64x36xf32, #tpu.memory_space<vmem>>, vector<64x4xf32>
    tpu.vector_store %arg15[%c0_150, %c20], %146 {strides = array<i32>} : memref<64x36xf32, #tpu.memory_space<vmem>>, vector<64x4xf32>,
    %c2_151 = arith.constant 2 : index
    %c0_152 = arith.constant 0 : index
    %c0_153 = arith.constant 0 : index
    %148 = vector.load %arg13[%c2_151, %c0_152, %c0_153] : memref<10x10x4xf32, #tpu.memory_space<vmem>>, vector<8x8x4xf32>
    %149 = vector.shape_cast %148 : vector<8x8x4xf32> to vector<64x4xf32>
    %c0_154 = arith.constant 0 : index
    %c24 = arith.constant 24 : index
    %150 = vector.load %arg15[%c0_154, %c24] : memref<64x36xf32, #tpu.memory_space<vmem>>, vector<64x4xf32>
    tpu.vector_store %arg15[%c0_154, %c24], %149 {strides = array<i32>} : memref<64x36xf32, #tpu.memory_space<vmem>>, vector<64x4xf32>,
    %c2_155 = arith.constant 2 : index
    %c1_156 = arith.constant 1 : index
    %c0_157 = arith.constant 0 : index
    %151 = vector.load %arg13[%c2_155, %c1_156, %c0_157] : memref<10x10x4xf32, #tpu.memory_space<vmem>>, vector<8x8x4xf32>
    %152 = vector.shape_cast %151 : vector<8x8x4xf32> to vector<64x4xf32>
    %c0_158 = arith.constant 0 : index
    %c28 = arith.constant 28 : index
    %153 = vector.load %arg15[%c0_158, %c28] : memref<64x36xf32, #tpu.memory_space<vmem>>, vector<64x4xf32>
    tpu.vector_store %arg15[%c0_158, %c28], %152 {strides = array<i32>} : memref<64x36xf32, #tpu.memory_space<vmem>>, vector<64x4xf32>,
    %c2_159 = arith.constant 2 : index
    %c2_160 = arith.constant 2 : index
    %c0_161 = arith.constant 0 : index
    %154 = vector.load %arg13[%c2_159, %c2_160, %c0_161] : memref<10x10x4xf32, #tpu.memory_space<vmem>>, vector<8x8x4xf32>
    %155 = vector.shape_cast %154 : vector<8x8x4xf32> to vector<64x4xf32>
    %c0_162 = arith.constant 0 : index
    %c32 = arith.constant 32 : index
    %156 = vector.load %arg15[%c0_162, %c32] : memref<64x36xf32, #tpu.memory_space<vmem>>, vector<64x4xf32>
    tpu.vector_store %arg15[%c0_162, %c32], %155 {strides = array<i32>} : memref<64x36xf32, #tpu.memory_space<vmem>>, vector<64x4xf32>,
    %c0_163 = arith.constant 0 : index
    %c0_164 = arith.constant 0 : index
    %157 = vector.load %arg15[%c0_163, %c0_164] : memref<64x36xf32, #tpu.memory_space<vmem>>, vector<64x36xf32>
    %c0_165 = arith.constant 0 : index
    %c0_166 = arith.constant 0 : index
    %158 = vector.load %arg4[%c0_165, %c0_166] : memref<36x8xf32, #tpu.memory_space<vmem>>, vector<36x8xf32>
    %cst_167 = arith.constant dense<0.000000e+00> : vector<64x8xf32>
    %159 = tpu.matmul %157, %158, %cst_167 {dimension_numbers = #tpu.dot_dimension_numbers<[1], [0], [0], [1], [0, 0, 1, 1], [], []>, precision = #tpu.contract_precision<fp32>} : vector<64x36xf32>, vector<36x8xf32>, vector<64x8xf32> -> vector<64x8xf32>
    %c0_168 = arith.constant 0 : index
    %c0_169 = arith.constant 0 : index
    %160 = vector.load %arg5[%c0_168, %c0_169] : memref<1x8xf32, #tpu.memory_space<vmem>>, vector<1x8xf32>
    %161 = vector.broadcast %160 : vector<1x8xf32> to vector<64x8xf32>
    %162 = arith.mulf %159, %161 : vector<64x8xf32>
    %c0_170 = arith.constant 0 : index
    %c0_171 = arith.constant 0 : index
    %163 = vector.load %arg6[%c0_170, %c0_171] : memref<1x8xf32, #tpu.memory_space<vmem>>, vector<1x8xf32>
    %164 = vector.broadcast %163 : vector<1x8xf32> to vector<64x8xf32>
    %165 = arith.addf %162, %164 : vector<64x8xf32>
    %cst_172 = arith.constant 0.000000e+00 : f32
    %166 = vector.broadcast %cst_172 : f32 to vector<64x8xf32>
    %167 = arith.cmpf ogt, %165, %166 : vector<64x8xf32>
    %c0_173 = arith.constant 0 : index
    %c0_174 = arith.constant 0 : index
    %168 = vector.load %arg7[%c0_173, %c0_174] : memref<1x8xf32, #tpu.memory_space<vmem>>, vector<1x8xf32>
    %169 = vector.broadcast %168 : vector<1x8xf32> to vector<64x8xf32>
    %170 = arith.mulf %169, %165 : vector<64x8xf32>
    %171 = arith.select %167, %165, %170 : vector<64x8xi1>, vector<64x8xf32>
    %172 = vector.shape_cast %171 : vector<64x8xf32> to vector<8x8x8xf32>
    %c1_175 = arith.constant 1 : index
    %c1_176 = arith.constant 1 : index
    %c0_177 = arith.constant 0 : index
    %173 = vector.load %arg14[%c1_175, %c1_176, %c0_177] : memref<10x10x8xf32, #tpu.memory_space<vmem>>, vector<8x8x8xf32>
    tpu.vector_store %arg14[%c1_175, %c1_176, %c0_177], %172 {strides = array<i32>} : memref<10x10x8xf32, #tpu.memory_space<vmem>>, vector<8x8x8xf32>,
    %c0_178 = arith.constant 0 : index
    %c0_179 = arith.constant 0 : index
    %c0_180 = arith.constant 0 : index
    %174 = vector.load %arg14[%c0_178, %c0_179, %c0_180] : memref<10x10x8xf32, #tpu.memory_space<vmem>>, vector<8x8x8xf32>
    %175 = vector.shape_cast %174 : vector<8x8x8xf32> to vector<64x8xf32>
    %c0_181 = arith.constant 0 : index
    %c0_182 = arith.constant 0 : index
    %176 = vector.load %arg16[%c0_181, %c0_182] : memref<64x72xf32, #tpu.memory_space<vmem>>, vector<64x8xf32>
    tpu.vector_store %arg16[%c0_181, %c0_182], %175 {strides = array<i32>} : memref<64x72xf32, #tpu.memory_space<vmem>>, vector<64x8xf32>,
    %c0_183 = arith.constant 0 : index
    %c1_184 = arith.constant 1 : index
    %c0_185 = arith.constant 0 : index
    %177 = vector.load %arg14[%c0_183, %c1_184, %c0_185] : memref<10x10x8xf32, #tpu.memory_space<vmem>>, vector<8x8x8xf32>
    %178 = vector.shape_cast %177 : vector<8x8x8xf32> to vector<64x8xf32>
    %c0_186 = arith.constant 0 : index
    %c8_187 = arith.constant 8 : index
    %179 = vector.load %arg16[%c0_186, %c8_187] : memref<64x72xf32, #tpu.memory_space<vmem>>, vector<64x8xf32>
    tpu.vector_store %arg16[%c0_186, %c8_187], %178 {strides = array<i32>} : memref<64x72xf32, #tpu.memory_space<vmem>>, vector<64x8xf32>,
    %c0_188 = arith.constant 0 : index
    %c2_189 = arith.constant 2 : index
    %c0_190 = arith.constant 0 : index
    %180 = vector.load %arg14[%c0_188, %c2_189, %c0_190] : memref<10x10x8xf32, #tpu.memory_space<vmem>>, vector<8x8x8xf32>
    %181 = vector.shape_cast %180 : vector<8x8x8xf32> to vector<64x8xf32>
    %c0_191 = arith.constant 0 : index
    %c16_192 = arith.constant 16 : index
    %182 = vector.load %arg16[%c0_191, %c16_192] : memref<64x72xf32, #tpu.memory_space<vmem>>, vector<64x8xf32>
    tpu.vector_store %arg16[%c0_191, %c16_192], %181 {strides = array<i32>} : memref<64x72xf32, #tpu.memory_space<vmem>>, vector<64x8xf32>,
    %c1_193 = arith.constant 1 : index
    %c0_194 = arith.constant 0 : index
    %c0_195 = arith.constant 0 : index
    %183 = vector.load %arg14[%c1_193, %c0_194, %c0_195] : memref<10x10x8xf32, #tpu.memory_space<vmem>>, vector<8x8x8xf32>
    %184 = vector.shape_cast %183 : vector<8x8x8xf32> to vector<64x8xf32>
    %c0_196 = arith.constant 0 : index
    %c24_197 = arith.constant 24 : index
    %185 = vector.load %arg16[%c0_196, %c24_197] : memref<64x72xf32, #tpu.memory_space<vmem>>, vector<64x8xf32>
    tpu.vector_store %arg16[%c0_196, %c24_197], %184 {strides = array<i32>} : memref<64x72xf32, #tpu.memory_space<vmem>>, vector<64x8xf32>,
    %c1_198 = arith.constant 1 : index
    %c1_199 = arith.constant 1 : index
    %c0_200 = arith.constant 0 : index
    %186 = vector.load %arg14[%c1_198, %c1_199, %c0_200] : memref<10x10x8xf32, #tpu.memory_space<vmem>>, vector<8x8x8xf32>
    %187 = vector.shape_cast %186 : vector<8x8x8xf32> to vector<64x8xf32>
    %c0_201 = arith.constant 0 : index
    %c32_202 = arith.constant 32 : index
    %188 = vector.load %arg16[%c0_201, %c32_202] : memref<64x72xf32, #tpu.memory_space<vmem>>, vector<64x8xf32>
    tpu.vector_store %arg16[%c0_201, %c32_202], %187 {strides = array<i32>} : memref<64x72xf32, #tpu.memory_space<vmem>>, vector<64x8xf32>,
    %c1_203 = arith.constant 1 : index
    %c2_204 = arith.constant 2 : index
    %c0_205 = arith.constant 0 : index
    %189 = vector.load %arg14[%c1_203, %c2_204, %c0_205] : memref<10x10x8xf32, #tpu.memory_space<vmem>>, vector<8x8x8xf32>
    %190 = vector.shape_cast %189 : vector<8x8x8xf32> to vector<64x8xf32>
    %c0_206 = arith.constant 0 : index
    %c40 = arith.constant 40 : index
    %191 = vector.load %arg16[%c0_206, %c40] : memref<64x72xf32, #tpu.memory_space<vmem>>, vector<64x8xf32>
    tpu.vector_store %arg16[%c0_206, %c40], %190 {strides = array<i32>} : memref<64x72xf32, #tpu.memory_space<vmem>>, vector<64x8xf32>,
    %c2_207 = arith.constant 2 : index
    %c0_208 = arith.constant 0 : index
    %c0_209 = arith.constant 0 : index
    %192 = vector.load %arg14[%c2_207, %c0_208, %c0_209] : memref<10x10x8xf32, #tpu.memory_space<vmem>>, vector<8x8x8xf32>
    %193 = vector.shape_cast %192 : vector<8x8x8xf32> to vector<64x8xf32>
    %c0_210 = arith.constant 0 : index
    %c48 = arith.constant 48 : index
    %194 = vector.load %arg16[%c0_210, %c48] : memref<64x72xf32, #tpu.memory_space<vmem>>, vector<64x8xf32>
    tpu.vector_store %arg16[%c0_210, %c48], %193 {strides = array<i32>} : memref<64x72xf32, #tpu.memory_space<vmem>>, vector<64x8xf32>,
    %c2_211 = arith.constant 2 : index
    %c1_212 = arith.constant 1 : index
    %c0_213 = arith.constant 0 : index
    %195 = vector.load %arg14[%c2_211, %c1_212, %c0_213] : memref<10x10x8xf32, #tpu.memory_space<vmem>>, vector<8x8x8xf32>
    %196 = vector.shape_cast %195 : vector<8x8x8xf32> to vector<64x8xf32>
    %c0_214 = arith.constant 0 : index
    %c56 = arith.constant 56 : index
    %197 = vector.load %arg16[%c0_214, %c56] : memref<64x72xf32, #tpu.memory_space<vmem>>, vector<64x8xf32>
    tpu.vector_store %arg16[%c0_214, %c56], %196 {strides = array<i32>} : memref<64x72xf32, #tpu.memory_space<vmem>>, vector<64x8xf32>,
    %c2_215 = arith.constant 2 : index
    %c2_216 = arith.constant 2 : index
    %c0_217 = arith.constant 0 : index
    %198 = vector.load %arg14[%c2_215, %c2_216, %c0_217] : memref<10x10x8xf32, #tpu.memory_space<vmem>>, vector<8x8x8xf32>
    %199 = vector.shape_cast %198 : vector<8x8x8xf32> to vector<64x8xf32>
    %c0_218 = arith.constant 0 : index
    %c64 = arith.constant 64 : index
    %200 = vector.load %arg16[%c0_218, %c64] : memref<64x72xf32, #tpu.memory_space<vmem>>, vector<64x8xf32>
    tpu.vector_store %arg16[%c0_218, %c64], %199 {strides = array<i32>} : memref<64x72xf32, #tpu.memory_space<vmem>>, vector<64x8xf32>,
    %c0_219 = arith.constant 0 : index
    %c0_220 = arith.constant 0 : index
    %201 = vector.load %arg16[%c0_219, %c0_220] : memref<64x72xf32, #tpu.memory_space<vmem>>, vector<64x72xf32>
    %c0_221 = arith.constant 0 : index
    %c0_222 = arith.constant 0 : index
    %202 = vector.load %arg8[%c0_221, %c0_222] : memref<72x8xf32, #tpu.memory_space<vmem>>, vector<72x8xf32>
    %cst_223 = arith.constant dense<0.000000e+00> : vector<64x8xf32>
    %203 = tpu.matmul %201, %202, %cst_223 {dimension_numbers = #tpu.dot_dimension_numbers<[1], [0], [0], [1], [0, 0, 1, 1], [], []>, precision = #tpu.contract_precision<fp32>} : vector<64x72xf32>, vector<72x8xf32>, vector<64x8xf32> -> vector<64x8xf32>
    %c0_224 = arith.constant 0 : index
    %c0_225 = arith.constant 0 : index
    %204 = vector.load %arg9[%c0_224, %c0_225] : memref<1x8xf32, #tpu.memory_space<vmem>>, vector<1x8xf32>
    %205 = vector.broadcast %204 : vector<1x8xf32> to vector<64x8xf32>
    %206 = arith.mulf %203, %205 : vector<64x8xf32>
    %c0_226 = arith.constant 0 : index
    %c0_227 = arith.constant 0 : index
    %207 = vector.load %arg10[%c0_226, %c0_227] : memref<1x8xf32, #tpu.memory_space<vmem>>, vector<1x8xf32>
    %208 = vector.broadcast %207 : vector<1x8xf32> to vector<64x8xf32>
    %209 = arith.addf %206, %208 : vector<64x8xf32>
    %cst_228 = arith.constant 0.000000e+00 : f32
    %210 = vector.broadcast %cst_228 : f32 to vector<64x8xf32>
    %211 = arith.cmpf ogt, %209, %210 : vector<64x8xf32>
    %c0_229 = arith.constant 0 : index
    %c0_230 = arith.constant 0 : index
    %212 = vector.load %arg11[%c0_229, %c0_230] : memref<1x8xf32, #tpu.memory_space<vmem>>, vector<1x8xf32>
    %213 = vector.broadcast %212 : vector<1x8xf32> to vector<64x8xf32>
    %214 = arith.mulf %213, %209 : vector<64x8xf32>
    %215 = arith.select %211, %209, %214 : vector<64x8xi1>, vector<64x8xf32>
    %216 = tpu.transpose %215, [1, 0] : vector<64x8xf32> -> vector<8x64xf32>
    %c0_231 = arith.constant 0 : index
    %c0_232 = arith.constant 0 : index
    %c0_233 = arith.constant 0 : index
    %217 = vector.load %arg12[%c0_231, %c0_232, %c0_233] : memref<1x8x64xf32, #tpu.memory_space<vmem>>, vector<1x8x64xf32>
    %218 = vector.shape_cast %217 : vector<1x8x64xf32> to vector<8x64xf32>
    %219 = vector.shape_cast %216 : vector<8x64xf32> to vector<1x8x64xf32>
    tpu.vector_store %arg12[%c0_231, %c0_232, %c0_233], %219 {strides = array<i32>} : memref<1x8x64xf32, #tpu.memory_space<vmem>>, vector<1x8x64xf32>,
    return
  }
  func.func @transform_0(%arg0: i32) -> (i32, i32, i32, i32) {
    %c0_i32 = arith.constant 0 : i32
    %c0_i32_0 = arith.constant 0 : i32
    %c0_i32_1 = arith.constant 0 : i32
    %c0_i32_2 = arith.constant 0 : i32
    return %arg0, %c0_i32, %c0_i32_0, %c0_i32_1 : i32, i32, i32, i32
  }
  func.func @transform_1(%arg0: i32) -> (i32, i32) {
    %c0_i32 = arith.constant 0 : i32
    %c0_i32_0 = arith.constant 0 : i32
    %c0_i32_1 = arith.constant 0 : i32
    return %c0_i32, %c0_i32_0 : i32, i32
  }
  func.func @transform_2(%arg0: i32) -> (i32, i32) {
    %c0_i32 = arith.constant 0 : i32
    %c0_i32_0 = arith.constant 0 : i32
    %c0_i32_1 = arith.constant 0 : i32
    return %c0_i32, %c0_i32_0 : i32, i32
  }
  func.func @transform_3(%arg0: i32) -> (i32, i32) {
    %c0_i32 = arith.constant 0 : i32
    %c0_i32_0 = arith.constant 0 : i32
    %c0_i32_1 = arith.constant 0 : i32
    return %c0_i32, %c0_i32_0 : i32, i32
  }
  func.func @transform_4(%arg0: i32) -> (i32, i32) {
    %c0_i32 = arith.constant 0 : i32
    %c0_i32_0 = arith.constant 0 : i32
    %c0_i32_1 = arith.constant 0 : i32
    return %c0_i32, %c0_i32_0 : i32, i32
  }
  func.func @transform_5(%arg0: i32) -> (i32, i32) {
    %c0_i32 = arith.constant 0 : i32
    %c0_i32_0 = arith.constant 0 : i32
    %c0_i32_1 = arith.constant 0 : i32
    return %c0_i32, %c0_i32_0 : i32, i32
  }
  func.func @transform_6(%arg0: i32) -> (i32, i32) {
    %c0_i32 = arith.constant 0 : i32
    %c0_i32_0 = arith.constant 0 : i32
    %c0_i32_1 = arith.constant 0 : i32
    return %c0_i32, %c0_i32_0 : i32, i32
  }
  func.func @transform_7(%arg0: i32) -> (i32, i32) {
    %c0_i32 = arith.constant 0 : i32
    %c0_i32_0 = arith.constant 0 : i32
    %c0_i32_1 = arith.constant 0 : i32
    return %c0_i32, %c0_i32_0 : i32, i32
  }
  func.func @transform_8(%arg0: i32) -> (i32, i32) {
    %c0_i32 = arith.constant 0 : i32
    %c0_i32_0 = arith.constant 0 : i32
    %c0_i32_1 = arith.constant 0 : i32
    return %c0_i32, %c0_i32_0 : i32, i32
  }
  func.func @transform_9(%arg0: i32) -> (i32, i32) {
    %c0_i32 = arith.constant 0 : i32
    %c0_i32_0 = arith.constant 0 : i32
    %c0_i32_1 = arith.constant 0 : i32
    return %c0_i32, %c0_i32_0 : i32, i32
  }
  func.func @transform_10(%arg0: i32) -> (i32, i32) {
    %c0_i32 = arith.constant 0 : i32
    %c0_i32_0 = arith.constant 0 : i32
    %c0_i32_1 = arith.constant 0 : i32
    return %c0_i32, %c0_i32_0 : i32, i32
  }
  func.func @transform_11(%arg0: i32) -> (i32, i32, i32) {
    %c0_i32 = arith.constant 0 : i32
    %c0_i32_0 = arith.constant 0 : i32
    %c0_i32_1 = arith.constant 0 : i32
    return %arg0, %c0_i32, %c0_i32_0 : i32, i32, i32
  }
}

</mosaic_0001>

<llo_original>
// kernel: down_forward.1
$region0: #{down_forward.1}
  #allocation0 [shape = 'u32[]', space=smem, size = 0x4, offset = 0x4, fixed_abs, tag = 'smem constant byte address 0x4 - core index']
  #allocation1 [shape = 'u32[144,128]{1,0:T(1,128)}', space=vmem, size = 0x12000, scoped, tag = 'internal scratch']
  #allocation2 [shape = 'f32[10,10,4]{2,1,0:T(8,128)}', space=vmem, size = 0x14000, scoped, tag = 'scratch operand']
  #allocation3 [shape = 'f32[10,10,8]{2,1,0:T(8,128)}', space=vmem, size = 0x14000, scoped, tag = 'scratch operand']
  #allocation4 [shape = 'f32[64,36]{1,0:T(8,128)}', space=vmem, size = 0x8000, scoped, tag = 'scratch operand']
  #allocation5 [shape = 'f32[64,72]{1,0:T(8,128)}', space=vmem, size = 0x8000, scoped, tag = 'scratch operand']
  %s0 = inlined_call_operand.vmem [shape: f32[2,4,16,16], index: 0, kind: input, shape index: {}]
  %s1 = inlined_call_operand.vmem [shape: f32[16,8], index: 1, kind: input, shape index: {}]
  %s2 = inlined_call_operand.vmem [shape: f32[16,8], index: 2, kind: input, shape index: {}]
  %s3 = inlined_call_operand.vmem [shape: f32[36,8], index: 3, kind: input, shape index: {}]
  %s4 = inlined_call_operand.vmem [shape: f32[1,8], index: 4, kind: input, shape index: {}]
  %s5 = inlined_call_operand.vmem [shape: f32[1,8], index: 5, kind: input, shape index: {}]
  %s6 = inlined_call_operand.vmem [shape: f32[1,8], index: 6, kind: input, shape index: {}]
  %s7 = inlined_call_operand.vmem [shape: f32[72,8], index: 7, kind: input, shape index: {}]
  %s8 = inlined_call_operand.vmem [shape: f32[1,8], index: 8, kind: input, shape index: {}]
  %s9 = inlined_call_operand.vmem [shape: f32[1,8], index: 9, kind: input, shape index: {}]
  %s10 = inlined_call_operand.vmem [shape: f32[1,8], index: 10, kind: input, shape index: {}]
  %s11 = inlined_call_operand.vmem [shape: f32[2,8,64], index: 11, kind: output, shape index: {}]
  %s12 = sld [smem:[#allocation0]]
  $region77: #{down_forward.1} parent=0
    _
  %s14 = ssub.s32 1, %s12
  %s15 = scalar_select 0, %s14, %s12
  loop: start=0, step=1, limit=4
  $region2: #{down_forward.1} parent=0 // loop_pre_header
    _
  $region3: #{down_forward.1} parent=0 // loop_header
    %s17 = sphi 0, %s21
    %p18 = scmp.ge.s32.totalorder %s17, 4
    %s27 = sphi 0, %s29
    %s30 = sphi 0, %s27
    %s31 = sphi 0, %s30
    %s47 = sphi 0, %s31
    %s51 = sphi 0, %s51
    %s53 = sphi 0, %s51
    %s54 = sphi 0, %s53
    %s68 = sphi 0, %s54
    %s72 = sphi 0, %s72
    %s74 = sphi 0, %s72
    %s75 = sphi 0, %s74
    %s89 = sphi 0, %s75
    %s93 = sphi 0, %s93
    %s95 = sphi 0, %s93
    %s96 = sphi 0, %s95
    %s110 = sphi 0, %s96
    %s114 = sphi 0, %s114
    %s116 = sphi 0, %s114
    %s117 = sphi 0, %s116
    %s131 = sphi 0, %s117
    %s135 = sphi 0, %s135
    %s137 = sphi 0, %s135
    %s138 = sphi 0, %s137
    %s152 = sphi 0, %s138
    %s156 = sphi 0, %s156
    %s158 = sphi 0, %s156
    %s159 = sphi 0, %s158
    %s173 = sphi 0, %s159
    %s177 = sphi 0, %s177
    %s179 = sphi 0, %s177
    %s180 = sphi 0, %s179
    %s194 = sphi 0, %s180
    %s198 = sphi 0, %s198
    %s200 = sphi 0, %s198
    %s201 = sphi 0, %s200
    %s215 = sphi 0, %s201
    %s219 = sphi 0, %s219
    %s221 = sphi 0, %s219
    %s222 = sphi 0, %s221
    %s236 = sphi 0, %s222
    %s240 = sphi 0, %s240
    %s242 = sphi 0, %s240
    %s243 = sphi 0, %s242
    %s257 = sphi 0, %s243
    %s263 = sphi 0, %s265
    %s266 = sphi 0, %s263
    %s267 = sphi 0, %s266
    %s283 = sphi 0, %s267
  $region4: #{down_forward.1} parent=0 // loop_header_branch
    %20 = sbr.rel (%p18) target = $region8
  $region5: #{down_forward.1} parent=0 // loop_body
    %s22 = ssub.s32 %s17, 1
    %s23 = ssub.s32 %s17, 2
    %s24 = sadd.s32 %s17, 1
    %s25 = ssub.s32 %s17, %s24
    %p26 = scmp.eq.s32.totalorder %s25, 0
    %s28 = sadd.s32 %s27, 1
    %s29 = scalar_select %p26, %s27, %s28
    %p32 = pneg %p26
    %p33 = scmp.eq.s32.totalorder %s17, 1
    %p34 = por %p32, %p33
    %p35 = scmp.ne.s32.totalorder %s27, %s30
    %p36 = scmp.eq.s32.totalorder %s17, 0
    %p37 = por %p35, %p36
    %p38 = scmp.ne.s32.totalorder %s27, %s30
    %p39 = scmp.eq.s32.totalorder %s22, 1
    %p40 = por %p38, %p39
    %p41 = scmp.ne.s32.totalorder %s30, %s31
    %p42 = scmp.eq.s32.totalorder %s22, 0
    %p43 = por %p41, %p42
    %p44 = scmp.ne.s32.totalorder %s30, %s31
    %p45 = scmp.eq.s32.totalorder %s23, 1
    %p46 = por %p44, %p45
    %p48 = scmp.ne.s32.totalorder %s31, %s47
    %p49 = scmp.eq.s32.totalorder %s23, 0
    %p50 = por %p48, %p49
    %s52 = sadd.s32 %s51, 1
    %p55 = scmp.eq.s32.totalorder %s17, 1
    %p56 = scmp.ne.s32.totalorder %s51, %s53
    %p57 = scmp.eq.s32.totalorder %s17, 0
    %p58 = por %p56, %p57
    %p59 = scmp.ne.s32.totalorder %s51, %s53
    %p60 = scmp.eq.s32.totalorder %s22, 1
    %p61 = por %p59, %p60
    %p62 = scmp.ne.s32.totalorder %s53, %s54
    %p63 = scmp.eq.s32.totalorder %s22, 0
    %p64 = por %p62, %p63
    %p65 = scmp.ne.s32.totalorder %s53, %s54
    %p66 = scmp.eq.s32.totalorder %s23, 1
    %p67 = por %p65, %p66
    %p69 = scmp.ne.s32.totalorder %s54, %s68
    %p70 = scmp.eq.s32.totalorder %s23, 0
    %p71 = por %p69, %p70
    %s73 = sadd.s32 %s72, 1
    %p76 = scmp.eq.s32.totalorder %s17, 1
    %p77 = scmp.ne.s32.totalorder %s72, %s74
    %p78 = scmp.eq.s32.totalorder %s17, 0
    %p79 = por %p77, %p78
    %p80 = scmp.ne.s32.totalorder %s72, %s74
    %p81 = scmp.eq.s32.totalorder %s22, 1
    %p82 = por %p80, %p81
    %p83 = scmp.ne.s32.totalorder %s74, %s75
    %p84 = scmp.eq.s32.totalorder %s22, 0
    %p85 = por %p83, %p84
    %p86 = scmp.ne.s32.totalorder %s74, %s75
    %p87 = scmp.eq.s32.totalorder %s23, 1
    %p88 = por %p86, %p87
    %p90 = scmp.ne.s32.totalorder %s75, %s89
    %p91 = scmp.eq.s32.totalorder %s23, 0
    %p92 = por %p90, %p91
    %s94 = sadd.s32 %s93, 1
    %p97 = scmp.eq.s32.totalorder %s17, 1
    %p98 = scmp.ne.s32.totalorder %s93, %s95
    %p99 = scmp.eq.s32.totalorder %s17, 0
    %p100 = por %p98, %p99
    %p101 = scmp.ne.s32.totalorder %s93, %s95
    %p102 = scmp.eq.s32.totalorder %s22, 1
    %p103 = por %p101, %p102
    %p104 = scmp.ne.s32.totalorder %s95, %s96
    %p105 = scmp.eq.s32.totalorder %s22, 0
    %p106 = por %p104, %p105
    %p107 = scmp.ne.s32.totalorder %s95, %s96
    %p108 = scmp.eq.s32.totalorder %s23, 1
    %p109 = por %p107, %p108
    %p111 = scmp.ne.s32.totalorder %s96, %s110
    %p112 = scmp.eq.s32.totalorder %s23, 0
    %p113 = por %p111, %p112
    %s115 = sadd.s32 %s114, 1
    %p118 = scmp.eq.s32.totalorder %s17, 1
    %p119 = scmp.ne.s32.totalorder %s114, %s116
    %p120 = scmp.eq.s32.totalorder %s17, 0
    %p121 = por %p119, %p120
    %p122 = scmp.ne.s32.totalorder %s114, %s116
    %p123 = scmp.eq.s32.totalorder %s22, 1
    %p124 = por %p122, %p123
    %p125 = scmp.ne.s32.totalorder %s116, %s117
    %p126 = scmp.eq.s32.totalorder %s22, 0
    %p127 = por %p125, %p126
    %p128 = scmp.ne.s32.totalorder %s116, %s117
    %p129 = scmp.eq.s32.totalorder %s23, 1
    %p130 = por %p128, %p129
    %p132 = scmp.ne.s32.totalorder %s117, %s131
    %p133 = scmp.eq.s32.totalorder %s23, 0
    %p134 = por %p132, %p133
    %s136 = sadd.s32 %s135, 1
    %p139 = scmp.eq.s32.totalorder %s17, 1
    %p140 = scmp.ne.s32.totalorder %s135, %s137
    %p141 = scmp.eq.s32.totalorder %s17, 0
    %p142 = por %p140, %p141
    %p143 = scmp.ne.s32.totalorder %s135, %s137
    %p144 = scmp.eq.s32.totalorder %s22, 1
    %p145 = por %p143, %p144
    %p146 = scmp.ne.s32.totalorder %s137, %s138
    %p147 = scmp.eq.s32.totalorder %s22, 0
    %p148 = por %p146, %p147
    %p149 = scmp.ne.s32.totalorder %s137, %s138
    %p150 = scmp.eq.s32.totalorder %s23, 1
    %p151 = por %p149, %p150
    %p153 = scmp.ne.s32.totalorder %s138, %s152
    %p154 = scmp.eq.s32.totalorder %s23, 0
    %p155 = por %p153, %p154
    %s157 = sadd.s32 %s156, 1
    %p160 = scmp.eq.s32.totalorder %s17, 1
    %p161 = scmp.ne.s32.totalorder %s156, %s158
    %p162 = scmp.eq.s32.totalorder %s17, 0
    %p163 = por %p161, %p162
    %p164 = scmp.ne.s32.totalorder %s156, %s158
    %p165 = scmp.eq.s32.totalorder %s22, 1
    %p166 = por %p164, %p165
    %p167 = scmp.ne.s32.totalorder %s158, %s159
    %p168 = scmp.eq.s32.totalorder %s22, 0
    %p169 = por %p167, %p168
    %p170 = scmp.ne.s32.totalorder %s158, %s159
    %p171 = scmp.eq.s32.totalorder %s23, 1
    %p172 = por %p170, %p171
    %p174 = scmp.ne.s32.totalorder %s159, %s173
    %p175 = scmp.eq.s32.totalorder %s23, 0
    %p176 = por %p174, %p175
    %s178 = sadd.s32 %s177, 1
    %p181 = scmp.eq.s32.totalorder %s17, 1
    %p182 = scmp.ne.s32.totalorder %s177, %s179
    %p183 = scmp.eq.s32.totalorder %s17, 0
    %p184 = por %p182, %p183
    %p185 = scmp.ne.s32.totalorder %s177, %s179
    %p186 = scmp.eq.s32.totalorder %s22, 1
    %p187 = por %p185, %p186
    %p188 = scmp.ne.s32.totalorder %s179, %s180
    %p189 = scmp.eq.s32.totalorder %s22, 0
    %p190 = por %p188, %p189
    %p191 = scmp.ne.s32.totalorder %s179, %s180
    %p192 = scmp.eq.s32.totalorder %s23, 1
    %p193 = por %p191, %p192
    %p195 = scmp.ne.s32.totalorder %s180, %s194
    %p196 = scmp.eq.s32.totalorder %s23, 0
    %p197 = por %p195, %p196
    %s199 = sadd.s32 %s198, 1
    %p202 = scmp.eq.s32.totalorder %s17, 1
    %p203 = scmp.ne.s32.totalorder %s198, %s200
    %p204 = scmp.eq.s32.totalorder %s17, 0
    %p205 = por %p203, %p204
    %p206 = scmp.ne.s32.totalorder %s198, %s200
    %p207 = scmp.eq.s32.totalorder %s22, 1
    %p208 = por %p206, %p207
    %p209 = scmp.ne.s32.totalorder %s200, %s201
    %p210 = scmp.eq.s32.totalorder %s22, 0
    %p211 = por %p209, %p210
    %p212 = scmp.ne.s32.totalorder %s200, %s201
    %p213 = scmp.eq.s32.totalorder %s23, 1
    %p214 = por %p212, %p213
    %p216 = scmp.ne.s32.totalorder %s201, %s215
    %p217 = scmp.eq.s32.totalorder %s23, 0
    %p218 = por %p216, %p217
    %s220 = sadd.s32 %s219, 1
    %p223 = scmp.eq.s32.totalorder %s17, 1
    %p224 = scmp.ne.s32.totalorder %s219, %s221
    %p225 = scmp.eq.s32.totalorder %s17, 0
    %p226 = por %p224, %p225
    %p227 = scmp.ne.s32.totalorder %s219, %s221
    %p228 = scmp.eq.s32.totalorder %s22, 1
    %p229 = por %p227, %p228
    %p230 = scmp.ne.s32.totalorder %s221, %s222
    %p231 = scmp.eq.s32.totalorder %s22, 0
    %p232 = por %p230, %p231
    %p233 = scmp.ne.s32.totalorder %s221, %s222
    %p234 = scmp.eq.s32.totalorder %s23, 1
    %p235 = por %p233, %p234
    %p237 = scmp.ne.s32.totalorder %s222, %s236
    %p238 = scmp.eq.s32.totalorder %s23, 0
    %p239 = por %p237, %p238
    %s241 = sadd.s32 %s240, 1
    %p244 = scmp.eq.s32.totalorder %s17, 1
    %p245 = scmp.ne.s32.totalorder %s240, %s242
    %p246 = scmp.eq.s32.totalorder %s17, 0
    %p247 = por %p245, %p246
    %p248 = scmp.ne.s32.totalorder %s240, %s242
    %p249 = scmp.eq.s32.totalorder %s22, 1
    %p250 = por %p248, %p249
    %p251 = scmp.ne.s32.totalorder %s242, %s243
    %p252 = scmp.eq.s32.totalorder %s22, 0
    %p253 = por %p251, %p252
    %p254 = scmp.ne.s32.totalorder %s242, %s243
    %p255 = scmp.eq.s32.totalorder %s23, 1
    %p256 = por %p254, %p255
    %p258 = scmp.ne.s32.totalorder %s243, %s257
    %p259 = scmp.eq.s32.totalorder %s23, 0
    %p260 = por %p258, %p259
    %s261 = ssub.s32 %s17, %s24
    %p262 = scmp.eq.s32.totalorder %s261, 0
    %s264 = sadd.s32 %s263, 1
    %s265 = scalar_select %p262, %s263, %s264
    %p268 = pneg %p262
    %p269 = scmp.eq.s32.totalorder %s17, 1
    %p270 = por %p268, %p269
    %p271 = scmp.ne.s32.totalorder %s263, %s266
    %p272 = scmp.eq.s32.totalorder %s17, 0
    %p273 = por %p271, %p272
    %p274 = scmp.ne.s32.totalorder %s263, %s266
    %p275 = scmp.eq.s32.totalorder %s22, 1
    %p276 = por %p274, %p275
    %p277 = scmp.ne.s32.totalorder %s266, %s267
    %p278 = scmp.eq.s32.totalorder %s22, 0
    %p279 = por %p277, %p278
    %p280 = scmp.ne.s32.totalorder %s266, %s267
    %p281 = scmp.eq.s32.totalorder %s23, 1
    %p282 = por %p280, %p281
    %p284 = scmp.ne.s32.totalorder %s267, %s283
    %p285 = scmp.eq.s32.totalorder %s23, 0
    %p286 = por %p284, %p285
    %p287 = scmp.le.s32.totalorder 1, %s17
    %p288 = scmp.lt.s32.totalorder %s17, 3
    %p289 = pnand %p287, %p288
    %p290 = pneg %p289
    // Predicated region
    $region9: #{down_forward.1} parent=5 // pred_check
      _
    $region10: #{down_forward.1} parent=5 // pred_check_branch
      %292 = sbr.rel (%p289) target = $region12
    $region11: #{down_forward.1} parent=5 // pred_region
      %s293 = ssub.s32 %s17, 1
      // Predicated region
      $region13: #{down_forward.1} parent=11 // pred_check
        %p294 = pneg %p64
      $region14: #{down_forward.1} parent=11 // pred_check_branch
        %296 = sbr.rel (%p294) target = $region16
      $region15: #{down_forward.1} parent=11 // pred_region
        _
      $region16: #{down_forward.1} parent=11 // pred_fallthru
        _
      // Predicated region
      $region17: #{down_forward.1} parent=11 // pred_check
        %p297 = pneg %p85
      $region18: #{down_forward.1} parent=11 // pred_check_branch
        %299 = sbr.rel (%p297) target = $region20
      $region19: #{down_forward.1} parent=11 // pred_region
        _
      $region20: #{down_forward.1} parent=11 // pred_fallthru
        _
      // Predicated region
      $region21: #{down_forward.1} parent=11 // pred_check
        %p300 = pneg %p106
      $region22: #{down_forward.1} parent=11 // pred_check_branch
        %302 = sbr.rel (%p300) target = $region24
      $region23: #{down_forward.1} parent=11 // pred_region
        _
      $region24: #{down_forward.1} parent=11 // pred_fallthru
        _
      // Predicated region
      $region25: #{down_forward.1} parent=11 // pred_check
        %p303 = pneg %p127
      $region26: #{down_forward.1} parent=11 // pred_check_branch
        %305 = sbr.rel (%p303) target = $region28
      $region27: #{down_forward.1} parent=11 // pred_region
        _
      $region28: #{down_forward.1} parent=11 // pred_fallthru
        _
      // Predicated region
      $region29: #{down_forward.1} parent=11 // pred_check
        %p306 = pneg %p148
      $region30: #{down_forward.1} parent=11 // pred_check_branch
        %308 = sbr.rel (%p306) target = $region32
      $region31: #{down_forward.1} parent=11 // pred_region
        _
      $region32: #{down_forward.1} parent=11 // pred_fallthru
        _
      // Predicated region
      $region33: #{down_forward.1} parent=11 // pred_check
        %p309 = pneg %p169
      $region34: #{down_forward.1} parent=11 // pred_check_branch
        %311 = sbr.rel (%p309) target = $region36
      $region35: #{down_forward.1} parent=11 // pred_region
        _
      $region36: #{down_forward.1} parent=11 // pred_fallthru
        _
      // Predicated region
      $region37: #{down_forward.1} parent=11 // pred_check
        %p312 = pneg %p190
      $region38: #{down_forward.1} parent=11 // pred_check_branch
        %314 = sbr.rel (%p312) target = $region40
      $region39: #{down_forward.1} parent=11 // pred_region
        _
      $region40: #{down_forward.1} parent=11 // pred_fallthru
        _
      // Predicated region
      $region41: #{down_forward.1} parent=11 // pred_check
        %p315 = pneg %p211
      $region42: #{down_forward.1} parent=11 // pred_check_branch
        %317 = sbr.rel (%p315) target = $region44
      $region43: #{down_forward.1} parent=11 // pred_region
        _
      $region44: #{down_forward.1} parent=11 // pred_fallthru
        _
      // Predicated region
      $region45: #{down_forward.1} parent=11 // pred_check
        %p318 = pneg %p232
      $region46: #{down_forward.1} parent=11 // pred_check_branch
        %320 = sbr.rel (%p318) target = $region48
      $region47: #{down_forward.1} parent=11 // pred_region
        _
      $region48: #{down_forward.1} parent=11 // pred_fallthru
        _
      // Predicated region
      $region49: #{down_forward.1} parent=11 // pred_check
        %p321 = pneg %p253
      $region50: #{down_forward.1} parent=11 // pred_check_branch
        %323 = sbr.rel (%p321) target = $region52
      $region51: #{down_forward.1} parent=11 // pred_region
        _
      $region52: #{down_forward.1} parent=11 // pred_fallthru
        _
    $region12: #{down_forward.1} parent=5 // pred_fallthru
      _
    %p324 = scmp.lt.s32.totalorder %s17, 2
    // Predicated region
    $region53: #{down_forward.1} parent=5 // pred_check
      %p325 = pneg %p324
    $region54: #{down_forward.1} parent=5 // pred_check_branch
      %327 = sbr.rel (%p325) target = $region56
    $region55: #{down_forward.1} parent=5 // pred_region
      // Predicated region
      $region57: #{down_forward.1} parent=55 // pred_check
        %p328 = pneg %p37
      $region58: #{down_forward.1} parent=55 // pred_check_branch
        %330 = sbr.rel (%p328) target = $region60
      $region59: #{down_forward.1} parent=55 // pred_region
        %p331 = scmp.lt.s32.totalorder %s17, 1
        %s332 = scalar_select %p331, %s17, 1
        %s333 = smul.addr %s332, 8
        %s334 = smul.addr %s333, 8
        %s335 = scalar_lea.vmem %s0, %s334
      $region60: #{down_forward.1} parent=55 // pred_fallthru
        _
    $region56: #{down_forward.1} parent=5 // pred_fallthru
      _
    %p336 = scmp.le.s32.totalorder 1, %s17
    %p337 = scmp.lt.s32.totalorder %s17, 3
    %p338 = pnand %p336, %p337
    %p339 = pneg %p338
    // Predicated region
    $region61: #{down_forward.1} parent=5 // pred_check
      _
    $region62: #{down_forward.1} parent=5 // pred_check_branch
      %341 = sbr.rel (%p338) target = $region64
    $region63: #{down_forward.1} parent=5 // pred_region
      %s342 = ssub.s32 %s17, 1
      %p343 = scmp.lt.s32.totalorder %s22, 1
      %s344 = scalar_select %p343, %s22, 1
      %s345 = smul.addr %s344, 8
      %s346 = smul.addr %s345, 8
      %s347 = scalar_lea.vmem %s0, %s346
      %p348 = pneg %p43
      %p349 = pneg %p40
      %p350 = pneg %p64
      %p351 = pneg %p61
      %p352 = pneg %p85
      %p353 = pneg %p82
      %p354 = pneg %p106
      %p355 = pneg %p103
      %p356 = pneg %p127
      %p357 = pneg %p124
      %p358 = pneg %p148
      %p359 = pneg %p145
      %p360 = pneg %p169
      %p361 = pneg %p166
      %p362 = pneg %p190
      %p363 = pneg %p187
      %p364 = pneg %p211
      %p365 = pneg %p208
      %p366 = pneg %p232
      %p367 = pneg %p229
      %p368 = pneg %p253
      %p369 = pneg %p250
      %p370 = pneg %p279
      %p371 = pneg %p276
      %p372 = scmp.lt.s32.totalorder %s22, 1
      %s373 = scalar_select %p372, %s22, 1
      %s374 = smul.addr %s373, 8
      %s375 = scalar_lea.vmem %s11, %s374
      %p376 = scmp.lt.s32.totalorder %s22, 1
      %s377 = scalar_select %p376, %s22, 1
      %s378 = smul.addr %s377, 8
      %s379 = smul.addr %s378, 8
      %s380 = scalar_lea.vmem %s0, %s379
      %p381 = scmp.lt.s32.totalorder %s22, 1
      %s382 = scalar_select %p381, %s22, 1
      %s383 = smul.addr %s382, 8
      %s384 = scalar_lea.vmem %s11, %s383
      %vm385 = vcmask 31744
      %386 = vst.msk [vmem:[#allocation2] sm:$0xff] %vm385, 0.0
      %vm387 = vcmask 25600
      %388 = vst.msk [vmem:[#allocation2 + $0x8] sm:$0x3] %vm387, 0.0
      %s389 = scalar_lea.vmem [#allocation2], 144
      %390 = vst.msk [vmem:[%s389] sm:$0xff] %vm385, 0.0
      %391 = vst.msk [vmem:[%s389 + $0x8] sm:$0x3] %vm387, 0.0
      %vm392 = vcmask 24576
      %393 = vst.msk [vmem:[#allocation2] sm:$0x1] %vm392, 0.0
      %394 = vst.msk [vmem:[#allocation2 + $0x10] sm:$0x1] %vm392, 0.0
      %395 = vst.msk [vmem:[#allocation2 + $0x20] sm:$0x1] %vm392, 0.0
      %396 = vst.msk [vmem:[#allocation2 + $0x30] sm:$0x1] %vm392, 0.0
      %397 = vst.msk [vmem:[#allocation2 + $0x40] sm:$0x1] %vm392, 0.0
      %398 = vst.msk [vmem:[#allocation2 + $0x50] sm:$0x1] %vm392, 0.0
      %399 = vst.msk [vmem:[#allocation2 + $0x60] sm:$0x1] %vm392, 0.0
      %400 = vst.msk [vmem:[#allocation2 + $0x70] sm:$0x1] %vm392, 0.0
      %401 = vst.msk [vmem:[#allocation2 + $0x80] sm:$0x1] %vm392, 0.0
      %402 = vst.msk [vmem:[#allocation2 + $0x90] sm:$0x1] %vm392, 0.0
      %403 = vst.msk [vmem:[#allocation2 + $0x9] sm:$0x1] %vm392, 0.0
      %404 = vst.msk [vmem:[#allocation2 + $0x19] sm:$0x1] %vm392, 0.0
      %405 = vst.msk [vmem:[#allocation2 + $0x29] sm:$0x1] %vm392, 0.0
      %406 = vst.msk [vmem:[#allocation2 + $0x39] sm:$0x1] %vm392, 0.0
      %407 = vst.msk [vmem:[#allocation2 + $0x49] sm:$0x1] %vm392, 0.0
      %408 = vst.msk [vmem:[#allocation2 + $0x59] sm:$0x1] %vm392, 0.0
      %409 = vst.msk [vmem:[#allocation2 + $0x69] sm:$0x1] %vm392, 0.0
      %410 = vst.msk [vmem:[#allocation2 + $0x79] sm:$0x1] %vm392, 0.0
      %411 = vst.msk [vmem:[#allocation2 + $0x89] sm:$0x1] %vm392, 0.0
      %412 = vst.msk [vmem:[#allocation2 + $0x99] sm:$0x1] %vm392, 0.0
      %vm413 = vcmask 64512
      %414 = vst.msk [vmem:[#allocation3] sm:$0xff] %vm413, 0.0
      %vm415 = vcmask 58368
      %416 = vst.msk [vmem:[#allocation3 + $0x8] sm:$0x3] %vm415, 0.0
      %s417 = scalar_lea.vmem [#allocation3], 144
      %418 = vst.msk [vmem:[%s417] sm:$0xff] %vm413, 0.0
      %419 = vst.msk [vmem:[%s417 + $0x8] sm:$0x3] %vm415, 0.0
      %vm420 = vcmask 57344
      %421 = vst.msk [vmem:[#allocation3] sm:$0x1] %vm420, 0.0
      %422 = vst.msk [vmem:[#allocation3 + $0x10] sm:$0x1] %vm420, 0.0
      %423 = vst.msk [vmem:[#allocation3 + $0x20] sm:$0x1] %vm420, 0.0
      %424 = vst.msk [vmem:[#allocation3 + $0x30] sm:$0x1] %vm420, 0.0
      %425 = vst.msk [vmem:[#allocation3 + $0x40] sm:$0x1] %vm420, 0.0
      %426 = vst.msk [vmem:[#allocation3 + $0x50] sm:$0x1] %vm420, 0.0
      %427 = vst.msk [vmem:[#allocation3 + $0x60] sm:$0x1] %vm420, 0.0
      %428 = vst.msk [vmem:[#allocation3 + $0x70] sm:$0x1] %vm420, 0.0
      %429 = vst.msk [vmem:[#allocation3 + $0x80] sm:$0x1] %vm420, 0.0
      %430 = vst.msk [vmem:[#allocation3 + $0x90] sm:$0x1] %vm420, 0.0
      %431 = vst.msk [vmem:[#allocation3 + $0x9] sm:$0x1] %vm420, 0.0
      %432 = vst.msk [vmem:[#allocation3 + $0x19] sm:$0x1] %vm420, 0.0
      %433 = vst.msk [vmem:[#allocation3 + $0x29] sm:$0x1] %vm420, 0.0
      %434 = vst.msk [vmem:[#allocation3 + $0x39] sm:$0x1] %vm420, 0.0
      %435 = vst.msk [vmem:[#allocation3 + $0x49] sm:$0x1] %vm420, 0.0
      %436 = vst.msk [vmem:[#allocation3 + $0x59] sm:$0x1] %vm420, 0.0
      %437 = vst.msk [vmem:[#allocation3 + $0x69] sm:$0x1] %vm420, 0.0
      %438 = vst.msk [vmem:[#allocation3 + $0x79] sm:$0x1] %vm420, 0.0
      %439 = vst.msk [vmem:[#allocation3 + $0x89] sm:$0x1] %vm420, 0.0
      %440 = vst.msk [vmem:[#allocation3 + $0x99] sm:$0x1] %vm420, 0.0
      %v441 = vld [vmem:[%s1] sm:$0xff]
      %v442 = vld [vmem:[%s1 + $0x8] sm:$0xff]
      %v443 = vld [vmem:[%s2] sm:$0xff]
      %v444 = vld [vmem:[%s2 + $0x8] sm:$0xff]
      %v445 = vld [vmem:[%s380] sm:$0x1]
      %v446 = vld [vmem:[%s380 + $0x10] sm:$0x1]
      %v447 = vld [vmem:[%s380 + $0x20] sm:$0x1]
      %v448 = vld [vmem:[%s380 + $0x30] sm:$0x1]
      %v449 = vld [vmem:[%s380 + $0x1] sm:$0x1]
      %v450 = vld [vmem:[%s380 + $0x11] sm:$0x1]
      %v451 = vld [vmem:[%s380 + $0x21] sm:$0x1]
      %v452 = vld [vmem:[%s380 + $0x31] sm:$0x1]
      %v453 = vmax.f32 %v445, %v449
      %v454 = vmax.f32 %v446, %v450
      %v455 = vmax.f32 %v447, %v451
      %v456 = vmax.f32 %v448, %v452
      %v461 = vrot.slane %v454, 7
      %vm462 = vcmask 1041409
      %v463 = vsel %vm462, %v461, %v453
      %v464 = vrot.slane %v455, 6
      %vm465 = vcmask 1042434
      %v466 = vsel %vm465, %v464, %v463
      %v467 = vrot.slane %v456, 5
      %vm468 = vcmask 1043459
      %v469 = vsel %vm468, %v467, %v466
      %vm470 = vcmask 130048
      %v471 = vsel %vm470, %v469, 0
      %473 = vmatprep.subr.mxu0 0.0
      %474 = vmatpush1.msra.mxu0 0.0
      %475 = vmatprep.subr.mxu0 0.0
      %476 = vmatpush1.msra.mxu0 0.0
      %477 = vmatprep.subr.mxu0 0.0
      %478 = vmatpush1.msra.mxu0 0.0
      %479 = vmatprep.subr.mxu0 0.0
      %480 = vmatpush1.msra.mxu0 0.0
      %481 = vmatprep.subr.mxu0 0.0
      %482 = vmatpush1.msra.mxu0 0.0
      %483 = vmatprep.subr.mxu0 0.0
      %484 = vmatpush1.msra.mxu0 0.0
      %485 = vmatprep.subr.mxu0 0.0
      %486 = vmatpush1.msra.mxu0 0.0
      %487 = vmatprep.subr.mxu0 0.0
      %488 = vmatpush1.msra.mxu0 0.0
      %489 = vmatprep.subr.mxu0 0.0
      %490 = vmatpush1.msra.mxu0 0.0
      %491 = vmatprep.subr.mxu0 0.0
      %492 = vmatpush1.msra.mxu0 0.0
      %493 = vmatprep.subr.mxu0 0.0
      %494 = vmatpush1.msra.mxu0 0.0
      %495 = vmatprep.subr.mxu0 0.0
      %496 = vmatpush1.msra.mxu0 0.0
      %497 = vmatprep.subr.mxu0 0.0
      %498 = vmatpush1.msra.mxu0 0.0
      %499 = vmatprep.subr.mxu0 0.0
      %500 = vmatpush1.msra.mxu0 0.0
      %501 = vmatprep.subr.mxu0 0.0
      %v502 = vand.u32 %v442, 4294901760
      %503 = vmatpush1.msra.mxu0 %v502
      %504 = vmatprep.subr.mxu0 0.0
      %v505 = vand.u32 %v441, 4294901760
      %506 = vmatpush1.msra.mxu0 %v505
      %507 = vmatprep.subr.mxu0 0.0
      %508 = vmatpush2.msra.mxu0 0.0
      %509 = vmatprep.subr.mxu0 0.0
      %510 = vmatpush2.msra.mxu0 0.0
      %511 = vmatprep.subr.mxu0 0.0
      %512 = vmatpush2.msra.mxu0 0.0
      %513 = vmatprep.subr.mxu0 0.0
      %514 = vmatpush2.msra.mxu0 0.0
      %515 = vmatprep.subr.mxu0 0.0
      %516 = vmatpush2.msra.mxu0 0.0
      %517 = vmatprep.subr.mxu0 0.0
      %518 = vmatpush2.msra.mxu0 0.0
      %519 = vmatprep.subr.mxu0 0.0
      %520 = vmatpush2.msra.mxu0 0.0
      %521 = vmatprep.subr.mxu0 0.0
      %522 = vmatpush2.msra.mxu0 0.0
      %523 = vmatprep.subr.mxu0 0.0
      %524 = vmatpush2.msra.mxu0 0.0
      %525 = vmatprep.subr.mxu0 0.0
      %526 = vmatpush2.msra.mxu0 0.0
      %527 = vmatprep.subr.mxu0 0.0
      %528 = vmatpush2.msra.mxu0 0.0
      %529 = vmatprep.subr.mxu0 0.0
      %530 = vmatpush2.msra.mxu0 0.0
      %531 = vmatprep.subr.mxu0 0.0
      %532 = vmatpush2.msra.mxu0 0.0
      %533 = vmatprep.subr.mxu0 0.0
      %534 = vmatpush2.msra.mxu0 0.0
      %535 = vmatprep.subr.mxu0 0.0
      %536 = vmatpush2.msra.mxu0 0.0
      %537 = vmatprep.subr.mxu0 0.0
      %538 = vmatpush2.msra.mxu0 0.0
      %539 = vmatprep.mubr.f32.mxu0 0.0
      %v540 = vand.u32 %v471, 4294901760
      %v541 = vsub.f32 %v471, %v540
      %v542 = vand.u32 %v541, 4294901760
      %v543 = vsub.f32 %v541, %v542
      %v544 = vand.u32 %v543, 4294901760
      %545 = vmatmul.mubr.f32.gmra.mxu0 %v544
      %v546 = vpop.f32.mrf.mxu0
      %v547 = vadd.f32 0.0, %v546
      %v548 = vpop.f32.mrf.mxu0
      %549 = vdwg.mxu0
      %550 = vmatprep.subr.mxu0 0.0
      %551 = vmatpush1.msra.mxu0 0.0
      %552 = vmatprep.subr.mxu0 0.0
      %553 = vmatpush1.msra.mxu0 0.0
      %554 = vmatprep.subr.mxu0 0.0
      %555 = vmatpush1.msra.mxu0 0.0
      %556 = vmatprep.subr.mxu0 0.0
      %557 = vmatpush1.msra.mxu0 0.0
      %558 = vmatprep.subr.mxu0 0.0
      %559 = vmatpush1.msra.mxu0 0.0
      %560 = vmatprep.subr.mxu0 0.0
      %561 = vmatpush1.msra.mxu0 0.0
      %562 = vmatprep.subr.mxu0 0.0
      %563 = vmatpush1.msra.mxu0 0.0
      %564 = vmatprep.subr.mxu0 0.0
      %565 = vmatpush1.msra.mxu0 0.0
      %566 = vmatprep.subr.mxu0 0.0
      %567 = vmatpush1.msra.mxu0 0.0
      %568 = vmatprep.subr.mxu0 0.0
      %569 = vmatpush1.msra.mxu0 0.0
      %570 = vmatprep.subr.mxu0 0.0
      %571 = vmatpush1.msra.mxu0 0.0
      %572 = vmatprep.subr.mxu0 0.0
      %573 = vmatpush1.msra.mxu0 0.0
      %574 = vmatprep.subr.mxu0 0.0
      %575 = vmatpush1.msra.mxu0 0.0
      %576 = vmatprep.subr.mxu0 0.0
      %577 = vmatpush1.msra.mxu0 0.0
      %578 = vmatprep.subr.mxu0 0.0
      %v579 = vand.u32 %v442, 4294901760
      %v580 = vsub.f32 %v442, %v579
      %v581 = vand.u32 %v580, 4294901760
      %v582 = vsub.f32 %v580, %v581
      %v583 = vand.u32 %v582, 4294901760
      %584 = vmatpush1.msra.mxu0 %v583
      %585 = vmatprep.subr.mxu0 0.0
      %v586 = vand.u32 %v441, 4294901760
      %v587 = vsub.f32 %v441, %v586
      %v588 = vand.u32 %v587, 4294901760
      %v589 = vsub.f32 %v587, %v588
      %v590 = vand.u32 %v589, 4294901760
      %591 = vmatpush1.msra.mxu0 %v590
      %592 = vmatprep.subr.mxu0 0.0
      %593 = vmatpush2.msra.mxu0 0.0
      %594 = vmatprep.subr.mxu0 0.0
      %595 = vmatpush2.msra.mxu0 0.0
      %596 = vmatprep.subr.mxu0 0.0
      %597 = vmatpush2.msra.mxu0 0.0
      %598 = vmatprep.subr.mxu0 0.0
      %599 = vmatpush2.msra.mxu0 0.0
      %600 = vmatprep.subr.mxu0 0.0
      %601 = vmatpush2.msra.mxu0 0.0
      %602 = vmatprep.subr.mxu0 0.0
      %603 = vmatpush2.msra.mxu0 0.0
      %604 = vmatprep.subr.mxu0 0.0
      %605 = vmatpush2.msra.mxu0 0.0
      %606 = vmatprep.subr.mxu0 0.0
      %607 = vmatpush2.msra.mxu0 0.0
      %608 = vmatprep.subr.mxu0 0.0
      %609 = vmatpush2.msra.mxu0 0.0
      %610 = vmatprep.subr.mxu0 0.0
      %611 = vmatpush2.msra.mxu0 0.0
      %612 = vmatprep.subr.mxu0 0.0
      %613 = vmatpush2.msra.mxu0 0.0
      %614 = vmatprep.subr.mxu0 0.0
      %615 = vmatpush2.msra.mxu0 0.0
      %616 = vmatprep.subr.mxu0 0.0
      %617 = vmatpush2.msra.mxu0 0.0
      %618 = vmatprep.subr.mxu0 0.0
      %619 = vmatpush2.msra.mxu0 0.0
      %620 = vmatprep.subr.mxu0 0.0
      %621 = vmatpush2.msra.mxu0 0.0
      %622 = vmatprep.subr.mxu0 0.0
      %623 = vmatpush2.msra.mxu0 0.0
      %624 = vmatprep.mubr.f32.mxu0 0.0
      %v625 = vand.u32 %v471, 4294901760
      %626 = vmatmul.mubr.f32.gmra.mxu0 %v625
      %v627 = vpop.f32.mrf.mxu0
      %v628 = vadd.f32 %v547, %v627
      %v629 = vpop.f32.mrf.mxu0
      %630 = vdwg.mxu0
      %631 = vmatprep.subr.mxu0 0.0
      %632 = vmatpush1.msra.mxu0 0.0
      %633 = vmatprep.subr.mxu0 0.0
      %634 = vmatpush1.msra.mxu0 0.0
      %635 = vmatprep.subr.mxu0 0.0
      %636 = vmatpush1.msra.mxu0 0.0
      %637 = vmatprep.subr.mxu0 0.0
      %638 = vmatpush1.msra.mxu0 0.0
      %639 = vmatprep.subr.mxu0 0.0
      %640 = vmatpush1.msra.mxu0 0.0
      %641 = vmatprep.subr.mxu0 0.0
      %642 = vmatpush1.msra.mxu0 0.0
      %643 = vmatprep.subr.mxu0 0.0
      %644 = vmatpush1.msra.mxu0 0.0
      %645 = vmatprep.subr.mxu0 0.0
      %646 = vmatpush1.msra.mxu0 0.0
      %647 = vmatprep.subr.mxu0 0.0
      %648 = vmatpush1.msra.mxu0 0.0
      %649 = vmatprep.subr.mxu0 0.0
      %650 = vmatpush1.msra.mxu0 0.0
      %651 = vmatprep.subr.mxu0 0.0
      %652 = vmatpush1.msra.mxu0 0.0
      %653 = vmatprep.subr.mxu0 0.0
      %654 = vmatpush1.msra.mxu0 0.0
      %655 = vmatprep.subr.mxu0 0.0
      %656 = vmatpush1.msra.mxu0 0.0
      %657 = vmatprep.subr.mxu0 0.0
      %658 = vmatpush1.msra.mxu0 0.0
      %659 = vmatprep.subr.mxu0 0.0
      %v660 = vand.u32 %v442, 4294901760
      %v661 = vsub.f32 %v442, %v660
      %662 = vmatpush1.msra.mxu0 %v661
      %663 = vmatprep.subr.mxu0 0.0
      %v664 = vand.u32 %v441, 4294901760
      %v665 = vsub.f32 %v441, %v664
      %666 = vmatpush1.msra.mxu0 %v665
      %667 = vmatprep.subr.mxu0 0.0
      %668 = vmatpush2.msra.mxu0 0.0
      %669 = vmatprep.subr.mxu0 0.0
      %670 = vmatpush2.msra.mxu0 0.0
      %671 = vmatprep.subr.mxu0 0.0
      %672 = vmatpush2.msra.mxu0 0.0
      %673 = vmatprep.subr.mxu0 0.0
      %674 = vmatpush2.msra.mxu0 0.0
      %675 = vmatprep.subr.mxu0 0.0
      %676 = vmatpush2.msra.mxu0 0.0
      %677 = vmatprep.subr.mxu0 0.0
      %678 = vmatpush2.msra.mxu0 0.0
      %679 = vmatprep.subr.mxu0 0.0
      %680 = vmatpush2.msra.mxu0 0.0
      %681 = vmatprep.subr.mxu0 0.0
      %682 = vmatpush2.msra.mxu0 0.0
      %683 = vmatprep.subr.mxu0 0.0
      %684 = vmatpush2.msra.mxu0 0.0
      %685 = vmatprep.subr.mxu0 0.0
      %686 = vmatpush2.msra.mxu0 0.0
      %687 = vmatprep.subr.mxu0 0.0
      %688 = vmatpush2.msra.mxu0 0.0
      %689 = vmatprep.subr.mxu0 0.0
      %690 = vmatpush2.msra.mxu0 0.0
      %691 = vmatprep.subr.mxu0 0.0
      %692 = vmatpush2.msra.mxu0 0.0
      %693 = vmatprep.subr.mxu0 0.0
      %694 = vmatpush2.msra.mxu0 0.0
      %695 = vmatprep.subr.mxu0 0.0
      %696 = vmatpush2.msra.mxu0 0.0
      %697 = vmatprep.subr.mxu0 0.0
      %698 = vmatpush2.msra.mxu0 0.0
      %699 = vmatprep.mubr.f32.mxu0 0.0
      %v700 = vand.u32 %v471, 4294901760
      %v701 = vsub.f32 %v471, %v700
      %702 = vmatmul.mubr.f32.gmra.mxu0 %v701
      %v703 = vpop.f32.mrf.mxu0
      %v704 = vadd.f32 %v628, %v703
      %v705 = vpop.f32.mrf.mxu0
      %706 = vdwg.mxu0
      %707 = vmatprep.subr.mxu0 0.0
      %708 = vmatpush1.msra.mxu0 0.0
      %709 = vmatprep.subr.mxu0 0.0
      %710 = vmatpush1.msra.mxu0 0.0
      %711 = vmatprep.subr.mxu0 0.0
      %712 = vmatpush1.msra.mxu0 0.0
      %713 = vmatprep.subr.mxu0 0.0
      %714 = vmatpush1.msra.mxu0 0.0
      %715 = vmatprep.subr.mxu0 0.0
      %716 = vmatpush1.msra.mxu0 0.0
      %717 = vmatprep.subr.mxu0 0.0
      %718 = vmatpush1.msra.mxu0 0.0
      %719 = vmatprep.subr.mxu0 0.0
      %720 = vmatpush1.msra.mxu0 0.0
      %721 = vmatprep.subr.mxu0 0.0
      %722 = vmatpush1.msra.mxu0 0.0
      %723 = vmatprep.subr.mxu0 0.0
      %724 = vmatpush1.msra.mxu0 0.0
      %725 = vmatprep.subr.mxu0 0.0
      %726 = vmatpush1.msra.mxu0 0.0
      %727 = vmatprep.subr.mxu0 0.0
      %728 = vmatpush1.msra.mxu0 0.0
      %729 = vmatprep.subr.mxu0 0.0
      %730 = vmatpush1.msra.mxu0 0.0
      %731 = vmatprep.subr.mxu0 0.0
      %732 = vmatpush1.msra.mxu0 0.0
      %733 = vmatprep.subr.mxu0 0.0
      %734 = vmatpush1.msra.mxu0 0.0
      %735 = vmatprep.subr.mxu0 0.0
      %v736 = vand.u32 %v442, 4294901760
      %737 = vmatpush1.msra.mxu0 %v736
      %738 = vmatprep.subr.mxu0 0.0
      %v739 = vand.u32 %v441, 4294901760
      %740 = vmatpush1.msra.mxu0 %v739
      %741 = vmatprep.subr.mxu0 0.0
      %742 = vmatpush2.msra.mxu0 0.0
      %743 = vmatprep.subr.mxu0 0.0
      %744 = vmatpush2.msra.mxu0 0.0
      %745 = vmatprep.subr.mxu0 0.0
      %746 = vmatpush2.msra.mxu0 0.0
      %747 = vmatprep.subr.mxu0 0.0
      %748 = vmatpush2.msra.mxu0 0.0
      %749 = vmatprep.subr.mxu0 0.0
      %750 = vmatpush2.msra.mxu0 0.0
      %751 = vmatprep.subr.mxu0 0.0
      %752 = vmatpush2.msra.mxu0 0.0
      %753 = vmatprep.subr.mxu0 0.0
      %754 = vmatpush2.msra.mxu0 0.0
      %755 = vmatprep.subr.mxu0 0.0
      %756 = vmatpush2.msra.mxu0 0.0
      %757 = vmatprep.subr.mxu0 0.0
      %758 = vmatpush2.msra.mxu0 0.0
      %759 = vmatprep.subr.mxu0 0.0
      %760 = vmatpush2.msra.mxu0 0.0
      %761 = vmatprep.subr.mxu0 0.0
      %762 = vmatpush2.msra.mxu0 0.0
      %763 = vmatprep.subr.mxu0 0.0
      %764 = vmatpush2.msra.mxu0 0.0
      %765 = vmatprep.subr.mxu0 0.0
      %766 = vmatpush2.msra.mxu0 0.0
      %767 = vmatprep.subr.mxu0 0.0
      %768 = vmatpush2.msra.mxu0 0.0
      %769 = vmatprep.subr.mxu0 0.0
      %770 = vmatpush2.msra.mxu0 0.0
      %771 = vmatprep.subr.mxu0 0.0
      %772 = vmatpush2.msra.mxu0 0.0
      %773 = vmatprep.mubr.f32.mxu0 0.0
      %v774 = vand.u32 %v471, 4294901760
      %v775 = vsub.f32 %v471, %v774
      %v776 = vand.u32 %v775, 4294901760
      %777 = vmatmul.mubr.f32.gmra.mxu0 %v776
      %v778 = vpop.f32.mrf.mxu0
      %v779 = vadd.f32 %v704, %v778
      %v780 = vpop.f32.mrf.mxu0
      %781 = vdwg.mxu0
      %782 = vmatprep.subr.mxu0 0.0
      %783 = vmatpush1.msra.mxu0 0.0
      %784 = vmatprep.subr.mxu0 0.0
      %785 = vmatpush1.msra.mxu0 0.0
      %786 = vmatprep.subr.mxu0 0.0
      %787 = vmatpush1.msra.mxu0 0.0
      %788 = vmatprep.subr.mxu0 0.0
      %789 = vmatpush1.msra.mxu0 0.0
      %790 = vmatprep.subr.mxu0 0.0
      %791 = vmatpush1.msra.mxu0 0.0
      %792 = vmatprep.subr.mxu0 0.0
      %793 = vmatpush1.msra.mxu0 0.0
      %794 = vmatprep.subr.mxu0 0.0
      %795 = vmatpush1.msra.mxu0 0.0
      %796 = vmatprep.subr.mxu0 0.0
      %797 = vmatpush1.msra.mxu0 0.0
      %798 = vmatprep.subr.mxu0 0.0
      %799 = vmatpush1.msra.mxu0 0.0
      %800 = vmatprep.subr.mxu0 0.0
      %801 = vmatpush1.msra.mxu0 0.0
      %802 = vmatprep.subr.mxu0 0.0
      %803 = vmatpush1.msra.mxu0 0.0
      %804 = vmatprep.subr.mxu0 0.0
      %805 = vmatpush1.msra.mxu0 0.0
      %806 = vmatprep.subr.mxu0 0.0
      %807 = vmatpush1.msra.mxu0 0.0
      %808 = vmatprep.subr.mxu0 0.0
      %809 = vmatpush1.msra.mxu0 0.0
      %810 = vmatprep.subr.mxu0 0.0
      %v811 = vand.u32 %v442, 4294901760
      %v812 = vsub.f32 %v442, %v811
      %v813 = vand.u32 %v812, 4294901760
      %814 = vmatpush1.msra.mxu0 %v813
      %815 = vmatprep.subr.mxu0 0.0
      %v816 = vand.u32 %v441, 4294901760
      %v817 = vsub.f32 %v441, %v816
      %v818 = vand.u32 %v817, 4294901760
      %819 = vmatpush1.msra.mxu0 %v818
      %820 = vmatprep.subr.mxu0 0.0
      %821 = vmatpush2.msra.mxu0 0.0
      %822 = vmatprep.subr.mxu0 0.0
      %823 = vmatpush2.msra.mxu0 0.0
      %824 = vmatprep.subr.mxu0 0.0
      %825 = vmatpush2.msra.mxu0 0.0
      %826 = vmatprep.subr.mxu0 0.0
      %827 = vmatpush2.msra.mxu0 0.0
      %828 = vmatprep.subr.mxu0 0.0
      %829 = vmatpush2.msra.mxu0 0.0
      %830 = vmatprep.subr.mxu0 0.0
      %831 = vmatpush2.msra.mxu0 0.0
      %832 = vmatprep.subr.mxu0 0.0
      %833 = vmatpush2.msra.mxu0 0.0
      %834 = vmatprep.subr.mxu0 0.0
      %835 = vmatpush2.msra.mxu0 0.0
      %836 = vmatprep.subr.mxu0 0.0
      %837 = vmatpush2.msra.mxu0 0.0
      %838 = vmatprep.subr.mxu0 0.0
      %839 = vmatpush2.msra.mxu0 0.0
      %840 = vmatprep.subr.mxu0 0.0
      %841 = vmatpush2.msra.mxu0 0.0
      %842 = vmatprep.subr.mxu0 0.0
      %843 = vmatpush2.msra.mxu0 0.0
      %844 = vmatprep.subr.mxu0 0.0
      %845 = vmatpush2.msra.mxu0 0.0
      %846 = vmatprep.subr.mxu0 0.0
      %847 = vmatpush2.msra.mxu0 0.0
      %848 = vmatprep.subr.mxu0 0.0
      %849 = vmatpush2.msra.mxu0 0.0
      %850 = vmatprep.subr.mxu0 0.0
      %851 = vmatpush2.msra.mxu0 0.0
      %852 = vmatprep.mubr.f32.mxu0 0.0
      %v853 = vand.u32 %v471, 4294901760
      %854 = vmatmul.mubr.f32.gmra.mxu0 %v853
      %v855 = vpop.f32.mrf.mxu0
      %v856 = vadd.f32 %v779, %v855
      %v857 = vpop.f32.mrf.mxu0
      %858 = vdwg.mxu0
      %859 = vmatprep.subr.mxu0 0.0
      %860 = vmatpush1.msra.mxu0 0.0
      %861 = vmatprep.subr.mxu0 0.0
      %862 = vmatpush1.msra.mxu0 0.0
      %863 = vmatprep.subr.mxu0 0.0
      %864 = vmatpush1.msra.mxu0 0.0
      %865 = vmatprep.subr.mxu0 0.0
      %866 = vmatpush1.msra.mxu0 0.0
      %867 = vmatprep.subr.mxu0 0.0
      %868 = vmatpush1.msra.mxu0 0.0
      %869 = vmatprep.subr.mxu0 0.0
      %870 = vmatpush1.msra.mxu0 0.0
      %871 = vmatprep.subr.mxu0 0.0
      %872 = vmatpush1.msra.mxu0 0.0
      %873 = vmatprep.subr.mxu0 0.0
      %874 = vmatpush1.msra.mxu0 0.0
      %875 = vmatprep.subr.mxu0 0.0
      %876 = vmatpush1.msra.mxu0 0.0
      %877 = vmatprep.subr.mxu0 0.0
      %878 = vmatpush1.msra.mxu0 0.0
      %879 = vmatprep.subr.mxu0 0.0
      %880 = vmatpush1.msra.mxu0 0.0
      %881 = vmatprep.subr.mxu0 0.0
      %882 = vmatpush1.msra.mxu0 0.0
      %883 = vmatprep.subr.mxu0 0.0
      %884 = vmatpush1.msra.mxu0 0.0
      %885 = vmatprep.subr.mxu0 0.0
      %886 = vmatpush1.msra.mxu0 0.0
      %887 = vmatprep.subr.mxu0 0.0
      %v888 = vand.u32 %v442, 4294901760
      %889 = vmatpush1.msra.mxu0 %v888
      %890 = vmatprep.subr.mxu0 0.0
      %v891 = vand.u32 %v441, 4294901760
      %892 = vmatpush1.msra.mxu0 %v891
      %893 = vmatprep.subr.mxu0 0.0
      %894 = vmatpush2.msra.mxu0 0.0
      %895 = vmatprep.subr.mxu0 0.0
      %896 = vmatpush2.msra.mxu0 0.0
      %897 = vmatprep.subr.mxu0 0.0
      %898 = vmatpush2.msra.mxu0 0.0
      %899 = vmatprep.subr.mxu0 0.0
      %900 = vmatpush2.msra.mxu0 0.0
      %901 = vmatprep.subr.mxu0 0.0
      %902 = vmatpush2.msra.mxu0 0.0
      %903 = vmatprep.subr.mxu0 0.0
      %904 = vmatpush2.msra.mxu0 0.0
      %905 = vmatprep.subr.mxu0 0.0
      %906 = vmatpush2.msra.mxu0 0.0
      %907 = vmatprep.subr.mxu0 0.0
      %908 = vmatpush2.msra.mxu0 0.0
      %909 = vmatprep.subr.mxu0 0.0
      %910 = vmatpush2.msra.mxu0 0.0
      %911 = vmatprep.subr.mxu0 0.0
      %912 = vmatpush2.msra.mxu0 0.0
      %913 = vmatprep.subr.mxu0 0.0
      %914 = vmatpush2.msra.mxu0 0.0
      %915 = vmatprep.subr.mxu0 0.0
      %916 = vmatpush2.msra.mxu0 0.0
      %917 = vmatprep.subr.mxu0 0.0
      %918 = vmatpush2.msra.mxu0 0.0
      %919 = vmatprep.subr.mxu0 0.0
      %920 = vmatpush2.msra.mxu0 0.0
      %921 = vmatprep.subr.mxu0 0.0
      %922 = vmatpush2.msra.mxu0 0.0
      %923 = vmatprep.subr.mxu0 0.0
      %924 = vmatpush2.msra.mxu0 0.0
      %925 = vmatprep.mubr.f32.mxu0 0.0
      %v926 = vand.u32 %v471, 4294901760
      %927 = vmatmul.mubr.f32.gmra.mxu0 %v926
      %v928 = vpop.f32.mrf.mxu0
      %v929 = vadd.f32 %v856, %v928
      %v930 = vpop.f32.mrf.mxu0
      %931 = vdwg.mxu0
      %932 = vmatprep.subr.mxu0 0.0
      %933 = vmatpush1.msra.mxu0 0.0
      %934 = vmatprep.subr.mxu0 0.0
      %935 = vmatpush1.msra.mxu0 0.0
      %936 = vmatprep.subr.mxu0 0.0
      %937 = vmatpush1.msra.mxu0 0.0
      %938 = vmatprep.subr.mxu0 0.0
      %939 = vmatpush1.msra.mxu0 0.0
      %940 = vmatprep.subr.mxu0 0.0
      %941 = vmatpush1.msra.mxu0 0.0
      %942 = vmatprep.subr.mxu0 0.0
      %943 = vmatpush1.msra.mxu0 0.0
      %944 = vmatprep.subr.mxu0 0.0
      %945 = vmatpush1.msra.mxu0 0.0
      %946 = vmatprep.subr.mxu0 0.0
      %947 = vmatpush1.msra.mxu0 0.0
      %948 = vmatprep.subr.mxu0 0.0
      %949 = vmatpush1.msra.mxu0 0.0
      %950 = vmatprep.subr.mxu0 0.0
      %951 = vmatpush1.msra.mxu0 0.0
      %952 = vmatprep.subr.mxu0 0.0
      %953 = vmatpush1.msra.mxu0 0.0
      %954 = vmatprep.subr.mxu0 0.0
      %955 = vmatpush1.msra.mxu0 0.0
      %956 = vmatprep.subr.mxu0 0.0
      %957 = vmatpush1.msra.mxu0 0.0
      %958 = vmatprep.subr.mxu0 0.0
      %959 = vmatpush1.msra.mxu0 0.0
      %960 = vmatprep.subr.mxu0 0.0
      %v961 = vand.u32 %v444, 4294901760
      %962 = vmatpush1.msra.mxu0 %v961
      %963 = vmatprep.subr.mxu0 0.0
      %v964 = vand.u32 %v443, 4294901760
      %965 = vmatpush1.msra.mxu0 %v964
      %966 = vmatprep.subr.mxu0 0.0
      %967 = vmatpush2.msra.mxu0 0.0
      %968 = vmatprep.subr.mxu0 0.0
      %969 = vmatpush2.msra.mxu0 0.0
      %970 = vmatprep.subr.mxu0 0.0
      %971 = vmatpush2.msra.mxu0 0.0
      %972 = vmatprep.subr.mxu0 0.0
      %973 = vmatpush2.msra.mxu0 0.0
      %974 = vmatprep.subr.mxu0 0.0
      %975 = vmatpush2.msra.mxu0 0.0
      %976 = vmatprep.subr.mxu0 0.0
      %977 = vmatpush2.msra.mxu0 0.0
      %978 = vmatprep.subr.mxu0 0.0
      %979 = vmatpush2.msra.mxu0 0.0
      %980 = vmatprep.subr.mxu0 0.0
      %981 = vmatpush2.msra.mxu0 0.0
      %982 = vmatprep.subr.mxu0 0.0
      %983 = vmatpush2.msra.mxu0 0.0
      %984 = vmatprep.subr.mxu0 0.0
      %985 = vmatpush2.msra.mxu0 0.0
      %986 = vmatprep.subr.mxu0 0.0
      %987 = vmatpush2.msra.mxu0 0.0
      %988 = vmatprep.subr.mxu0 0.0
      %989 = vmatpush2.msra.mxu0 0.0
      %990 = vmatprep.subr.mxu0 0.0
      %991 = vmatpush2.msra.mxu0 0.0
      %992 = vmatprep.subr.mxu0 0.0
      %993 = vmatpush2.msra.mxu0 0.0
      %994 = vmatprep.subr.mxu0 0.0
      %995 = vmatpush2.msra.mxu0 0.0
      %996 = vmatprep.subr.mxu0 0.0
      %997 = vmatpush2.msra.mxu0 0.0
      %998 = vmatprep.mubr.f32.mxu0 0.0
      %v999 = vand.u32 %v471, 4294901760
      %v1000 = vsub.f32 %v471, %v999
      %v1001 = vand.u32 %v1000, 4294901760
      %v1002 = vsub.f32 %v1000, %v1001
      %v1003 = vand.u32 %v1002, 4294901760
      %1004 = vmatmul.mubr.f32.gmra.mxu0 %v1003
      %v1005 = vpop.f32.mrf.mxu0
      %v1006 = vadd.f32 0.0, %v1005
      %v1007 = vpop.f32.mrf.mxu0
      %1008 = vdwg.mxu0
      %1009 = vmatprep.subr.mxu0 0.0
      %1010 = vmatpush1.msra.mxu0 0.0
      %1011 = vmatprep.subr.mxu0 0.0
      %1012 = vmatpush1.msra.mxu0 0.0
      %1013 = vmatprep.subr.mxu0 0.0
      %1014 = vmatpush1.msra.mxu0 0.0
      %1015 = vmatprep.subr.mxu0 0.0
      %1016 = vmatpush1.msra.mxu0 0.0
      %1017 = vmatprep.subr.mxu0 0.0
      %1018 = vmatpush1.msra.mxu0 0.0
      %1019 = vmatprep.subr.mxu0 0.0
      %1020 = vmatpush1.msra.mxu0 0.0
      %1021 = vmatprep.subr.mxu0 0.0
      %1022 = vmatpush1.msra.mxu0 0.0
      %1023 = vmatprep.subr.mxu0 0.0
      %1024 = vmatpush1.msra.mxu0 0.0
      %1025 = vmatprep.subr.mxu0 0.0
      %1026 = vmatpush1.msra.mxu0 0.0
      %1027 = vmatprep.subr.mxu0 0.0
      %1028 = vmatpush1.msra.mxu0 0.0
      %1029 = vmatprep.subr.mxu0 0.0
      %1030 = vmatpush1.msra.mxu0 0.0
      %1031 = vmatprep.subr.mxu0 0.0
      %1032 = vmatpush1.msra.mxu0 0.0
      %1033 = vmatprep.subr.mxu0 0.0
      %1034 = vmatpush1.msra.mxu0 0.0
      %1035 = vmatprep.subr.mxu0 0.0
      %1036 = vmatpush1.msra.mxu0 0.0
      %1037 = vmatprep.subr.mxu0 0.0
      %v1038 = vand.u32 %v444, 4294901760
      %v1039 = vsub.f32 %v444, %v1038
      %v1040 = vand.u32 %v1039, 4294901760
      %v1041 = vsub.f32 %v1039, %v1040
      %v1042 = vand.u32 %v1041, 4294901760
      %1043 = vmatpush1.msra.mxu0 %v1042
      %1044 = vmatprep.subr.mxu0 0.0
      %v1045 = vand.u32 %v443, 4294901760
      %v1046 = vsub.f32 %v443, %v1045
      %v1047 = vand.u32 %v1046, 4294901760
      %v1048 = vsub.f32 %v1046, %v1047
      %v1049 = vand.u32 %v1048, 4294901760
      %1050 = vmatpush1.msra.mxu0 %v1049
      %1051 = vmatprep.subr.mxu0 0.0
      %1052 = vmatpush2.msra.mxu0 0.0
      %1053 = vmatprep.subr.mxu0 0.0
      %1054 = vmatpush2.msra.mxu0 0.0
      %1055 = vmatprep.subr.mxu0 0.0
      %1056 = vmatpush2.msra.mxu0 0.0
      %1057 = vmatprep.subr.mxu0 0.0
      %1058 = vmatpush2.msra.mxu0 0.0
      %1059 = vmatprep.subr.mxu0 0.0
      %1060 = vmatpush2.msra.mxu0 0.0
      %1061 = vmatprep.subr.mxu0 0.0
      %1062 = vmatpush2.msra.mxu0 0.0
      %1063 = vmatprep.subr.mxu0 0.0
      %1064 = vmatpush2.msra.mxu0 0.0
      %1065 = vmatprep.subr.mxu0 0.0
      %1066 = vmatpush2.msra.mxu0 0.0
      %1067 = vmatprep.subr.mxu0 0.0
      %1068 = vmatpush2.msra.mxu0 0.0
      %1069 = vmatprep.subr.mxu0 0.0
      %1070 = vmatpush2.msra.mxu0 0.0
      %1071 = vmatprep.subr.mxu0 0.0
      %1072 = vmatpush2.msra.mxu0 0.0
      %1073 = vmatprep.subr.mxu0 0.0
      %1074 = vmatpush2.msra.mxu0 0.0
      %1075 = vmatprep.subr.mxu0 0.0
      %1076 = vmatpush2.msra.mxu0 0.0
      %1077 = vmatprep.subr.mxu0 0.0
      %1078 = vmatpush2.msra.mxu0 0.0
      %1079 = vmatprep.subr.mxu0 0.0
      %1080 = vmatpush2.msra.mxu0 0.0
      %1081 = vmatprep.subr.mxu0 0.0
      %1082 = vmatpush2.msra.mxu0 0.0
      %1083 = vmatprep.mubr.f32.mxu0 0.0
      %v1084 = vand.u32 %v471, 4294901760
      %1085 = vmatmul.mubr.f32.gmra.mxu0 %v1084
      %v1086 = vpop.f32.mrf.mxu0
      %v1087 = vadd.f32 %v1006, %v1086
      %v1088 = vpop.f32.mrf.mxu0
      %1089 = vdwg.mxu0
      %1090 = vmatprep.subr.mxu0 0.0
      %1091 = vmatpush1.msra.mxu0 0.0
      %1092 = vmatprep.subr.mxu0 0.0
      %1093 = vmatpush1.msra.mxu0 0.0
      %1094 = vmatprep.subr.mxu0 0.0
      %1095 = vmatpush1.msra.mxu0 0.0
      %1096 = vmatprep.subr.mxu0 0.0
      %1097 = vmatpush1.msra.mxu0 0.0
      %1098 = vmatprep.subr.mxu0 0.0
      %1099 = vmatpush1.msra.mxu0 0.0
      %1100 = vmatprep.subr.mxu0 0.0
      %1101 = vmatpush1.msra.mxu0 0.0
      %1102 = vmatprep.subr.mxu0 0.0
      %1103 = vmatpush1.msra.mxu0 0.0
      %1104 = vmatprep.subr.mxu0 0.0
      %1105 = vmatpush1.msra.mxu0 0.0
      %1106 = vmatprep.subr.mxu0 0.0
      %1107 = vmatpush1.msra.mxu0 0.0
      %1108 = vmatprep.subr.mxu0 0.0
      %1109 = vmatpush1.msra.mxu0 0.0
      %1110 = vmatprep.subr.mxu0 0.0
      %1111 = vmatpush1.msra.mxu0 0.0
      %1112 = vmatprep.subr.mxu0 0.0
      %1113 = vmatpush1.msra.mxu0 0.0
      %1114 = vmatprep.subr.mxu0 0.0
      %1115 = vmatpush1.msra.mxu0 0.0
      %1116 = vmatprep.subr.mxu0 0.0
      %1117 = vmatpush1.msra.mxu0 0.0
      %1118 = vmatprep.subr.mxu0 0.0
      %v1119 = vand.u32 %v444, 4294901760
      %v1120 = vsub.f32 %v444, %v1119
      %1121 = vmatpush1.msra.mxu0 %v1120
      %1122 = vmatprep.subr.mxu0 0.0
      %v1123 = vand.u32 %v443, 4294901760
      %v1124 = vsub.f32 %v443, %v1123
      %1125 = vmatpush1.msra.mxu0 %v1124
      %1126 = vmatprep.subr.mxu0 0.0
      %1127 = vmatpush2.msra.mxu0 0.0
      %1128 = vmatprep.subr.mxu0 0.0
      %1129 = vmatpush2.msra.mxu0 0.0
      %1130 = vmatprep.subr.mxu0 0.0
      %1131 = vmatpush2.msra.mxu0 0.0
      %1132 = vmatprep.subr.mxu0 0.0
      %1133 = vmatpush2.msra.mxu0 0.0
      %1134 = vmatprep.subr.mxu0 0.0
      %1135 = vmatpush2.msra.mxu0 0.0
      %1136 = vmatprep.subr.mxu0 0.0
      %1137 = vmatpush2.msra.mxu0 0.0
      %1138 = vmatprep.subr.mxu0 0.0
      %1139 = vmatpush2.msra.mxu0 0.0
      %1140 = vmatprep.subr.mxu0 0.0
      %1141 = vmatpush2.msra.mxu0 0.0
      %1142 = vmatprep.subr.mxu0 0.0
      %1143 = vmatpush2.msra.mxu0 0.0
      %1144 = vmatprep.subr.mxu0 0.0
      %1145 = vmatpush2.msra.mxu0 0.0
      %1146 = vmatprep.subr.mxu0 0.0
      %1147 = vmatpush2.msra.mxu0 0.0
      %1148 = vmatprep.subr.mxu0 0.0
      %1149 = vmatpush2.msra.mxu0 0.0
      %1150 = vmatprep.subr.mxu0 0.0
      %1151 = vmatpush2.msra.mxu0 0.0
      %1152 = vmatprep.subr.mxu0 0.0
      %1153 = vmatpush2.msra.mxu0 0.0
      %1154 = vmatprep.subr.mxu0 0.0
      %1155 = vmatpush2.msra.mxu0 0.0
      %1156 = vmatprep.subr.mxu0 0.0
      %1157 = vmatpush2.msra.mxu0 0.0
      %1158 = vmatprep.mubr.f32.mxu0 0.0
      %v1159 = vand.u32 %v471, 4294901760
      %v1160 = vsub.f32 %v471, %v1159
      %1161 = vmatmul.mubr.f32.gmra.mxu0 %v1160
      %v1162 = vpop.f32.mrf.mxu0
      %v1163 = vadd.f32 %v1087, %v1162
      %v1164 = vpop.f32.mrf.mxu0
      %1165 = vdwg.mxu0
      %1166 = vmatprep.subr.mxu0 0.0
      %1167 = vmatpush1.msra.mxu0 0.0
      %1168 = vmatprep.subr.mxu0 0.0
      %1169 = vmatpush1.msra.mxu0 0.0
      %1170 = vmatprep.subr.mxu0 0.0
      %1171 = vmatpush1.msra.mxu0 0.0
      %1172 = vmatprep.subr.mxu0 0.0
      %1173 = vmatpush1.msra.mxu0 0.0
      %1174 = vmatprep.subr.mxu0 0.0
      %1175 = vmatpush1.msra.mxu0 0.0
      %1176 = vmatprep.subr.mxu0 0.0
      %1177 = vmatpush1.msra.mxu0 0.0
      %1178 = vmatprep.subr.mxu0 0.0
      %1179 = vmatpush1.msra.mxu0 0.0
      %1180 = vmatprep.subr.mxu0 0.0
      %1181 = vmatpush1.msra.mxu0 0.0
      %1182 = vmatprep.subr.mxu0 0.0
      %1183 = vmatpush1.msra.mxu0 0.0
      %1184 = vmatprep.subr.mxu0 0.0
      %1185 = vmatpush1.msra.mxu0 0.0
      %1186 = vmatprep.subr.mxu0 0.0
      %1187 = vmatpush1.msra.mxu0 0.0
      %1188 = vmatprep.subr.mxu0 0.0
      %1189 = vmatpush1.msra.mxu0 0.0
      %1190 = vmatprep.subr.mxu0 0.0
      %1191 = vmatpush1.msra.mxu0 0.0
      %1192 = vmatprep.subr.mxu0 0.0
      %1193 = vmatpush1.msra.mxu0 0.0
      %1194 = vmatprep.subr.mxu0 0.0
      %v1195 = vand.u32 %v444, 4294901760
      %1196 = vmatpush1.msra.mxu0 %v1195
      %1197 = vmatprep.subr.mxu0 0.0
      %v1198 = vand.u32 %v443, 4294901760
      %1199 = vmatpush1.msra.mxu0 %v1198
      %1200 = vmatprep.subr.mxu0 0.0
      %1201 = vmatpush2.msra.mxu0 0.0
      %1202 = vmatprep.subr.mxu0 0.0
      %1203 = vmatpush2.msra.mxu0 0.0
      %1204 = vmatprep.subr.mxu0 0.0
      %1205 = vmatpush2.msra.mxu0 0.0
      %1206 = vmatprep.subr.mxu0 0.0
      %1207 = vmatpush2.msra.mxu0 0.0
      %1208 = vmatprep.subr.mxu0 0.0
      %1209 = vmatpush2.msra.mxu0 0.0
      %1210 = vmatprep.subr.mxu0 0.0
      %1211 = vmatpush2.msra.mxu0 0.0
      %1212 = vmatprep.subr.mxu0 0.0
      %1213 = vmatpush2.msra.mxu0 0.0
      %1214 = vmatprep.subr.mxu0 0.0
      %1215 = vmatpush2.msra.mxu0 0.0
      %1216 = vmatprep.subr.mxu0 0.0
      %1217 = vmatpush2.msra.mxu0 0.0
      %1218 = vmatprep.subr.mxu0 0.0
      %1219 = vmatpush2.msra.mxu0 0.0
      %1220 = vmatprep.subr.mxu0 0.0
      %1221 = vmatpush2.msra.mxu0 0.0
      %1222 = vmatprep.subr.mxu0 0.0
      %1223 = vmatpush2.msra.mxu0 0.0
      %1224 = vmatprep.subr.mxu0 0.0
      %1225 = vmatpush2.msra.mxu0 0.0
      %1226 = vmatprep.subr.mxu0 0.0
      %1227 = vmatpush2.msra.mxu0 0.0
      %1228 = vmatprep.subr.mxu0 0.0
      %1229 = vmatpush2.msra.mxu0 0.0
      %1230 = vmatprep.subr.mxu0 0.0
      %1231 = vmatpush2.msra.mxu0 0.0
      %1232 = vmatprep.mubr.f32.mxu0 0.0
      %v1233 = vand.u32 %v471, 4294901760
      %v1234 = vsub.f32 %v471, %v1233
      %v1235 = vand.u32 %v1234, 4294901760
      %1236 = vmatmul.mubr.f32.gmra.mxu0 %v1235
      %v1237 = vpop.f32.mrf.mxu0
      %v1238 = vadd.f32 %v1163, %v1237
      %v1239 = vpop.f32.mrf.mxu0
      %1240 = vdwg.mxu0
      %1241 = vmatprep.subr.mxu0 0.0
      %1242 = vmatpush1.msra.mxu0 0.0
      %1243 = vmatprep.subr.mxu0 0.0
      %1244 = vmatpush1.msra.mxu0 0.0
      %1245 = vmatprep.subr.mxu0 0.0
      %1246 = vmatpush1.msra.mxu0 0.0
      %1247 = vmatprep.subr.mxu0 0.0
      %1248 = vmatpush1.msra.mxu0 0.0
      %1249 = vmatprep.subr.mxu0 0.0
      %1250 = vmatpush1.msra.mxu0 0.0
      %1251 = vmatprep.subr.mxu0 0.0
      %1252 = vmatpush1.msra.mxu0 0.0
      %1253 = vmatprep.subr.mxu0 0.0
      %1254 = vmatpush1.msra.mxu0 0.0
      %1255 = vmatprep.subr.mxu0 0.0
      %1256 = vmatpush1.msra.mxu0 0.0
      %1257 = vmatprep.subr.mxu0 0.0
      %1258 = vmatpush1.msra.mxu0 0.0
      %1259 = vmatprep.subr.mxu0 0.0
      %1260 = vmatpush1.msra.mxu0 0.0
      %1261 = vmatprep.subr.mxu0 0.0
      %1262 = vmatpush1.msra.mxu0 0.0
      %1263 = vmatprep.subr.mxu0 0.0
      %1264 = vmatpush1.msra.mxu0 0.0
      %1265 = vmatprep.subr.mxu0 0.0
      %1266 = vmatpush1.msra.mxu0 0.0
      %1267 = vmatprep.subr.mxu0 0.0
      %1268 = vmatpush1.msra.mxu0 0.0
      %1269 = vmatprep.subr.mxu0 0.0
      %v1270 = vand.u32 %v444, 4294901760
      %v1271 = vsub.f32 %v444, %v1270
      %v1272 = vand.u32 %v1271, 4294901760
      %1273 = vmatpush1.msra.mxu0 %v1272
      %1274 = vmatprep.subr.mxu0 0.0
      %v1275 = vand.u32 %v443, 4294901760
      %v1276 = vsub.f32 %v443, %v1275
      %v1277 = vand.u32 %v1276, 4294901760
      %1278 = vmatpush1.msra.mxu0 %v1277
      %1279 = vmatprep.subr.mxu0 0.0
      %1280 = vmatpush2.msra.mxu0 0.0
      %1281 = vmatprep.subr.mxu0 0.0
      %1282 = vmatpush2.msra.mxu0 0.0
      %1283 = vmatprep.subr.mxu0 0.0
      %1284 = vmatpush2.msra.mxu0 0.0
      %1285 = vmatprep.subr.mxu0 0.0
      %1286 = vmatpush2.msra.mxu0 0.0
      %1287 = vmatprep.subr.mxu0 0.0
      %1288 = vmatpush2.msra.mxu0 0.0
      %1289 = vmatprep.subr.mxu0 0.0
      %1290 = vmatpush2.msra.mxu0 0.0
      %1291 = vmatprep.subr.mxu0 0.0
      %1292 = vmatpush2.msra.mxu0 0.0
      %1293 = vmatprep.subr.mxu0 0.0
      %1294 = vmatpush2.msra.mxu0 0.0
      %1295 = vmatprep.subr.mxu0 0.0
      %1296 = vmatpush2.msra.mxu0 0.0
      %1297 = vmatprep.subr.mxu0 0.0
      %1298 = vmatpush2.msra.mxu0 0.0
      %1299 = vmatprep.subr.mxu0 0.0
      %1300 = vmatpush2.msra.mxu0 0.0
      %1301 = vmatprep.subr.mxu0 0.0
      %1302 = vmatpush2.msra.mxu0 0.0
      %1303 = vmatprep.subr.mxu0 0.0
      %1304 = vmatpush2.msra.mxu0 0.0
      %1305 = vmatprep.subr.mxu0 0.0
      %1306 = vmatpush2.msra.mxu0 0.0
      %1307 = vmatprep.subr.mxu0 0.0
      %1308 = vmatpush2.msra.mxu0 0.0
      %1309 = vmatprep.subr.mxu0 0.0
      %1310 = vmatpush2.msra.mxu0 0.0
      %1311 = vmatprep.mubr.f32.mxu0 0.0
      %v1312 = vand.u32 %v471, 4294901760
      %1313 = vmatmul.mubr.f32.gmra.mxu0 %v1312
      %v1314 = vpop.f32.mrf.mxu0
      %v1315 = vadd.f32 %v1238, %v1314
      %v1316 = vpop.f32.mrf.mxu0
      %1317 = vdwg.mxu0
      %1318 = vmatprep.subr.mxu0 0.0
      %1319 = vmatpush1.msra.mxu0 0.0
      %1320 = vmatprep.subr.mxu0 0.0
      %1321 = vmatpush1.msra.mxu0 0.0
      %1322 = vmatprep.subr.mxu0 0.0
      %1323 = vmatpush1.msra.mxu0 0.0
      %1324 = vmatprep.subr.mxu0 0.0
      %1325 = vmatpush1.msra.mxu0 0.0
      %1326 = vmatprep.subr.mxu0 0.0
      %1327 = vmatpush1.msra.mxu0 0.0
      %1328 = vmatprep.subr.mxu0 0.0
      %1329 = vmatpush1.msra.mxu0 0.0
      %1330 = vmatprep.subr.mxu0 0.0
      %1331 = vmatpush1.msra.mxu0 0.0
      %1332 = vmatprep.subr.mxu0 0.0
      %1333 = vmatpush1.msra.mxu0 0.0
      %1334 = vmatprep.subr.mxu0 0.0
      %1335 = vmatpush1.msra.mxu0 0.0
      %1336 = vmatprep.subr.mxu0 0.0
      %1337 = vmatpush1.msra.mxu0 0.0
      %1338 = vmatprep.subr.mxu0 0.0
      %1339 = vmatpush1.msra.mxu0 0.0
      %1340 = vmatprep.subr.mxu0 0.0
      %1341 = vmatpush1.msra.mxu0 0.0
      %1342 = vmatprep.subr.mxu0 0.0
      %1343 = vmatpush1.msra.mxu0 0.0
      %1344 = vmatprep.subr.mxu0 0.0
      %1345 = vmatpush1.msra.mxu0 0.0
      %1346 = vmatprep.subr.mxu0 0.0
      %v1347 = vand.u32 %v444, 4294901760
      %1348 = vmatpush1.msra.mxu0 %v1347
      %1349 = vmatprep.subr.mxu0 0.0
      %v1350 = vand.u32 %v443, 4294901760
      %1351 = vmatpush1.msra.mxu0 %v1350
      %1352 = vmatprep.subr.mxu0 0.0
      %1353 = vmatpush2.msra.mxu0 0.0
      %1354 = vmatprep.subr.mxu0 0.0
      %1355 = vmatpush2.msra.mxu0 0.0
      %1356 = vmatprep.subr.mxu0 0.0
      %1357 = vmatpush2.msra.mxu0 0.0
      %1358 = vmatprep.subr.mxu0 0.0
      %1359 = vmatpush2.msra.mxu0 0.0
      %1360 = vmatprep.subr.mxu0 0.0
      %1361 = vmatpush2.msra.mxu0 0.0
      %1362 = vmatprep.subr.mxu0 0.0
      %1363 = vmatpush2.msra.mxu0 0.0
      %1364 = vmatprep.subr.mxu0 0.0
      %1365 = vmatpush2.msra.mxu0 0.0
      %1366 = vmatprep.subr.mxu0 0.0
      %1367 = vmatpush2.msra.mxu0 0.0
      %1368 = vmatprep.subr.mxu0 0.0
      %1369 = vmatpush2.msra.mxu0 0.0
      %1370 = vmatprep.subr.mxu0 0.0
      %1371 = vmatpush2.msra.mxu0 0.0
      %1372 = vmatprep.subr.mxu0 0.0
      %1373 = vmatpush2.msra.mxu0 0.0
      %1374 = vmatprep.subr.mxu0 0.0
      %1375 = vmatpush2.msra.mxu0 0.0
      %1376 = vmatprep.subr.mxu0 0.0
      %1377 = vmatpush2.msra.mxu0 0.0
      %1378 = vmatprep.subr.mxu0 0.0
      %1379 = vmatpush2.msra.mxu0 0.0
      %1380 = vmatprep.subr.mxu0 0.0
      %1381 = vmatpush2.msra.mxu0 0.0
      %1382 = vmatprep.subr.mxu0 0.0
      %1383 = vmatpush2.msra.mxu0 0.0
      %1384 = vmatprep.mubr.f32.mxu0 0.0
      %v1385 = vand.u32 %v471, 4294901760
      %1386 = vmatmul.mubr.f32.gmra.mxu0 %v1385
      %v1387 = vpop.f32.mrf.mxu0
      %v1388 = vadd.f32 %v1315, %v1387
      %v1389 = vpop.f32.mrf.mxu0
      %1390 = vdwg.mxu0
      %v1391 = vmax.f32 %v929, %v1388
      %1392 = vxpose.xlu0.b32.start [1/16] %v1391, 128
      %1393 = vxpose.xlu0.b32.cont [2/16] 0.0, 128
      %1394 = vxpose.xlu0.b32.cont [3/16] 0.0, 128
      %1395 = vxpose.xlu0.b32.cont [4/16] 0.0, 128
      %1396 = vxpose.xlu0.b32.cont [5/16] 0.0, 128
      %1397 = vxpose.xlu0.b32.cont [6/16] 0.0, 128
      %1398 = vxpose.xlu0.b32.cont [7/16] 0.0, 128
      %1399 = vxpose.xlu0.b32.cont [8/16] 0.0, 128
      %1400 = vxpose.xlu0.b32.cont [9/16] 0.0, 128
      %1401 = vxpose.xlu0.b32.cont [10/16] 0.0, 128
      %1402 = vxpose.xlu0.b32.cont [11/16] 0.0, 128
      %1403 = vxpose.xlu0.b32.cont [12/16] 0.0, 128
      %1404 = vxpose.xlu0.b32.cont [13/16] 0.0, 128
      %1405 = vxpose.xlu0.b32.cont [14/16] 0.0, 128
      %1406 = vxpose.xlu0.b32.cont [15/16] 0.0, 128
      %1407 = vxpose.xlu0.b32.end [16/16] 0.0, 128
      %v1408 = vpop.trf.xlu0
      %v1409 = vpop.trf.xlu0
      %v1410 = vpop.trf.xlu0
      %v1411 = vpop.trf.xlu0
      %v1412 = vpop.trf.xlu0
      %v1413 = vpop.trf.xlu0
      %v1414 = vpop.trf.xlu0
      %v1415 = vpop.trf.xlu0
      %v1416 = vpop.trf.xlu0
      %v1417 = vpop.trf.xlu0
      %v1418 = vpop.trf.xlu0
      %v1419 = vpop.trf.xlu0
      %v1420 = vpop.trf.xlu0
      %v1421 = vpop.trf.xlu0
      %v1422 = vpop.trf.xlu0
      %v1423 = vpop.trf.xlu0
      %s1424 = scalar_lea.vmem [#allocation2], 16
      %1425 = vst.msk [vmem:[%s1424 + $0x1] sm:$0xff] %vm385, %v1408
      %v1426 = vld [vmem:[%s380 + $0x2] sm:$0x1]
      %v1427 = vld [vmem:[%s380 + $0x12] sm:$0x1]
      %v1428 = vld [vmem:[%s380 + $0x22] sm:$0x1]
      %v1429 = vld [vmem:[%s380 + $0x32] sm:$0x1]
      %v1430 = vld [vmem:[%s380 + $0x3] sm:$0x1]
      %v1431 = vld [vmem:[%s380 + $0x13] sm:$0x1]
      %v1432 = vld [vmem:[%s380 + $0x23] sm:$0x1]
      %v1433 = vld [vmem:[%s380 + $0x33] sm:$0x1]
      %v1434 = vmax.f32 %v1426, %v1430
      %v1435 = vmax.f32 %v1427, %v1431
      %v1436 = vmax.f32 %v1428, %v1432
      %v1437 = vmax.f32 %v1429, %v1433
      %v1442 = vrot.slane %v1435, 7
      %v1443 = vsel %vm462, %v1442, %v1434
      %v1444 = vrot.slane %v1436, 6
      %v1445 = vsel %vm465, %v1444, %v1443
      %v1446 = vrot.slane %v1437, 5
      %v1447 = vsel %vm468, %v1446, %v1445
      %v1448 = vsel %vm470, %v1447, 0
      %1450 = vmatprep.subr.mxu0 0.0
      %1451 = vmatpush1.msra.mxu0 0.0
      %1452 = vmatprep.subr.mxu0 0.0
      %1453 = vmatpush1.msra.mxu0 0.0
      %1454 = vmatprep.subr.mxu0 0.0
      %1455 = vmatpush1.msra.mxu0 0.0
      %1456 = vmatprep.subr.mxu0 0.0
      %1457 = vmatpush1.msra.mxu0 0.0
      %1458 = vmatprep.subr.mxu0 0.0
      %1459 = vmatpush1.msra.mxu0 0.0
      %1460 = vmatprep.subr.mxu0 0.0
      %1461 = vmatpush1.msra.mxu0 0.0
      %1462 = vmatprep.subr.mxu0 0.0
      %1463 = vmatpush1.msra.mxu0 0.0
      %1464 = vmatprep.subr.mxu0 0.0
      %1465 = vmatpush1.msra.mxu0 0.0
      %1466 = vmatprep.subr.mxu0 0.0
      %1467 = vmatpush1.msra.mxu0 0.0
      %1468 = vmatprep.subr.mxu0 0.0
      %1469 = vmatpush1.msra.mxu0 0.0
      %1470 = vmatprep.subr.mxu0 0.0
      %1471 = vmatpush1.msra.mxu0 0.0
      %1472 = vmatprep.subr.mxu0 0.0
      %1473 = vmatpush1.msra.mxu0 0.0
      %1474 = vmatprep.subr.mxu0 0.0
      %1475 = vmatpush1.msra.mxu0 0.0
      %1476 = vmatprep.subr.mxu0 0.0
      %1477 = vmatpush1.msra.mxu0 0.0
      %1478 = vmatprep.subr.mxu0 0.0
      %v1479 = vand.u32 %v442, 4294901760
      %1480 = vmatpush1.msra.mxu0 %v1479
      %1481 = vmatprep.subr.mxu0 0.0
      %v1482 = vand.u32 %v441, 4294901760
      %1483 = vmatpush1.msra.mxu0 %v1482
      %1484 = vmatprep.subr.mxu0 0.0
      %1485 = vmatpush2.msra.mxu0 0.0
      %1486 = vmatprep.subr.mxu0 0.0
      %1487 = vmatpush2.msra.mxu0 0.0
      %1488 = vmatprep.subr.mxu0 0.0
      %1489 = vmatpush2.msra.mxu0 0.0
      %1490 = vmatprep.subr.mxu0 0.0
      %1491 = vmatpush2.msra.mxu0 0.0
      %1492 = vmatprep.subr.mxu0 0.0
      %1493 = vmatpush2.msra.mxu0 0.0
      %1494 = vmatprep.subr.mxu0 0.0
      %1495 = vmatpush2.msra.mxu0 0.0
      %1496 = vmatprep.subr.mxu0 0.0
      %1497 = vmatpush2.msra.mxu0 0.0
      %1498 = vmatprep.subr.mxu0 0.0
      %1499 = vmatpush2.msra.mxu0 0.0
      %1500 = vmatprep.subr.mxu0 0.0
      %1501 = vmatpush2.msra.mxu0 0.0
      %1502 = vmatprep.subr.mxu0 0.0
      %1503 = vmatpush2.msra.mxu0 0.0
      %1504 = vmatprep.subr.mxu0 0.0
      %1505 = vmatpush2.msra.mxu0 0.0
      %1506 = vmatprep.subr.mxu0 0.0
      %1507 = vmatpush2.msra.mxu0 0.0
      %1508 = vmatprep.subr.mxu0 0.0
      %1509 = vmatpush2.msra.mxu0 0.0
      %1510 = vmatprep.subr.mxu0 0.0
      %1511 = vmatpush2.msra.mxu0 0.0
      %1512 = vmatprep.subr.mxu0 0.0
      %1513 = vmatpush2.msra.mxu0 0.0
      %1514 = vmatprep.subr.mxu0 0.0
      %1515 = vmatpush2.msra.mxu0 0.0
      %1516 = vmatprep.mubr.f32.mxu0 0.0
      %v1517 = vand.u32 %v1448, 4294901760
      %v1518 = vsub.f32 %v1448, %v1517
      %v1519 = vand.u32 %v1518, 4294901760
      %v1520 = vsub.f32 %v1518, %v1519
      %v1521 = vand.u32 %v1520, 4294901760
      %1522 = vmatmul.mubr.f32.gmra.mxu0 %v1521
      %v1523 = vpop.f32.mrf.mxu0
      %v1524 = vadd.f32 0.0, %v1523
      %v1525 = vpop.f32.mrf.mxu0
      %1526 = vdwg.mxu0
      %1527 = vmatprep.subr.mxu0 0.0
      %1528 = vmatpush1.msra.mxu0 0.0
      %1529 = vmatprep.subr.mxu0 0.0
      %1530 = vmatpush1.msra.mxu0 0.0
      %1531 = vmatprep.subr.mxu0 0.0
      %1532 = vmatpush1.msra.mxu0 0.0
      %1533 = vmatprep.subr.mxu0 0.0
      %1534 = vmatpush1.msra.mxu0 0.0
      %1535 = vmatprep.subr.mxu0 0.0
      %1536 = vmatpush1.msra.mxu0 0.0
      %1537 = vmatprep.subr.mxu0 0.0
      %1538 = vmatpush1.msra.mxu0 0.0
      %1539 = vmatprep.subr.mxu0 0.0
      %1540 = vmatpush1.msra.mxu0 0.0
      %1541 = vmatprep.subr.mxu0 0.0
      %1542 = vmatpush1.msra.mxu0 0.0
      %1543 = vmatprep.subr.mxu0 0.0
      %1544 = vmatpush1.msra.mxu0 0.0
      %1545 = vmatprep.subr.mxu0 0.0
      %1546 = vmatpush1.msra.mxu0 0.0
      %1547 = vmatprep.subr.mxu0 0.0
      %1548 = vmatpush1.msra.mxu0 0.0
      %1549 = vmatprep.subr.mxu0 0.0
      %1550 = vmatpush1.msra.mxu0 0.0
      %1551 = vmatprep.subr.mxu0 0.0
      %1552 = vmatpush1.msra.mxu0 0.0
      %1553 = vmatprep.subr.mxu0 0.0
      %1554 = vmatpush1.msra.mxu0 0.0
      %1555 = vmatprep.subr.mxu0 0.0
      %v1556 = vand.u32 %v442, 4294901760
      %v1557 = vsub.f32 %v442, %v1556
      %v1558 = vand.u32 %v1557, 4294901760
      %v1559 = vsub.f32 %v1557, %v1558
      %v1560 = vand.u32 %v1559, 4294901760
      %1561 = vmatpush1.msra.mxu0 %v1560
      %1562 = vmatprep.subr.mxu0 0.0
      %v1563 = vand.u32 %v441, 4294901760
      %v1564 = vsub.f32 %v441, %v1563
      %v1565 = vand.u32 %v1564, 4294901760
      %v1566 = vsub.f32 %v1564, %v1565
      %v1567 = vand.u32 %v1566, 4294901760
      %1568 = vmatpush1.msra.mxu0 %v1567
      %1569 = vmatprep.subr.mxu0 0.0
      %1570 = vmatpush2.msra.mxu0 0.0
      %1571 = vmatprep.subr.mxu0 0.0
      %1572 = vmatpush2.msra.mxu0 0.0
      %1573 = vmatprep.subr.mxu0 0.0
      %1574 = vmatpush2.msra.mxu0 0.0
      %1575 = vmatprep.subr.mxu0 0.0
      %1576 = vmatpush2.msra.mxu0 0.0
      %1577 = vmatprep.subr.mxu0 0.0
      %1578 = vmatpush2.msra.mxu0 0.0
      %1579 = vmatprep.subr.mxu0 0.0
      %1580 = vmatpush2.msra.mxu0 0.0
      %1581 = vmatprep.subr.mxu0 0.0
      %1582 = vmatpush2.msra.mxu0 0.0
      %1583 = vmatprep.subr.mxu0 0.0
      %1584 = vmatpush2.msra.mxu0 0.0
      %1585 = vmatprep.subr.mxu0 0.0
      %1586 = vmatpush2.msra.mxu0 0.0
      %1587 = vmatprep.subr.mxu0 0.0
      %1588 = vmatpush2.msra.mxu0 0.0
      %1589 = vmatprep.subr.mxu0 0.0
      %1590 = vmatpush2.msra.mxu0 0.0
      %1591 = vmatprep.subr.mxu0 0.0
      %1592 = vmatpush2.msra.mxu0 0.0
      %1593 = vmatprep.subr.mxu0 0.0
      %1594 = vmatpush2.msra.mxu0 0.0
      %1595 = vmatprep.subr.mxu0 0.0
      %1596 = vmatpush2.msra.mxu0 0.0
      %1597 = vmatprep.subr.mxu0 0.0
      %1598 = vmatpush2.msra.mxu0 0.0
      %1599 = vmatprep.subr.mxu0 0.0
      %1600 = vmatpush2.msra.mxu0 0.0
      %1601 = vmatprep.mubr.f32.mxu0 0.0
      %v1602 = vand.u32 %v1448, 4294901760
      %1603 = vmatmul.mubr.f32.gmra.mxu0 %v1602
      %v1604 = vpop.f32.mrf.mxu0
      %v1605 = vadd.f32 %v1524, %v1604
      %v1606 = vpop.f32.mrf.mxu0
      %1607 = vdwg.mxu0
      %1608 = vmatprep.subr.mxu0 0.0
      %1609 = vmatpush1.msra.mxu0 0.0
      %1610 = vmatprep.subr.mxu0 0.0
      %1611 = vmatpush1.msra.mxu0 0.0
      %1612 = vmatprep.subr.mxu0 0.0
      %1613 = vmatpush1.msra.mxu0 0.0
      %1614 = vmatprep.subr.mxu0 0.0
      %1615 = vmatpush1.msra.mxu0 0.0
      %1616 = vmatprep.subr.mxu0 0.0
      %1617 = vmatpush1.msra.mxu0 0.0
      %1618 = vmatprep.subr.mxu0 0.0
      %1619 = vmatpush1.msra.mxu0 0.0
      %1620 = vmatprep.subr.mxu0 0.0
      %1621 = vmatpush1.msra.mxu0 0.0
      %1622 = vmatprep.subr.mxu0 0.0
      %1623 = vmatpush1.msra.mxu0 0.0
      %1624 = vmatprep.subr.mxu0 0.0
      %1625 = vmatpush1.msra.mxu0 0.0
      %1626 = vmatprep.subr.mxu0 0.0
      %1627 = vmatpush1.msra.mxu0 0.0
      %1628 = vmatprep.subr.mxu0 0.0
      %1629 = vmatpush1.msra.mxu0 0.0
      %1630 = vmatprep.subr.mxu0 0.0
      %1631 = vmatpush1.msra.mxu0 0.0
      %1632 = vmatprep.subr.mxu0 0.0
      %1633 = vmatpush1.msra.mxu0 0.0
      %1634 = vmatprep.subr.mxu0 0.0
      %1635 = vmatpush1.msra.mxu0 0.0
      %1636 = vmatprep.subr.mxu0 0.0
      %v1637 = vand.u32 %v442, 4294901760
      %v1638 = vsub.f32 %v442, %v1637
      %1639 = vmatpush1.msra.mxu0 %v1638
      %1640 = vmatprep.subr.mxu0 0.0
      %v1641 = vand.u32 %v441, 4294901760
      %v1642 = vsub.f32 %v441, %v1641
      %1643 = vmatpush1.msra.mxu0 %v1642
      %1644 = vmatprep.subr.mxu0 0.0
      %1645 = vmatpush2.msra.mxu0 0.0
      %1646 = vmatprep.subr.mxu0 0.0
      %1647 = vmatpush2.msra.mxu0 0.0
      %1648 = vmatprep.subr.mxu0 0.0
      %1649 = vmatpush2.msra.mxu0 0.0
      %1650 = vmatprep.subr.mxu0 0.0
      %1651 = vmatpush2.msra.mxu0 0.0
      %1652 = vmatprep.subr.mxu0 0.0
      %1653 = vmatpush2.msra.mxu0 0.0
      %1654 = vmatprep.subr.mxu0 0.0
      %1655 = vmatpush2.msra.mxu0 0.0
      %1656 = vmatprep.subr.mxu0 0.0
      %1657 = vmatpush2.msra.mxu0 0.0
      %1658 = vmatprep.subr.mxu0 0.0
      %1659 = vmatpush2.msra.mxu0 0.0
      %1660 = vmatprep.subr.mxu0 0.0
      %1661 = vmatpush2.msra.mxu0 0.0
      %1662 = vmatprep.subr.mxu0 0.0
      %1663 = vmatpush2.msra.mxu0 0.0
      %1664 = vmatprep.subr.mxu0 0.0
      %1665 = vmatpush2.msra.mxu0 0.0
      %1666 = vmatprep.subr.mxu0 0.0
      %1667 = vmatpush2.msra.mxu0 0.0
      %1668 = vmatprep.subr.mxu0 0.0
      %1669 = vmatpush2.msra.mxu0 0.0
      %1670 = vmatprep.subr.mxu0 0.0
      %1671 = vmatpush2.msra.mxu0 0.0
      %1672 = vmatprep.subr.mxu0 0.0
      %1673 = vmatpush2.msra.mxu0 0.0
      %1674 = vmatprep.subr.mxu0 0.0
      %1675 = vmatpush2.msra.mxu0 0.0
      %1676 = vmatprep.mubr.f32.mxu0 0.0
      %v1677 = vand.u32 %v1448, 4294901760
      %v1678 = vsub.f32 %v1448, %v1677
      %1679 = vmatmul.mubr.f32.gmra.mxu0 %v1678
      %v1680 = vpop.f32.mrf.mxu0
      %v1681 = vadd.f32 %v1605, %v1680
      %v1682 = vpop.f32.mrf.mxu0
      %1683 = vdwg.mxu0
      %1684 = vmatprep.subr.mxu0 0.0
      %1685 = vmatpush1.msra.mxu0 0.0
      %1686 = vmatprep.subr.mxu0 0.0
      %1687 = vmatpush1.msra.mxu0 0.0
      %1688 = vmatprep.subr.mxu0 0.0
      %1689 = vmatpush1.msra.mxu0 0.0
      %1690 = vmatprep.subr.mxu0 0.0
      %1691 = vmatpush1.msra.mxu0 0.0
      %1692 = vmatprep.subr.mxu0 0.0
      %1693 = vmatpush1.msra.mxu0 0.0
      %1694 = vmatprep.subr.mxu0 0.0
      %1695 = vmatpush1.msra.mxu0 0.0
      %1696 = vmatprep.subr.mxu0 0.0
      %1697 = vmatpush1.msra.mxu0 0.0
      %1698 = vmatprep.subr.mxu0 0.0
      %1699 = vmatpush1.msra.mxu0 0.0
      %1700 = vmatprep.subr.mxu0 0.0
      %1701 = vmatpush1.msra.mxu0 0.0
      %1702 = vmatprep.subr.mxu0 0.0
      %1703 = vmatpush1.msra.mxu0 0.0
      %1704 = vmatprep.subr.mxu0 0.0
      %1705 = vmatpush1.msra.mxu0 0.0
      %1706 = vmatprep.subr.mxu0 0.0
      %1707 = vmatpush1.msra.mxu0 0.0
      %1708 = vmatprep.subr.mxu0 0.0
      %1709 = vmatpush1.msra.mxu0 0.0
      %1710 = vmatprep.subr.mxu0 0.0
      %1711 = vmatpush1.msra.mxu0 0.0
      %1712 = vmatprep.subr.mxu0 0.0
      %v1713 = vand.u32 %v442, 4294901760
      %1714 = vmatpush1.msra.mxu0 %v1713
      %1715 = vmatprep.subr.mxu0 0.0
      %v1716 = vand.u32 %v441, 4294901760
      %1717 = vmatpush1.msra.mxu0 %v1716
      %1718 = vmatprep.subr.mxu0 0.0
      %1719 = vmatpush2.msra.mxu0 0.0
      %1720 = vmatprep.subr.mxu0 0.0
      %1721 = vmatpush2.msra.mxu0 0.0
      %1722 = vmatprep.subr.mxu0 0.0
      %1723 = vmatpush2.msra.mxu0 0.0
      %1724 = vmatprep.subr.mxu0 0.0
      %1725 = vmatpush2.msra.mxu0 0.0
      %1726 = vmatprep.subr.mxu0 0.0
      %1727 = vmatpush2.msra.mxu0 0.0
      %1728 = vmatprep.subr.mxu0 0.0
      %1729 = vmatpush2.msra.mxu0 0.0
      %1730 = vmatprep.subr.mxu0 0.0
      %1731 = vmatpush2.msra.mxu0 0.0
      %1732 = vmatprep.subr.mxu0 0.0
      %1733 = vmatpush2.msra.mxu0 0.0
      %1734 = vmatprep.subr.mxu0 0.0
      %1735 = vmatpush2.msra.mxu0 0.0
      %1736 = vmatprep.subr.mxu0 0.0
      %1737 = vmatpush2.msra.mxu0 0.0
      %1738 = vmatprep.subr.mxu0 0.0
      %1739 = vmatpush2.msra.mxu0 0.0
      %1740 = vmatprep.subr.mxu0 0.0
      %1741 = vmatpush2.msra.mxu0 0.0
      %1742 = vmatprep.subr.mxu0 0.0
      %1743 = vmatpush2.msra.mxu0 0.0
      %1744 = vmatprep.subr.mxu0 0.0
      %1745 = vmatpush2.msra.mxu0 0.0
      %1746 = vmatprep.subr.mxu0 0.0
      %1747 = vmatpush2.msra.mxu0 0.0
      %1748 = vmatprep.subr.mxu0 0.0
      %1749 = vmatpush2.msra.mxu0 0.0
      %1750 = vmatprep.mubr.f32.mxu0 0.0
      %v1751 = vand.u32 %v1448, 4294901760
      %v1752 = vsub.f32 %v1448, %v1751
      %v1753 = vand.u32 %v1752, 4294901760
      %1754 = vmatmul.mubr.f32.gmra.mxu0 %v1753
      %v1755 = vpop.f32.mrf.mxu0
      %v1756 = vadd.f32 %v1681, %v1755
      %v1757 = vpop.f32.mrf.mxu0
      %1758 = vdwg.mxu0
      %1759 = vmatprep.subr.mxu0 0.0
      %1760 = vmatpush1.msra.mxu0 0.0
      %1761 = vmatprep.subr.mxu0 0.0
      %1762 = vmatpush1.msra.mxu0 0.0
      %1763 = vmatprep.subr.mxu0 0.0
      %1764 = vmatpush1.msra.mxu0 0.0
      %1765 = vmatprep.subr.mxu0 0.0
      %1766 = vmatpush1.msra.mxu0 0.0
      %1767 = vmatprep.subr.mxu0 0.0
      %1768 = vmatpush1.msra.mxu0 0.0
      %1769 = vmatprep.subr.mxu0 0.0
      %1770 = vmatpush1.msra.mxu0 0.0
      %1771 = vmatprep.subr.mxu0 0.0
      %1772 = vmatpush1.msra.mxu0 0.0
      %1773 = vmatprep.subr.mxu0 0.0
      %1774 = vmatpush1.msra.mxu0 0.0
      %1775 = vmatprep.subr.mxu0 0.0
      %1776 = vmatpush1.msra.mxu0 0.0
      %1777 = vmatprep.subr.mxu0 0.0
      %1778 = vmatpush1.msra.mxu0 0.0
      %1779 = vmatprep.subr.mxu0 0.0
      %1780 = vmatpush1.msra.mxu0 0.0
      %1781 = vmatprep.subr.mxu0 0.0
      %1782 = vmatpush1.msra.mxu0 0.0
      %1783 = vmatprep.subr.mxu0 0.0
      %1784 = vmatpush1.msra.mxu0 0.0
      %1785 = vmatprep.subr.mxu0 0.0
      %1786 = vmatpush1.msra.mxu0 0.0
      %1787 = vmatprep.subr.mxu0 0.0
      %v1788 = vand.u32 %v442, 4294901760
      %v1789 = vsub.f32 %v442, %v1788
      %v1790 = vand.u32 %v1789, 4294901760
      %1791 = vmatpush1.msra.mxu0 %v1790
      %1792 = vmatprep.subr.mxu0 0.0
      %v1793 = vand.u32 %v441, 4294901760
      %v1794 = vsub.f32 %v441, %v1793
      %v1795 = vand.u32 %v1794, 4294901760
      %1796 = vmatpush1.msra.mxu0 %v1795
      %1797 = vmatprep.subr.mxu0 0.0
      %1798 = vmatpush2.msra.mxu0 0.0
      %1799 = vmatprep.subr.mxu0 0.0
      %1800 = vmatpush2.msra.mxu0 0.0
      %1801 = vmatprep.subr.mxu0 0.0
      %1802 = vmatpush2.msra.mxu0 0.0
      %1803 = vmatprep.subr.mxu0 0.0
      %1804 = vmatpush2.msra.mxu0 0.0
      %1805 = vmatprep.subr.mxu0 0.0
      %1806 = vmatpush2.msra.mxu0 0.0
      %1807 = vmatprep.subr.mxu0 0.0
      %1808 = vmatpush2.msra.mxu0 0.0
      %1809 = vmatprep.subr.mxu0 0.0
      %1810 = vmatpush2.msra.mxu0 0.0
      %1811 = vmatprep.subr.mxu0 0.0
      %1812 = vmatpush2.msra.mxu0 0.0
      %1813 = vmatprep.subr.mxu0 0.0
      %1814 = vmatpush2.msra.mxu0 0.0
      %1815 = vmatprep.subr.mxu0 0.0
      %1816 = vmatpush2.msra.mxu0 0.0
      %1817 = vmatprep.subr.mxu0 0.0
      %1818 = vmatpush2.msra.mxu0 0.0
      %1819 = vmatprep.subr.mxu0 0.0
      %1820 = vmatpush2.msra.mxu0 0.0
      %1821 = vmatprep.subr.mxu0 0.0
      %1822 = vmatpush2.msra.mxu0 0.0
      %1823 = vmatprep.subr.mxu0 0.0
      %1824 = vmatpush2.msra.mxu0 0.0
      %1825 = vmatprep.subr.mxu0 0.0
      %1826 = vmatpush2.msra.mxu0 0.0
      %1827 = vmatprep.subr.mxu0 0.0
      %1828 = vmatpush2.msra.mxu0 0.0
      %1829 = vmatprep.mubr.f32.mxu0 0.0
      %v1830 = vand.u32 %v1448, 4294901760
      %1831 = vmatmul.mubr.f32.gmra.mxu0 %v1830
      %v1832 = vpop.f32.mrf.mxu0
      %v1833 = vadd.f32 %v1756, %v1832
      %v1834 = vpop.f32.mrf.mxu0
      %1835 = vdwg.mxu0
      %1836 = vmatprep.subr.mxu0 0.0
      %1837 = vmatpush1.msra.mxu0 0.0
      %1838 = vmatprep.subr.mxu0 0.0
      %1839 = vmatpush1.msra.mxu0 0.0
      %1840 = vmatprep.subr.mxu0 0.0
      %1841 = vmatpush1.msra.mxu0 0.0
      %1842 = vmatprep.subr.mxu0 0.0
      %1843 = vmatpush1.msra.mxu0 0.0
      %1844 = vmatprep.subr.mxu0 0.0
      %1845 = vmatpush1.msra.mxu0 0.0
      %1846 = vmatprep.subr.mxu0 0.0
      %1847 = vmatpush1.msra.mxu0 0.0
      %1848 = vmatprep.subr.mxu0 0.0
      %1849 = vmatpush1.msra.mxu0 0.0
      %1850 = vmatprep.subr.mxu0 0.0
      %1851 = vmatpush1.msra.mxu0 0.0
      %1852 = vmatprep.subr.mxu0 0.0
      %1853 = vmatpush1.msra.mxu0 0.0
      %1854 = vmatprep.subr.mxu0 0.0
      %1855 = vmatpush1.msra.mxu0 0.0
      %1856 = vmatprep.subr.mxu0 0.0
      %1857 = vmatpush1.msra.mxu0 0.0
      %1858 = vmatprep.subr.mxu0 0.0
      %1859 = vmatpush1.msra.mxu0 0.0
      %1860 = vmatprep.subr.mxu0 0.0
      %1861 = vmatpush1.msra.mxu0 0.0
      %1862 = vmatprep.subr.mxu0 0.0
      %1863 = vmatpush1.msra.mxu0 0.0
      %1864 = vmatprep.subr.mxu0 0.0
      %v1865 = vand.u32 %v442, 4294901760
      %1866 = vmatpush1.msra.mxu0 %v1865
      %1867 = vmatprep.subr.mxu0 0.0
      %v1868 = vand.u32 %v441, 4294901760
      %1869 = vmatpush1.msra.mxu0 %v1868
      %1870 = vmatprep.subr.mxu0 0.0
      %1871 = vmatpush2.msra.mxu0 0.0
      %1872 = vmatprep.subr.mxu0 0.0
      %1873 = vmatpush2.msra.mxu0 0.0
      %1874 = vmatprep.subr.mxu0 0.0
      %1875 = vmatpush2.msra.mxu0 0.0
      %1876 = vmatprep.subr.mxu0 0.0
      %1877 = vmatpush2.msra.mxu0 0.0
      %1878 = vmatprep.subr.mxu0 0.0
      %1879 = vmatpush2.msra.mxu0 0.0
      %1880 = vmatprep.subr.mxu0 0.0
      %1881 = vmatpush2.msra.mxu0 0.0
      %1882 = vmatprep.subr.mxu0 0.0
      %1883 = vmatpush2.msra.mxu0 0.0
      %1884 = vmatprep.subr.mxu0 0.0
      %1885 = vmatpush2.msra.mxu0 0.0
      %1886 = vmatprep.subr.mxu0 0.0
      %1887 = vmatpush2.msra.mxu0 0.0
      %1888 = vmatprep.subr.mxu0 0.0
      %1889 = vmatpush2.msra.mxu0 0.0
      %1890 = vmatprep.subr.mxu0 0.0
      %1891 = vmatpush2.msra.mxu0 0.0
      %1892 = vmatprep.subr.mxu0 0.0
      %1893 = vmatpush2.msra.mxu0 0.0
      %1894 = vmatprep.subr.mxu0 0.0
      %1895 = vmatpush2.msra.mxu0 0.0
      %1896 = vmatprep.subr.mxu0 0.0
      %1897 = vmatpush2.msra.mxu0 0.0
      %1898 = vmatprep.subr.mxu0 0.0
      %1899 = vmatpush2.msra.mxu0 0.0
      %1900 = vmatprep.subr.mxu0 0.0
      %1901 = vmatpush2.msra.mxu0 0.0
      %1902 = vmatprep.mubr.f32.mxu0 0.0
      %v1903 = vand.u32 %v1448, 4294901760
      %1904 = vmatmul.mubr.f32.gmra.mxu0 %v1903
      %v1905 = vpop.f32.mrf.mxu0
      %v1906 = vadd.f32 %v1833, %v1905
      %v1907 = vpop.f32.mrf.mxu0
      %1908 = vdwg.mxu0
      %1909 = vmatprep.subr.mxu0 0.0
      %1910 = vmatpush1.msra.mxu0 0.0
      %1911 = vmatprep.subr.mxu0 0.0
      %1912 = vmatpush1.msra.mxu0 0.0
      %1913 = vmatprep.subr.mxu0 0.0
      %1914 = vmatpush1.msra.mxu0 0.0
      %1915 = vmatprep.subr.mxu0 0.0
      %1916 = vmatpush1.msra.mxu0 0.0
      %1917 = vmatprep.subr.mxu0 0.0
      %1918 = vmatpush1.msra.mxu0 0.0
      %1919 = vmatprep.subr.mxu0 0.0
      %1920 = vmatpush1.msra.mxu0 0.0
      %1921 = vmatprep.subr.mxu0 0.0
      %1922 = vmatpush1.msra.mxu0 0.0
      %1923 = vmatprep.subr.mxu0 0.0
      %1924 = vmatpush1.msra.mxu0 0.0
      %1925 = vmatprep.subr.mxu0 0.0
      %1926 = vmatpush1.msra.mxu0 0.0
      %1927 = vmatprep.subr.mxu0 0.0
      %1928 = vmatpush1.msra.mxu0 0.0
      %1929 = vmatprep.subr.mxu0 0.0
      %1930 = vmatpush1.msra.mxu0 0.0
      %1931 = vmatprep.subr.mxu0 0.0
      %1932 = vmatpush1.msra.mxu0 0.0
      %1933 = vmatprep.subr.mxu0 0.0
      %1934 = vmatpush1.msra.mxu0 0.0
      %1935 = vmatprep.subr.mxu0 0.0
      %1936 = vmatpush1.msra.mxu0 0.0
      %1937 = vmatprep.subr.mxu0 0.0
      %v1938 = vand.u32 %v444, 4294901760
      %1939 = vmatpush1.msra.mxu0 %v1938
      %1940 = vmatprep.subr.mxu0 0.0
      %v1941 = vand.u32 %v443, 4294901760
      %1942 = vmatpush1.msra.mxu0 %v1941
      %1943 = vmatprep.subr.mxu0 0.0
      %1944 = vmatpush2.msra.mxu0 0.0
      %1945 = vmatprep.subr.mxu0 0.0
      %1946 = vmatpush2.msra.mxu0 0.0
      %1947 = vmatprep.subr.mxu0 0.0
      %1948 = vmatpush2.msra.mxu0 0.0
      %1949 = vmatprep.subr.mxu0 0.0
      %1950 = vmatpush2.msra.mxu0 0.0
      %1951 = vmatprep.subr.mxu0 0.0
      %1952 = vmatpush2.msra.mxu0 0.0
      %1953 = vmatprep.subr.mxu0 0.0
      %1954 = vmatpush2.msra.mxu0 0.0
      %1955 = vmatprep.subr.mxu0 0.0
      %1956 = vmatpush2.msra.mxu0 0.0
      %1957 = vmatprep.subr.mxu0 0.0
      %1958 = vmatpush2.msra.mxu0 0.0
      %1959 = vmatprep.subr.mxu0 0.0
      %1960 = vmatpush2.msra.mxu0 0.0
      %1961 = vmatprep.subr.mxu0 0.0
      %1962 = vmatpush2.msra.mxu0 0.0
      %1963 = vmatprep.subr.mxu0 0.0
      %1964 = vmatpush2.msra.mxu0 0.0
      %1965 = vmatprep.subr.mxu0 0.0
      %1966 = vmatpush2.msra.mxu0 0.0
      %1967 = vmatprep.subr.mxu0 0.0
      %1968 = vmatpush2.msra.mxu0 0.0
      %1969 = vmatprep.subr.mxu0 0.0
      %1970 = vmatpush2.msra.mxu0 0.0
      %1971 = vmatprep.subr.mxu0 0.0
      %1972 = vmatpush2.msra.mxu0 0.0
      %1973 = vmatprep.subr.mxu0 0.0
      %1974 = vmatpush2.msra.mxu0 0.0
      %1975 = vmatprep.mubr.f32.mxu0 0.0
      %v1976 = vand.u32 %v1448, 4294901760
      %v1977 = vsub.f32 %v1448, %v1976
      %v1978 = vand.u32 %v1977, 4294901760
      %v1979 = vsub.f32 %v1977, %v1978
      %v1980 = vand.u32 %v1979, 4294901760
      %1981 = vmatmul.mubr.f32.gmra.mxu0 %v1980
      %v1982 = vpop.f32.mrf.mxu0
      %v1983 = vadd.f32 0.0, %v1982
      %v1984 = vpop.f32.mrf.mxu0
      %1985 = vdwg.mxu0
      %1986 = vmatprep.subr.mxu0 0.0
      %1987 = vmatpush1.msra.mxu0 0.0
      %1988 = vmatprep.subr.mxu0 0.0
      %1989 = vmatpush1.msra.mxu0 0.0
      %1990 = vmatprep.subr.mxu0 0.0
      %1991 = vmatpush1.msra.mxu0 0.0
      %1992 = vmatprep.subr.mxu0 0.0
      %1993 = vmatpush1.msra.mxu0 0.0
      %1994 = vmatprep.subr.mxu0 0.0
      %1995 = vmatpush1.msra.mxu0 0.0
      %1996 = vmatprep.subr.mxu0 0.0
      %1997 = vmatpush1.msra.mxu0 0.0
      %1998 = vmatprep.subr.mxu0 0.0
      %1999 = vmatpush1.msra.mxu0 0.0
      %2000 = vmatprep.subr.mxu0 0.0
      %2001 = vmatpush1.msra.mxu0 0.0
      %2002 = vmatprep.subr.mxu0 0.0
      %2003 = vmatpush1.msra.mxu0 0.0
      %2004 = vmatprep.subr.mxu0 0.0
      %2005 = vmatpush1.msra.mxu0 0.0
      %2006 = vmatprep.subr.mxu0 0.0
      %2007 = vmatpush1.msra.mxu0 0.0
      %2008 = vmatprep.subr.mxu0 0.0
      %2009 = vmatpush1.msra.mxu0 0.0
      %2010 = vmatprep.subr.mxu0 0.0
      %2011 = vmatpush1.msra.mxu0 0.0
      %2012 = vmatprep.subr.mxu0 0.0
      %2013 = vmatpush1.msra.mxu0 0.0
      %2014 = vmatprep.subr.mxu0 0.0
      %v2015 = vand.u32 %v444, 4294901760
      %v2016 = vsub.f32 %v444, %v2015
      %v2017 = vand.u32 %v2016, 4294901760
      %v2018 = vsub.f32 %v2016, %v2017
      %v2019 = vand.u32 %v2018, 4294901760
      %2020 = vmatpush1.msra.mxu0 %v2019
      %2021 = vmatprep.subr.mxu0 0.0
      %v2022 = vand.u32 %v443, 4294901760
      %v2023 = vsub.f32 %v443, %v2022
      %v2024 = vand.u32 %v2023, 4294901760
      %v2025 = vsub.f32 %v2023, %v2024
      %v2026 = vand.u32 %v2025, 4294901760
      %2027 = vmatpush1.msra.mxu0 %v2026
      %2028 = vmatprep.subr.mxu0 0.0
      %2029 = vmatpush2.msra.mxu0 0.0
      %2030 = vmatprep.subr.mxu0 0.0
      %2031 = vmatpush2.msra.mxu0 0.0
      %2032 = vmatprep.subr.mxu0 0.0
      %2033 = vmatpush2.msra.mxu0 0.0
      %2034 = vmatprep.subr.mxu0 0.0
      %2035 = vmatpush2.msra.mxu0 0.0
      %2036 = vmatprep.subr.mxu0 0.0
      %2037 = vmatpush2.msra.mxu0 0.0
      %2038 = vmatprep.subr.mxu0 0.0
      %2039 = vmatpush2.msra.mxu0 0.0
      %2040 = vmatprep.subr.mxu0 0.0
      %2041 = vmatpush2.msra.mxu0 0.0
      %2042 = vmatprep.subr.mxu0 0.0
      %2043 = vmatpush2.msra.mxu0 0.0
      %2044 = vmatprep.subr.mxu0 0.0
      %2045 = vmatpush2.msra.mxu0 0.0
      %2046 = vmatprep.subr.mxu0 0.0
      %2047 = vmatpush2.msra.mxu0 0.0
      %2048 = vmatprep.subr.mxu0 0.0
      %2049 = vmatpush2.msra.mxu0 0.0
      %2050 = vmatprep.subr.mxu0 0.0
      %2051 = vmatpush2.msra.mxu0 0.0
      %2052 = vmatprep.subr.mxu0 0.0
      %2053 = vmatpush2.msra.mxu0 0.0
      %2054 = vmatprep.subr.mxu0 0.0
      %2055 = vmatpush2.msra.mxu0 0.0
      %2056 = vmatprep.subr.mxu0 0.0
      %2057 = vmatpush2.msra.mxu0 0.0
      %2058 = vmatprep.subr.mxu0 0.0
      %2059 = vmatpush2.msra.mxu0 0.0
      %2060 = vmatprep.mubr.f32.mxu0 0.0
      %v2061 = vand.u32 %v1448, 4294901760
      %2062 = vmatmul.mubr.f32.gmra.mxu0 %v2061
      %v2063 = vpop.f32.mrf.mxu0
      %v2064 = vadd.f32 %v1983, %v2063
      %v2065 = vpop.f32.mrf.mxu0
      %2066 = vdwg.mxu0
      %2067 = vmatprep.subr.mxu0 0.0
      %2068 = vmatpush1.msra.mxu0 0.0
      %2069 = vmatprep.subr.mxu0 0.0
      %2070 = vmatpush1.msra.mxu0 0.0
      %2071 = vmatprep.subr.mxu0 0.0
      %2072 = vmatpush1.msra.mxu0 0.0
      %2073 = vmatprep.subr.mxu0 0.0
      %2074 = vmatpush1.msra.mxu0 0.0
      %2075 = vmatprep.subr.mxu0 0.0
      %2076 = vmatpush1.msra.mxu0 0.0
      %2077 = vmatprep.subr.mxu0 0.0
      %2078 = vmatpush1.msra.mxu0 0.0
      %2079 = vmatprep.subr.mxu0 0.0
      %2080 = vmatpush1.msra.mxu0 0.0
      %2081 = vmatprep.subr.mxu0 0.0
      %2082 = vmatpush1.msra.mxu0 0.0
      %2083 = vmatprep.subr.mxu0 0.0
      %2084 = vmatpush1.msra.mxu0 0.0
      %2085 = vmatprep.subr.mxu0 0.0
      %2086 = vmatpush1.msra.mxu0 0.0
      %2087 = vmatprep.subr.mxu0 0.0
      %2088 = vmatpush1.msra.mxu0 0.0
      %2089 = vmatprep.subr.mxu0 0.0
      %2090 = vmatpush1.msra.mxu0 0.0
      %2091 = vmatprep.subr.mxu0 0.0
      %2092 = vmatpush1.msra.mxu0 0.0
      %2093 = vmatprep.subr.mxu0 0.0
      %2094 = vmatpush1.msra.mxu0 0.0
      %2095 = vmatprep.subr.mxu0 0.0
      %v2096 = vand.u32 %v444, 4294901760
      %v2097 = vsub.f32 %v444, %v2096
      %2098 = vmatpush1.msra.mxu0 %v2097
      %2099 = vmatprep.subr.mxu0 0.0
      %v2100 = vand.u32 %v443, 4294901760
      %v2101 = vsub.f32 %v443, %v2100
      %2102 = vmatpush1.msra.mxu0 %v2101
      %2103 = vmatprep.subr.mxu0 0.0
      %2104 = vmatpush2.msra.mxu0 0.0
      %2105 = vmatprep.subr.mxu0 0.0
      %2106 = vmatpush2.msra.mxu0 0.0
      %2107 = vmatprep.subr.mxu0 0.0
      %2108 = vmatpush2.msra.mxu0 0.0
      %2109 = vmatprep.subr.mxu0 0.0
      %2110 = vmatpush2.msra.mxu0 0.0
      %2111 = vmatprep.subr.mxu0 0.0
      %2112 = vmatpush2.msra.mxu0 0.0
      %2113 = vmatprep.subr.mxu0 0.0
      %2114 = vmatpush2.msra.mxu0 0.0
      %2115 = vmatprep.subr.mxu0 0.0
      %2116 = vmatpush2.msra.mxu0 0.0
      %2117 = vmatprep.subr.mxu0 0.0
      %2118 = vmatpush2.msra.mxu0 0.0
      %2119 = vmatprep.subr.mxu0 0.0
      %2120 = vmatpush2.msra.mxu0 0.0
      %2121 = vmatprep.subr.mxu0 0.0
      %2122 = vmatpush2.msra.mxu0 0.0
      %2123 = vmatprep.subr.mxu0 0.0
      %2124 = vmatpush2.msra.mxu0 0.0
      %2125 = vmatprep.subr.mxu0 0.0
      %2126 = vmatpush2.msra.mxu0 0.0
      %2127 = vmatprep.subr.mxu0 0.0
      %2128 = vmatpush2.msra.mxu0 0.0
      %2129 = vmatprep.subr.mxu0 0.0
      %2130 = vmatpush2.msra.mxu0 0.0
      %2131 = vmatprep.subr.mxu0 0.0
      %2132 = vmatpush2.msra.mxu0 0.0
      %2133 = vmatprep.subr.mxu0 0.0
      %2134 = vmatpush2.msra.mxu0 0.0
      %2135 = vmatprep.mubr.f32.mxu0 0.0
      %v2136 = vand.u32 %v1448, 4294901760
      %v2137 = vsub.f32 %v1448, %v2136
      %2138 = vmatmul.mubr.f32.gmra.mxu0 %v2137
      %v2139 = vpop.f32.mrf.mxu0
      %v2140 = vadd.f32 %v2064, %v2139
      %v2141 = vpop.f32.mrf.mxu0
      %2142 = vdwg.mxu0
      %2143 = vmatprep.subr.mxu0 0.0
      %2144 = vmatpush1.msra.mxu0 0.0
      %2145 = vmatprep.subr.mxu0 0.0
      %2146 = vmatpush1.msra.mxu0 0.0
      %2147 = vmatprep.subr.mxu0 0.0
      %2148 = vmatpush1.msra.mxu0 0.0
      %2149 = vmatprep.subr.mxu0 0.0
      %2150 = vmatpush1.msra.mxu0 0.0
      %2151 = vmatprep.subr.mxu0 0.0
      %2152 = vmatpush1.msra.mxu0 0.0
      %2153 = vmatprep.subr.mxu0 0.0
      %2154 = vmatpush1.msra.mxu0 0.0
      %2155 = vmatprep.subr.mxu0 0.0
      %2156 = vmatpush1.msra.mxu0 0.0
      %2157 = vmatprep.subr.mxu0 0.0
      %2158 = vmatpush1.msra.mxu0 0.0
      %2159 = vmatprep.subr.mxu0 0.0
      %2160 = vmatpush1.msra.mxu0 0.0
      %2161 = vmatprep.subr.mxu0 0.0
      %2162 = vmatpush1.msra.mxu0 0.0
      %2163 = vmatprep.subr.mxu0 0.0
      %2164 = vmatpush1.msra.mxu0 0.0
      %2165 = vmatprep.subr.mxu0 0.0
      %2166 = vmatpush1.msra.mxu0 0.0
      %2167 = vmatprep.subr.mxu0 0.0
      %2168 = vmatpush1.msra.mxu0 0.0
      %2169 = vmatprep.subr.mxu0 0.0
      %2170 = vmatpush1.msra.mxu0 0.0
      %2171 = vmatprep.subr.mxu0 0.0
      %v2172 = vand.u32 %v444, 4294901760
      %2173 = vmatpush1.msra.mxu0 %v2172
      %2174 = vmatprep.subr.mxu0 0.0
      %v2175 = vand.u32 %v443, 4294901760
      %2176 = vmatpush1.msra.mxu0 %v2175
      %2177 = vmatprep.subr.mxu0 0.0
      %2178 = vmatpush2.msra.mxu0 0.0
      %2179 = vmatprep.subr.mxu0 0.0
      %2180 = vmatpush2.msra.mxu0 0.0
      %2181 = vmatprep.subr.mxu0 0.0
      %2182 = vmatpush2.msra.mxu0 0.0
      %2183 = vmatprep.subr.mxu0 0.0
      %2184 = vmatpush2.msra.mxu0 0.0
      %2185 = vmatprep.subr.mxu0 0.0
      %2186 = vmatpush2.msra.mxu0 0.0
      %2187 = vmatprep.subr.mxu0 0.0
      %2188 = vmatpush2.msra.mxu0 0.0
      %2189 = vmatprep.subr.mxu0 0.0
      %2190 = vmatpush2.msra.mxu0 0.0
      %2191 = vmatprep.subr.mxu0 0.0
      %2192 = vmatpush2.msra.mxu0 0.0
      %2193 = vmatprep.subr.mxu0 0.0
      %2194 = vmatpush2.msra.mxu0 0.0
      %2195 = vmatprep.subr.mxu0 0.0
      %2196 = vmatpush2.msra.mxu0 0.0
      %2197 = vmatprep.subr.mxu0 0.0
      %2198 = vmatpush2.msra.mxu0 0.0
      %2199 = vmatprep.subr.mxu0 0.0
      %2200 = vmatpush2.msra.mxu0 0.0
      %2201 = vmatprep.subr.mxu0 0.0
      %2202 = vmatpush2.msra.mxu0 0.0
      %2203 = vmatprep.subr.mxu0 0.0
      %2204 = vmatpush2.msra.mxu0 0.0
      %2205 = vmatprep.subr.mxu0 0.0
      %2206 = vmatpush2.msra.mxu0 0.0
      %2207 = vmatprep.subr.mxu0 0.0
      %2208 = vmatpush2.msra.mxu0 0.0
      %2209 = vmatprep.mubr.f32.mxu0 0.0
      %v2210 = vand.u32 %v1448, 4294901760
      %v2211 = vsub.f32 %v1448, %v2210
      %v2212 = vand.u32 %v2211, 4294901760
      %2213 = vmatmul.mubr.f32.gmra.mxu0 %v2212
      %v2214 = vpop.f32.mrf.mxu0
      %v2215 = vadd.f32 %v2140, %v2214
      %v2216 = vpop.f32.mrf.mxu0
      %2217 = vdwg.mxu0
      %2218 = vmatprep.subr.mxu0 0.0
      %2219 = vmatpush1.msra.mxu0 0.0
      %2220 = vmatprep.subr.mxu0 0.0
      %2221 = vmatpush1.msra.mxu0 0.0
      %2222 = vmatprep.subr.mxu0 0.0
      %2223 = vmatpush1.msra.mxu0 0.0
      %2224 = vmatprep.subr.mxu0 0.0
      %2225 = vmatpush1.msra.mxu0 0.0
      %2226 = vmatprep.subr.mxu0 0.0
      %2227 = vmatpush1.msra.mxu0 0.0
      %2228 = vmatprep.subr.mxu0 0.0
      %2229 = vmatpush1.msra.mxu0 0.0
      %2230 = vmatprep.subr.mxu0 0.0
      %2231 = vmatpush1.msra.mxu0 0.0
      %2232 = vmatprep.subr.mxu0 0.0
      %2233 = vmatpush1.msra.mxu0 0.0
      %2234 = vmatprep.subr.mxu0 0.0
      %2235 = vmatpush1.msra.mxu0 0.0
      %2236 = vmatprep.subr.mxu0 0.0
      %2237 = vmatpush1.msra.mxu0 0.0
      %2238 = vmatprep.subr.mxu0 0.0
      %2239 = vmatpush1.msra.mxu0 0.0
      %2240 = vmatprep.subr.mxu0 0.0
      %2241 = vmatpush1.msra.mxu0 0.0
      %2242 = vmatprep.subr.mxu0 0.0
      %2243 = vmatpush1.msra.mxu0 0.0
      %2244 = vmatprep.subr.mxu0 0.0
      %2245 = vmatpush1.msra.mxu0 0.0
      %2246 = vmatprep.subr.mxu0 0.0
      %v2247 = vand.u32 %v444, 4294901760
      %v2248 = vsub.f32 %v444, %v2247
      %v2249 = vand.u32 %v2248, 4294901760
      %2250 = vmatpush1.msra.mxu0 %v2249
      %2251 = vmatprep.subr.mxu0 0.0
      %v2252 = vand.u32 %v443, 4294901760
      %v2253 = vsub.f32 %v443, %v2252
      %v2254 = vand.u32 %v2253, 4294901760
      %2255 = vmatpush1.msra.mxu0 %v2254
      %2256 = vmatprep.subr.mxu0 0.0
      %2257 = vmatpush2.msra.mxu0 0.0
      %2258 = vmatprep.subr.mxu0 0.0
      %2259 = vmatpush2.msra.mxu0 0.0
      %2260 = vmatprep.subr.mxu0 0.0
      %2261 = vmatpush2.msra.mxu0 0.0
      %2262 = vmatprep.subr.mxu0 0.0
      %2263 = vmatpush2.msra.mxu0 0.0
      %2264 = vmatprep.subr.mxu0 0.0
      %2265 = vmatpush2.msra.mxu0 0.0
      %2266 = vmatprep.subr.mxu0 0.0
      %2267 = vmatpush2.msra.mxu0 0.0
      %2268 = vmatprep.subr.mxu0 0.0
      %2269 = vmatpush2.msra.mxu0 0.0
      %2270 = vmatprep.subr.mxu0 0.0
      %2271 = vmatpush2.msra.mxu0 0.0
      %2272 = vmatprep.subr.mxu0 0.0
      %2273 = vmatpush2.msra.mxu0 0.0
      %2274 = vmatprep.subr.mxu0 0.0
      %2275 = vmatpush2.msra.mxu0 0.0
      %2276 = vmatprep.subr.mxu0 0.0
      %2277 = vmatpush2.msra.mxu0 0.0
      %2278 = vmatprep.subr.mxu0 0.0
      %2279 = vmatpush2.msra.mxu0 0.0
      %2280 = vmatprep.subr.mxu0 0.0
      %2281 = vmatpush2.msra.mxu0 0.0
      %2282 = vmatprep.subr.mxu0 0.0
      %2283 = vmatpush2.msra.mxu0 0.0
      %2284 = vmatprep.subr.mxu0 0.0
      %2285 = vmatpush2.msra.mxu0 0.0
      %2286 = vmatprep.subr.mxu0 0.0
      %2287 = vmatpush2.msra.mxu0 0.0
      %2288 = vmatprep.mubr.f32.mxu0 0.0
      %v2289 = vand.u32 %v1448, 4294901760
      %2290 = vmatmul.mubr.f32.gmra.mxu0 %v2289
      %v2291 = vpop.f32.mrf.mxu0
      %v2292 = vadd.f32 %v2215, %v2291
      %v2293 = vpop.f32.mrf.mxu0
      %2294 = vdwg.mxu0
      %2295 = vmatprep.subr.mxu0 0.0
      %2296 = vmatpush1.msra.mxu0 0.0
      %2297 = vmatprep.subr.mxu0 0.0
      %2298 = vmatpush1.msra.mxu0 0.0
      %2299 = vmatprep.subr.mxu0 0.0
      %2300 = vmatpush1.msra.mxu0 0.0
      %2301 = vmatprep.subr.mxu0 0.0
      %2302 = vmatpush1.msra.mxu0 0.0
      %2303 = vmatprep.subr.mxu0 0.0
      %2304 = vmatpush1.msra.mxu0 0.0
      %2305 = vmatprep.subr.mxu0 0.0
      %2306 = vmatpush1.msra.mxu0 0.0
      %2307 = vmatprep.subr.mxu0 0.0
      %2308 = vmatpush1.msra.mxu0 0.0
      %2309 = vmatprep.subr.mxu0 0.0
      %2310 = vmatpush1.msra.mxu0 0.0
      %2311 = vmatprep.subr.mxu0 0.0
      %2312 = vmatpush1.msra.mxu0 0.0
      %2313 = vmatprep.subr.mxu0 0.0
      %2314 = vmatpush1.msra.mxu0 0.0
      %2315 = vmatprep.subr.mxu0 0.0
      %2316 = vmatpush1.msra.mxu0 0.0
      %2317 = vmatprep.subr.mxu0 0.0
      %2318 = vmatpush1.msra.mxu0 0.0
      %2319 = vmatprep.subr.mxu0 0.0
      %2320 = vmatpush1.msra.mxu0 0.0
      %2321 = vmatprep.subr.mxu0 0.0
      %2322 = vmatpush1.msra.mxu0 0.0
      %2323 = vmatprep.subr.mxu0 0.0
      %v2324 = vand.u32 %v444, 4294901760
      %2325 = vmatpush1.msra.mxu0 %v2324
      %2326 = vmatprep.subr.mxu0 0.0
      %v2327 = vand.u32 %v443, 4294901760
      %2328 = vmatpush1.msra.mxu0 %v2327
      %2329 = vmatprep.subr.mxu0 0.0
      %2330 = vmatpush2.msra.mxu0 0.0
      %2331 = vmatprep.subr.mxu0 0.0
      %2332 = vmatpush2.msra.mxu0 0.0
      %2333 = vmatprep.subr.mxu0 0.0
      %2334 = vmatpush2.msra.mxu0 0.0
      %2335 = vmatprep.subr.mxu0 0.0
      %2336 = vmatpush2.msra.mxu0 0.0
      %2337 = vmatprep.subr.mxu0 0.0
      %2338 = vmatpush2.msra.mxu0 0.0
      %2339 = vmatprep.subr.mxu0 0.0
      %2340 = vmatpush2.msra.mxu0 0.0
      %2341 = vmatprep.subr.mxu0 0.0
      %2342 = vmatpush2.msra.mxu0 0.0
      %2343 = vmatprep.subr.mxu0 0.0
      %2344 = vmatpush2.msra.mxu0 0.0
      %2345 = vmatprep.subr.mxu0 0.0
      %2346 = vmatpush2.msra.mxu0 0.0
      %2347 = vmatprep.subr.mxu0 0.0
      %2348 = vmatpush2.msra.mxu0 0.0
      %2349 = vmatprep.subr.mxu0 0.0
      %2350 = vmatpush2.msra.mxu0 0.0
      %2351 = vmatprep.subr.mxu0 0.0
      %2352 = vmatpush2.msra.mxu0 0.0
      %2353 = vmatprep.subr.mxu0 0.0
      %2354 = vmatpush2.msra.mxu0 0.0
      %2355 = vmatprep.subr.mxu0 0.0
      %2356 = vmatpush2.msra.mxu0 0.0
      %2357 = vmatprep.subr.mxu0 0.0
      %2358 = vmatpush2.msra.mxu0 0.0
      %2359 = vmatprep.subr.mxu0 0.0
      %2360 = vmatpush2.msra.mxu0 0.0
      %2361 = vmatprep.mubr.f32.mxu0 0.0
      %v2362 = vand.u32 %v1448, 4294901760
      %2363 = vmatmul.mubr.f32.gmra.mxu0 %v2362
      %v2364 = vpop.f32.mrf.mxu0
      %v2365 = vadd.f32 %v2292, %v2364
      %v2366 = vpop.f32.mrf.mxu0
      %2367 = vdwg.mxu0
      %v2368 = vmax.f32 %v1906, %v2365
      %2369 = vxpose.xlu0.b32.start [1/16] %v2368, 128
      %2370 = vxpose.xlu0.b32.cont [2/16] 0.0, 128
      %2371 = vxpose.xlu0.b32.cont [3/16] 0.0, 128
      %2372 = vxpose.xlu0.b32.cont [4/16] 0.0, 128
      %2373 = vxpose.xlu0.b32.cont [5/16] 0.0, 128
      %2374 = vxpose.xlu0.b32.cont [6/16] 0.0, 128
      %2375 = vxpose.xlu0.b32.cont [7/16] 0.0, 128
      %2376 = vxpose.xlu0.b32.cont [8/16] 0.0, 128
      %2377 = vxpose.xlu0.b32.cont [9/16] 0.0, 128
      %2378 = vxpose.xlu0.b32.cont [10/16] 0.0, 128
      %2379 = vxpose.xlu0.b32.cont [11/16] 0.0, 128
      %2380 = vxpose.xlu0.b32.cont [12/16] 0.0, 128
      %2381 = vxpose.xlu0.b32.cont [13/16] 0.0, 128
      %2382 = vxpose.xlu0.b32.cont [14/16] 0.0, 128
      %2383 = vxpose.xlu0.b32.cont [15/16] 0.0, 128
      %2384 = vxpose.xlu0.b32.end [16/16] 0.0, 128
      %v2385 = vpop.trf.xlu0
      %v2386 = vpop.trf.xlu0
      %v2387 = vpop.trf.xlu0
      %v2388 = vpop.trf.xlu0
      %v2389 = vpop.trf.xlu0
      %v2390 = vpop.trf.xlu0
      %v2391 = vpop.trf.xlu0
      %v2392 = vpop.trf.xlu0
      %v2393 = vpop.trf.xlu0
      %v2394 = vpop.trf.xlu0
      %v2395 = vpop.trf.xlu0
      %v2396 = vpop.trf.xlu0
      %v2397 = vpop.trf.xlu0
      %v2398 = vpop.trf.xlu0
      %v2399 = vpop.trf.xlu0
      %v2400 = vpop.trf.xlu0
      %s2401 = scalar_lea.vmem [#allocation2], 32
      %2402 = vst.msk [vmem:[%s2401 + $0x1] sm:$0xff] %vm385, %v2385
      %v2403 = vld [vmem:[%s380 + $0x4] sm:$0x1]
      %v2404 = vld [vmem:[%s380 + $0x14] sm:$0x1]
      %v2405 = vld [vmem:[%s380 + $0x24] sm:$0x1]
      %v2406 = vld [vmem:[%s380 + $0x34] sm:$0x1]
      %v2407 = vld [vmem:[%s380 + $0x5] sm:$0x1]
      %v2408 = vld [vmem:[%s380 + $0x15] sm:$0x1]
      %v2409 = vld [vmem:[%s380 + $0x25] sm:$0x1]
      %v2410 = vld [vmem:[%s380 + $0x35] sm:$0x1]
      %v2411 = vmax.f32 %v2403, %v2407
      %v2412 = vmax.f32 %v2404, %v2408
      %v2413 = vmax.f32 %v2405, %v2409
      %v2414 = vmax.f32 %v2406, %v2410
      %v2419 = vrot.slane %v2412, 7
      %v2420 = vsel %vm462, %v2419, %v2411
      %v2421 = vrot.slane %v2413, 6
      %v2422 = vsel %vm465, %v2421, %v2420
      %v2423 = vrot.slane %v2414, 5
      %v2424 = vsel %vm468, %v2423, %v2422
      %v2425 = vsel %vm470, %v2424, 0
      %2427 = vmatprep.subr.mxu0 0.0
      %2428 = vmatpush1.msra.mxu0 0.0
      %2429 = vmatprep.subr.mxu0 0.0
      %2430 = vmatpush1.msra.mxu0 0.0
      %2431 = vmatprep.subr.mxu0 0.0
      %2432 = vmatpush1.msra.mxu0 0.0
      %2433 = vmatprep.subr.mxu0 0.0
      %2434 = vmatpush1.msra.mxu0 0.0
      %2435 = vmatprep.subr.mxu0 0.0
      %2436 = vmatpush1.msra.mxu0 0.0
      %2437 = vmatprep.subr.mxu0 0.0
      %2438 = vmatpush1.msra.mxu0 0.0
      %2439 = vmatprep.subr.mxu0 0.0
      %2440 = vmatpush1.msra.mxu0 0.0
      %2441 = vmatprep.subr.mxu0 0.0
      %2442 = vmatpush1.msra.mxu0 0.0
      %2443 = vmatprep.subr.mxu0 0.0
      %2444 = vmatpush1.msra.mxu0 0.0
      %2445 = vmatprep.subr.mxu0 0.0
      %2446 = vmatpush1.msra.mxu0 0.0
      %2447 = vmatprep.subr.mxu0 0.0
      %2448 = vmatpush1.msra.mxu0 0.0
      %2449 = vmatprep.subr.mxu0 0.0
      %2450 = vmatpush1.msra.mxu0 0.0
      %2451 = vmatprep.subr.mxu0 0.0
      %2452 = vmatpush1.msra.mxu0 0.0
      %2453 = vmatprep.subr.mxu0 0.0
      %2454 = vmatpush1.msra.mxu0 0.0
      %2455 = vmatprep.subr.mxu0 0.0
      %v2456 = vand.u32 %v442, 4294901760
      %2457 = vmatpush1.msra.mxu0 %v2456
      %2458 = vmatprep.subr.mxu0 0.0
      %v2459 = vand.u32 %v441, 4294901760
      %2460 = vmatpush1.msra.mxu0 %v2459
      %2461 = vmatprep.subr.mxu0 0.0
      %2462 = vmatpush2.msra.mxu0 0.0
      %2463 = vmatprep.subr.mxu0 0.0
      %2464 = vmatpush2.msra.mxu0 0.0
      %2465 = vmatprep.subr.mxu0 0.0
      %2466 = vmatpush2.msra.mxu0 0.0
      %2467 = vmatprep.subr.mxu0 0.0
      %2468 = vmatpush2.msra.mxu0 0.0
      %2469 = vmatprep.subr.mxu0 0.0
      %2470 = vmatpush2.msra.mxu0 0.0
      %2471 = vmatprep.subr.mxu0 0.0
      %2472 = vmatpush2.msra.mxu0 0.0
      %2473 = vmatprep.subr.mxu0 0.0
      %2474 = vmatpush2.msra.mxu0 0.0
      %2475 = vmatprep.subr.mxu0 0.0
      %2476 = vmatpush2.msra.mxu0 0.0
      %2477 = vmatprep.subr.mxu0 0.0
      %2478 = vmatpush2.msra.mxu0 0.0
      %2479 = vmatprep.subr.mxu0 0.0
      %2480 = vmatpush2.msra.mxu0 0.0
      %2481 = vmatprep.subr.mxu0 0.0
      %2482 = vmatpush2.msra.mxu0 0.0
      %2483 = vmatprep.subr.mxu0 0.0
      %2484 = vmatpush2.msra.mxu0 0.0
      %2485 = vmatprep.subr.mxu0 0.0
      %2486 = vmatpush2.msra.mxu0 0.0
      %2487 = vmatprep.subr.mxu0 0.0
      %2488 = vmatpush2.msra.mxu0 0.0
      %2489 = vmatprep.subr.mxu0 0.0
      %2490 = vmatpush2.msra.mxu0 0.0
      %2491 = vmatprep.subr.mxu0 0.0
      %2492 = vmatpush2.msra.mxu0 0.0
      %2493 = vmatprep.mubr.f32.mxu0 0.0
      %v2494 = vand.u32 %v2425, 4294901760
      %v2495 = vsub.f32 %v2425, %v2494
      %v2496 = vand.u32 %v2495, 4294901760
      %v2497 = vsub.f32 %v2495, %v2496
      %v2498 = vand.u32 %v2497, 4294901760
      %2499 = vmatmul.mubr.f32.gmra.mxu0 %v2498
      %v2500 = vpop.f32.mrf.mxu0
      %v2501 = vadd.f32 0.0, %v2500
      %v2502 = vpop.f32.mrf.mxu0
      %2503 = vdwg.mxu0
      %2504 = vmatprep.subr.mxu0 0.0
      %2505 = vmatpush1.msra.mxu0 0.0
      %2506 = vmatprep.subr.mxu0 0.0
      %2507 = vmatpush1.msra.mxu0 0.0
      %2508 = vmatprep.subr.mxu0 0.0
      %2509 = vmatpush1.msra.mxu0 0.0
      %2510 = vmatprep.subr.mxu0 0.0
      %2511 = vmatpush1.msra.mxu0 0.0
      %2512 = vmatprep.subr.mxu0 0.0
      %2513 = vmatpush1.msra.mxu0 0.0
      %2514 = vmatprep.subr.mxu0 0.0
      %2515 = vmatpush1.msra.mxu0 0.0
      %2516 = vmatprep.subr.mxu0 0.0
      %2517 = vmatpush1.msra.mxu0 0.0
      %2518 = vmatprep.subr.mxu0 0.0
      %2519 = vmatpush1.msra.mxu0 0.0
      %2520 = vmatprep.subr.mxu0 0.0
      %2521 = vmatpush1.msra.mxu0 0.0
      %2522 = vmatprep.subr.mxu0 0.0
      %2523 = vmatpush1.msra.mxu0 0.0
      %2524 = vmatprep.subr.mxu0 0.0
      %2525 = vmatpush1.msra.mxu0 0.0
      %2526 = vmatprep.subr.mxu0 0.0
      %2527 = vmatpush1.msra.mxu0 0.0
      %2528 = vmatprep.subr.mxu0 0.0
      %2529 = vmatpush1.msra.mxu0 0.0
      %2530 = vmatprep.subr.mxu0 0.0
      %2531 = vmatpush1.msra.mxu0 0.0
      %2532 = vmatprep.subr.mxu0 0.0
      %v2533 = vand.u32 %v442, 4294901760
      %v2534 = vsub.f32 %v442, %v2533
      %v2535 = vand.u32 %v2534, 4294901760
      %v2536 = vsub.f32 %v2534, %v2535
      %v2537 = vand.u32 %v2536, 4294901760
      %2538 = vmatpush1.msra.mxu0 %v2537
      %2539 = vmatprep.subr.mxu0 0.0
      %v2540 = vand.u32 %v441, 4294901760
      %v2541 = vsub.f32 %v441, %v2540
      %v2542 = vand.u32 %v2541, 4294901760
      %v2543 = vsub.f32 %v2541, %v2542
      %v2544 = vand.u32 %v2543, 4294901760
      %2545 = vmatpush1.msra.mxu0 %v2544
      %2546 = vmatprep.subr.mxu0 0.0
      %2547 = vmatpush2.msra.mxu0 0.0
      %2548 = vmatprep.subr.mxu0 0.0
      %2549 = vmatpush2.msra.mxu0 0.0
      %2550 = vmatprep.subr.mxu0 0.0
      %2551 = vmatpush2.msra.mxu0 0.0
      %2552 = vmatprep.subr.mxu0 0.0
      %2553 = vmatpush2.msra.mxu0 0.0
      %2554 = vmatprep.subr.mxu0 0.0
      %2555 = vmatpush2.msra.mxu0 0.0
      %2556 = vmatprep.subr.mxu0 0.0
      %2557 = vmatpush2.msra.mxu0 0.0
      %2558 = vmatprep.subr.mxu0 0.0
      %2559 = vmatpush2.msra.mxu0 0.0
      %2560 = vmatprep.subr.mxu0 0.0
      %2561 = vmatpush2.msra.mxu0 0.0
      %2562 = vmatprep.subr.mxu0 0.0
      %2563 = vmatpush2.msra.mxu0 0.0
      %2564 = vmatprep.subr.mxu0 0.0
      %2565 = vmatpush2.msra.mxu0 0.0
      %2566 = vmatprep.subr.mxu0 0.0
      %2567 = vmatpush2.msra.mxu0 0.0
      %2568 = vmatprep.subr.mxu0 0.0
      %2569 = vmatpush2.msra.mxu0 0.0
      %2570 = vmatprep.subr.mxu0 0.0
      %2571 = vmatpush2.msra.mxu0 0.0
      %2572 = vmatprep.subr.mxu0 0.0
      %2573 = vmatpush2.msra.mxu0 0.0
      %2574 = vmatprep.subr.mxu0 0.0
      %2575 = vmatpush2.msra.mxu0 0.0
      %2576 = vmatprep.subr.mxu0 0.0
      %2577 = vmatpush2.msra.mxu0 0.0
      %2578 = vmatprep.mubr.f32.mxu0 0.0
      %v2579 = vand.u32 %v2425, 4294901760
      %2580 = vmatmul.mubr.f32.gmra.mxu0 %v2579
      %v2581 = vpop.f32.mrf.mxu0
      %v2582 = vadd.f32 %v2501, %v2581
      %v2583 = vpop.f32.mrf.mxu0
      %2584 = vdwg.mxu0
      %2585 = vmatprep.subr.mxu0 0.0
      %2586 = vmatpush1.msra.mxu0 0.0
      %2587 = vmatprep.subr.mxu0 0.0
      %2588 = vmatpush1.msra.mxu0 0.0
      %2589 = vmatprep.subr.mxu0 0.0
      %2590 = vmatpush1.msra.mxu0 0.0
      %2591 = vmatprep.subr.mxu0 0.0
      %2592 = vmatpush1.msra.mxu0 0.0
      %2593 = vmatprep.subr.mxu0 0.0
      %2594 = vmatpush1.msra.mxu0 0.0
      %2595 = vmatprep.subr.mxu0 0.0
      %2596 = vmatpush1.msra.mxu0 0.0
      %2597 = vmatprep.subr.mxu0 0.0
      %2598 = vmatpush1.msra.mxu0 0.0
      %2599 = vmatprep.subr.mxu0 0.0
      %2600 = vmatpush1.msra.mxu0 0.0
      %2601 = vmatprep.subr.mxu0 0.0
      %2602 = vmatpush1.msra.mxu0 0.0
      %2603 = vmatprep.subr.mxu0 0.0
      %2604 = vmatpush1.msra.mxu0 0.0
      %2605 = vmatprep.subr.mxu0 0.0
      %2606 = vmatpush1.msra.mxu0 0.0
      %2607 = vmatprep.subr.mxu0 0.0
      %2608 = vmatpush1.msra.mxu0 0.0
      %2609 = vmatprep.subr.mxu0 0.0
      %2610 = vmatpush1.msra.mxu0 0.0
      %2611 = vmatprep.subr.mxu0 0.0
      %2612 = vmatpush1.msra.mxu0 0.0
      %2613 = vmatprep.subr.mxu0 0.0
      %v2614 = vand.u32 %v442, 4294901760
      %v2615 = vsub.f32 %v442, %v2614
      %2616 = vmatpush1.msra.mxu0 %v2615
      %2617 = vmatprep.subr.mxu0 0.0
      %v2618 = vand.u32 %v441, 4294901760
      %v2619 = vsub.f32 %v441, %v2618
      %2620 = vmatpush1.msra.mxu0 %v2619
      %2621 = vmatprep.subr.mxu0 0.0
      %2622 = vmatpush2.msra.mxu0 0.0
      %2623 = vmatprep.subr.mxu0 0.0
      %2624 = vmatpush2.msra.mxu0 0.0
      %2625 = vmatprep.subr.mxu0 0.0
      %2626 = vmatpush2.msra.mxu0 0.0
      %2627 = vmatprep.subr.mxu0 0.0
      %2628 = vmatpush2.msra.mxu0 0.0
      %2629 = vmatprep.subr.mxu0 0.0
      %2630 = vmatpush2.msra.mxu0 0.0
      %2631 = vmatprep.subr.mxu0 0.0
      %2632 = vmatpush2.msra.mxu0 0.0
      %2633 = vmatprep.subr.mxu0 0.0
      %2634 = vmatpush2.msra.mxu0 0.0
      %2635 = vmatprep.subr.mxu0 0.0
      %2636 = vmatpush2.msra.mxu0 0.0
      %2637 = vmatprep.subr.mxu0 0.0
      %2638 = vmatpush2.msra.mxu0 0.0
      %2639 = vmatprep.subr.mxu0 0.0
      %2640 = vmatpush2.msra.mxu0 0.0
      %2641 = vmatprep.subr.mxu0 0.0
      %2642 = vmatpush2.msra.mxu0 0.0
      %2643 = vmatprep.subr.mxu0 0.0
      %2644 = vmatpush2.msra.mxu0 0.0
      %2645 = vmatprep.subr.mxu0 0.0
      %2646 = vmatpush2.msra.mxu0 0.0
      %2647 = vmatprep.subr.mxu0 0.0
      %2648 = vmatpush2.msra.mxu0 0.0
      %2649 = vmatprep.subr.mxu0 0.0
      %2650 = vmatpush2.msra.mxu0 0.0
      %2651 = vmatprep.subr.mxu0 0.0
      %2652 = vmatpush2.msra.mxu0 0.0
      %2653 = vmatprep.mubr.f32.mxu0 0.0
      %v2654 = vand.u32 %v2425, 4294901760
      %v2655 = vsub.f32 %v2425, %v2654
      %2656 = vmatmul.mubr.f32.gmra.mxu0 %v2655
      %v2657 = vpop.f32.mrf.mxu0
      %v2658 = vadd.f32 %v2582, %v2657
      %v2659 = vpop.f32.mrf.mxu0
      %2660 = vdwg.mxu0
      %2661 = vmatprep.subr.mxu0 0.0
      %2662 = vmatpush1.msra.mxu0 0.0
      %2663 = vmatprep.subr.mxu0 0.0
      %2664 = vmatpush1.msra.mxu0 0.0
      %2665 = vmatprep.subr.mxu0 0.0
      %2666 = vmatpush1.msra.mxu0 0.0
      %2667 = vmatprep.subr.mxu0 0.0
      %2668 = vmatpush1.msra.mxu0 0.0
      %2669 = vmatprep.subr.mxu0 0.0
      %2670 = vmatpush1.msra.mxu0 0.0
      %2671 = vmatprep.subr.mxu0 0.0
      %2672 = vmatpush1.msra.mxu0 0.0
      %2673 = vmatprep.subr.mxu0 0.0
      %2674 = vmatpush1.msra.mxu0 0.0
      %2675 = vmatprep.subr.mxu0 0.0
      %2676 = vmatpush1.msra.mxu0 0.0
      %2677 = vmatprep.subr.mxu0 0.0
      %2678 = vmatpush1.msra.mxu0 0.0
      %2679 = vmatprep.subr.mxu0 0.0
      %2680 = vmatpush1.msra.mxu0 0.0
      %2681 = vmatprep.subr.mxu0 0.0
      %2682 = vmatpush1.msra.mxu0 0.0
      %2683 = vmatprep.subr.mxu0 0.0
      %2684 = vmatpush1.msra.mxu0 0.0
      %2685 = vmatprep.subr.mxu0 0.0
      %2686 = vmatpush1.msra.mxu0 0.0
      %2687 = vmatprep.subr.mxu0 0.0
      %2688 = vmatpush1.msra.mxu0 0.0
      %2689 = vmatprep.subr.mxu0 0.0
      %v2690 = vand.u32 %v442, 4294901760
      %2691 = vmatpush1.msra.mxu0 %v2690
      %2692 = vmatprep.subr.mxu0 0.0
      %v2693 = vand.u32 %v441, 4294901760
      %2694 = vmatpush1.msra.mxu0 %v2693
      %2695 = vmatprep.subr.mxu0 0.0
      %2696 = vmatpush2.msra.mxu0 0.0
      %2697 = vmatprep.subr.mxu0 0.0
      %2698 = vmatpush2.msra.mxu0 0.0
      %2699 = vmatprep.subr.mxu0 0.0
      %2700 = vmatpush2.msra.mxu0 0.0
      %2701 = vmatprep.subr.mxu0 0.0
      %2702 = vmatpush2.msra.mxu0 0.0
      %2703 = vmatprep.subr.mxu0 0.0
      %2704 = vmatpush2.msra.mxu0 0.0
      %2705 = vmatprep.subr.mxu0 0.0
      %2706 = vmatpush2.msra.mxu0 0.0
      %2707 = vmatprep.subr.mxu0 0.0
      %2708 = vmatpush2.msra.mxu0 0.0
      %2709 = vmatprep.subr.mxu0 0.0
      %2710 = vmatpush2.msra.mxu0 0.0
      %2711 = vmatprep.subr.mxu0 0.0
      %2712 = vmatpush2.msra.mxu0 0.0
      %2713 = vmatprep.subr.mxu0 0.0
      %2714 = vmatpush2.msra.mxu0 0.0
      %2715 = vmatprep.subr.mxu0 0.0
      %2716 = vmatpush2.msra.mxu0 0.0
      %2717 = vmatprep.subr.mxu0 0.0
      %2718 = vmatpush2.msra.mxu0 0.0
      %2719 = vmatprep.subr.mxu0 0.0
      %2720 = vmatpush2.msra.mxu0 0.0
      %2721 = vmatprep.subr.mxu0 0.0
      %2722 = vmatpush2.msra.mxu0 0.0
      %2723 = vmatprep.subr.mxu0 0.0
      %2724 = vmatpush2.msra.mxu0 0.0
      %2725 = vmatprep.subr.mxu0 0.0
      %2726 = vmatpush2.msra.mxu0 0.0
      %2727 = vmatprep.mubr.f32.mxu0 0.0
      %v2728 = vand.u32 %v2425, 4294901760
      %v2729 = vsub.f32 %v2425, %v2728
      %v2730 = vand.u32 %v2729, 4294901760
      %2731 = vmatmul.mubr.f32.gmra.mxu0 %v2730
      %v2732 = vpop.f32.mrf.mxu0
      %v2733 = vadd.f32 %v2658, %v2732
      %v2734 = vpop.f32.mrf.mxu0
      %2735 = vdwg.mxu0
      %2736 = vmatprep.subr.mxu0 0.0
      %2737 = vmatpush1.msra.mxu0 0.0
      %2738 = vmatprep.subr.mxu0 0.0
      %2739 = vmatpush1.msra.mxu0 0.0
      %2740 = vmatprep.subr.mxu0 0.0
      %2741 = vmatpush1.msra.mxu0 0.0
      %2742 = vmatprep.subr.mxu0 0.0
      %2743 = vmatpush1.msra.mxu0 0.0
      %2744 = vmatprep.subr.mxu0 0.0
      %2745 = vmatpush1.msra.mxu0 0.0
      %2746 = vmatprep.subr.mxu0 0.0
      %2747 = vmatpush1.msra.mxu0 0.0
      %2748 = vmatprep.subr.mxu0 0.0
      %2749 = vmatpush1.msra.mxu0 0.0
      %2750 = vmatprep.subr.mxu0 0.0
      %2751 = vmatpush1.msra.mxu0 0.0
      %2752 = vmatprep.subr.mxu0 0.0
      %2753 = vmatpush1.msra.mxu0 0.0
      %2754 = vmatprep.subr.mxu0 0.0
      %2755 = vmatpush1.msra.mxu0 0.0
      %2756 = vmatprep.subr.mxu0 0.0
      %2757 = vmatpush1.msra.mxu0 0.0
      %2758 = vmatprep.subr.mxu0 0.0
      %2759 = vmatpush1.msra.mxu0 0.0
      %2760 = vmatprep.subr.mxu0 0.0
      %2761 = vmatpush1.msra.mxu0 0.0
      %2762 = vmatprep.subr.mxu0 0.0
      %2763 = vmatpush1.msra.mxu0 0.0
      %2764 = vmatprep.subr.mxu0 0.0
      %v2765 = vand.u32 %v442, 4294901760
      %v2766 = vsub.f32 %v442, %v2765
      %v2767 = vand.u32 %v2766, 4294901760
      %2768 = vmatpush1.msra.mxu0 %v2767
      %2769 = vmatprep.subr.mxu0 0.0
      %v2770 = vand.u32 %v441, 4294901760
      %v2771 = vsub.f32 %v441, %v2770
      %v2772 = vand.u32 %v2771, 4294901760
      %2773 = vmatpush1.msra.mxu0 %v2772
      %2774 = vmatprep.subr.mxu0 0.0
      %2775 = vmatpush2.msra.mxu0 0.0
      %2776 = vmatprep.subr.mxu0 0.0
      %2777 = vmatpush2.msra.mxu0 0.0
      %2778 = vmatprep.subr.mxu0 0.0
      %2779 = vmatpush2.msra.mxu0 0.0
      %2780 = vmatprep.subr.mxu0 0.0
      %2781 = vmatpush2.msra.mxu0 0.0
      %2782 = vmatprep.subr.mxu0 0.0
      %2783 = vmatpush2.msra.mxu0 0.0
      %2784 = vmatprep.subr.mxu0 0.0
      %2785 = vmatpush2.msra.mxu0 0.0
      %2786 = vmatprep.subr.mxu0 0.0
      %2787 = vmatpush2.msra.mxu0 0.0
      %2788 = vmatprep.subr.mxu0 0.0
      %2789 = vmatpush2.msra.mxu0 0.0
      %2790 = vmatprep.subr.mxu0 0.0
      %2791 = vmatpush2.msra.mxu0 0.0
      %2792 = vmatprep.subr.mxu0 0.0
      %2793 = vmatpush2.msra.mxu0 0.0
      %2794 = vmatprep.subr.mxu0 0.0
      %2795 = vmatpush2.msra.mxu0 0.0
      %2796 = vmatprep.subr.mxu0 0.0
      %2797 = vmatpush2.msra.mxu0 0.0
      %2798 = vmatprep.subr.mxu0 0.0
      %2799 = vmatpush2.msra.mxu0 0.0
      %2800 = vmatprep.subr.mxu0 0.0
      %2801 = vmatpush2.msra.mxu0 0.0
      %2802 = vmatprep.subr.mxu0 0.0
      %2803 = vmatpush2.msra.mxu0 0.0
      %2804 = vmatprep.subr.mxu0 0.0
      %2805 = vmatpush2.msra.mxu0 0.0
      %2806 = vmatprep.mubr.f32.mxu0 0.0
      %v2807 = vand.u32 %v2425, 4294901760
      %2808 = vmatmul.mubr.f32.gmra.mxu0 %v2807
      %v2809 = vpop.f32.mrf.mxu0
      %v2810 = vadd.f32 %v2733, %v2809
      %v2811 = vpop.f32.mrf.mxu0
      %2812 = vdwg.mxu0
      %2813 = vmatprep.subr.mxu0 0.0
      %2814 = vmatpush1.msra.mxu0 0.0
      %2815 = vmatprep.subr.mxu0 0.0
      %2816 = vmatpush1.msra.mxu0 0.0
      %2817 = vmatprep.subr.mxu0 0.0
      %2818 = vmatpush1.msra.mxu0 0.0
      %2819 = vmatprep.subr.mxu0 0.0
      %2820 = vmatpush1.msra.mxu0 0.0
      %2821 = vmatprep.subr.mxu0 0.0
      %2822 = vmatpush1.msra.mxu0 0.0
      %2823 = vmatprep.subr.mxu0 0.0
      %2824 = vmatpush1.msra.mxu0 0.0
      %2825 = vmatprep.subr.mxu0 0.0
      %2826 = vmatpush1.msra.mxu0 0.0
      %2827 = vmatprep.subr.mxu0 0.0
      %2828 = vmatpush1.msra.mxu0 0.0
      %2829 = vmatprep.subr.mxu0 0.0
      %2830 = vmatpush1.msra.mxu0 0.0
      %2831 = vmatprep.subr.mxu0 0.0
      %2832 = vmatpush1.msra.mxu0 0.0
      %2833 = vmatprep.subr.mxu0 0.0
      %2834 = vmatpush1.msra.mxu0 0.0
      %2835 = vmatprep.subr.mxu0 0.0
      %2836 = vmatpush1.msra.mxu0 0.0
      %2837 = vmatprep.subr.mxu0 0.0
      %2838 = vmatpush1.msra.mxu0 0.0
      %2839 = vmatprep.subr.mxu0 0.0
      %2840 = vmatpush1.msra.mxu0 0.0
      %2841 = vmatprep.subr.mxu0 0.0
      %v2842 = vand.u32 %v442, 4294901760
      %2843 = vmatpush1.msra.mxu0 %v2842
      %2844 = vmatprep.subr.mxu0 0.0
      %v2845 = vand.u32 %v441, 4294901760
      %2846 = vmatpush1.msra.mxu0 %v2845
      %2847 = vmatprep.subr.mxu0 0.0
      %2848 = vmatpush2.msra.mxu0 0.0
      %2849 = vmatprep.subr.mxu0 0.0
      %2850 = vmatpush2.msra.mxu0 0.0
      %2851 = vmatprep.subr.mxu0 0.0
      %2852 = vmatpush2.msra.mxu0 0.0
      %2853 = vmatprep.subr.mxu0 0.0
      %2854 = vmatpush2.msra.mxu0 0.0
      %2855 = vmatprep.subr.mxu0 0.0
      %2856 = vmatpush2.msra.mxu0 0.0
      %2857 = vmatprep.subr.mxu0 0.0
      %2858 = vmatpush2.msra.mxu0 0.0
      %2859 = vmatprep.subr.mxu0 0.0
      %2860 = vmatpush2.msra.mxu0 0.0
      %2861 = vmatprep.subr.mxu0 0.0
      %2862 = vmatpush2.msra.mxu0 0.0
      %2863 = vmatprep.subr.mxu0 0.0
      %2864 = vmatpush2.msra.mxu0 0.0
      %2865 = vmatprep.subr.mxu0 0.0
      %2866 = vmatpush2.msra.mxu0 0.0
      %2867 = vmatprep.subr.mxu0 0.0
      %2868 = vmatpush2.msra.mxu0 0.0
      %2869 = vmatprep.subr.mxu0 0.0
      %2870 = vmatpush2.msra.mxu0 0.0
      %2871 = vmatprep.subr.mxu0 0.0
      %2872 = vmatpush2.msra.mxu0 0.0
      %2873 = vmatprep.subr.mxu0 0.0
      %2874 = vmatpush2.msra.mxu0 0.0
      %2875 = vmatprep.subr.mxu0 0.0
      %2876 = vmatpush2.msra.mxu0 0.0
      %2877 = vmatprep.subr.mxu0 0.0
      %2878 = vmatpush2.msra.mxu0 0.0
      %2879 = vmatprep.mubr.f32.mxu0 0.0
      %v2880 = vand.u32 %v2425, 4294901760
      %2881 = vmatmul.mubr.f32.gmra.mxu0 %v2880
      %v2882 = vpop.f32.mrf.mxu0
      %v2883 = vadd.f32 %v2810, %v2882
      %v2884 = vpop.f32.mrf.mxu0
      %2885 = vdwg.mxu0
      %2886 = vmatprep.subr.mxu0 0.0
      %2887 = vmatpush1.msra.mxu0 0.0
      %2888 = vmatprep.subr.mxu0 0.0
      %2889 = vmatpush1.msra.mxu0 0.0
      %2890 = vmatprep.subr.mxu0 0.0
      %2891 = vmatpush1.msra.mxu0 0.0
      %2892 = vmatprep.subr.mxu0 0.0
      %2893 = vmatpush1.msra.mxu0 0.0
      %2894 = vmatprep.subr.mxu0 0.0
      %2895 = vmatpush1.msra.mxu0 0.0
      %2896 = vmatprep.subr.mxu0 0.0
      %2897 = vmatpush1.msra.mxu0 0.0
      %2898 = vmatprep.subr.mxu0 0.0
      %2899 = vmatpush1.msra.mxu0 0.0
      %2900 = vmatprep.subr.mxu0 0.0
      %2901 = vmatpush1.msra.mxu0 0.0
      %2902 = vmatprep.subr.mxu0 0.0
      %2903 = vmatpush1.msra.mxu0 0.0
      %2904 = vmatprep.subr.mxu0 0.0
      %2905 = vmatpush1.msra.mxu0 0.0
      %2906 = vmatprep.subr.mxu0 0.0
      %2907 = vmatpush1.msra.mxu0 0.0
      %2908 = vmatprep.subr.mxu0 0.0
      %2909 = vmatpush1.msra.mxu0 0.0
      %2910 = vmatprep.subr.mxu0 0.0
      %2911 = vmatpush1.msra.mxu0 0.0
      %2912 = vmatprep.subr.mxu0 0.0
      %2913 = vmatpush1.msra.mxu0 0.0
      %2914 = vmatprep.subr.mxu0 0.0
      %v2915 = vand.u32 %v444, 4294901760
      %2916 = vmatpush1.msra.mxu0 %v2915
      %2917 = vmatprep.subr.mxu0 0.0
      %v2918 = vand.u32 %v443, 4294901760
      %2919 = vmatpush1.msra.mxu0 %v2918
      %2920 = vmatprep.subr.mxu0 0.0
      %2921 = vmatpush2.msra.mxu0 0.0
      %2922 = vmatprep.subr.mxu0 0.0
      %2923 = vmatpush2.msra.mxu0 0.0
      %2924 = vmatprep.subr.mxu0 0.0
      %2925 = vmatpush2.msra.mxu0 0.0
      %2926 = vmatprep.subr.mxu0 0.0
      %2927 = vmatpush2.msra.mxu0 0.0
      %2928 = vmatprep.subr.mxu0 0.0
      %2929 = vmatpush2.msra.mxu0 0.0
      %2930 = vmatprep.subr.mxu0 0.0
      %2931 = vmatpush2.msra.mxu0 0.0
      %2932 = vmatprep.subr.mxu0 0.0
      %2933 = vmatpush2.msra.mxu0 0.0
      %2934 = vmatprep.subr.mxu0 0.0
      %2935 = vmatpush2.msra.mxu0 0.0
      %2936 = vmatprep.subr.mxu0 0.0
      %2937 = vmatpush2.msra.mxu0 0.0
      %2938 = vmatprep.subr.mxu0 0.0
      %2939 = vmatpush2.msra.mxu0 0.0
      %2940 = vmatprep.subr.mxu0 0.0
      %2941 = vmatpush2.msra.mxu0 0.0
      %2942 = vmatprep.subr.mxu0 0.0
      %2943 = vmatpush2.msra.mxu0 0.0
      %2944 = vmatprep.subr.mxu0 0.0
      %2945 = vmatpush2.msra.mxu0 0.0
      %2946 = vmatprep.subr.mxu0 0.0
      %2947 = vmatpush2.msra.mxu0 0.0
      %2948 = vmatprep.subr.mxu0 0.0
      %2949 = vmatpush2.msra.mxu0 0.0
      %2950 = vmatprep.subr.mxu0 0.0
      %2951 = vmatpush2.msra.mxu0 0.0
      %2952 = vmatprep.mubr.f32.mxu0 0.0
      %v2953 = vand.u32 %v2425, 4294901760
      %v2954 = vsub.f32 %v2425, %v2953
      %v2955 = vand.u32 %v2954, 4294901760
      %v2956 = vsub.f32 %v2954, %v2955
      %v2957 = vand.u32 %v2956, 4294901760
      %2958 = vmatmul.mubr.f32.gmra.mxu0 %v2957
      %v2959 = vpop.f32.mrf.mxu0
      %v2960 = vadd.f32 0.0, %v2959
      %v2961 = vpop.f32.mrf.mxu0
      %2962 = vdwg.mxu0
      %2963 = vmatprep.subr.mxu0 0.0
      %2964 = vmatpush1.msra.mxu0 0.0
      %2965 = vmatprep.subr.mxu0 0.0
      %2966 = vmatpush1.msra.mxu0 0.0
      %2967 = vmatprep.subr.mxu0 0.0
      %2968 = vmatpush1.msra.mxu0 0.0
      %2969 = vmatprep.subr.mxu0 0.0
      %2970 = vmatpush1.msra.mxu0 0.0
      %2971 = vmatprep.subr.mxu0 0.0
      %2972 = vmatpush1.msra.mxu0 0.0
      %2973 = vmatprep.subr.mxu0 0.0
      %2974 = vmatpush1.msra.mxu0 0.0
      %2975 = vmatprep.subr.mxu0 0.0
      %2976 = vmatpush1.msra.mxu0 0.0
      %2977 = vmatprep.subr.mxu0 0.0
      %2978 = vmatpush1.msra.mxu0 0.0
      %2979 = vmatprep.subr.mxu0 0.0
      %2980 = vmatpush1.msra.mxu0 0.0
      %2981 = vmatprep.subr.mxu0 0.0
      %2982 = vmatpush1.msra.mxu0 0.0
      %2983 = vmatprep.subr.mxu0 0.0
      %2984 = vmatpush1.msra.mxu0 0.0
      %2985 = vmatprep.subr.mxu0 0.0
      %2986 = vmatpush1.msra.mxu0 0.0
      %2987 = vmatprep.subr.mxu0 0.0
      %2988 = vmatpush1.msra.mxu0 0.0
      %2989 = vmatprep.subr.mxu0 0.0
      %2990 = vmatpush1.msra.mxu0 0.0
      %2991 = vmatprep.subr.mxu0 0.0
      %v2992 = vand.u32 %v444, 4294901760
      %v2993 = vsub.f32 %v444, %v2992
      %v2994 = vand.u32 %v2993, 4294901760
      %v2995 = vsub.f32 %v2993, %v2994
      %v2996 = vand.u32 %v2995, 4294901760
      %2997 = vmatpush1.msra.mxu0 %v2996
      %2998 = vmatprep.subr.mxu0 0.0
      %v2999 = vand.u32 %v443, 4294901760
      %v3000 = vsub.f32 %v443, %v2999
      %v3001 = vand.u32 %v3000, 4294901760
      %v3002 = vsub.f32 %v3000, %v3001
      %v3003 = vand.u32 %v3002, 4294901760
      %3004 = vmatpush1.msra.mxu0 %v3003
      %3005 = vmatprep.subr.mxu0 0.0
      %3006 = vmatpush2.msra.mxu0 0.0
      %3007 = vmatprep.subr.mxu0 0.0
      %3008 = vmatpush2.msra.mxu0 0.0
      %3009 = vmatprep.subr.mxu0 0.0
      %3010 = vmatpush2.msra.mxu0 0.0
      %3011 = vmatprep.subr.mxu0 0.0
      %3012 = vmatpush2.msra.mxu0 0.0
      %3013 = vmatprep.subr.mxu0 0.0
      %3014 = vmatpush2.msra.mxu0 0.0
      %3015 = vmatprep.subr.mxu0 0.0
      %3016 = vmatpush2.msra.mxu0 0.0
      %3017 = vmatprep.subr.mxu0 0.0
      %3018 = vmatpush2.msra.mxu0 0.0
      %3019 = vmatprep.subr.mxu0 0.0
      %3020 = vmatpush2.msra.mxu0 0.0
      %3021 = vmatprep.subr.mxu0 0.0
      %3022 = vmatpush2.msra.mxu0 0.0
      %3023 = vmatprep.subr.mxu0 0.0
      %3024 = vmatpush2.msra.mxu0 0.0
      %3025 = vmatprep.subr.mxu0 0.0
      %3026 = vmatpush2.msra.mxu0 0.0
      %3027 = vmatprep.subr.mxu0 0.0
      %3028 = vmatpush2.msra.mxu0 0.0
      %3029 = vmatprep.subr.mxu0 0.0
      %3030 = vmatpush2.msra.mxu0 0.0
      %3031 = vmatprep.subr.mxu0 0.0
      %3032 = vmatpush2.msra.mxu0 0.0
      %3033 = vmatprep.subr.mxu0 0.0
      %3034 = vmatpush2.msra.mxu0 0.0
      %3035 = vmatprep.subr.mxu0 0.0
      %3036 = vmatpush2.msra.mxu0 0.0
      %3037 = vmatprep.mubr.f32.mxu0 0.0
      %v3038 = vand.u32 %v2425, 4294901760
      %3039 = vmatmul.mubr.f32.gmra.mxu0 %v3038
      %v3040 = vpop.f32.mrf.mxu0
      %v3041 = vadd.f32 %v2960, %v3040
      %v3042 = vpop.f32.mrf.mxu0
      %3043 = vdwg.mxu0
      %3044 = vmatprep.subr.mxu0 0.0
      %3045 = vmatpush1.msra.mxu0 0.0
      %3046 = vmatprep.subr.mxu0 0.0
      %3047 = vmatpush1.msra.mxu0 0.0
      %3048 = vmatprep.subr.mxu0 0.0
      %3049 = vmatpush1.msra.mxu0 0.0
      %3050 = vmatprep.subr.mxu0 0.0
      %3051 = vmatpush1.msra.mxu0 0.0
      %3052 = vmatprep.subr.mxu0 0.0
      %3053 = vmatpush1.msra.mxu0 0.0
      %3054 = vmatprep.subr.mxu0 0.0
      %3055 = vmatpush1.msra.mxu0 0.0
      %3056 = vmatprep.subr.mxu0 0.0
      %3057 = vmatpush1.msra.mxu0 0.0
      %3058 = vmatprep.subr.mxu0 0.0
      %3059 = vmatpush1.msra.mxu0 0.0
      %3060 = vmatprep.subr.mxu0 0.0
      %3061 = vmatpush1.msra.mxu0 0.0
      %3062 = vmatprep.subr.mxu0 0.0
      %3063 = vmatpush1.msra.mxu0 0.0
      %3064 = vmatprep.subr.mxu0 0.0
      %3065 = vmatpush1.msra.mxu0 0.0
      %3066 = vmatprep.subr.mxu0 0.0
      %3067 = vmatpush1.msra.mxu0 0.0
      %3068 = vmatprep.subr.mxu0 0.0
      %3069 = vmatpush1.msra.mxu0 0.0
      %3070 = vmatprep.subr.mxu0 0.0
      %3071 = vmatpush1.msra.mxu0 0.0
      %3072 = vmatprep.subr.mxu0 0.0
      %v3073 = vand.u32 %v444, 4294901760
      %v3074 = vsub.f32 %v444, %v3073
      %3075 = vmatpush1.msra.mxu0 %v3074
      %3076 = vmatprep.subr.mxu0 0.0
      %v3077 = vand.u32 %v443, 4294901760
      %v3078 = vsub.f32 %v443, %v3077
      %3079 = vmatpush1.msra.mxu0 %v3078
      %3080 = vmatprep.subr.mxu0 0.0
      %3081 = vmatpush2.msra.mxu0 0.0
      %3082 = vmatprep.subr.mxu0 0.0
      %3083 = vmatpush2.msra.mxu0 0.0
      %3084 = vmatprep.subr.mxu0 0.0
      %3085 = vmatpush2.msra.mxu0 0.0
      %3086 = vmatprep.subr.mxu0 0.0
      %3087 = vmatpush2.msra.mxu0 0.0
      %3088 = vmatprep.subr.mxu0 0.0
      %3089 = vmatpush2.msra.mxu0 0.0
      %3090 = vmatprep.subr.mxu0 0.0
      %3091 = vmatpush2.msra.mxu0 0.0
      %3092 = vmatprep.subr.mxu0 0.0
      %3093 = vmatpush2.msra.mxu0 0.0
      %3094 = vmatprep.subr.mxu0 0.0
      %3095 = vmatpush2.msra.mxu0 0.0
      %3096 = vmatprep.subr.mxu0 0.0
      %3097 = vmatpush2.msra.mxu0 0.0
      %3098 = vmatprep.subr.mxu0 0.0
      %3099 = vmatpush2.msra.mxu0 0.0
      %3100 = vmatprep.subr.mxu0 0.0
      %3101 = vmatpush2.msra.mxu0 0.0
      %3102 = vmatprep.subr.mxu0 0.0
      %3103 = vmatpush2.msra.mxu0 0.0
      %3104 = vmatprep.subr.mxu0 0.0
      %3105 = vmatpush2.msra.mxu0 0.0
      %3106 = vmatprep.subr.mxu0 0.0
      %3107 = vmatpush2.msra.mxu0 0.0
      %3108 = vmatprep.subr.mxu0 0.0
      %3109 = vmatpush2.msra.mxu0 0.0
      %3110 = vmatprep.subr.mxu0 0.0
      %3111 = vmatpush2.msra.mxu0 0.0
      %3112 = vmatprep.mubr.f32.mxu0 0.0
      %v3113 = vand.u32 %v2425, 4294901760
      %v3114 = vsub.f32 %v2425, %v3113
      %3115 = vmatmul.mubr.f32.gmra.mxu0 %v3114
      %v3116 = vpop.f32.mrf.mxu0
      %v3117 = vadd.f32 %v3041, %v3116
      %v3118 = vpop.f32.mrf.mxu0
      %3119 = vdwg.mxu0
      %3120 = vmatprep.subr.mxu0 0.0
      %3121 = vmatpush1.msra.mxu0 0.0
      %3122 = vmatprep.subr.mxu0 0.0
      %3123 = vmatpush1.msra.mxu0 0.0
      %3124 = vmatprep.subr.mxu0 0.0
      %3125 = vmatpush1.msra.mxu0 0.0
      %3126 = vmatprep.subr.mxu0 0.0
      %3127 = vmatpush1.msra.mxu0 0.0
      %3128 = vmatprep.subr.mxu0 0.0
      %3129 = vmatpush1.msra.mxu0 0.0
      %3130 = vmatprep.subr.mxu0 0.0
      %3131 = vmatpush1.msra.mxu0 0.0
      %3132 = vmatprep.subr.mxu0 0.0
      %3133 = vmatpush1.msra.mxu0 0.0
      %3134 = vmatprep.subr.mxu0 0.0
      %3135 = vmatpush1.msra.mxu0 0.0
      %3136 = vmatprep.subr.mxu0 0.0
      %3137 = vmatpush1.msra.mxu0 0.0
      %3138 = vmatprep.subr.mxu0 0.0
      %3139 = vmatpush1.msra.mxu0 0.0
      %3140 = vmatprep.subr.mxu0 0.0
      %3141 = vmatpush1.msra.mxu0 0.0
      %3142 = vmatprep.subr.mxu0 0.0
      %3143 = vmatpush1.msra.mxu0 0.0
      %3144 = vmatprep.subr.mxu0 0.0
      %3145 = vmatpush1.msra.mxu0 0.0
      %3146 = vmatprep.subr.mxu0 0.0
      %3147 = vmatpush1.msra.mxu0 0.0
      %3148 = vmatprep.subr.mxu0 0.0
      %v3149 = vand.u32 %v444, 4294901760
      %3150 = vmatpush1.msra.mxu0 %v3149
      %3151 = vmatprep.subr.mxu0 0.0
      %v3152 = vand.u32 %v443, 4294901760
      %3153 = vmatpush1.msra.mxu0 %v3152
      %3154 = vmatprep.subr.mxu0 0.0
      %3155 = vmatpush2.msra.mxu0 0.0
      %3156 = vmatprep.subr.mxu0 0.0
      %3157 = vmatpush2.msra.mxu0 0.0
      %3158 = vmatprep.subr.mxu0 0.0
      %3159 = vmatpush2.msra.mxu0 0.0
      %3160 = vmatprep.subr.mxu0 0.0
      %3161 = vmatpush2.msra.mxu0 0.0
      %3162 = vmatprep.subr.mxu0 0.0
      %3163 = vmatpush2.msra.mxu0 0.0
      %3164 = vmatprep.subr.mxu0 0.0
      %3165 = vmatpush2.msra.mxu0 0.0
      %3166 = vmatprep.subr.mxu0 0.0
      %3167 = vmatpush2.msra.mxu0 0.0
      %3168 = vmatprep.subr.mxu0 0.0
      %3169 = vmatpush2.msra.mxu0 0.0
      %3170 = vmatprep.subr.mxu0 0.0
      %3171 = vmatpush2.msra.mxu0 0.0
      %3172 = vmatprep.subr.mxu0 0.0
      %3173 = vmatpush2.msra.mxu0 0.0
      %3174 = vmatprep.subr.mxu0 0.0
      %3175 = vmatpush2.msra.mxu0 0.0
      %3176 = vmatprep.subr.mxu0 0.0
      %3177 = vmatpush2.msra.mxu0 0.0
      %3178 = vmatprep.subr.mxu0 0.0
      %3179 = vmatpush2.msra.mxu0 0.0
      %3180 = vmatprep.subr.mxu0 0.0
      %3181 = vmatpush2.msra.mxu0 0.0
      %3182 = vmatprep.subr.mxu0 0.0
      %3183 = vmatpush2.msra.mxu0 0.0
      %3184 = vmatprep.subr.mxu0 0.0
      %3185 = vmatpush2.msra.mxu0 0.0
      %3186 = vmatprep.mubr.f32.mxu0 0.0
      %v3187 = vand.u32 %v2425, 4294901760
      %v3188 = vsub.f32 %v2425, %v3187
      %v3189 = vand.u32 %v3188, 4294901760
      %3190 = vmatmul.mubr.f32.gmra.mxu0 %v3189
      %v3191 = vpop.f32.mrf.mxu0
      %v3192 = vadd.f32 %v3117, %v3191
      %v3193 = vpop.f32.mrf.mxu0
      %3194 = vdwg.mxu0
      %3195 = vmatprep.subr.mxu0 0.0
      %3196 = vmatpush1.msra.mxu0 0.0
      %3197 = vmatprep.subr.mxu0 0.0
      %3198 = vmatpush1.msra.mxu0 0.0
      %3199 = vmatprep.subr.mxu0 0.0
      %3200 = vmatpush1.msra.mxu0 0.0
      %3201 = vmatprep.subr.mxu0 0.0
      %3202 = vmatpush1.msra.mxu0 0.0
      %3203 = vmatprep.subr.mxu0 0.0
      %3204 = vmatpush1.msra.mxu0 0.0
      %3205 = vmatprep.subr.mxu0 0.0
      %3206 = vmatpush1.msra.mxu0 0.0
      %3207 = vmatprep.subr.mxu0 0.0
      %3208 = vmatpush1.msra.mxu0 0.0
      %3209 = vmatprep.subr.mxu0 0.0
      %3210 = vmatpush1.msra.mxu0 0.0
      %3211 = vmatprep.subr.mxu0 0.0
      %3212 = vmatpush1.msra.mxu0 0.0
      %3213 = vmatprep.subr.mxu0 0.0
      %3214 = vmatpush1.msra.mxu0 0.0
      %3215 = vmatprep.subr.mxu0 0.0
      %3216 = vmatpush1.msra.mxu0 0.0
      %3217 = vmatprep.subr.mxu0 0.0
      %3218 = vmatpush1.msra.mxu0 0.0
      %3219 = vmatprep.subr.mxu0 0.0
      %3220 = vmatpush1.msra.mxu0 0.0
      %3221 = vmatprep.subr.mxu0 0.0
      %3222 = vmatpush1.msra.mxu0 0.0
      %3223 = vmatprep.subr.mxu0 0.0
      %v3224 = vand.u32 %v444, 4294901760
      %v3225 = vsub.f32 %v444, %v3224
      %v3226 = vand.u32 %v3225, 4294901760
      %3227 = vmatpush1.msra.mxu0 %v3226
      %3228 = vmatprep.subr.mxu0 0.0
      %v3229 = vand.u32 %v443, 4294901760
      %v3230 = vsub.f32 %v443, %v3229
      %v3231 = vand.u32 %v3230, 4294901760
      %3232 = vmatpush1.msra.mxu0 %v3231
      %3233 = vmatprep.subr.mxu0 0.0
      %3234 = vmatpush2.msra.mxu0 0.0
      %3235 = vmatprep.subr.mxu0 0.0
      %3236 = vmatpush2.msra.mxu0 0.0
      %3237 = vmatprep.subr.mxu0 0.0
      %3238 = vmatpush2.msra.mxu0 0.0
      %3239 = vmatprep.subr.mxu0 0.0
      %3240 = vmatpush2.msra.mxu0 0.0
      %3241 = vmatprep.subr.mxu0 0.0
      %3242 = vmatpush2.msra.mxu0 0.0
      %3243 = vmatprep.subr.mxu0 0.0
      %3244 = vmatpush2.msra.mxu0 0.0
      %3245 = vmatprep.subr.mxu0 0.0
      %3246 = vmatpush2.msra.mxu0 0.0
      %3247 = vmatprep.subr.mxu0 0.0
      %3248 = vmatpush2.msra.mxu0 0.0
      %3249 = vmatprep.subr.mxu0 0.0
      %3250 = vmatpush2.msra.mxu0 0.0
      %3251 = vmatprep.subr.mxu0 0.0
      %3252 = vmatpush2.msra.mxu0 0.0
      %3253 = vmatprep.subr.mxu0 0.0
      %3254 = vmatpush2.msra.mxu0 0.0
      %3255 = vmatprep.subr.mxu0 0.0
      %3256 = vmatpush2.msra.mxu0 0.0
      %3257 = vmatprep.subr.mxu0 0.0
      %3258 = vmatpush2.msra.mxu0 0.0
      %3259 = vmatprep.subr.mxu0 0.0
      %3260 = vmatpush2.msra.mxu0 0.0
      %3261 = vmatprep.subr.mxu0 0.0
      %3262 = vmatpush2.msra.mxu0 0.0
      %3263 = vmatprep.subr.mxu0 0.0
      %3264 = vmatpush2.msra.mxu0 0.0
      %3265 = vmatprep.mubr.f32.mxu0 0.0
      %v3266 = vand.u32 %v2425, 4294901760
      %3267 = vmatmul.mubr.f32.gmra.mxu0 %v3266
      %v3268 = vpop.f32.mrf.mxu0
      %v3269 = vadd.f32 %v3192, %v3268
      %v3270 = vpop.f32.mrf.mxu0
      %3271 = vdwg.mxu0
      %3272 = vmatprep.subr.mxu0 0.0
      %3273 = vmatpush1.msra.mxu0 0.0
      %3274 = vmatprep.subr.mxu0 0.0
      %3275 = vmatpush1.msra.mxu0 0.0
      %3276 = vmatprep.subr.mxu0 0.0
      %3277 = vmatpush1.msra.mxu0 0.0
      %3278 = vmatprep.subr.mxu0 0.0
      %3279 = vmatpush1.msra.mxu0 0.0
      %3280 = vmatprep.subr.mxu0 0.0
      %3281 = vmatpush1.msra.mxu0 0.0
      %3282 = vmatprep.subr.mxu0 0.0
      %3283 = vmatpush1.msra.mxu0 0.0
      %3284 = vmatprep.subr.mxu0 0.0
      %3285 = vmatpush1.msra.mxu0 0.0
      %3286 = vmatprep.subr.mxu0 0.0
      %3287 = vmatpush1.msra.mxu0 0.0
      %3288 = vmatprep.subr.mxu0 0.0
      %3289 = vmatpush1.msra.mxu0 0.0
      %3290 = vmatprep.subr.mxu0 0.0
      %3291 = vmatpush1.msra.mxu0 0.0
      %3292 = vmatprep.subr.mxu0 0.0
      %3293 = vmatpush1.msra.mxu0 0.0
      %3294 = vmatprep.subr.mxu0 0.0
      %3295 = vmatpush1.msra.mxu0 0.0
      %3296 = vmatprep.subr.mxu0 0.0
      %3297 = vmatpush1.msra.mxu0 0.0
      %3298 = vmatprep.subr.mxu0 0.0
      %3299 = vmatpush1.msra.mxu0 0.0
      %3300 = vmatprep.subr.mxu0 0.0
      %v3301 = vand.u32 %v444, 4294901760
      %3302 = vmatpush1.msra.mxu0 %v3301
      %3303 = vmatprep.subr.mxu0 0.0
      %v3304 = vand.u32 %v443, 4294901760
      %3305 = vmatpush1.msra.mxu0 %v3304
      %3306 = vmatprep.subr.mxu0 0.0
      %3307 = vmatpush2.msra.mxu0 0.0
      %3308 = vmatprep.subr.mxu0 0.0
      %3309 = vmatpush2.msra.mxu0 0.0
      %3310 = vmatprep.subr.mxu0 0.0
      %3311 = vmatpush2.msra.mxu0 0.0
      %3312 = vmatprep.subr.mxu0 0.0
      %3313 = vmatpush2.msra.mxu0 0.0
      %3314 = vmatprep.subr.mxu0 0.0
      %3315 = vmatpush2.msra.mxu0 0.0
      %3316 = vmatprep.subr.mxu0 0.0
      %3317 = vmatpush2.msra.mxu0 0.0
      %3318 = vmatprep.subr.mxu0 0.0
      %3319 = vmatpush2.msra.mxu0 0.0
      %3320 = vmatprep.subr.mxu0 0.0
      %3321 = vmatpush2.msra.mxu0 0.0
      %3322 = vmatprep.subr.mxu0 0.0
      %3323 = vmatpush2.msra.mxu0 0.0
      %3324 = vmatprep.subr.mxu0 0.0
      %3325 = vmatpush2.msra.mxu0 0.0
      %3326 = vmatprep.subr.mxu0 0.0
      %3327 = vmatpush2.msra.mxu0 0.0
      %3328 = vmatprep.subr.mxu0 0.0
      %3329 = vmatpush2.msra.mxu0 0.0
      %3330 = vmatprep.subr.mxu0 0.0
      %3331 = vmatpush2.msra.mxu0 0.0
      %3332 = vmatprep.subr.mxu0 0.0
      %3333 = vmatpush2.msra.mxu0 0.0
      %3334 = vmatprep.subr.mxu0 0.0
      %3335 = vmatpush2.msra.mxu0 0.0
      %3336 = vmatprep.subr.mxu0 0.0
      %3337 = vmatpush2.msra.mxu0 0.0
      %3338 = vmatprep.mubr.f32.mxu0 0.0
      %v3339 = vand.u32 %v2425, 4294901760
      %3340 = vmatmul.mubr.f32.gmra.mxu0 %v3339
      %v3341 = vpop.f32.mrf.mxu0
      %v3342 = vadd.f32 %v3269, %v3341
      %v3343 = vpop.f32.mrf.mxu0
      %3344 = vdwg.mxu0
      %v3345 = vmax.f32 %v2883, %v3342
      %3346 = vxpose.xlu0.b32.start [1/16] %v3345, 128
      %3347 = vxpose.xlu0.b32.cont [2/16] 0.0, 128
      %3348 = vxpose.xlu0.b32.cont [3/16] 0.0, 128
      %3349 = vxpose.xlu0.b32.cont [4/16] 0.0, 128
      %3350 = vxpose.xlu0.b32.cont [5/16] 0.0, 128
      %3351 = vxpose.xlu0.b32.cont [6/16] 0.0, 128
      %3352 = vxpose.xlu0.b32.cont [7/16] 0.0, 128
      %3353 = vxpose.xlu0.b32.cont [8/16] 0.0, 128
      %3354 = vxpose.xlu0.b32.cont [9/16] 0.0, 128
      %3355 = vxpose.xlu0.b32.cont [10/16] 0.0, 128
      %3356 = vxpose.xlu0.b32.cont [11/16] 0.0, 128
      %3357 = vxpose.xlu0.b32.cont [12/16] 0.0, 128
      %3358 = vxpose.xlu0.b32.cont [13/16] 0.0, 128
      %3359 = vxpose.xlu0.b32.cont [14/16] 0.0, 128
      %3360 = vxpose.xlu0.b32.cont [15/16] 0.0, 128
      %3361 = vxpose.xlu0.b32.end [16/16] 0.0, 128
      %v3362 = vpop.trf.xlu0
      %v3363 = vpop.trf.xlu0
      %v3364 = vpop.trf.xlu0
      %v3365 = vpop.trf.xlu0
      %v3366 = vpop.trf.xlu0
      %v3367 = vpop.trf.xlu0
      %v3368 = vpop.trf.xlu0
      %v3369 = vpop.trf.xlu0
      %v3370 = vpop.trf.xlu0
      %v3371 = vpop.trf.xlu0
      %v3372 = vpop.trf.xlu0
      %v3373 = vpop.trf.xlu0
      %v3374 = vpop.trf.xlu0
      %v3375 = vpop.trf.xlu0
      %v3376 = vpop.trf.xlu0
      %v3377 = vpop.trf.xlu0
      %s3378 = scalar_lea.vmem [#allocation2], 48
      %3379 = vst.msk [vmem:[%s3378 + $0x1] sm:$0xff] %vm385, %v3362
      %v3380 = vld [vmem:[%s380 + $0x6] sm:$0x1]
      %v3381 = vld [vmem:[%s380 + $0x16] sm:$0x1]
      %v3382 = vld [vmem:[%s380 + $0x26] sm:$0x1]
      %v3383 = vld [vmem:[%s380 + $0x36] sm:$0x1]
      %v3384 = vld [vmem:[%s380 + $0x7] sm:$0x1]
      %v3385 = vld [vmem:[%s380 + $0x17] sm:$0x1]
      %v3386 = vld [vmem:[%s380 + $0x27] sm:$0x1]
      %v3387 = vld [vmem:[%s380 + $0x37] sm:$0x1]
      %v3388 = vmax.f32 %v3380, %v3384
      %v3389 = vmax.f32 %v3381, %v3385
      %v3390 = vmax.f32 %v3382, %v3386
      %v3391 = vmax.f32 %v3383, %v3387
      %v3396 = vrot.slane %v3389, 7
      %v3397 = vsel %vm462, %v3396, %v3388
      %v3398 = vrot.slane %v3390, 6
      %v3399 = vsel %vm465, %v3398, %v3397
      %v3400 = vrot.slane %v3391, 5
      %v3401 = vsel %vm468, %v3400, %v3399
      %v3402 = vsel %vm470, %v3401, 0
      %3404 = vmatprep.subr.mxu0 0.0
      %3405 = vmatpush1.msra.mxu0 0.0
      %3406 = vmatprep.subr.mxu0 0.0
      %3407 = vmatpush1.msra.mxu0 0.0
      %3408 = vmatprep.subr.mxu0 0.0
      %3409 = vmatpush1.msra.mxu0 0.0
      %3410 = vmatprep.subr.mxu0 0.0
      %3411 = vmatpush1.msra.mxu0 0.0
      %3412 = vmatprep.subr.mxu0 0.0
      %3413 = vmatpush1.msra.mxu0 0.0
      %3414 = vmatprep.subr.mxu0 0.0
      %3415 = vmatpush1.msra.mxu0 0.0
      %3416 = vmatprep.subr.mxu0 0.0
      %3417 = vmatpush1.msra.mxu0 0.0
      %3418 = vmatprep.subr.mxu0 0.0
      %3419 = vmatpush1.msra.mxu0 0.0
      %3420 = vmatprep.subr.mxu0 0.0
      %3421 = vmatpush1.msra.mxu0 0.0
      %3422 = vmatprep.subr.mxu0 0.0
      %3423 = vmatpush1.msra.mxu0 0.0
      %3424 = vmatprep.subr.mxu0 0.0
      %3425 = vmatpush1.msra.mxu0 0.0
      %3426 = vmatprep.subr.mxu0 0.0
      %3427 = vmatpush1.msra.mxu0 0.0
      %3428 = vmatprep.subr.mxu0 0.0
      %3429 = vmatpush1.msra.mxu0 0.0
      %3430 = vmatprep.subr.mxu0 0.0
      %3431 = vmatpush1.msra.mxu0 0.0
      %3432 = vmatprep.subr.mxu0 0.0
      %v3433 = vand.u32 %v442, 4294901760
      %3434 = vmatpush1.msra.mxu0 %v3433
      %3435 = vmatprep.subr.mxu0 0.0
      %v3436 = vand.u32 %v441, 4294901760
      %3437 = vmatpush1.msra.mxu0 %v3436
      %3438 = vmatprep.subr.mxu0 0.0
      %3439 = vmatpush2.msra.mxu0 0.0
      %3440 = vmatprep.subr.mxu0 0.0
      %3441 = vmatpush2.msra.mxu0 0.0
      %3442 = vmatprep.subr.mxu0 0.0
      %3443 = vmatpush2.msra.mxu0 0.0
      %3444 = vmatprep.subr.mxu0 0.0
      %3445 = vmatpush2.msra.mxu0 0.0
      %3446 = vmatprep.subr.mxu0 0.0
      %3447 = vmatpush2.msra.mxu0 0.0
      %3448 = vmatprep.subr.mxu0 0.0
      %3449 = vmatpush2.msra.mxu0 0.0
      %3450 = vmatprep.subr.mxu0 0.0
      %3451 = vmatpush2.msra.mxu0 0.0
      %3452 = vmatprep.subr.mxu0 0.0
      %3453 = vmatpush2.msra.mxu0 0.0
      %3454 = vmatprep.subr.mxu0 0.0
      %3455 = vmatpush2.msra.mxu0 0.0
      %3456 = vmatprep.subr.mxu0 0.0
      %3457 = vmatpush2.msra.mxu0 0.0
      %3458 = vmatprep.subr.mxu0 0.0
      %3459 = vmatpush2.msra.mxu0 0.0
      %3460 = vmatprep.subr.mxu0 0.0
      %3461 = vmatpush2.msra.mxu0 0.0
      %3462 = vmatprep.subr.mxu0 0.0
      %3463 = vmatpush2.msra.mxu0 0.0
      %3464 = vmatprep.subr.mxu0 0.0
      %3465 = vmatpush2.msra.mxu0 0.0
      %3466 = vmatprep.subr.mxu0 0.0
      %3467 = vmatpush2.msra.mxu0 0.0
      %3468 = vmatprep.subr.mxu0 0.0
      %3469 = vmatpush2.msra.mxu0 0.0
      %3470 = vmatprep.mubr.f32.mxu0 0.0
      %v3471 = vand.u32 %v3402, 4294901760
      %v3472 = vsub.f32 %v3402, %v3471
      %v3473 = vand.u32 %v3472, 4294901760
      %v3474 = vsub.f32 %v3472, %v3473
      %v3475 = vand.u32 %v3474, 4294901760
      %3476 = vmatmul.mubr.f32.gmra.mxu0 %v3475
      %v3477 = vpop.f32.mrf.mxu0
      %v3478 = vadd.f32 0.0, %v3477
      %v3479 = vpop.f32.mrf.mxu0
      %3480 = vdwg.mxu0
      %3481 = vmatprep.subr.mxu0 0.0
      %3482 = vmatpush1.msra.mxu0 0.0
      %3483 = vmatprep.subr.mxu0 0.0
      %3484 = vmatpush1.msra.mxu0 0.0
      %3485 = vmatprep.subr.mxu0 0.0
      %3486 = vmatpush1.msra.mxu0 0.0
      %3487 = vmatprep.subr.mxu0 0.0
      %3488 = vmatpush1.msra.mxu0 0.0
      %3489 = vmatprep.subr.mxu0 0.0
      %3490 = vmatpush1.msra.mxu0 0.0
      %3491 = vmatprep.subr.mxu0 0.0
      %3492 = vmatpush1.msra.mxu0 0.0
      %3493 = vmatprep.subr.mxu0 0.0
      %3494 = vmatpush1.msra.mxu0 0.0
      %3495 = vmatprep.subr.mxu0 0.0
      %3496 = vmatpush1.msra.mxu0 0.0
      %3497 = vmatprep.subr.mxu0 0.0
      %3498 = vmatpush1.msra.mxu0 0.0
      %3499 = vmatprep.subr.mxu0 0.0
      %3500 = vmatpush1.msra.mxu0 0.0
      %3501 = vmatprep.subr.mxu0 0.0
      %3502 = vmatpush1.msra.mxu0 0.0
      %3503 = vmatprep.subr.mxu0 0.0
      %3504 = vmatpush1.msra.mxu0 0.0
      %3505 = vmatprep.subr.mxu0 0.0
      %3506 = vmatpush1.msra.mxu0 0.0
      %3507 = vmatprep.subr.mxu0 0.0
      %3508 = vmatpush1.msra.mxu0 0.0
      %3509 = vmatprep.subr.mxu0 0.0
      %v3510 = vand.u32 %v442, 4294901760
      %v3511 = vsub.f32 %v442, %v3510
      %v3512 = vand.u32 %v3511, 4294901760
      %v3513 = vsub.f32 %v3511, %v3512
      %v3514 = vand.u32 %v3513, 4294901760
      %3515 = vmatpush1.msra.mxu0 %v3514
      %3516 = vmatprep.subr.mxu0 0.0
      %v3517 = vand.u32 %v441, 4294901760
      %v3518 = vsub.f32 %v441, %v3517
      %v3519 = vand.u32 %v3518, 4294901760
      %v3520 = vsub.f32 %v3518, %v3519
      %v3521 = vand.u32 %v3520, 4294901760
      %3522 = vmatpush1.msra.mxu0 %v3521
      %3523 = vmatprep.subr.mxu0 0.0
      %3524 = vmatpush2.msra.mxu0 0.0
      %3525 = vmatprep.subr.mxu0 0.0
      %3526 = vmatpush2.msra.mxu0 0.0
      %3527 = vmatprep.subr.mxu0 0.0
      %3528 = vmatpush2.msra.mxu0 0.0
      %3529 = vmatprep.subr.mxu0 0.0
      %3530 = vmatpush2.msra.mxu0 0.0
      %3531 = vmatprep.subr.mxu0 0.0
      %3532 = vmatpush2.msra.mxu0 0.0
      %3533 = vmatprep.subr.mxu0 0.0
      %3534 = vmatpush2.msra.mxu0 0.0
      %3535 = vmatprep.subr.mxu0 0.0
      %3536 = vmatpush2.msra.mxu0 0.0
      %3537 = vmatprep.subr.mxu0 0.0
      %3538 = vmatpush2.msra.mxu0 0.0
      %3539 = vmatprep.subr.mxu0 0.0
      %3540 = vmatpush2.msra.mxu0 0.0
      %3541 = vmatprep.subr.mxu0 0.0
      %3542 = vmatpush2.msra.mxu0 0.0
      %3543 = vmatprep.subr.mxu0 0.0
      %3544 = vmatpush2.msra.mxu0 0.0
      %3545 = vmatprep.subr.mxu0 0.0
      %3546 = vmatpush2.msra.mxu0 0.0
      %3547 = vmatprep.subr.mxu0 0.0
      %3548 = vmatpush2.msra.mxu0 0.0
      %3549 = vmatprep.subr.mxu0 0.0
      %3550 = vmatpush2.msra.mxu0 0.0
      %3551 = vmatprep.subr.mxu0 0.0
      %3552 = vmatpush2.msra.mxu0 0.0
      %3553 = vmatprep.subr.mxu0 0.0
      %3554 = vmatpush2.msra.mxu0 0.0
      %3555 = vmatprep.mubr.f32.mxu0 0.0
      %v3556 = vand.u32 %v3402, 4294901760
      %3557 = vmatmul.mubr.f32.gmra.mxu0 %v3556
      %v3558 = vpop.f32.mrf.mxu0
      %v3559 = vadd.f32 %v3478, %v3558
      %v3560 = vpop.f32.mrf.mxu0
      %3561 = vdwg.mxu0
      %3562 = vmatprep.subr.mxu0 0.0
      %3563 = vmatpush1.msra.mxu0 0.0
      %3564 = vmatprep.subr.mxu0 0.0
      %3565 = vmatpush1.msra.mxu0 0.0
      %3566 = vmatprep.subr.mxu0 0.0
      %3567 = vmatpush1.msra.mxu0 0.0
      %3568 = vmatprep.subr.mxu0 0.0
      %3569 = vmatpush1.msra.mxu0 0.0
      %3570 = vmatprep.subr.mxu0 0.0
      %3571 = vmatpush1.msra.mxu0 0.0
      %3572 = vmatprep.subr.mxu0 0.0
      %3573 = vmatpush1.msra.mxu0 0.0
      %3574 = vmatprep.subr.mxu0 0.0
      %3575 = vmatpush1.msra.mxu0 0.0
      %3576 = vmatprep.subr.mxu0 0.0
      %3577 = vmatpush1.msra.mxu0 0.0
      %3578 = vmatprep.subr.mxu0 0.0
      %3579 = vmatpush1.msra.mxu0 0.0
      %3580 = vmatprep.subr.mxu0 0.0
      %3581 = vmatpush1.msra.mxu0 0.0
      %3582 = vmatprep.subr.mxu0 0.0
      %3583 = vmatpush1.msra.mxu0 0.0
      %3584 = vmatprep.subr.mxu0 0.0
      %3585 = vmatpush1.msra.mxu0 0.0
      %3586 = vmatprep.subr.mxu0 0.0
      %3587 = vmatpush1.msra.mxu0 0.0
      %3588 = vmatprep.subr.mxu0 0.0
      %3589 = vmatpush1.msra.mxu0 0.0
      %3590 = vmatprep.subr.mxu0 0.0
      %v3591 = vand.u32 %v442, 4294901760
      %v3592 = vsub.f32 %v442, %v3591
      %3593 = vmatpush1.msra.mxu0 %v3592
      %3594 = vmatprep.subr.mxu0 0.0
      %v3595 = vand.u32 %v441, 4294901760
      %v3596 = vsub.f32 %v441, %v3595
      %3597 = vmatpush1.msra.mxu0 %v3596
      %3598 = vmatprep.subr.mxu0 0.0
      %3599 = vmatpush2.msra.mxu0 0.0
      %3600 = vmatprep.subr.mxu0 0.0
      %3601 = vmatpush2.msra.mxu0 0.0
      %3602 = vmatprep.subr.mxu0 0.0
      %3603 = vmatpush2.msra.mxu0 0.0
      %3604 = vmatprep.subr.mxu0 0.0
      %3605 = vmatpush2.msra.mxu0 0.0
      %3606 = vmatprep.subr.mxu0 0.0
      %3607 = vmatpush2.msra.mxu0 0.0
      %3608 = vmatprep.subr.mxu0 0.0
      %3609 = vmatpush2.msra.mxu0 0.0
      %3610 = vmatprep.subr.mxu0 0.0
      %3611 = vmatpush2.msra.mxu0 0.0
      %3612 = vmatprep.subr.mxu0 0.0
      %3613 = vmatpush2.msra.mxu0 0.0
      %3614 = vmatprep.subr.mxu0 0.0
      %3615 = vmatpush2.msra.mxu0 0.0
      %3616 = vmatprep.subr.mxu0 0.0
      %3617 = vmatpush2.msra.mxu0 0.0
      %3618 = vmatprep.subr.mxu0 0.0
      %3619 = vmatpush2.msra.mxu0 0.0
      %3620 = vmatprep.subr.mxu0 0.0
      %3621 = vmatpush2.msra.mxu0 0.0
      %3622 = vmatprep.subr.mxu0 0.0
      %3623 = vmatpush2.msra.mxu0 0.0
      %3624 = vmatprep.subr.mxu0 0.0
      %3625 = vmatpush2.msra.mxu0 0.0
      %3626 = vmatprep.subr.mxu0 0.0
      %3627 = vmatpush2.msra.mxu0 0.0
      %3628 = vmatprep.subr.mxu0 0.0
      %3629 = vmatpush2.msra.mxu0 0.0
      %3630 = vmatprep.mubr.f32.mxu0 0.0
      %v3631 = vand.u32 %v3402, 4294901760
      %v3632 = vsub.f32 %v3402, %v3631
      %3633 = vmatmul.mubr.f32.gmra.mxu0 %v3632
      %v3634 = vpop.f32.mrf.mxu0
      %v3635 = vadd.f32 %v3559, %v3634
      %v3636 = vpop.f32.mrf.mxu0
      %3637 = vdwg.mxu0
      %3638 = vmatprep.subr.mxu0 0.0
      %3639 = vmatpush1.msra.mxu0 0.0
      %3640 = vmatprep.subr.mxu0 0.0
      %3641 = vmatpush1.msra.mxu0 0.0
      %3642 = vmatprep.subr.mxu0 0.0
      %3643 = vmatpush1.msra.mxu0 0.0
      %3644 = vmatprep.subr.mxu0 0.0
      %3645 = vmatpush1.msra.mxu0 0.0
      %3646 = vmatprep.subr.mxu0 0.0
      %3647 = vmatpush1.msra.mxu0 0.0
      %3648 = vmatprep.subr.mxu0 0.0
      %3649 = vmatpush1.msra.mxu0 0.0
      %3650 = vmatprep.subr.mxu0 0.0
      %3651 = vmatpush1.msra.mxu0 0.0
      %3652 = vmatprep.subr.mxu0 0.0
      %3653 = vmatpush1.msra.mxu0 0.0
      %3654 = vmatprep.subr.mxu0 0.0
      %3655 = vmatpush1.msra.mxu0 0.0
      %3656 = vmatprep.subr.mxu0 0.0
      %3657 = vmatpush1.msra.mxu0 0.0
      %3658 = vmatprep.subr.mxu0 0.0
      %3659 = vmatpush1.msra.mxu0 0.0
      %3660 = vmatprep.subr.mxu0 0.0
      %3661 = vmatpush1.msra.mxu0 0.0
      %3662 = vmatprep.subr.mxu0 0.0
      %3663 = vmatpush1.msra.mxu0 0.0
      %3664 = vmatprep.subr.mxu0 0.0
      %3665 = vmatpush1.msra.mxu0 0.0
      %3666 = vmatprep.subr.mxu0 0.0
      %v3667 = vand.u32 %v442, 4294901760
      %3668 = vmatpush1.msra.mxu0 %v3667
      %3669 = vmatprep.subr.mxu0 0.0
      %v3670 = vand.u32 %v441, 4294901760
      %3671 = vmatpush1.msra.mxu0 %v3670
      %3672 = vmatprep.subr.mxu0 0.0
      %3673 = vmatpush2.msra.mxu0 0.0
      %3674 = vmatprep.subr.mxu0 0.0
      %3675 = vmatpush2.msra.mxu0 0.0
      %3676 = vmatprep.subr.mxu0 0.0
      %3677 = vmatpush2.msra.mxu0 0.0
      %3678 = vmatprep.subr.mxu0 0.0
      %3679 = vmatpush2.msra.mxu0 0.0
      %3680 = vmatprep.subr.mxu0 0.0
      %3681 = vmatpush2.msra.mxu0 0.0
      %3682 = vmatprep.subr.mxu0 0.0
      %3683 = vmatpush2.msra.mxu0 0.0
      %3684 = vmatprep.subr.mxu0 0.0
      %3685 = vmatpush2.msra.mxu0 0.0
      %3686 = vmatprep.subr.mxu0 0.0
      %3687 = vmatpush2.msra.mxu0 0.0
      %3688 = vmatprep.subr.mxu0 0.0
      %3689 = vmatpush2.msra.mxu0 0.0
      %3690 = vmatprep.subr.mxu0 0.0
      %3691 = vmatpush2.msra.mxu0 0.0
      %3692 = vmatprep.subr.mxu0 0.0
      %3693 = vmatpush2.msra.mxu0 0.0
      %3694 = vmatprep.subr.mxu0 0.0
      %3695 = vmatpush2.msra.mxu0 0.0
      %3696 = vmatprep.subr.mxu0 0.0
      %3697 = vmatpush2.msra.mxu0 0.0
      %3698 = vmatprep.subr.mxu0 0.0
      %3699 = vmatpush2.msra.mxu0 0.0
      %3700 = vmatprep.subr.mxu0 0.0
      %3701 = vmatpush2.msra.mxu0 0.0
      %3702 = vmatprep.subr.mxu0 0.0
      %3703 = vmatpush2.msra.mxu0 0.0
      %3704 = vmatprep.mubr.f32.mxu0 0.0
      %v3705 = vand.u32 %v3402, 4294901760
      %v3706 = vsub.f32 %v3402, %v3705
      %v3707 = vand.u32 %v3706, 4294901760
      %3708 = vmatmul.mubr.f32.gmra.mxu0 %v3707
      %v3709 = vpop.f32.mrf.mxu0
      %v3710 = vadd.f32 %v3635, %v3709
      %v3711 = vpop.f32.mrf.mxu0
      %3712 = vdwg.mxu0
      %3713 = vmatprep.subr.mxu0 0.0
      %3714 = vmatpush1.msra.mxu0 0.0
      %3715 = vmatprep.subr.mxu0 0.0
      %3716 = vmatpush1.msra.mxu0 0.0
      %3717 = vmatprep.subr.mxu0 0.0
      %3718 = vmatpush1.msra.mxu0 0.0
      %3719 = vmatprep.subr.mxu0 0.0
      %3720 = vmatpush1.msra.mxu0 0.0
      %3721 = vmatprep.subr.mxu0 0.0
      %3722 = vmatpush1.msra.mxu0 0.0
      %3723 = vmatprep.subr.mxu0 0.0
      %3724 = vmatpush1.msra.mxu0 0.0
      %3725 = vmatprep.subr.mxu0 0.0
      %3726 = vmatpush1.msra.mxu0 0.0
      %3727 = vmatprep.subr.mxu0 0.0
      %3728 = vmatpush1.msra.mxu0 0.0
      %3729 = vmatprep.subr.mxu0 0.0
      %3730 = vmatpush1.msra.mxu0 0.0
      %3731 = vmatprep.subr.mxu0 0.0
      %3732 = vmatpush1.msra.mxu0 0.0
      %3733 = vmatprep.subr.mxu0 0.0
      %3734 = vmatpush1.msra.mxu0 0.0
      %3735 = vmatprep.subr.mxu0 0.0
      %3736 = vmatpush1.msra.mxu0 0.0
      %3737 = vmatprep.subr.mxu0 0.0
      %3738 = vmatpush1.msra.mxu0 0.0
      %3739 = vmatprep.subr.mxu0 0.0
      %3740 = vmatpush1.msra.mxu0 0.0
      %3741 = vmatprep.subr.mxu0 0.0
      %v3742 = vand.u32 %v442, 4294901760
      %v3743 = vsub.f32 %v442, %v3742
      %v3744 = vand.u32 %v3743, 4294901760
      %3745 = vmatpush1.msra.mxu0 %v3744
      %3746 = vmatprep.subr.mxu0 0.0
      %v3747 = vand.u32 %v441, 4294901760
      %v3748 = vsub.f32 %v441, %v3747
      %v3749 = vand.u32 %v3748, 4294901760
      %3750 = vmatpush1.msra.mxu0 %v3749
      %3751 = vmatprep.subr.mxu0 0.0
      %3752 = vmatpush2.msra.mxu0 0.0
      %3753 = vmatprep.subr.mxu0 0.0
      %3754 = vmatpush2.msra.mxu0 0.0
      %3755 = vmatprep.subr.mxu0 0.0
      %3756 = vmatpush2.msra.mxu0 0.0
      %3757 = vmatprep.subr.mxu0 0.0
      %3758 = vmatpush2.msra.mxu0 0.0
      %3759 = vmatprep.subr.mxu0 0.0
      %3760 = vmatpush2.msra.mxu0 0.0
      %3761 = vmatprep.subr.mxu0 0.0
      %3762 = vmatpush2.msra.mxu0 0.0
      %3763 = vmatprep.subr.mxu0 0.0
      %3764 = vmatpush2.msra.mxu0 0.0
      %3765 = vmatprep.subr.mxu0 0.0
      %3766 = vmatpush2.msra.mxu0 0.0
      %3767 = vmatprep.subr.mxu0 0.0
      %3768 = vmatpush2.msra.mxu0 0.0
      %3769 = vmatprep.subr.mxu0 0.0
      %3770 = vmatpush2.msra.mxu0 0.0
      %3771 = vmatprep.subr.mxu0 0.0
      %3772 = vmatpush2.msra.mxu0 0.0
      %3773 = vmatprep.subr.mxu0 0.0
      %3774 = vmatpush2.msra.mxu0 0.0
      %3775 = vmatprep.subr.mxu0 0.0
      %3776 = vmatpush2.msra.mxu0 0.0
      %3777 = vmatprep.subr.mxu0 0.0
      %3778 = vmatpush2.msra.mxu0 0.0
      %3779 = vmatprep.subr.mxu0 0.0
      %3780 = vmatpush2.msra.mxu0 0.0
      %3781 = vmatprep.subr.mxu0 0.0
      %3782 = vmatpush2.msra.mxu0 0.0
      %3783 = vmatprep.mubr.f32.mxu0 0.0
      %v3784 = vand.u32 %v3402, 4294901760
      %3785 = vmatmul.mubr.f32.gmra.mxu0 %v3784
      %v3786 = vpop.f32.mrf.mxu0
      %v3787 = vadd.f32 %v3710, %v3786
      %v3788 = vpop.f32.mrf.mxu0
      %3789 = vdwg.mxu0
      %3790 = vmatprep.subr.mxu0 0.0
      %3791 = vmatpush1.msra.mxu0 0.0
      %3792 = vmatprep.subr.mxu0 0.0
      %3793 = vmatpush1.msra.mxu0 0.0
      %3794 = vmatprep.subr.mxu0 0.0
      %3795 = vmatpush1.msra.mxu0 0.0
      %3796 = vmatprep.subr.mxu0 0.0
      %3797 = vmatpush1.msra.mxu0 0.0
      %3798 = vmatprep.subr.mxu0 0.0
      %3799 = vmatpush1.msra.mxu0 0.0
      %3800 = vmatprep.subr.mxu0 0.0
      %3801 = vmatpush1.msra.mxu0 0.0
      %3802 = vmatprep.subr.mxu0 0.0
      %3803 = vmatpush1.msra.mxu0 0.0
      %3804 = vmatprep.subr.mxu0 0.0
      %3805 = vmatpush1.msra.mxu0 0.0
      %3806 = vmatprep.subr.mxu0 0.0
      %3807 = vmatpush1.msra.mxu0 0.0
      %3808 = vmatprep.subr.mxu0 0.0
      %3809 = vmatpush1.msra.mxu0 0.0
      %3810 = vmatprep.subr.mxu0 0.0
      %3811 = vmatpush1.msra.mxu0 0.0
      %3812 = vmatprep.subr.mxu0 0.0
      %3813 = vmatpush1.msra.mxu0 0.0
      %3814 = vmatprep.subr.mxu0 0.0
      %3815 = vmatpush1.msra.mxu0 0.0
      %3816 = vmatprep.subr.mxu0 0.0
      %3817 = vmatpush1.msra.mxu0 0.0
      %3818 = vmatprep.subr.mxu0 0.0
      %v3819 = vand.u32 %v442, 4294901760
      %3820 = vmatpush1.msra.mxu0 %v3819
      %3821 = vmatprep.subr.mxu0 0.0
      %v3822 = vand.u32 %v441, 4294901760
      %3823 = vmatpush1.msra.mxu0 %v3822
      %3824 = vmatprep.subr.mxu0 0.0
      %3825 = vmatpush2.msra.mxu0 0.0
      %3826 = vmatprep.subr.mxu0 0.0
      %3827 = vmatpush2.msra.mxu0 0.0
      %3828 = vmatprep.subr.mxu0 0.0
      %3829 = vmatpush2.msra.mxu0 0.0
      %3830 = vmatprep.subr.mxu0 0.0
      %3831 = vmatpush2.msra.mxu0 0.0
      %3832 = vmatprep.subr.mxu0 0.0
      %3833 = vmatpush2.msra.mxu0 0.0
      %3834 = vmatprep.subr.mxu0 0.0
      %3835 = vmatpush2.msra.mxu0 0.0
      %3836 = vmatprep.subr.mxu0 0.0
      %3837 = vmatpush2.msra.mxu0 0.0
      %3838 = vmatprep.subr.mxu0 0.0
      %3839 = vmatpush2.msra.mxu0 0.0
      %3840 = vmatprep.subr.mxu0 0.0
      %3841 = vmatpush2.msra.mxu0 0.0
      %3842 = vmatprep.subr.mxu0 0.0
      %3843 = vmatpush2.msra.mxu0 0.0
      %3844 = vmatprep.subr.mxu0 0.0
      %3845 = vmatpush2.msra.mxu0 0.0
      %3846 = vmatprep.subr.mxu0 0.0
      %3847 = vmatpush2.msra.mxu0 0.0
      %3848 = vmatprep.subr.mxu0 0.0
      %3849 = vmatpush2.msra.mxu0 0.0
      %3850 = vmatprep.subr.mxu0 0.0
      %3851 = vmatpush2.msra.mxu0 0.0
      %3852 = vmatprep.subr.mxu0 0.0
      %3853 = vmatpush2.msra.mxu0 0.0
      %3854 = vmatprep.subr.mxu0 0.0
      %3855 = vmatpush2.msra.mxu0 0.0
      %3856 = vmatprep.mubr.f32.mxu0 0.0
      %v3857 = vand.u32 %v3402, 4294901760
      %3858 = vmatmul.mubr.f32.gmra.mxu0 %v3857
      %v3859 = vpop.f32.mrf.mxu0
      %v3860 = vadd.f32 %v3787, %v3859
      %v3861 = vpop.f32.mrf.mxu0
      %3862 = vdwg.mxu0
      %3863 = vmatprep.subr.mxu0 0.0
      %3864 = vmatpush1.msra.mxu0 0.0
      %3865 = vmatprep.subr.mxu0 0.0
      %3866 = vmatpush1.msra.mxu0 0.0
      %3867 = vmatprep.subr.mxu0 0.0
      %3868 = vmatpush1.msra.mxu0 0.0
      %3869 = vmatprep.subr.mxu0 0.0
      %3870 = vmatpush1.msra.mxu0 0.0
      %3871 = vmatprep.subr.mxu0 0.0
      %3872 = vmatpush1.msra.mxu0 0.0
      %3873 = vmatprep.subr.mxu0 0.0
      %3874 = vmatpush1.msra.mxu0 0.0
      %3875 = vmatprep.subr.mxu0 0.0
      %3876 = vmatpush1.msra.mxu0 0.0
      %3877 = vmatprep.subr.mxu0 0.0
      %3878 = vmatpush1.msra.mxu0 0.0
      %3879 = vmatprep.subr.mxu0 0.0
      %3880 = vmatpush1.msra.mxu0 0.0
      %3881 = vmatprep.subr.mxu0 0.0
      %3882 = vmatpush1.msra.mxu0 0.0
      %3883 = vmatprep.subr.mxu0 0.0
      %3884 = vmatpush1.msra.mxu0 0.0
      %3885 = vmatprep.subr.mxu0 0.0
      %3886 = vmatpush1.msra.mxu0 0.0
      %3887 = vmatprep.subr.mxu0 0.0
      %3888 = vmatpush1.msra.mxu0 0.0
      %3889 = vmatprep.subr.mxu0 0.0
      %3890 = vmatpush1.msra.mxu0 0.0
      %3891 = vmatprep.subr.mxu0 0.0
      %v3892 = vand.u32 %v444, 4294901760
      %3893 = vmatpush1.msra.mxu0 %v3892
      %3894 = vmatprep.subr.mxu0 0.0
      %v3895 = vand.u32 %v443, 4294901760
      %3896 = vmatpush1.msra.mxu0 %v3895
      %3897 = vmatprep.subr.mxu0 0.0
      %3898 = vmatpush2.msra.mxu0 0.0
      %3899 = vmatprep.subr.mxu0 0.0
      %3900 = vmatpush2.msra.mxu0 0.0
      %3901 = vmatprep.subr.mxu0 0.0
      %3902 = vmatpush2.msra.mxu0 0.0
      %3903 = vmatprep.subr.mxu0 0.0
      %3904 = vmatpush2.msra.mxu0 0.0
      %3905 = vmatprep.subr.mxu0 0.0
      %3906 = vmatpush2.msra.mxu0 0.0
      %3907 = vmatprep.subr.mxu0 0.0
      %3908 = vmatpush2.msra.mxu0 0.0
      %3909 = vmatprep.subr.mxu0 0.0
      %3910 = vmatpush2.msra.mxu0 0.0
      %3911 = vmatprep.subr.mxu0 0.0
      %3912 = vmatpush2.msra.mxu0 0.0
      %3913 = vmatprep.subr.mxu0 0.0
      %3914 = vmatpush2.msra.mxu0 0.0
      %3915 = vmatprep.subr.mxu0 0.0
      %3916 = vmatpush2.msra.mxu0 0.0
      %3917 = vmatprep.subr.mxu0 0.0
      %3918 = vmatpush2.msra.mxu0 0.0
      %3919 = vmatprep.subr.mxu0 0.0
      %3920 = vmatpush2.msra.mxu0 0.0
      %3921 = vmatprep.subr.mxu0 0.0
      %3922 = vmatpush2.msra.mxu0 0.0
      %3923 = vmatprep.subr.mxu0 0.0
      %3924 = vmatpush2.msra.mxu0 0.0
      %3925 = vmatprep.subr.mxu0 0.0
      %3926 = vmatpush2.msra.mxu0 0.0
      %3927 = vmatprep.subr.mxu0 0.0
      %3928 = vmatpush2.msra.mxu0 0.0
      %3929 = vmatprep.mubr.f32.mxu0 0.0
      %v3930 = vand.u32 %v3402, 4294901760
      %v3931 = vsub.f32 %v3402, %v3930
      %v3932 = vand.u32 %v3931, 4294901760
      %v3933 = vsub.f32 %v3931, %v3932
      %v3934 = vand.u32 %v3933, 4294901760
      %3935 = vmatmul.mubr.f32.gmra.mxu0 %v3934
      %v3936 = vpop.f32.mrf.mxu0
      %v3937 = vadd.f32 0.0, %v3936
      %v3938 = vpop.f32.mrf.mxu0
      %3939 = vdwg.mxu0
      %3940 = vmatprep.subr.mxu0 0.0
      %3941 = vmatpush1.msra.mxu0 0.0
      %3942 = vmatprep.subr.mxu0 0.0
      %3943 = vmatpush1.msra.mxu0 0.0
      %3944 = vmatprep.subr.mxu0 0.0
      %3945 = vmatpush1.msra.mxu0 0.0
      %3946 = vmatprep.subr.mxu0 0.0
      %3947 = vmatpush1.msra.mxu0 0.0
      %3948 = vmatprep.subr.mxu0 0.0
      %3949 = vmatpush1.msra.mxu0 0.0
      %3950 = vmatprep.subr.mxu0 0.0
      %3951 = vmatpush1.msra.mxu0 0.0
      %3952 = vmatprep.subr.mxu0 0.0
      %3953 = vmatpush1.msra.mxu0 0.0
      %3954 = vmatprep.subr.mxu0 0.0
      %3955 = vmatpush1.msra.mxu0 0.0
      %3956 = vmatprep.subr.mxu0 0.0
      %3957 = vmatpush1.msra.mxu0 0.0
      %3958 = vmatprep.subr.mxu0 0.0
      %3959 = vmatpush1.msra.mxu0 0.0
      %3960 = vmatprep.subr.mxu0 0.0
      %3961 = vmatpush1.msra.mxu0 0.0
      %3962 = vmatprep.subr.mxu0 0.0
      %3963 = vmatpush1.msra.mxu0 0.0
      %3964 = vmatprep.subr.mxu0 0.0
      %3965 = vmatpush1.msra.mxu0 0.0
      %3966 = vmatprep.subr.mxu0 0.0
      %3967 = vmatpush1.msra.mxu0 0.0
      %3968 = vmatprep.subr.mxu0 0.0
      %v3969 = vand.u32 %v444, 4294901760
      %v3970 = vsub.f32 %v444, %v3969
      %v3971 = vand.u32 %v3970, 4294901760
      %v3972 = vsub.f32 %v3970, %v3971
      %v3973 = vand.u32 %v3972, 4294901760
      %3974 = vmatpush1.msra.mxu0 %v3973
      %3975 = vmatprep.subr.mxu0 0.0
      %v3976 = vand.u32 %v443, 4294901760
      %v3977 = vsub.f32 %v443, %v3976
      %v3978 = vand.u32 %v3977, 4294901760
      %v3979 = vsub.f32 %v3977, %v3978
      %v3980 = vand.u32 %v3979, 4294901760
      %3981 = vmatpush1.msra.mxu0 %v3980
      %3982 = vmatprep.subr.mxu0 0.0
      %3983 = vmatpush2.msra.mxu0 0.0
      %3984 = vmatprep.subr.mxu0 0.0
      %3985 = vmatpush2.msra.mxu0 0.0
      %3986 = vmatprep.subr.mxu0 0.0
      %3987 = vmatpush2.msra.mxu0 0.0
      %3988 = vmatprep.subr.mxu0 0.0
      %3989 = vmatpush2.msra.mxu0 0.0
      %3990 = vmatprep.subr.mxu0 0.0
      %3991 = vmatpush2.msra.mxu0 0.0
      %3992 = vmatprep.subr.mxu0 0.0
      %3993 = vmatpush2.msra.mxu0 0.0
      %3994 = vmatprep.subr.mxu0 0.0
      %3995 = vmatpush2.msra.mxu0 0.0
      %3996 = vmatprep.subr.mxu0 0.0
      %3997 = vmatpush2.msra.mxu0 0.0
      %3998 = vmatprep.subr.mxu0 0.0
      %3999 = vmatpush2.msra.mxu0 0.0
      %4000 = vmatprep.subr.mxu0 0.0
      %4001 = vmatpush2.msra.mxu0 0.0
      %4002 = vmatprep.subr.mxu0 0.0
      %4003 = vmatpush2.msra.mxu0 0.0
      %4004 = vmatprep.subr.mxu0 0.0
      %4005 = vmatpush2.msra.mxu0 0.0
      %4006 = vmatprep.subr.mxu0 0.0
      %4007 = vmatpush2.msra.mxu0 0.0
      %4008 = vmatprep.subr.mxu0 0.0
      %4009 = vmatpush2.msra.mxu0 0.0
      %4010 = vmatprep.subr.mxu0 0.0
      %4011 = vmatpush2.msra.mxu0 0.0
      %4012 = vmatprep.subr.mxu0 0.0
      %4013 = vmatpush2.msra.mxu0 0.0
      %4014 = vmatprep.mubr.f32.mxu0 0.0
      %v4015 = vand.u32 %v3402, 4294901760
      %4016 = vmatmul.mubr.f32.gmra.mxu0 %v4015
      %v4017 = vpop.f32.mrf.mxu0
      %v4018 = vadd.f32 %v3937, %v4017
      %v4019 = vpop.f32.mrf.mxu0
      %4020 = vdwg.mxu0
      %4021 = vmatprep.subr.mxu0 0.0
      %4022 = vmatpush1.msra.mxu0 0.0
      %4023 = vmatprep.subr.mxu0 0.0
      %4024 = vmatpush1.msra.mxu0 0.0
      %4025 = vmatprep.subr.mxu0 0.0
      %4026 = vmatpush1.msra.mxu0 0.0
      %4027 = vmatprep.subr.mxu0 0.0
      %4028 = vmatpush1.msra.mxu0 0.0
      %4029 = vmatprep.subr.mxu0 0.0
      %4030 = vmatpush1.msra.mxu0 0.0
      %4031 = vmatprep.subr.mxu0 0.0
      %4032 = vmatpush1.msra.mxu0 0.0
      %4033 = vmatprep.subr.mxu0 0.0
      %4034 = vmatpush1.msra.mxu0 0.0
      %4035 = vmatprep.subr.mxu0 0.0
      %4036 = vmatpush1.msra.mxu0 0.0
      %4037 = vmatprep.subr.mxu0 0.0
      %4038 = vmatpush1.msra.mxu0 0.0
      %4039 = vmatprep.subr.mxu0 0.0
      %4040 = vmatpush1.msra.mxu0 0.0
      %4041 = vmatprep.subr.mxu0 0.0
      %4042 = vmatpush1.msra.mxu0 0.0
      %4043 = vmatprep.subr.mxu0 0.0
      %4044 = vmatpush1.msra.mxu0 0.0
      %4045 = vmatprep.subr.mxu0 0.0
      %4046 = vmatpush1.msra.mxu0 0.0
      %4047 = vmatprep.subr.mxu0 0.0
      %4048 = vmatpush1.msra.mxu0 0.0
      %4049 = vmatprep.subr.mxu0 0.0
      %v4050 = vand.u32 %v444, 4294901760
      %v4051 = vsub.f32 %v444, %v4050
      %4052 = vmatpush1.msra.mxu0 %v4051
      %4053 = vmatprep.subr.mxu0 0.0
      %v4054 = vand.u32 %v443, 4294901760
      %v4055 = vsub.f32 %v443, %v4054
      %4056 = vmatpush1.msra.mxu0 %v4055
      %4057 = vmatprep.subr.mxu0 0.0
      %4058 = vmatpush2.msra.mxu0 0.0
      %4059 = vmatprep.subr.mxu0 0.0
      %4060 = vmatpush2.msra.mxu0 0.0
      %4061 = vmatprep.subr.mxu0 0.0
      %4062 = vmatpush2.msra.mxu0 0.0
      %4063 = vmatprep.subr.mxu0 0.0
      %4064 = vmatpush2.msra.mxu0 0.0
      %4065 = vmatprep.subr.mxu0 0.0
      %4066 = vmatpush2.msra.mxu0 0.0
      %4067 = vmatprep.subr.mxu0 0.0
      %4068 = vmatpush2.msra.mxu0 0.0
      %4069 = vmatprep.subr.mxu0 0.0
      %4070 = vmatpush2.msra.mxu0 0.0
      %4071 = vmatprep.subr.mxu0 0.0
      %4072 = vmatpush2.msra.mxu0 0.0
      %4073 = vmatprep.subr.mxu0 0.0
      %4074 = vmatpush2.msra.mxu0 0.0
      %4075 = vmatprep.subr.mxu0 0.0
      %4076 = vmatpush2.msra.mxu0 0.0
      %4077 = vmatprep.subr.mxu0 0.0
      %4078 = vmatpush2.msra.mxu0 0.0
      %4079 = vmatprep.subr.mxu0 0.0
      %4080 = vmatpush2.msra.mxu0 0.0
      %4081 = vmatprep.subr.mxu0 0.0
      %4082 = vmatpush2.msra.mxu0 0.0
      %4083 = vmatprep.subr.mxu0 0.0
      %4084 = vmatpush2.msra.mxu0 0.0
      %4085 = vmatprep.subr.mxu0 0.0
      %4086 = vmatpush2.msra.mxu0 0.0
      %4087 = vmatprep.subr.mxu0 0.0
      %4088 = vmatpush2.msra.mxu0 0.0
      %4089 = vmatprep.mubr.f32.mxu0 0.0
      %v4090 = vand.u32 %v3402, 4294901760
      %v4091 = vsub.f32 %v3402, %v4090
      %4092 = vmatmul.mubr.f32.gmra.mxu0 %v4091
      %v4093 = vpop.f32.mrf.mxu0
      %v4094 = vadd.f32 %v4018, %v4093
      %v4095 = vpop.f32.mrf.mxu0
      %4096 = vdwg.mxu0
      %4097 = vmatprep.subr.mxu0 0.0
      %4098 = vmatpush1.msra.mxu0 0.0
      %4099 = vmatprep.subr.mxu0 0.0
      %4100 = vmatpush1.msra.mxu0 0.0
      %4101 = vmatprep.subr.mxu0 0.0
      %4102 = vmatpush1.msra.mxu0 0.0
      %4103 = vmatprep.subr.mxu0 0.0
      %4104 = vmatpush1.msra.mxu0 0.0
      %4105 = vmatprep.subr.mxu0 0.0
      %4106 = vmatpush1.msra.mxu0 0.0
      %4107 = vmatprep.subr.mxu0 0.0
      %4108 = vmatpush1.msra.mxu0 0.0
      %4109 = vmatprep.subr.mxu0 0.0
      %4110 = vmatpush1.msra.mxu0 0.0
      %4111 = vmatprep.subr.mxu0 0.0
      %4112 = vmatpush1.msra.mxu0 0.0
      %4113 = vmatprep.subr.mxu0 0.0
      %4114 = vmatpush1.msra.mxu0 0.0
      %4115 = vmatprep.subr.mxu0 0.0
      %4116 = vmatpush1.msra.mxu0 0.0
      %4117 = vmatprep.subr.mxu0 0.0
      %4118 = vmatpush1.msra.mxu0 0.0
      %4119 = vmatprep.subr.mxu0 0.0
      %4120 = vmatpush1.msra.mxu0 0.0
      %4121 = vmatprep.subr.mxu0 0.0
      %4122 = vmatpush1.msra.mxu0 0.0
      %4123 = vmatprep.subr.mxu0 0.0
      %4124 = vmatpush1.msra.mxu0 0.0
      %4125 = vmatprep.subr.mxu0 0.0
      %v4126 = vand.u32 %v444, 4294901760
      %4127 = vmatpush1.msra.mxu0 %v4126
      %4128 = vmatprep.subr.mxu0 0.0
      %v4129 = vand.u32 %v443, 4294901760
      %4130 = vmatpush1.msra.mxu0 %v4129
      %4131 = vmatprep.subr.mxu0 0.0
      %4132 = vmatpush2.msra.mxu0 0.0
      %4133 = vmatprep.subr.mxu0 0.0
      %4134 = vmatpush2.msra.mxu0 0.0
      %4135 = vmatprep.subr.mxu0 0.0
      %4136 = vmatpush2.msra.mxu0 0.0
      %4137 = vmatprep.subr.mxu0 0.0
      %4138 = vmatpush2.msra.mxu0 0.0
      %4139 = vmatprep.subr.mxu0 0.0
      %4140 = vmatpush2.msra.mxu0 0.0
      %4141 = vmatprep.subr.mxu0 0.0
      %4142 = vmatpush2.msra.mxu0 0.0
      %4143 = vmatprep.subr.mxu0 0.0
      %4144 = vmatpush2.msra.mxu0 0.0
      %4145 = vmatprep.subr.mxu0 0.0
      %4146 = vmatpush2.msra.mxu0 0.0
      %4147 = vmatprep.subr.mxu0 0.0
      %4148 = vmatpush2.msra.mxu0 0.0
      %4149 = vmatprep.subr.mxu0 0.0
      %4150 = vmatpush2.msra.mxu0 0.0
      %4151 = vmatprep.subr.mxu0 0.0
      %4152 = vmatpush2.msra.mxu0 0.0
      %4153 = vmatprep.subr.mxu0 0.0
      %4154 = vmatpush2.msra.mxu0 0.0
      %4155 = vmatprep.subr.mxu0 0.0
      %4156 = vmatpush2.msra.mxu0 0.0
      %4157 = vmatprep.subr.mxu0 0.0
      %4158 = vmatpush2.msra.mxu0 0.0
      %4159 = vmatprep.subr.mxu0 0.0
      %4160 = vmatpush2.msra.mxu0 0.0
      %4161 = vmatprep.subr.mxu0 0.0
      %4162 = vmatpush2.msra.mxu0 0.0
      %4163 = vmatprep.mubr.f32.mxu0 0.0
      %v4164 = vand.u32 %v3402, 4294901760
      %v4165 = vsub.f32 %v3402, %v4164
      %v4166 = vand.u32 %v4165, 4294901760
      %4167 = vmatmul.mubr.f32.gmra.mxu0 %v4166
      %v4168 = vpop.f32.mrf.mxu0
      %v4169 = vadd.f32 %v4094, %v4168
      %v4170 = vpop.f32.mrf.mxu0
      %4171 = vdwg.mxu0
      %4172 = vmatprep.subr.mxu0 0.0
      %4173 = vmatpush1.msra.mxu0 0.0
      %4174 = vmatprep.subr.mxu0 0.0
      %4175 = vmatpush1.msra.mxu0 0.0
      %4176 = vmatprep.subr.mxu0 0.0
      %4177 = vmatpush1.msra.mxu0 0.0
      %4178 = vmatprep.subr.mxu0 0.0
      %4179 = vmatpush1.msra.mxu0 0.0
      %4180 = vmatprep.subr.mxu0 0.0
      %4181 = vmatpush1.msra.mxu0 0.0
      %4182 = vmatprep.subr.mxu0 0.0
      %4183 = vmatpush1.msra.mxu0 0.0
      %4184 = vmatprep.subr.mxu0 0.0
      %4185 = vmatpush1.msra.mxu0 0.0
      %4186 = vmatprep.subr.mxu0 0.0
      %4187 = vmatpush1.msra.mxu0 0.0
      %4188 = vmatprep.subr.mxu0 0.0
      %4189 = vmatpush1.msra.mxu0 0.0
      %4190 = vmatprep.subr.mxu0 0.0
      %4191 = vmatpush1.msra.mxu0 0.0
      %4192 = vmatprep.subr.mxu0 0.0
      %4193 = vmatpush1.msra.mxu0 0.0
      %4194 = vmatprep.subr.mxu0 0.0
      %4195 = vmatpush1.msra.mxu0 0.0
      %4196 = vmatprep.subr.mxu0 0.0
      %4197 = vmatpush1.msra.mxu0 0.0
      %4198 = vmatprep.subr.mxu0 0.0
      %4199 = vmatpush1.msra.mxu0 0.0
      %4200 = vmatprep.subr.mxu0 0.0
      %v4201 = vand.u32 %v444, 4294901760
      %v4202 = vsub.f32 %v444, %v4201
      %v4203 = vand.u32 %v4202, 4294901760
      %4204 = vmatpush1.msra.mxu0 %v4203
      %4205 = vmatprep.subr.mxu0 0.0
      %v4206 = vand.u32 %v443, 4294901760
      %v4207 = vsub.f32 %v443, %v4206
      %v4208 = vand.u32 %v4207, 4294901760
      %4209 = vmatpush1.msra.mxu0 %v4208
      %4210 = vmatprep.subr.mxu0 0.0
      %4211 = vmatpush2.msra.mxu0 0.0
      %4212 = vmatprep.subr.mxu0 0.0
      %4213 = vmatpush2.msra.mxu0 0.0
      %4214 = vmatprep.subr.mxu0 0.0
      %4215 = vmatpush2.msra.mxu0 0.0
      %4216 = vmatprep.subr.mxu0 0.0
      %4217 = vmatpush2.msra.mxu0 0.0
      %4218 = vmatprep.subr.mxu0 0.0
      %4219 = vmatpush2.msra.mxu0 0.0
      %4220 = vmatprep.subr.mxu0 0.0
      %4221 = vmatpush2.msra.mxu0 0.0
      %4222 = vmatprep.subr.mxu0 0.0
      %4223 = vmatpush2.msra.mxu0 0.0
      %4224 = vmatprep.subr.mxu0 0.0
      %4225 = vmatpush2.msra.mxu0 0.0
      %4226 = vmatprep.subr.mxu0 0.0
      %4227 = vmatpush2.msra.mxu0 0.0
      %4228 = vmatprep.subr.mxu0 0.0
      %4229 = vmatpush2.msra.mxu0 0.0
      %4230 = vmatprep.subr.mxu0 0.0
      %4231 = vmatpush2.msra.mxu0 0.0
      %4232 = vmatprep.subr.mxu0 0.0
      %4233 = vmatpush2.msra.mxu0 0.0
      %4234 = vmatprep.subr.mxu0 0.0
      %4235 = vmatpush2.msra.mxu0 0.0
      %4236 = vmatprep.subr.mxu0 0.0
      %4237 = vmatpush2.msra.mxu0 0.0
      %4238 = vmatprep.subr.mxu0 0.0
      %4239 = vmatpush2.msra.mxu0 0.0
      %4240 = vmatprep.subr.mxu0 0.0
      %4241 = vmatpush2.msra.mxu0 0.0
      %4242 = vmatprep.mubr.f32.mxu0 0.0
      %v4243 = vand.u32 %v3402, 4294901760
      %4244 = vmatmul.mubr.f32.gmra.mxu0 %v4243
      %v4245 = vpop.f32.mrf.mxu0
      %v4246 = vadd.f32 %v4169, %v4245
      %v4247 = vpop.f32.mrf.mxu0
      %4248 = vdwg.mxu0
      %4249 = vmatprep.subr.mxu0 0.0
      %4250 = vmatpush1.msra.mxu0 0.0
      %4251 = vmatprep.subr.mxu0 0.0
      %4252 = vmatpush1.msra.mxu0 0.0
      %4253 = vmatprep.subr.mxu0 0.0
      %4254 = vmatpush1.msra.mxu0 0.0
      %4255 = vmatprep.subr.mxu0 0.0
      %4256 = vmatpush1.msra.mxu0 0.0
      %4257 = vmatprep.subr.mxu0 0.0
      %4258 = vmatpush1.msra.mxu0 0.0
      %4259 = vmatprep.subr.mxu0 0.0
      %4260 = vmatpush1.msra.mxu0 0.0
      %4261 = vmatprep.subr.mxu0 0.0
      %4262 = vmatpush1.msra.mxu0 0.0
      %4263 = vmatprep.subr.mxu0 0.0
      %4264 = vmatpush1.msra.mxu0 0.0
      %4265 = vmatprep.subr.mxu0 0.0
      %4266 = vmatpush1.msra.mxu0 0.0
      %4267 = vmatprep.subr.mxu0 0.0
      %4268 = vmatpush1.msra.mxu0 0.0
      %4269 = vmatprep.subr.mxu0 0.0
      %4270 = vmatpush1.msra.mxu0 0.0
      %4271 = vmatprep.subr.mxu0 0.0
      %4272 = vmatpush1.msra.mxu0 0.0
      %4273 = vmatprep.subr.mxu0 0.0
      %4274 = vmatpush1.msra.mxu0 0.0
      %4275 = vmatprep.subr.mxu0 0.0
      %4276 = vmatpush1.msra.mxu0 0.0
      %4277 = vmatprep.subr.mxu0 0.0
      %v4278 = vand.u32 %v444, 4294901760
      %4279 = vmatpush1.msra.mxu0 %v4278
      %4280 = vmatprep.subr.mxu0 0.0
      %v4281 = vand.u32 %v443, 4294901760
      %4282 = vmatpush1.msra.mxu0 %v4281
      %4283 = vmatprep.subr.mxu0 0.0
      %4284 = vmatpush2.msra.mxu0 0.0
      %4285 = vmatprep.subr.mxu0 0.0
      %4286 = vmatpush2.msra.mxu0 0.0
      %4287 = vmatprep.subr.mxu0 0.0
      %4288 = vmatpush2.msra.mxu0 0.0
      %4289 = vmatprep.subr.mxu0 0.0
      %4290 = vmatpush2.msra.mxu0 0.0
      %4291 = vmatprep.subr.mxu0 0.0
      %4292 = vmatpush2.msra.mxu0 0.0
      %4293 = vmatprep.subr.mxu0 0.0
      %4294 = vmatpush2.msra.mxu0 0.0
      %4295 = vmatprep.subr.mxu0 0.0
      %4296 = vmatpush2.msra.mxu0 0.0
      %4297 = vmatprep.subr.mxu0 0.0
      %4298 = vmatpush2.msra.mxu0 0.0
      %4299 = vmatprep.subr.mxu0 0.0
      %4300 = vmatpush2.msra.mxu0 0.0
      %4301 = vmatprep.subr.mxu0 0.0
      %4302 = vmatpush2.msra.mxu0 0.0
      %4303 = vmatprep.subr.mxu0 0.0
      %4304 = vmatpush2.msra.mxu0 0.0
      %4305 = vmatprep.subr.mxu0 0.0
      %4306 = vmatpush2.msra.mxu0 0.0
      %4307 = vmatprep.subr.mxu0 0.0
      %4308 = vmatpush2.msra.mxu0 0.0
      %4309 = vmatprep.subr.mxu0 0.0
      %4310 = vmatpush2.msra.mxu0 0.0
      %4311 = vmatprep.subr.mxu0 0.0
      %4312 = vmatpush2.msra.mxu0 0.0
      %4313 = vmatprep.subr.mxu0 0.0
      %4314 = vmatpush2.msra.mxu0 0.0
      %4315 = vmatprep.mubr.f32.mxu0 0.0
      %v4316 = vand.u32 %v3402, 4294901760
      %4317 = vmatmul.mubr.f32.gmra.mxu0 %v4316
      %v4318 = vpop.f32.mrf.mxu0
      %v4319 = vadd.f32 %v4246, %v4318
      %v4320 = vpop.f32.mrf.mxu0
      %4321 = vdwg.mxu0
      %v4322 = vmax.f32 %v3860, %v4319
      %4323 = vxpose.xlu0.b32.start [1/16] %v4322, 128
      %4324 = vxpose.xlu0.b32.cont [2/16] 0.0, 128
      %4325 = vxpose.xlu0.b32.cont [3/16] 0.0, 128
      %4326 = vxpose.xlu0.b32.cont [4/16] 0.0, 128
      %4327 = vxpose.xlu0.b32.cont [5/16] 0.0, 128
      %4328 = vxpose.xlu0.b32.cont [6/16] 0.0, 128
      %4329 = vxpose.xlu0.b32.cont [7/16] 0.0, 128
      %4330 = vxpose.xlu0.b32.cont [8/16] 0.0, 128
      %4331 = vxpose.xlu0.b32.cont [9/16] 0.0, 128
      %4332 = vxpose.xlu0.b32.cont [10/16] 0.0, 128
      %4333 = vxpose.xlu0.b32.cont [11/16] 0.0, 128
      %4334 = vxpose.xlu0.b32.cont [12/16] 0.0, 128
      %4335 = vxpose.xlu0.b32.cont [13/16] 0.0, 128
      %4336 = vxpose.xlu0.b32.cont [14/16] 0.0, 128
      %4337 = vxpose.xlu0.b32.cont [15/16] 0.0, 128
      %4338 = vxpose.xlu0.b32.end [16/16] 0.0, 128
      %v4339 = vpop.trf.xlu0
      %v4340 = vpop.trf.xlu0
      %v4341 = vpop.trf.xlu0
      %v4342 = vpop.trf.xlu0
      %v4343 = vpop.trf.xlu0
      %v4344 = vpop.trf.xlu0
      %v4345 = vpop.trf.xlu0
      %v4346 = vpop.trf.xlu0
      %v4347 = vpop.trf.xlu0
      %v4348 = vpop.trf.xlu0
      %v4349 = vpop.trf.xlu0
      %v4350 = vpop.trf.xlu0
      %v4351 = vpop.trf.xlu0
      %v4352 = vpop.trf.xlu0
      %v4353 = vpop.trf.xlu0
      %v4354 = vpop.trf.xlu0
      %s4355 = scalar_lea.vmem [#allocation2], 64
      %4356 = vst.msk [vmem:[%s4355 + $0x1] sm:$0xff] %vm385, %v4339
      %v4357 = vld [vmem:[%s380 + $0x8] sm:$0x1]
      %v4358 = vld [vmem:[%s380 + $0x18] sm:$0x1]
      %v4359 = vld [vmem:[%s380 + $0x28] sm:$0x1]
      %v4360 = vld [vmem:[%s380 + $0x38] sm:$0x1]
      %v4361 = vld [vmem:[%s380 + $0x9] sm:$0x1]
      %v4362 = vld [vmem:[%s380 + $0x19] sm:$0x1]
      %v4363 = vld [vmem:[%s380 + $0x29] sm:$0x1]
      %v4364 = vld [vmem:[%s380 + $0x39] sm:$0x1]
      %v4365 = vmax.f32 %v4357, %v4361
      %v4366 = vmax.f32 %v4358, %v4362
      %v4367 = vmax.f32 %v4359, %v4363
      %v4368 = vmax.f32 %v4360, %v4364
      %v4373 = vrot.slane %v4366, 7
      %v4374 = vsel %vm462, %v4373, %v4365
      %v4375 = vrot.slane %v4367, 6
      %v4376 = vsel %vm465, %v4375, %v4374
      %v4377 = vrot.slane %v4368, 5
      %v4378 = vsel %vm468, %v4377, %v4376
      %v4379 = vsel %vm470, %v4378, 0
      %4381 = vmatprep.subr.mxu0 0.0
      %4382 = vmatpush1.msra.mxu0 0.0
      %4383 = vmatprep.subr.mxu0 0.0
      %4384 = vmatpush1.msra.mxu0 0.0
      %4385 = vmatprep.subr.mxu0 0.0
      %4386 = vmatpush1.msra.mxu0 0.0
      %4387 = vmatprep.subr.mxu0 0.0
      %4388 = vmatpush1.msra.mxu0 0.0
      %4389 = vmatprep.subr.mxu0 0.0
      %4390 = vmatpush1.msra.mxu0 0.0
      %4391 = vmatprep.subr.mxu0 0.0
      %4392 = vmatpush1.msra.mxu0 0.0
      %4393 = vmatprep.subr.mxu0 0.0
      %4394 = vmatpush1.msra.mxu0 0.0
      %4395 = vmatprep.subr.mxu0 0.0
      %4396 = vmatpush1.msra.mxu0 0.0
      %4397 = vmatprep.subr.mxu0 0.0
      %4398 = vmatpush1.msra.mxu0 0.0
      %4399 = vmatprep.subr.mxu0 0.0
      %4400 = vmatpush1.msra.mxu0 0.0
      %4401 = vmatprep.subr.mxu0 0.0
      %4402 = vmatpush1.msra.mxu0 0.0
      %4403 = vmatprep.subr.mxu0 0.0
      %4404 = vmatpush1.msra.mxu0 0.0
      %4405 = vmatprep.subr.mxu0 0.0
      %4406 = vmatpush1.msra.mxu0 0.0
      %4407 = vmatprep.subr.mxu0 0.0
      %4408 = vmatpush1.msra.mxu0 0.0
      %4409 = vmatprep.subr.mxu0 0.0
      %v4410 = vand.u32 %v442, 4294901760
      %4411 = vmatpush1.msra.mxu0 %v4410
      %4412 = vmatprep.subr.mxu0 0.0
      %v4413 = vand.u32 %v441, 4294901760
      %4414 = vmatpush1.msra.mxu0 %v4413
      %4415 = vmatprep.subr.mxu0 0.0
      %4416 = vmatpush2.msra.mxu0 0.0
      %4417 = vmatprep.subr.mxu0 0.0
      %4418 = vmatpush2.msra.mxu0 0.0
      %4419 = vmatprep.subr.mxu0 0.0
      %4420 = vmatpush2.msra.mxu0 0.0
      %4421 = vmatprep.subr.mxu0 0.0
      %4422 = vmatpush2.msra.mxu0 0.0
      %4423 = vmatprep.subr.mxu0 0.0
      %4424 = vmatpush2.msra.mxu0 0.0
      %4425 = vmatprep.subr.mxu0 0.0
      %4426 = vmatpush2.msra.mxu0 0.0
      %4427 = vmatprep.subr.mxu0 0.0
      %4428 = vmatpush2.msra.mxu0 0.0
      %4429 = vmatprep.subr.mxu0 0.0
      %4430 = vmatpush2.msra.mxu0 0.0
      %4431 = vmatprep.subr.mxu0 0.0
      %4432 = vmatpush2.msra.mxu0 0.0
      %4433 = vmatprep.subr.mxu0 0.0
      %4434 = vmatpush2.msra.mxu0 0.0
      %4435 = vmatprep.subr.mxu0 0.0
      %4436 = vmatpush2.msra.mxu0 0.0
      %4437 = vmatprep.subr.mxu0 0.0
      %4438 = vmatpush2.msra.mxu0 0.0
      %4439 = vmatprep.subr.mxu0 0.0
      %4440 = vmatpush2.msra.mxu0 0.0
      %4441 = vmatprep.subr.mxu0 0.0
      %4442 = vmatpush2.msra.mxu0 0.0
      %4443 = vmatprep.subr.mxu0 0.0
      %4444 = vmatpush2.msra.mxu0 0.0
      %4445 = vmatprep.subr.mxu0 0.0
      %4446 = vmatpush2.msra.mxu0 0.0
      %4447 = vmatprep.mubr.f32.mxu0 0.0
      %v4448 = vand.u32 %v4379, 4294901760
      %v4449 = vsub.f32 %v4379, %v4448
      %v4450 = vand.u32 %v4449, 4294901760
      %v4451 = vsub.f32 %v4449, %v4450
      %v4452 = vand.u32 %v4451, 4294901760
      %4453 = vmatmul.mubr.f32.gmra.mxu0 %v4452
      %v4454 = vpop.f32.mrf.mxu0
      %v4455 = vadd.f32 0.0, %v4454
      %v4456 = vpop.f32.mrf.mxu0
      %4457 = vdwg.mxu0
      %4458 = vmatprep.subr.mxu0 0.0
      %4459 = vmatpush1.msra.mxu0 0.0
      %4460 = vmatprep.subr.mxu0 0.0
      %4461 = vmatpush1.msra.mxu0 0.0
      %4462 = vmatprep.subr.mxu0 0.0
      %4463 = vmatpush1.msra.mxu0 0.0
      %4464 = vmatprep.subr.mxu0 0.0
      %4465 = vmatpush1.msra.mxu0 0.0
      %4466 = vmatprep.subr.mxu0 0.0
      %4467 = vmatpush1.msra.mxu0 0.0
      %4468 = vmatprep.subr.mxu0 0.0
      %4469 = vmatpush1.msra.mxu0 0.0
      %4470 = vmatprep.subr.mxu0 0.0
      %4471 = vmatpush1.msra.mxu0 0.0
      %4472 = vmatprep.subr.mxu0 0.0
      %4473 = vmatpush1.msra.mxu0 0.0
      %4474 = vmatprep.subr.mxu0 0.0
      %4475 = vmatpush1.msra.mxu0 0.0
      %4476 = vmatprep.subr.mxu0 0.0
      %4477 = vmatpush1.msra.mxu0 0.0
      %4478 = vmatprep.subr.mxu0 0.0
      %4479 = vmatpush1.msra.mxu0 0.0
      %4480 = vmatprep.subr.mxu0 0.0
      %4481 = vmatpush1.msra.mxu0 0.0
      %4482 = vmatprep.subr.mxu0 0.0
      %4483 = vmatpush1.msra.mxu0 0.0
      %4484 = vmatprep.subr.mxu0 0.0
      %4485 = vmatpush1.msra.mxu0 0.0
      %4486 = vmatprep.subr.mxu0 0.0
      %v4487 = vand.u32 %v442, 4294901760
      %v4488 = vsub.f32 %v442, %v4487
      %v4489 = vand.u32 %v4488, 4294901760
      %v4490 = vsub.f32 %v4488, %v4489
      %v4491 = vand.u32 %v4490, 4294901760
      %4492 = vmatpush1.msra.mxu0 %v4491
      %4493 = vmatprep.subr.mxu0 0.0
      %v4494 = vand.u32 %v441, 4294901760
      %v4495 = vsub.f32 %v441, %v4494
      %v4496 = vand.u32 %v4495, 4294901760
      %v4497 = vsub.f32 %v4495, %v4496
      %v4498 = vand.u32 %v4497, 4294901760
      %4499 = vmatpush1.msra.mxu0 %v4498
      %4500 = vmatprep.subr.mxu0 0.0
      %4501 = vmatpush2.msra.mxu0 0.0
      %4502 = vmatprep.subr.mxu0 0.0
      %4503 = vmatpush2.msra.mxu0 0.0
      %4504 = vmatprep.subr.mxu0 0.0
      %4505 = vmatpush2.msra.mxu0 0.0
      %4506 = vmatprep.subr.mxu0 0.0
      %4507 = vmatpush2.msra.mxu0 0.0
      %4508 = vmatprep.subr.mxu0 0.0
      %4509 = vmatpush2.msra.mxu0 0.0
      %4510 = vmatprep.subr.mxu0 0.0
      %4511 = vmatpush2.msra.mxu0 0.0
      %4512 = vmatprep.subr.mxu0 0.0
      %4513 = vmatpush2.msra.mxu0 0.0
      %4514 = vmatprep.subr.mxu0 0.0
      %4515 = vmatpush2.msra.mxu0 0.0
      %4516 = vmatprep.subr.mxu0 0.0
      %4517 = vmatpush2.msra.mxu0 0.0
      %4518 = vmatprep.subr.mxu0 0.0
      %4519 = vmatpush2.msra.mxu0 0.0
      %4520 = vmatprep.subr.mxu0 0.0
      %4521 = vmatpush2.msra.mxu0 0.0
      %4522 = vmatprep.subr.mxu0 0.0
      %4523 = vmatpush2.msra.mxu0 0.0
      %4524 = vmatprep.subr.mxu0 0.0
      %4525 = vmatpush2.msra.mxu0 0.0
      %4526 = vmatprep.subr.mxu0 0.0
      %4527 = vmatpush2.msra.mxu0 0.0
      %4528 = vmatprep.subr.mxu0 0.0
      %4529 = vmatpush2.msra.mxu0 0.0
      %4530 = vmatprep.subr.mxu0 0.0
      %4531 = vmatpush2.msra.mxu0 0.0
      %4532 = vmatprep.mubr.f32.mxu0 0.0
      %v4533 = vand.u32 %v4379, 4294901760
      %4534 = vmatmul.mubr.f32.gmra.mxu0 %v4533
      %v4535 = vpop.f32.mrf.mxu0
      %v4536 = vadd.f32 %v4455, %v4535
      %v4537 = vpop.f32.mrf.mxu0
      %4538 = vdwg.mxu0
      %4539 = vmatprep.subr.mxu0 0.0
      %4540 = vmatpush1.msra.mxu0 0.0
      %4541 = vmatprep.subr.mxu0 0.0
      %4542 = vmatpush1.msra.mxu0 0.0
      %4543 = vmatprep.subr.mxu0 0.0
      %4544 = vmatpush1.msra.mxu0 0.0
      %4545 = vmatprep.subr.mxu0 0.0
      %4546 = vmatpush1.msra.mxu0 0.0
      %4547 = vmatprep.subr.mxu0 0.0
      %4548 = vmatpush1.msra.mxu0 0.0
      %4549 = vmatprep.subr.mxu0 0.0
      %4550 = vmatpush1.msra.mxu0 0.0
      %4551 = vmatprep.subr.mxu0 0.0
      %4552 = vmatpush1.msra.mxu0 0.0
      %4553 = vmatprep.subr.mxu0 0.0
      %4554 = vmatpush1.msra.mxu0 0.0
      %4555 = vmatprep.subr.mxu0 0.0
      %4556 = vmatpush1.msra.mxu0 0.0
      %4557 = vmatprep.subr.mxu0 0.0
      %4558 = vmatpush1.msra.mxu0 0.0
      %4559 = vmatprep.subr.mxu0 0.0
      %4560 = vmatpush1.msra.mxu0 0.0
      %4561 = vmatprep.subr.mxu0 0.0
      %4562 = vmatpush1.msra.mxu0 0.0
      %4563 = vmatprep.subr.mxu0 0.0
      %4564 = vmatpush1.msra.mxu0 0.0
      %4565 = vmatprep.subr.mxu0 0.0
      %4566 = vmatpush1.msra.mxu0 0.0
      %4567 = vmatprep.subr.mxu0 0.0
      %v4568 = vand.u32 %v442, 4294901760
      %v4569 = vsub.f32 %v442, %v4568
      %4570 = vmatpush1.msra.mxu0 %v4569
      %4571 = vmatprep.subr.mxu0 0.0
      %v4572 = vand.u32 %v441, 4294901760
      %v4573 = vsub.f32 %v441, %v4572
      %4574 = vmatpush1.msra.mxu0 %v4573
      %4575 = vmatprep.subr.mxu0 0.0
      %4576 = vmatpush2.msra.mxu0 0.0
      %4577 = vmatprep.subr.mxu0 0.0
      %4578 = vmatpush2.msra.mxu0 0.0
      %4579 = vmatprep.subr.mxu0 0.0
      %4580 = vmatpush2.msra.mxu0 0.0
      %4581 = vmatprep.subr.mxu0 0.0
      %4582 = vmatpush2.msra.mxu0 0.0
      %4583 = vmatprep.subr.mxu0 0.0
      %4584 = vmatpush2.msra.mxu0 0.0
      %4585 = vmatprep.subr.mxu0 0.0
      %4586 = vmatpush2.msra.mxu0 0.0
      %4587 = vmatprep.subr.mxu0 0.0
      %4588 = vmatpush2.msra.mxu0 0.0
      %4589 = vmatprep.subr.mxu0 0.0
      %4590 = vmatpush2.msra.mxu0 0.0
      %4591 = vmatprep.subr.mxu0 0.0
      %4592 = vmatpush2.msra.mxu0 0.0
      %4593 = vmatprep.subr.mxu0 0.0
      %4594 = vmatpush2.msra.mxu0 0.0
      %4595 = vmatprep.subr.mxu0 0.0
      %4596 = vmatpush2.msra.mxu0 0.0
      %4597 = vmatprep.subr.mxu0 0.0
      %4598 = vmatpush2.msra.mxu0 0.0
      %4599 = vmatprep.subr.mxu0 0.0
      %4600 = vmatpush2.msra.mxu0 0.0
      %4601 = vmatprep.subr.mxu0 0.0
      %4602 = vmatpush2.msra.mxu0 0.0
      %4603 = vmatprep.subr.mxu0 0.0
      %4604 = vmatpush2.msra.mxu0 0.0
      %4605 = vmatprep.subr.mxu0 0.0
      %4606 = vmatpush2.msra.mxu0 0.0
      %4607 = vmatprep.mubr.f32.mxu0 0.0
      %v4608 = vand.u32 %v4379, 4294901760
      %v4609 = vsub.f32 %v4379, %v4608
      %4610 = vmatmul.mubr.f32.gmra.mxu0 %v4609
      %v4611 = vpop.f32.mrf.mxu0
      %v4612 = vadd.f32 %v4536, %v4611
      %v4613 = vpop.f32.mrf.mxu0
      %4614 = vdwg.mxu0
      %4615 = vmatprep.subr.mxu0 0.0
      %4616 = vmatpush1.msra.mxu0 0.0
      %4617 = vmatprep.subr.mxu0 0.0
      %4618 = vmatpush1.msra.mxu0 0.0
      %4619 = vmatprep.subr.mxu0 0.0
      %4620 = vmatpush1.msra.mxu0 0.0
      %4621 = vmatprep.subr.mxu0 0.0
      %4622 = vmatpush1.msra.mxu0 0.0
      %4623 = vmatprep.subr.mxu0 0.0
      %4624 = vmatpush1.msra.mxu0 0.0
      %4625 = vmatprep.subr.mxu0 0.0
      %4626 = vmatpush1.msra.mxu0 0.0
      %4627 = vmatprep.subr.mxu0 0.0
      %4628 = vmatpush1.msra.mxu0 0.0
      %4629 = vmatprep.subr.mxu0 0.0
      %4630 = vmatpush1.msra.mxu0 0.0
      %4631 = vmatprep.subr.mxu0 0.0
      %4632 = vmatpush1.msra.mxu0 0.0
      %4633 = vmatprep.subr.mxu0 0.0
      %4634 = vmatpush1.msra.mxu0 0.0
      %4635 = vmatprep.subr.mxu0 0.0
      %4636 = vmatpush1.msra.mxu0 0.0
      %4637 = vmatprep.subr.mxu0 0.0
      %4638 = vmatpush1.msra.mxu0 0.0
      %4639 = vmatprep.subr.mxu0 0.0
      %4640 = vmatpush1.msra.mxu0 0.0
      %4641 = vmatprep.subr.mxu0 0.0
      %4642 = vmatpush1.msra.mxu0 0.0
      %4643 = vmatprep.subr.mxu0 0.0
      %v4644 = vand.u32 %v442, 4294901760
      %4645 = vmatpush1.msra.mxu0 %v4644
      %4646 = vmatprep.subr.mxu0 0.0
      %v4647 = vand.u32 %v441, 4294901760
      %4648 = vmatpush1.msra.mxu0 %v4647
      %4649 = vmatprep.subr.mxu0 0.0
      %4650 = vmatpush2.msra.mxu0 0.0
      %4651 = vmatprep.subr.mxu0 0.0
      %4652 = vmatpush2.msra.mxu0 0.0
      %4653 = vmatprep.subr.mxu0 0.0
      %4654 = vmatpush2.msra.mxu0 0.0
      %4655 = vmatprep.subr.mxu0 0.0
      %4656 = vmatpush2.msra.mxu0 0.0
      %4657 = vmatprep.subr.mxu0 0.0
      %4658 = vmatpush2.msra.mxu0 0.0
      %4659 = vmatprep.subr.mxu0 0.0
      %4660 = vmatpush2.msra.mxu0 0.0
      %4661 = vmatprep.subr.mxu0 0.0
      %4662 = vmatpush2.msra.mxu0 0.0
      %4663 = vmatprep.subr.mxu0 0.0
      %4664 = vmatpush2.msra.mxu0 0.0
      %4665 = vmatprep.subr.mxu0 0.0
      %4666 = vmatpush2.msra.mxu0 0.0
      %4667 = vmatprep.subr.mxu0 0.0
      %4668 = vmatpush2.msra.mxu0 0.0
      %4669 = vmatprep.subr.mxu0 0.0
      %4670 = vmatpush2.msra.mxu0 0.0
      %4671 = vmatprep.subr.mxu0 0.0
      %4672 = vmatpush2.msra.mxu0 0.0
      %4673 = vmatprep.subr.mxu0 0.0
      %4674 = vmatpush2.msra.mxu0 0.0
      %4675 = vmatprep.subr.mxu0 0.0
      %4676 = vmatpush2.msra.mxu0 0.0
      %4677 = vmatprep.subr.mxu0 0.0
      %4678 = vmatpush2.msra.mxu0 0.0
      %4679 = vmatprep.subr.mxu0 0.0
      %4680 = vmatpush2.msra.mxu0 0.0
      %4681 = vmatprep.mubr.f32.mxu0 0.0
      %v4682 = vand.u32 %v4379, 4294901760
      %v4683 = vsub.f32 %v4379, %v4682
      %v4684 = vand.u32 %v4683, 4294901760
      %4685 = vmatmul.mubr.f32.gmra.mxu0 %v4684
      %v4686 = vpop.f32.mrf.mxu0
      %v4687 = vadd.f32 %v4612, %v4686
      %v4688 = vpop.f32.mrf.mxu0
      %4689 = vdwg.mxu0
      %4690 = vmatprep.subr.mxu0 0.0
      %4691 = vmatpush1.msra.mxu0 0.0
      %4692 = vmatprep.subr.mxu0 0.0
      %4693 = vmatpush1.msra.mxu0 0.0
      %4694 = vmatprep.subr.mxu0 0.0
      %4695 = vmatpush1.msra.mxu0 0.0
      %4696 = vmatprep.subr.mxu0 0.0
      %4697 = vmatpush1.msra.mxu0 0.0
      %4698 = vmatprep.subr.mxu0 0.0
      %4699 = vmatpush1.msra.mxu0 0.0
      %4700 = vmatprep.subr.mxu0 0.0
      %4701 = vmatpush1.msra.mxu0 0.0
      %4702 = vmatprep.subr.mxu0 0.0
      %4703 = vmatpush1.msra.mxu0 0.0
      %4704 = vmatprep.subr.mxu0 0.0
      %4705 = vmatpush1.msra.mxu0 0.0
      %4706 = vmatprep.subr.mxu0 0.0
      %4707 = vmatpush1.msra.mxu0 0.0
      %4708 = vmatprep.subr.mxu0 0.0
      %4709 = vmatpush1.msra.mxu0 0.0
      %4710 = vmatprep.subr.mxu0 0.0
      %4711 = vmatpush1.msra.mxu0 0.0
      %4712 = vmatprep.subr.mxu0 0.0
      %4713 = vmatpush1.msra.mxu0 0.0
      %4714 = vmatprep.subr.mxu0 0.0
      %4715 = vmatpush1.msra.mxu0 0.0
      %4716 = vmatprep.subr.mxu0 0.0
      %4717 = vmatpush1.msra.mxu0 0.0
      %4718 = vmatprep.subr.mxu0 0.0
      %v4719 = vand.u32 %v442, 4294901760
      %v4720 = vsub.f32 %v442, %v4719
      %v4721 = vand.u32 %v4720, 4294901760
      %4722 = vmatpush1.msra.mxu0 %v4721
      %4723 = vmatprep.subr.mxu0 0.0
      %v4724 = vand.u32 %v441, 4294901760
      %v4725 = vsub.f32 %v441, %v4724
      %v4726 = vand.u32 %v4725, 4294901760
      %4727 = vmatpush1.msra.mxu0 %v4726
      %4728 = vmatprep.subr.mxu0 0.0
      %4729 = vmatpush2.msra.mxu0 0.0
      %4730 = vmatprep.subr.mxu0 0.0
      %4731 = vmatpush2.msra.mxu0 0.0
      %4732 = vmatprep.subr.mxu0 0.0
      %4733 = vmatpush2.msra.mxu0 0.0
      %4734 = vmatprep.subr.mxu0 0.0
      %4735 = vmatpush2.msra.mxu0 0.0
      %4736 = vmatprep.subr.mxu0 0.0
      %4737 = vmatpush2.msra.mxu0 0.0
      %4738 = vmatprep.subr.mxu0 0.0
      %4739 = vmatpush2.msra.mxu0 0.0
      %4740 = vmatprep.subr.mxu0 0.0
      %4741 = vmatpush2.msra.mxu0 0.0
      %4742 = vmatprep.subr.mxu0 0.0
      %4743 = vmatpush2.msra.mxu0 0.0
      %4744 = vmatprep.subr.mxu0 0.0
      %4745 = vmatpush2.msra.mxu0 0.0
      %4746 = vmatprep.subr.mxu0 0.0
      %4747 = vmatpush2.msra.mxu0 0.0
      %4748 = vmatprep.subr.mxu0 0.0
      %4749 = vmatpush2.msra.mxu0 0.0
      %4750 = vmatprep.subr.mxu0 0.0
      %4751 = vmatpush2.msra.mxu0 0.0
      %4752 = vmatprep.subr.mxu0 0.0
      %4753 = vmatpush2.msra.mxu0 0.0
      %4754 = vmatprep.subr.mxu0 0.0
      %4755 = vmatpush2.msra.mxu0 0.0
      %4756 = vmatprep.subr.mxu0 0.0
      %4757 = vmatpush2.msra.mxu0 0.0
      %4758 = vmatprep.subr.mxu0 0.0
      %4759 = vmatpush2.msra.mxu0 0.0
      %4760 = vmatprep.mubr.f32.mxu0 0.0
      %v4761 = vand.u32 %v4379, 4294901760
      %4762 = vmatmul.mubr.f32.gmra.mxu0 %v4761
      %v4763 = vpop.f32.mrf.mxu0
      %v4764 = vadd.f32 %v4687, %v4763
      %v4765 = vpop.f32.mrf.mxu0
      %4766 = vdwg.mxu0
      %4767 = vmatprep.subr.mxu0 0.0
      %4768 = vmatpush1.msra.mxu0 0.0
      %4769 = vmatprep.subr.mxu0 0.0
      %4770 = vmatpush1.msra.mxu0 0.0
      %4771 = vmatprep.subr.mxu0 0.0
      %4772 = vmatpush1.msra.mxu0 0.0
      %4773 = vmatprep.subr.mxu0 0.0
      %4774 = vmatpush1.msra.mxu0 0.0
      %4775 = vmatprep.subr.mxu0 0.0
      %4776 = vmatpush1.msra.mxu0 0.0
      %4777 = vmatprep.subr.mxu0 0.0
      %4778 = vmatpush1.msra.mxu0 0.0
      %4779 = vmatprep.subr.mxu0 0.0
      %4780 = vmatpush1.msra.mxu0 0.0
      %4781 = vmatprep.subr.mxu0 0.0
      %4782 = vmatpush1.msra.mxu0 0.0
      %4783 = vmatprep.subr.mxu0 0.0
      %4784 = vmatpush1.msra.mxu0 0.0
      %4785 = vmatprep.subr.mxu0 0.0
      %4786 = vmatpush1.msra.mxu0 0.0
      %4787 = vmatprep.subr.mxu0 0.0
      %4788 = vmatpush1.msra.mxu0 0.0
      %4789 = vmatprep.subr.mxu0 0.0
      %4790 = vmatpush1.msra.mxu0 0.0
      %4791 = vmatprep.subr.mxu0 0.0
      %4792 = vmatpush1.msra.mxu0 0.0
      %4793 = vmatprep.subr.mxu0 0.0
      %4794 = vmatpush1.msra.mxu0 0.0
      %4795 = vmatprep.subr.mxu0 0.0
      %v4796 = vand.u32 %v442, 4294901760
      %4797 = vmatpush1.msra.mxu0 %v4796
      %4798 = vmatprep.subr.mxu0 0.0
      %v4799 = vand.u32 %v441, 4294901760
      %4800 = vmatpush1.msra.mxu0 %v4799
      %4801 = vmatprep.subr.mxu0 0.0
      %4802 = vmatpush2.msra.mxu0 0.0
      %4803 = vmatprep.subr.mxu0 0.0
      %4804 = vmatpush2.msra.mxu0 0.0
      %4805 = vmatprep.subr.mxu0 0.0
      %4806 = vmatpush2.msra.mxu0 0.0
      %4807 = vmatprep.subr.mxu0 0.0
      %4808 = vmatpush2.msra.mxu0 0.0
      %4809 = vmatprep.subr.mxu0 0.0
      %4810 = vmatpush2.msra.mxu0 0.0
      %4811 = vmatprep.subr.mxu0 0.0
      %4812 = vmatpush2.msra.mxu0 0.0
      %4813 = vmatprep.subr.mxu0 0.0
      %4814 = vmatpush2.msra.mxu0 0.0
      %4815 = vmatprep.subr.mxu0 0.0
      %4816 = vmatpush2.msra.mxu0 0.0
      %4817 = vmatprep.subr.mxu0 0.0
      %4818 = vmatpush2.msra.mxu0 0.0
      %4819 = vmatprep.subr.mxu0 0.0
      %4820 = vmatpush2.msra.mxu0 0.0
      %4821 = vmatprep.subr.mxu0 0.0
      %4822 = vmatpush2.msra.mxu0 0.0
      %4823 = vmatprep.subr.mxu0 0.0
      %4824 = vmatpush2.msra.mxu0 0.0
      %4825 = vmatprep.subr.mxu0 0.0
      %4826 = vmatpush2.msra.mxu0 0.0
      %4827 = vmatprep.subr.mxu0 0.0
      %4828 = vmatpush2.msra.mxu0 0.0
      %4829 = vmatprep.subr.mxu0 0.0
      %4830 = vmatpush2.msra.mxu0 0.0
      %4831 = vmatprep.subr.mxu0 0.0
      %4832 = vmatpush2.msra.mxu0 0.0
      %4833 = vmatprep.mubr.f32.mxu0 0.0
      %v4834 = vand.u32 %v4379, 4294901760
      %4835 = vmatmul.mubr.f32.gmra.mxu0 %v4834
      %v4836 = vpop.f32.mrf.mxu0
      %v4837 = vadd.f32 %v4764, %v4836
      %v4838 = vpop.f32.mrf.mxu0
      %4839 = vdwg.mxu0
      %4840 = vmatprep.subr.mxu0 0.0
      %4841 = vmatpush1.msra.mxu0 0.0
      %4842 = vmatprep.subr.mxu0 0.0
      %4843 = vmatpush1.msra.mxu0 0.0
      %4844 = vmatprep.subr.mxu0 0.0
      %4845 = vmatpush1.msra.mxu0 0.0
      %4846 = vmatprep.subr.mxu0 0.0
      %4847 = vmatpush1.msra.mxu0 0.0
      %4848 = vmatprep.subr.mxu0 0.0
      %4849 = vmatpush1.msra.mxu0 0.0
      %4850 = vmatprep.subr.mxu0 0.0
      %4851 = vmatpush1.msra.mxu0 0.0
      %4852 = vmatprep.subr.mxu0 0.0
      %4853 = vmatpush1.msra.mxu0 0.0
      %4854 = vmatprep.subr.mxu0 0.0
      %4855 = vmatpush1.msra.mxu0 0.0
      %4856 = vmatprep.subr.mxu0 0.0
      %4857 = vmatpush1.msra.mxu0 0.0
      %4858 = vmatprep.subr.mxu0 0.0
      %4859 = vmatpush1.msra.mxu0 0.0
      %4860 = vmatprep.subr.mxu0 0.0
      %4861 = vmatpush1.msra.mxu0 0.0
      %4862 = vmatprep.subr.mxu0 0.0
      %4863 = vmatpush1.msra.mxu0 0.0
      %4864 = vmatprep.subr.mxu0 0.0
      %4865 = vmatpush1.msra.mxu0 0.0
      %4866 = vmatprep.subr.mxu0 0.0
      %4867 = vmatpush1.msra.mxu0 0.0
      %4868 = vmatprep.subr.mxu0 0.0
      %v4869 = vand.u32 %v444, 4294901760
      %4870 = vmatpush1.msra.mxu0 %v4869
      %4871 = vmatprep.subr.mxu0 0.0
      %v4872 = vand.u32 %v443, 4294901760
      %4873 = vmatpush1.msra.mxu0 %v4872
      %4874 = vmatprep.subr.mxu0 0.0
      %4875 = vmatpush2.msra.mxu0 0.0
      %4876 = vmatprep.subr.mxu0 0.0
      %4877 = vmatpush2.msra.mxu0 0.0
      %4878 = vmatprep.subr.mxu0 0.0
      %4879 = vmatpush2.msra.mxu0 0.0
      %4880 = vmatprep.subr.mxu0 0.0
      %4881 = vmatpush2.msra.mxu0 0.0
      %4882 = vmatprep.subr.mxu0 0.0
      %4883 = vmatpush2.msra.mxu0 0.0
      %4884 = vmatprep.subr.mxu0 0.0
      %4885 = vmatpush2.msra.mxu0 0.0
      %4886 = vmatprep.subr.mxu0 0.0
      %4887 = vmatpush2.msra.mxu0 0.0
      %4888 = vmatprep.subr.mxu0 0.0
      %4889 = vmatpush2.msra.mxu0 0.0
      %4890 = vmatprep.subr.mxu0 0.0
      %4891 = vmatpush2.msra.mxu0 0.0
      %4892 = vmatprep.subr.mxu0 0.0
      %4893 = vmatpush2.msra.mxu0 0.0
      %4894 = vmatprep.subr.mxu0 0.0
      %4895 = vmatpush2.msra.mxu0 0.0
      %4896 = vmatprep.subr.mxu0 0.0
      %4897 = vmatpush2.msra.mxu0 0.0
      %4898 = vmatprep.subr.mxu0 0.0
      %4899 = vmatpush2.msra.mxu0 0.0
      %4900 = vmatprep.subr.mxu0 0.0
      %4901 = vmatpush2.msra.mxu0 0.0
      %4902 = vmatprep.subr.mxu0 0.0
      %4903 = vmatpush2.msra.mxu0 0.0
      %4904 = vmatprep.subr.mxu0 0.0
      %4905 = vmatpush2.msra.mxu0 0.0
      %4906 = vmatprep.mubr.f32.mxu0 0.0
      %v4907 = vand.u32 %v4379, 4294901760
      %v4908 = vsub.f32 %v4379, %v4907
      %v4909 = vand.u32 %v4908, 4294901760
      %v4910 = vsub.f32 %v4908, %v4909
      %v4911 = vand.u32 %v4910, 4294901760
      %4912 = vmatmul.mubr.f32.gmra.mxu0 %v4911
      %v4913 = vpop.f32.mrf.mxu0
      %v4914 = vadd.f32 0.0, %v4913
      %v4915 = vpop.f32.mrf.mxu0
      %4916 = vdwg.mxu0
      %4917 = vmatprep.subr.mxu0 0.0
      %4918 = vmatpush1.msra.mxu0 0.0
      %4919 = vmatprep.subr.mxu0 0.0
      %4920 = vmatpush1.msra.mxu0 0.0
      %4921 = vmatprep.subr.mxu0 0.0
      %4922 = vmatpush1.msra.mxu0 0.0
      %4923 = vmatprep.subr.mxu0 0.0
      %4924 = vmatpush1.msra.mxu0 0.0
      %4925 = vmatprep.subr.mxu0 0.0
      %4926 = vmatpush1.msra.mxu0 0.0
      %4927 = vmatprep.subr.mxu0 0.0
      %4928 = vmatpush1.msra.mxu0 0.0
      %4929 = vmatprep.subr.mxu0 0.0
      %4930 = vmatpush1.msra.mxu0 0.0
      %4931 = vmatprep.subr.mxu0 0.0
      %4932 = vmatpush1.msra.mxu0 0.0
      %4933 = vmatprep.subr.mxu0 0.0
      %4934 = vmatpush1.msra.mxu0 0.0
      %4935 = vmatprep.subr.mxu0 0.0
      %4936 = vmatpush1.msra.mxu0 0.0
      %4937 = vmatprep.subr.mxu0 0.0
      %4938 = vmatpush1.msra.mxu0 0.0
      %4939 = vmatprep.subr.mxu0 0.0
      %4940 = vmatpush1.msra.mxu0 0.0
      %4941 = vmatprep.subr.mxu0 0.0
      %4942 = vmatpush1.msra.mxu0 0.0
      %4943 = vmatprep.subr.mxu0 0.0
      %4944 = vmatpush1.msra.mxu0 0.0
      %4945 = vmatprep.subr.mxu0 0.0
      %v4946 = vand.u32 %v444, 4294901760
      %v4947 = vsub.f32 %v444, %v4946
      %v4948 = vand.u32 %v4947, 4294901760
      %v4949 = vsub.f32 %v4947, %v4948
      %v4950 = vand.u32 %v4949, 4294901760
      %4951 = vmatpush1.msra.mxu0 %v4950
      %4952 = vmatprep.subr.mxu0 0.0
      %v4953 = vand.u32 %v443, 4294901760
      %v4954 = vsub.f32 %v443, %v4953
      %v4955 = vand.u32 %v4954, 4294901760
      %v4956 = vsub.f32 %v4954, %v4955
      %v4957 = vand.u32 %v4956, 4294901760
      %4958 = vmatpush1.msra.mxu0 %v4957
      %4959 = vmatprep.subr.mxu0 0.0
      %4960 = vmatpush2.msra.mxu0 0.0
      %4961 = vmatprep.subr.mxu0 0.0
      %4962 = vmatpush2.msra.mxu0 0.0
      %4963 = vmatprep.subr.mxu0 0.0
      %4964 = vmatpush2.msra.mxu0 0.0
      %4965 = vmatprep.subr.mxu0 0.0
      %4966 = vmatpush2.msra.mxu0 0.0
      %4967 = vmatprep.subr.mxu0 0.0
      %4968 = vmatpush2.msra.mxu0 0.0
      %4969 = vmatprep.subr.mxu0 0.0
      %4970 = vmatpush2.msra.mxu0 0.0
      %4971 = vmatprep.subr.mxu0 0.0
      %4972 = vmatpush2.msra.mxu0 0.0
      %4973 = vmatprep.subr.mxu0 0.0
      %4974 = vmatpush2.msra.mxu0 0.0
      %4975 = vmatprep.subr.mxu0 0.0
      %4976 = vmatpush2.msra.mxu0 0.0
      %4977 = vmatprep.subr.mxu0 0.0
      %4978 = vmatpush2.msra.mxu0 0.0
      %4979 = vmatprep.subr.mxu0 0.0
      %4980 = vmatpush2.msra.mxu0 0.0
      %4981 = vmatprep.subr.mxu0 0.0
      %4982 = vmatpush2.msra.mxu0 0.0
      %4983 = vmatprep.subr.mxu0 0.0
      %4984 = vmatpush2.msra.mxu0 0.0
      %4985 = vmatprep.subr.mxu0 0.0
      %4986 = vmatpush2.msra.mxu0 0.0
      %4987 = vmatprep.subr.mxu0 0.0
      %4988 = vmatpush2.msra.mxu0 0.0
      %4989 = vmatprep.subr.mxu0 0.0
      %4990 = vmatpush2.msra.mxu0 0.0
      %4991 = vmatprep.mubr.f32.mxu0 0.0
      %v4992 = vand.u32 %v4379, 4294901760
      %4993 = vmatmul.mubr.f32.gmra.mxu0 %v4992
      %v4994 = vpop.f32.mrf.mxu0
      %v4995 = vadd.f32 %v4914, %v4994
      %v4996 = vpop.f32.mrf.mxu0
      %4997 = vdwg.mxu0
      %4998 = vmatprep.subr.mxu0 0.0
      %4999 = vmatpush1.msra.mxu0 0.0
      %5000 = vmatprep.subr.mxu0 0.0
      %5001 = vmatpush1.msra.mxu0 0.0
      %5002 = vmatprep.subr.mxu0 0.0
      %5003 = vmatpush1.msra.mxu0 0.0
      %5004 = vmatprep.subr.mxu0 0.0
      %5005 = vmatpush1.msra.mxu0 0.0
      %5006 = vmatprep.subr.mxu0 0.0
      %5007 = vmatpush1.msra.mxu0 0.0
      %5008 = vmatprep.subr.mxu0 0.0
      %5009 = vmatpush1.msra.mxu0 0.0
      %5010 = vmatprep.subr.mxu0 0.0
      %5011 = vmatpush1.msra.mxu0 0.0
      %5012 = vmatprep.subr.mxu0 0.0
      %5013 = vmatpush1.msra.mxu0 0.0
      %5014 = vmatprep.subr.mxu0 0.0
      %5015 = vmatpush1.msra.mxu0 0.0
      %5016 = vmatprep.subr.mxu0 0.0
      %5017 = vmatpush1.msra.mxu0 0.0
      %5018 = vmatprep.subr.mxu0 0.0
      %5019 = vmatpush1.msra.mxu0 0.0
      %5020 = vmatprep.subr.mxu0 0.0
      %5021 = vmatpush1.msra.mxu0 0.0
      %5022 = vmatprep.subr.mxu0 0.0
      %5023 = vmatpush1.msra.mxu0 0.0
      %5024 = vmatprep.subr.mxu0 0.0
      %5025 = vmatpush1.msra.mxu0 0.0
      %5026 = vmatprep.subr.mxu0 0.0
      %v5027 = vand.u32 %v444, 4294901760
      %v5028 = vsub.f32 %v444, %v5027
      %5029 = vmatpush1.msra.mxu0 %v5028
      %5030 = vmatprep.subr.mxu0 0.0
      %v5031 = vand.u32 %v443, 4294901760
      %v5032 = vsub.f32 %v443, %v5031
      %5033 = vmatpush1.msra.mxu0 %v5032
      %5034 = vmatprep.subr.mxu0 0.0
      %5035 = vmatpush2.msra.mxu0 0.0
      %5036 = vmatprep.subr.mxu0 0.0
      %5037 = vmatpush2.msra.mxu0 0.0
      %5038 = vmatprep.subr.mxu0 0.0
      %5039 = vmatpush2.msra.mxu0 0.0
      %5040 = vmatprep.subr.mxu0 0.0
      %5041 = vmatpush2.msra.mxu0 0.0
      %5042 = vmatprep.subr.mxu0 0.0
      %5043 = vmatpush2.msra.mxu0 0.0
      %5044 = vmatprep.subr.mxu0 0.0
      %5045 = vmatpush2.msra.mxu0 0.0
      %5046 = vmatprep.subr.mxu0 0.0
      %5047 = vmatpush2.msra.mxu0 0.0
      %5048 = vmatprep.subr.mxu0 0.0
      %5049 = vmatpush2.msra.mxu0 0.0
      %5050 = vmatprep.subr.mxu0 0.0
      %5051 = vmatpush2.msra.mxu0 0.0
      %5052 = vmatprep.subr.mxu0 0.0
      %5053 = vmatpush2.msra.mxu0 0.0
      %5054 = vmatprep.subr.mxu0 0.0
      %5055 = vmatpush2.msra.mxu0 0.0
      %5056 = vmatprep.subr.mxu0 0.0
      %5057 = vmatpush2.msra.mxu0 0.0
      %5058 = vmatprep.subr.mxu0 0.0
      %5059 = vmatpush2.msra.mxu0 0.0
      %5060 = vmatprep.subr.mxu0 0.0
      %5061 = vmatpush2.msra.mxu0 0.0
      %5062 = vmatprep.subr.mxu0 0.0
      %5063 = vmatpush2.msra.mxu0 0.0
      %5064 = vmatprep.subr.mxu0 0.0
      %5065 = vmatpush2.msra.mxu0 0.0
      %5066 = vmatprep.mubr.f32.mxu0 0.0
      %v5067 = vand.u32 %v4379, 4294901760
      %v5068 = vsub.f32 %v4379, %v5067
      %5069 = vmatmul.mubr.f32.gmra.mxu0 %v5068
      %v5070 = vpop.f32.mrf.mxu0
      %v5071 = vadd.f32 %v4995, %v5070
      %v5072 = vpop.f32.mrf.mxu0
      %5073 = vdwg.mxu0
      %5074 = vmatprep.subr.mxu0 0.0
      %5075 = vmatpush1.msra.mxu0 0.0
      %5076 = vmatprep.subr.mxu0 0.0
      %5077 = vmatpush1.msra.mxu0 0.0
      %5078 = vmatprep.subr.mxu0 0.0
      %5079 = vmatpush1.msra.mxu0 0.0
      %5080 = vmatprep.subr.mxu0 0.0
      %5081 = vmatpush1.msra.mxu0 0.0
      %5082 = vmatprep.subr.mxu0 0.0
      %5083 = vmatpush1.msra.mxu0 0.0
      %5084 = vmatprep.subr.mxu0 0.0
      %5085 = vmatpush1.msra.mxu0 0.0
      %5086 = vmatprep.subr.mxu0 0.0
      %5087 = vmatpush1.msra.mxu0 0.0
      %5088 = vmatprep.subr.mxu0 0.0
      %5089 = vmatpush1.msra.mxu0 0.0
      %5090 = vmatprep.subr.mxu0 0.0
      %5091 = vmatpush1.msra.mxu0 0.0
      %5092 = vmatprep.subr.mxu0 0.0
      %5093 = vmatpush1.msra.mxu0 0.0
      %5094 = vmatprep.subr.mxu0 0.0
      %5095 = vmatpush1.msra.mxu0 0.0
      %5096 = vmatprep.subr.mxu0 0.0
      %5097 = vmatpush1.msra.mxu0 0.0
      %5098 = vmatprep.subr.mxu0 0.0
      %5099 = vmatpush1.msra.mxu0 0.0
      %5100 = vmatprep.subr.mxu0 0.0
      %5101 = vmatpush1.msra.mxu0 0.0
      %5102 = vmatprep.subr.mxu0 0.0
      %v5103 = vand.u32 %v444, 4294901760
      %5104 = vmatpush1.msra.mxu0 %v5103
      %5105 = vmatprep.subr.mxu0 0.0
      %v5106 = vand.u32 %v443, 4294901760
      %5107 = vmatpush1.msra.mxu0 %v5106
      %5108 = vmatprep.subr.mxu0 0.0
      %5109 = vmatpush2.msra.mxu0 0.0
      %5110 = vmatprep.subr.mxu0 0.0
      %5111 = vmatpush2.msra.mxu0 0.0
      %5112 = vmatprep.subr.mxu0 0.0
      %5113 = vmatpush2.msra.mxu0 0.0
      %5114 = vmatprep.subr.mxu0 0.0
      %5115 = vmatpush2.msra.mxu0 0.0
      %5116 = vmatprep.subr.mxu0 0.0
      %5117 = vmatpush2.msra.mxu0 0.0
      %5118 = vmatprep.subr.mxu0 0.0
      %5119 = vmatpush2.msra.mxu0 0.0
      %5120 = vmatprep.subr.mxu0 0.0
      %5121 = vmatpush2.msra.mxu0 0.0
      %5122 = vmatprep.subr.mxu0 0.0
      %5123 = vmatpush2.msra.mxu0 0.0
      %5124 = vmatprep.subr.mxu0 0.0
      %5125 = vmatpush2.msra.mxu0 0.0
      %5126 = vmatprep.subr.mxu0 0.0
      %5127 = vmatpush2.msra.mxu0 0.0
      %5128 = vmatprep.subr.mxu0 0.0
      %5129 = vmatpush2.msra.mxu0 0.0
      %5130 = vmatprep.subr.mxu0 0.0
      %5131 = vmatpush2.msra.mxu0 0.0
      %5132 = vmatprep.subr.mxu0 0.0
      %5133 = vmatpush2.msra.mxu0 0.0
      %5134 = vmatprep.subr.mxu0 0.0
      %5135 = vmatpush2.msra.mxu0 0.0
      %5136 = vmatprep.subr.mxu0 0.0
      %5137 = vmatpush2.msra.mxu0 0.0
      %5138 = vmatprep.subr.mxu0 0.0
      %5139 = vmatpush2.msra.mxu0 0.0
      %5140 = vmatprep.mubr.f32.mxu0 0.0
      %v5141 = vand.u32 %v4379, 4294901760
      %v5142 = vsub.f32 %v4379, %v5141
      %v5143 = vand.u32 %v5142, 4294901760
      %5144 = vmatmul.mubr.f32.gmra.mxu0 %v5143
      %v5145 = vpop.f32.mrf.mxu0
      %v5146 = vadd.f32 %v5071, %v5145
      %v5147 = vpop.f32.mrf.mxu0
      %5148 = vdwg.mxu0
      %5149 = vmatprep.subr.mxu0 0.0
      %5150 = vmatpush1.msra.mxu0 0.0
      %5151 = vmatprep.subr.mxu0 0.0
      %5152 = vmatpush1.msra.mxu0 0.0
      %5153 = vmatprep.subr.mxu0 0.0
      %5154 = vmatpush1.msra.mxu0 0.0
      %5155 = vmatprep.subr.mxu0 0.0
      %5156 = vmatpush1.msra.mxu0 0.0
      %5157 = vmatprep.subr.mxu0 0.0
      %5158 = vmatpush1.msra.mxu0 0.0
      %5159 = vmatprep.subr.mxu0 0.0
      %5160 = vmatpush1.msra.mxu0 0.0
      %5161 = vmatprep.subr.mxu0 0.0
      %5162 = vmatpush1.msra.mxu0 0.0
      %5163 = vmatprep.subr.mxu0 0.0
      %5164 = vmatpush1.msra.mxu0 0.0
      %5165 = vmatprep.subr.mxu0 0.0
      %5166 = vmatpush1.msra.mxu0 0.0
      %5167 = vmatprep.subr.mxu0 0.0
      %5168 = vmatpush1.msra.mxu0 0.0
      %5169 = vmatprep.subr.mxu0 0.0
      %5170 = vmatpush1.msra.mxu0 0.0
      %5171 = vmatprep.subr.mxu0 0.0
      %5172 = vmatpush1.msra.mxu0 0.0
      %5173 = vmatprep.subr.mxu0 0.0
      %5174 = vmatpush1.msra.mxu0 0.0
      %5175 = vmatprep.subr.mxu0 0.0
      %5176 = vmatpush1.msra.mxu0 0.0
      %5177 = vmatprep.subr.mxu0 0.0
      %v5178 = vand.u32 %v444, 4294901760
      %v5179 = vsub.f32 %v444, %v5178
      %v5180 = vand.u32 %v5179, 4294901760
      %5181 = vmatpush1.msra.mxu0 %v5180
      %5182 = vmatprep.subr.mxu0 0.0
      %v5183 = vand.u32 %v443, 4294901760
      %v5184 = vsub.f32 %v443, %v5183
      %v5185 = vand.u32 %v5184, 4294901760
      %5186 = vmatpush1.msra.mxu0 %v5185
      %5187 = vmatprep.subr.mxu0 0.0
      %5188 = vmatpush2.msra.mxu0 0.0
      %5189 = vmatprep.subr.mxu0 0.0
      %5190 = vmatpush2.msra.mxu0 0.0
      %5191 = vmatprep.subr.mxu0 0.0
      %5192 = vmatpush2.msra.mxu0 0.0
      %5193 = vmatprep.subr.mxu0 0.0
      %5194 = vmatpush2.msra.mxu0 0.0
      %5195 = vmatprep.subr.mxu0 0.0
      %5196 = vmatpush2.msra.mxu0 0.0
      %5197 = vmatprep.subr.mxu0 0.0
      %5198 = vmatpush2.msra.mxu0 0.0
      %5199 = vmatprep.subr.mxu0 0.0
      %5200 = vmatpush2.msra.mxu0 0.0
      %5201 = vmatprep.subr.mxu0 0.0
      %5202 = vmatpush2.msra.mxu0 0.0
      %5203 = vmatprep.subr.mxu0 0.0
      %5204 = vmatpush2.msra.mxu0 0.0
      %5205 = vmatprep.subr.mxu0 0.0
      %5206 = vmatpush2.msra.mxu0 0.0
      %5207 = vmatprep.subr.mxu0 0.0
      %5208 = vmatpush2.msra.mxu0 0.0
      %5209 = vmatprep.subr.mxu0 0.0
      %5210 = vmatpush2.msra.mxu0 0.0
      %5211 = vmatprep.subr.mxu0 0.0
      %5212 = vmatpush2.msra.mxu0 0.0
      %5213 = vmatprep.subr.mxu0 0.0
      %5214 = vmatpush2.msra.mxu0 0.0
      %5215 = vmatprep.subr.mxu0 0.0
      %5216 = vmatpush2.msra.mxu0 0.0
      %5217 = vmatprep.subr.mxu0 0.0
      %5218 = vmatpush2.msra.mxu0 0.0
      %5219 = vmatprep.mubr.f32.mxu0 0.0
      %v5220 = vand.u32 %v4379, 4294901760
      %5221 = vmatmul.mubr.f32.gmra.mxu0 %v5220
      %v5222 = vpop.f32.mrf.mxu0
      %v5223 = vadd.f32 %v5146, %v5222
      %v5224 = vpop.f32.mrf.mxu0
      %5225 = vdwg.mxu0
      %5226 = vmatprep.subr.mxu0 0.0
      %5227 = vmatpush1.msra.mxu0 0.0
      %5228 = vmatprep.subr.mxu0 0.0
      %5229 = vmatpush1.msra.mxu0 0.0
      %5230 = vmatprep.subr.mxu0 0.0
      %5231 = vmatpush1.msra.mxu0 0.0
      %5232 = vmatprep.subr.mxu0 0.0
      %5233 = vmatpush1.msra.mxu0 0.0
      %5234 = vmatprep.subr.mxu0 0.0
      %5235 = vmatpush1.msra.mxu0 0.0
      %5236 = vmatprep.subr.mxu0 0.0
      %5237 = vmatpush1.msra.mxu0 0.0
      %5238 = vmatprep.subr.mxu0 0.0
      %5239 = vmatpush1.msra.mxu0 0.0
      %5240 = vmatprep.subr.mxu0 0.0
      %5241 = vmatpush1.msra.mxu0 0.0
      %5242 = vmatprep.subr.mxu0 0.0
      %5243 = vmatpush1.msra.mxu0 0.0
      %5244 = vmatprep.subr.mxu0 0.0
      %5245 = vmatpush1.msra.mxu0 0.0
      %5246 = vmatprep.subr.mxu0 0.0
      %5247 = vmatpush1.msra.mxu0 0.0
      %5248 = vmatprep.subr.mxu0 0.0
      %5249 = vmatpush1.msra.mxu0 0.0
      %5250 = vmatprep.subr.mxu0 0.0
      %5251 = vmatpush1.msra.mxu0 0.0
      %5252 = vmatprep.subr.mxu0 0.0
      %5253 = vmatpush1.msra.mxu0 0.0
      %5254 = vmatprep.subr.mxu0 0.0
      %v5255 = vand.u32 %v444, 4294901760
      %5256 = vmatpush1.msra.mxu0 %v5255
      %5257 = vmatprep.subr.mxu0 0.0
      %v5258 = vand.u32 %v443, 4294901760
      %5259 = vmatpush1.msra.mxu0 %v5258
      %5260 = vmatprep.subr.mxu0 0.0
      %5261 = vmatpush2.msra.mxu0 0.0
      %5262 = vmatprep.subr.mxu0 0.0
      %5263 = vmatpush2.msra.mxu0 0.0
      %5264 = vmatprep.subr.mxu0 0.0
      %5265 = vmatpush2.msra.mxu0 0.0
      %5266 = vmatprep.subr.mxu0 0.0
      %5267 = vmatpush2.msra.mxu0 0.0
      %5268 = vmatprep.subr.mxu0 0.0
      %5269 = vmatpush2.msra.mxu0 0.0
      %5270 = vmatprep.subr.mxu0 0.0
      %5271 = vmatpush2.msra.mxu0 0.0
      %5272 = vmatprep.subr.mxu0 0.0
      %5273 = vmatpush2.msra.mxu0 0.0
      %5274 = vmatprep.subr.mxu0 0.0
      %5275 = vmatpush2.msra.mxu0 0.0
      %5276 = vmatprep.subr.mxu0 0.0
      %5277 = vmatpush2.msra.mxu0 0.0
      %5278 = vmatprep.subr.mxu0 0.0
      %5279 = vmatpush2.msra.mxu0 0.0
      %5280 = vmatprep.subr.mxu0 0.0
      %5281 = vmatpush2.msra.mxu0 0.0
      %5282 = vmatprep.subr.mxu0 0.0
      %5283 = vmatpush2.msra.mxu0 0.0
      %5284 = vmatprep.subr.mxu0 0.0
      %5285 = vmatpush2.msra.mxu0 0.0
      %5286 = vmatprep.subr.mxu0 0.0
      %5287 = vmatpush2.msra.mxu0 0.0
      %5288 = vmatprep.subr.mxu0 0.0
      %5289 = vmatpush2.msra.mxu0 0.0
      %5290 = vmatprep.subr.mxu0 0.0
      %5291 = vmatpush2.msra.mxu0 0.0
      %5292 = vmatprep.mubr.f32.mxu0 0.0
      %v5293 = vand.u32 %v4379, 4294901760
      %5294 = vmatmul.mubr.f32.gmra.mxu0 %v5293
      %v5295 = vpop.f32.mrf.mxu0
      %v5296 = vadd.f32 %v5223, %v5295
      %v5297 = vpop.f32.mrf.mxu0
      %5298 = vdwg.mxu0
      %v5299 = vmax.f32 %v4837, %v5296
      %5300 = vxpose.xlu0.b32.start [1/16] %v5299, 128
      %5301 = vxpose.xlu0.b32.cont [2/16] 0.0, 128
      %5302 = vxpose.xlu0.b32.cont [3/16] 0.0, 128
      %5303 = vxpose.xlu0.b32.cont [4/16] 0.0, 128
      %5304 = vxpose.xlu0.b32.cont [5/16] 0.0, 128
      %5305 = vxpose.xlu0.b32.cont [6/16] 0.0, 128
      %5306 = vxpose.xlu0.b32.cont [7/16] 0.0, 128
      %5307 = vxpose.xlu0.b32.cont [8/16] 0.0, 128
      %5308 = vxpose.xlu0.b32.cont [9/16] 0.0, 128
      %5309 = vxpose.xlu0.b32.cont [10/16] 0.0, 128
      %5310 = vxpose.xlu0.b32.cont [11/16] 0.0, 128
      %5311 = vxpose.xlu0.b32.cont [12/16] 0.0, 128
      %5312 = vxpose.xlu0.b32.cont [13/16] 0.0, 128
      %5313 = vxpose.xlu0.b32.cont [14/16] 0.0, 128
      %5314 = vxpose.xlu0.b32.cont [15/16] 0.0, 128
      %5315 = vxpose.xlu0.b32.end [16/16] 0.0, 128
      %v5316 = vpop.trf.xlu0
      %v5317 = vpop.trf.xlu0
      %v5318 = vpop.trf.xlu0
      %v5319 = vpop.trf.xlu0
      %v5320 = vpop.trf.xlu0
      %v5321 = vpop.trf.xlu0
      %v5322 = vpop.trf.xlu0
      %v5323 = vpop.trf.xlu0
      %v5324 = vpop.trf.xlu0
      %v5325 = vpop.trf.xlu0
      %v5326 = vpop.trf.xlu0
      %v5327 = vpop.trf.xlu0
      %v5328 = vpop.trf.xlu0
      %v5329 = vpop.trf.xlu0
      %v5330 = vpop.trf.xlu0
      %v5331 = vpop.trf.xlu0
      %s5332 = scalar_lea.vmem [#allocation2], 80
      %5333 = vst.msk [vmem:[%s5332 + $0x1] sm:$0xff] %vm385, %v5316
      %v5334 = vld [vmem:[%s380 + $0xa] sm:$0x1]
      %v5335 = vld [vmem:[%s380 + $0x1a] sm:$0x1]
      %v5336 = vld [vmem:[%s380 + $0x2a] sm:$0x1]
      %v5337 = vld [vmem:[%s380 + $0x3a] sm:$0x1]
      %v5338 = vld [vmem:[%s380 + $0xb] sm:$0x1]
      %v5339 = vld [vmem:[%s380 + $0x1b] sm:$0x1]
      %v5340 = vld [vmem:[%s380 + $0x2b] sm:$0x1]
      %v5341 = vld [vmem:[%s380 + $0x3b] sm:$0x1]
      %v5342 = vmax.f32 %v5334, %v5338
      %v5343 = vmax.f32 %v5335, %v5339
      %v5344 = vmax.f32 %v5336, %v5340
      %v5345 = vmax.f32 %v5337, %v5341
      %v5350 = vrot.slane %v5343, 7
      %v5351 = vsel %vm462, %v5350, %v5342
      %v5352 = vrot.slane %v5344, 6
      %v5353 = vsel %vm465, %v5352, %v5351
      %v5354 = vrot.slane %v5345, 5
      %v5355 = vsel %vm468, %v5354, %v5353
      %v5356 = vsel %vm470, %v5355, 0
      %5358 = vmatprep.subr.mxu0 0.0
      %5359 = vmatpush1.msra.mxu0 0.0
      %5360 = vmatprep.subr.mxu0 0.0
      %5361 = vmatpush1.msra.mxu0 0.0
      %5362 = vmatprep.subr.mxu0 0.0
      %5363 = vmatpush1.msra.mxu0 0.0
      %5364 = vmatprep.subr.mxu0 0.0
      %5365 = vmatpush1.msra.mxu0 0.0
      %5366 = vmatprep.subr.mxu0 0.0
      %5367 = vmatpush1.msra.mxu0 0.0
      %5368 = vmatprep.subr.mxu0 0.0
      %5369 = vmatpush1.msra.mxu0 0.0
      %5370 = vmatprep.subr.mxu0 0.0
      %5371 = vmatpush1.msra.mxu0 0.0
      %5372 = vmatprep.subr.mxu0 0.0
      %5373 = vmatpush1.msra.mxu0 0.0
      %5374 = vmatprep.subr.mxu0 0.0
      %5375 = vmatpush1.msra.mxu0 0.0
      %5376 = vmatprep.subr.mxu0 0.0
      %5377 = vmatpush1.msra.mxu0 0.0
      %5378 = vmatprep.subr.mxu0 0.0
      %5379 = vmatpush1.msra.mxu0 0.0
      %5380 = vmatprep.subr.mxu0 0.0
      %5381 = vmatpush1.msra.mxu0 0.0
      %5382 = vmatprep.subr.mxu0 0.0
      %5383 = vmatpush1.msra.mxu0 0.0
      %5384 = vmatprep.subr.mxu0 0.0
      %5385 = vmatpush1.msra.mxu0 0.0
      %5386 = vmatprep.subr.mxu0 0.0
      %v5387 = vand.u32 %v442, 4294901760
      %5388 = vmatpush1.msra.mxu0 %v5387
      %5389 = vmatprep.subr.mxu0 0.0
      %v5390 = vand.u32 %v441, 4294901760
      %5391 = vmatpush1.msra.mxu0 %v5390
      %5392 = vmatprep.subr.mxu0 0.0
      %5393 = vmatpush2.msra.mxu0 0.0
      %5394 = vmatprep.subr.mxu0 0.0
      %5395 = vmatpush2.msra.mxu0 0.0
      %5396 = vmatprep.subr.mxu0 0.0
      %5397 = vmatpush2.msra.mxu0 0.0
      %5398 = vmatprep.subr.mxu0 0.0
      %5399 = vmatpush2.msra.mxu0 0.0
      %5400 = vmatprep.subr.mxu0 0.0
      %5401 = vmatpush2.msra.mxu0 0.0
      %5402 = vmatprep.subr.mxu0 0.0
      %5403 = vmatpush2.msra.mxu0 0.0
      %5404 = vmatprep.subr.mxu0 0.0
      %5405 = vmatpush2.msra.mxu0 0.0
      %5406 = vmatprep.subr.mxu0 0.0
      %5407 = vmatpush2.msra.mxu0 0.0
      %5408 = vmatprep.subr.mxu0 0.0
      %5409 = vmatpush2.msra.mxu0 0.0
      %5410 = vmatprep.subr.mxu0 0.0
      %5411 = vmatpush2.msra.mxu0 0.0
      %5412 = vmatprep.subr.mxu0 0.0
      %5413 = vmatpush2.msra.mxu0 0.0
      %5414 = vmatprep.subr.mxu0 0.0
      %5415 = vmatpush2.msra.mxu0 0.0
      %5416 = vmatprep.subr.mxu0 0.0
      %5417 = vmatpush2.msra.mxu0 0.0
      %5418 = vmatprep.subr.mxu0 0.0
      %5419 = vmatpush2.msra.mxu0 0.0
      %5420 = vmatprep.subr.mxu0 0.0
      %5421 = vmatpush2.msra.mxu0 0.0
      %5422 = vmatprep.subr.mxu0 0.0
      %5423 = vmatpush2.msra.mxu0 0.0
      %5424 = vmatprep.mubr.f32.mxu0 0.0
      %v5425 = vand.u32 %v5356, 4294901760
      %v5426 = vsub.f32 %v5356, %v5425
      %v5427 = vand.u32 %v5426, 4294901760
      %v5428 = vsub.f32 %v5426, %v5427
      %v5429 = vand.u32 %v5428, 4294901760
      %5430 = vmatmul.mubr.f32.gmra.mxu0 %v5429
      %v5431 = vpop.f32.mrf.mxu0
      %v5432 = vadd.f32 0.0, %v5431
      %v5433 = vpop.f32.mrf.mxu0
      %5434 = vdwg.mxu0
      %5435 = vmatprep.subr.mxu0 0.0
      %5436 = vmatpush1.msra.mxu0 0.0
      %5437 = vmatprep.subr.mxu0 0.0
      %5438 = vmatpush1.msra.mxu0 0.0
      %5439 = vmatprep.subr.mxu0 0.0
      %5440 = vmatpush1.msra.mxu0 0.0
      %5441 = vmatprep.subr.mxu0 0.0
      %5442 = vmatpush1.msra.mxu0 0.0
      %5443 = vmatprep.subr.mxu0 0.0
      %5444 = vmatpush1.msra.mxu0 0.0
      %5445 = vmatprep.subr.mxu0 0.0
      %5446 = vmatpush1.msra.mxu0 0.0
      %5447 = vmatprep.subr.mxu0 0.0
      %5448 = vmatpush1.msra.mxu0 0.0
      %5449 = vmatprep.subr.mxu0 0.0
      %5450 = vmatpush1.msra.mxu0 0.0
      %5451 = vmatprep.subr.mxu0 0.0
      %5452 = vmatpush1.msra.mxu0 0.0
      %5453 = vmatprep.subr.mxu0 0.0
      %5454 = vmatpush1.msra.mxu0 0.0
      %5455 = vmatprep.subr.mxu0 0.0
      %5456 = vmatpush1.msra.mxu0 0.0
      %5457 = vmatprep.subr.mxu0 0.0
      %5458 = vmatpush1.msra.mxu0 0.0
      %5459 = vmatprep.subr.mxu0 0.0
      %5460 = vmatpush1.msra.mxu0 0.0
      %5461 = vmatprep.subr.mxu0 0.0
      %5462 = vmatpush1.msra.mxu0 0.0
      %5463 = vmatprep.subr.mxu0 0.0
      %v5464 = vand.u32 %v442, 4294901760
      %v5465 = vsub.f32 %v442, %v5464
      %v5466 = vand.u32 %v5465, 4294901760
      %v5467 = vsub.f32 %v5465, %v5466
      %v5468 = vand.u32 %v5467, 4294901760
      %5469 = vmatpush1.msra.mxu0 %v5468
      %5470 = vmatprep.subr.mxu0 0.0
      %v5471 = vand.u32 %v441, 4294901760
      %v5472 = vsub.f32 %v441, %v5471
      %v5473 = vand.u32 %v5472, 4294901760
      %v5474 = vsub.f32 %v5472, %v5473
      %v5475 = vand.u32 %v5474, 4294901760
      %5476 = vmatpush1.msra.mxu0 %v5475
      %5477 = vmatprep.subr.mxu0 0.0
      %5478 = vmatpush2.msra.mxu0 0.0
      %5479 = vmatprep.subr.mxu0 0.0
      %5480 = vmatpush2.msra.mxu0 0.0
      %5481 = vmatprep.subr.mxu0 0.0
      %5482 = vmatpush2.msra.mxu0 0.0
      %5483 = vmatprep.subr.mxu0 0.0
      %5484 = vmatpush2.msra.mxu0 0.0
      %5485 = vmatprep.subr.mxu0 0.0
      %5486 = vmatpush2.msra.mxu0 0.0
      %5487 = vmatprep.subr.mxu0 0.0
      %5488 = vmatpush2.msra.mxu0 0.0
      %5489 = vmatprep.subr.mxu0 0.0
      %5490 = vmatpush2.msra.mxu0 0.0
      %5491 = vmatprep.subr.mxu0 0.0
      %5492 = vmatpush2.msra.mxu0 0.0
      %5493 = vmatprep.subr.mxu0 0.0
      %5494 = vmatpush2.msra.mxu0 0.0
      %5495 = vmatprep.subr.mxu0 0.0
      %5496 = vmatpush2.msra.mxu0 0.0
      %5497 = vmatprep.subr.mxu0 0.0
      %5498 = vmatpush2.msra.mxu0 0.0
      %5499 = vmatprep.subr.mxu0 0.0
      %5500 = vmatpush2.msra.mxu0 0.0
      %5501 = vmatprep.subr.mxu0 0.0
      %5502 = vmatpush2.msra.mxu0 0.0
      %5503 = vmatprep.subr.mxu0 0.0
      %5504 = vmatpush2.msra.mxu0 0.0
      %5505 = vmatprep.subr.mxu0 0.0
      %5506 = vmatpush2.msra.mxu0 0.0
      %5507 = vmatprep.subr.mxu0 0.0
      %5508 = vmatpush2.msra.mxu0 0.0
      %5509 = vmatprep.mubr.f32.mxu0 0.0
      %v5510 = vand.u32 %v5356, 4294901760
      %5511 = vmatmul.mubr.f32.gmra.mxu0 %v5510
      %v5512 = vpop.f32.mrf.mxu0
      %v5513 = vadd.f32 %v5432, %v5512
      %v5514 = vpop.f32.mrf.mxu0
      %5515 = vdwg.mxu0
      %5516 = vmatprep.subr.mxu0 0.0
      %5517 = vmatpush1.msra.mxu0 0.0
      %5518 = vmatprep.subr.mxu0 0.0
      %5519 = vmatpush1.msra.mxu0 0.0
      %5520 = vmatprep.subr.mxu0 0.0
      %5521 = vmatpush1.msra.mxu0 0.0
      %5522 = vmatprep.subr.mxu0 0.0
      %5523 = vmatpush1.msra.mxu0 0.0
      %5524 = vmatprep.subr.mxu0 0.0
      %5525 = vmatpush1.msra.mxu0 0.0
      %5526 = vmatprep.subr.mxu0 0.0
      %5527 = vmatpush1.msra.mxu0 0.0
      %5528 = vmatprep.subr.mxu0 0.0
      %5529 = vmatpush1.msra.mxu0 0.0
      %5530 = vmatprep.subr.mxu0 0.0
      %5531 = vmatpush1.msra.mxu0 0.0
      %5532 = vmatprep.subr.mxu0 0.0
      %5533 = vmatpush1.msra.mxu0 0.0
      %5534 = vmatprep.subr.mxu0 0.0
      %5535 = vmatpush1.msra.mxu0 0.0
      %5536 = vmatprep.subr.mxu0 0.0
      %5537 = vmatpush1.msra.mxu0 0.0
      %5538 = vmatprep.subr.mxu0 0.0
      %5539 = vmatpush1.msra.mxu0 0.0
      %5540 = vmatprep.subr.mxu0 0.0
      %5541 = vmatpush1.msra.mxu0 0.0
      %5542 = vmatprep.subr.mxu0 0.0
      %5543 = vmatpush1.msra.mxu0 0.0
      %5544 = vmatprep.subr.mxu0 0.0
      %v5545 = vand.u32 %v442, 4294901760
      %v5546 = vsub.f32 %v442, %v5545
      %5547 = vmatpush1.msra.mxu0 %v5546
      %5548 = vmatprep.subr.mxu0 0.0
      %v5549 = vand.u32 %v441, 4294901760
      %v5550 = vsub.f32 %v441, %v5549
      %5551 = vmatpush1.msra.mxu0 %v5550
      %5552 = vmatprep.subr.mxu0 0.0
      %5553 = vmatpush2.msra.mxu0 0.0
      %5554 = vmatprep.subr.mxu0 0.0
      %5555 = vmatpush2.msra.mxu0 0.0
      %5556 = vmatprep.subr.mxu0 0.0
      %5557 = vmatpush2.msra.mxu0 0.0
      %5558 = vmatprep.subr.mxu0 0.0
      %5559 = vmatpush2.msra.mxu0 0.0
      %5560 = vmatprep.subr.mxu0 0.0
      %5561 = vmatpush2.msra.mxu0 0.0
      %5562 = vmatprep.subr.mxu0 0.0
      %5563 = vmatpush2.msra.mxu0 0.0
      %5564 = vmatprep.subr.mxu0 0.0
      %5565 = vmatpush2.msra.mxu0 0.0
      %5566 = vmatprep.subr.mxu0 0.0
      %5567 = vmatpush2.msra.mxu0 0.0
      %5568 = vmatprep.subr.mxu0 0.0
      %5569 = vmatpush2.msra.mxu0 0.0
      %5570 = vmatprep.subr.mxu0 0.0
      %5571 = vmatpush2.msra.mxu0 0.0
      %5572 = vmatprep.subr.mxu0 0.0
      %5573 = vmatpush2.msra.mxu0 0.0
      %5574 = vmatprep.subr.mxu0 0.0
      %5575 = vmatpush2.msra.mxu0 0.0
      %5576 = vmatprep.subr.mxu0 0.0
      %5577 = vmatpush2.msra.mxu0 0.0
      %5578 = vmatprep.subr.mxu0 0.0
      %5579 = vmatpush2.msra.mxu0 0.0
      %5580 = vmatprep.subr.mxu0 0.0
      %5581 = vmatpush2.msra.mxu0 0.0
      %5582 = vmatprep.subr.mxu0 0.0
      %5583 = vmatpush2.msra.mxu0 0.0
      %5584 = vmatprep.mubr.f32.mxu0 0.0
      %v5585 = vand.u32 %v5356, 4294901760
      %v5586 = vsub.f32 %v5356, %v5585
      %5587 = vmatmul.mubr.f32.gmra.mxu0 %v5586
      %v5588 = vpop.f32.mrf.mxu0
      %v5589 = vadd.f32 %v5513, %v5588
      %v5590 = vpop.f32.mrf.mxu0
      %5591 = vdwg.mxu0
      %5592 = vmatprep.subr.mxu0 0.0
      %5593 = vmatpush1.msra.mxu0 0.0
      %5594 = vmatprep.subr.mxu0 0.0
      %5595 = vmatpush1.msra.mxu0 0.0
      %5596 = vmatprep.subr.mxu0 0.0
      %5597 = vmatpush1.msra.mxu0 0.0
      %5598 = vmatprep.subr.mxu0 0.0
      %5599 = vmatpush1.msra.mxu0 0.0
      %5600 = vmatprep.subr.mxu0 0.0
      %5601 = vmatpush1.msra.mxu0 0.0
      %5602 = vmatprep.subr.mxu0 0.0
      %5603 = vmatpush1.msra.mxu0 0.0
      %5604 = vmatprep.subr.mxu0 0.0
      %5605 = vmatpush1.msra.mxu0 0.0
      %5606 = vmatprep.subr.mxu0 0.0
      %5607 = vmatpush1.msra.mxu0 0.0
      %5608 = vmatprep.subr.mxu0 0.0
      %5609 = vmatpush1.msra.mxu0 0.0
      %5610 = vmatprep.subr.mxu0 0.0
      %5611 = vmatpush1.msra.mxu0 0.0
      %5612 = vmatprep.subr.mxu0 0.0
      %5613 = vmatpush1.msra.mxu0 0.0
      %5614 = vmatprep.subr.mxu0 0.0
      %5615 = vmatpush1.msra.mxu0 0.0
      %5616 = vmatprep.subr.mxu0 0.0
      %5617 = vmatpush1.msra.mxu0 0.0
      %5618 = vmatprep.subr.mxu0 0.0
      %5619 = vmatpush1.msra.mxu0 0.0
      %5620 = vmatprep.subr.mxu0 0.0
      %v5621 = vand.u32 %v442, 4294901760
      %5622 = vmatpush1.msra.mxu0 %v5621
      %5623 = vmatprep.subr.mxu0 0.0
      %v5624 = vand.u32 %v441, 4294901760
      %5625 = vmatpush1.msra.mxu0 %v5624
      %5626 = vmatprep.subr.mxu0 0.0
      %5627 = vmatpush2.msra.mxu0 0.0
      %5628 = vmatprep.subr.mxu0 0.0
      %5629 = vmatpush2.msra.mxu0 0.0
      %5630 = vmatprep.subr.mxu0 0.0
      %5631 = vmatpush2.msra.mxu0 0.0
      %5632 = vmatprep.subr.mxu0 0.0
      %5633 = vmatpush2.msra.mxu0 0.0
      %5634 = vmatprep.subr.mxu0 0.0
      %5635 = vmatpush2.msra.mxu0 0.0
      %5636 = vmatprep.subr.mxu0 0.0
      %5637 = vmatpush2.msra.mxu0 0.0
      %5638 = vmatprep.subr.mxu0 0.0
      %5639 = vmatpush2.msra.mxu0 0.0
      %5640 = vmatprep.subr.mxu0 0.0
      %5641 = vmatpush2.msra.mxu0 0.0
      %5642 = vmatprep.subr.mxu0 0.0
      %5643 = vmatpush2.msra.mxu0 0.0
      %5644 = vmatprep.subr.mxu0 0.0
      %5645 = vmatpush2.msra.mxu0 0.0
      %5646 = vmatprep.subr.mxu0 0.0
      %5647 = vmatpush2.msra.mxu0 0.0
      %5648 = vmatprep.subr.mxu0 0.0
      %5649 = vmatpush2.msra.mxu0 0.0
      %5650 = vmatprep.subr.mxu0 0.0
      %5651 = vmatpush2.msra.mxu0 0.0
      %5652 = vmatprep.subr.mxu0 0.0
      %5653 = vmatpush2.msra.mxu0 0.0
      %5654 = vmatprep.subr.mxu0 0.0
      %5655 = vmatpush2.msra.mxu0 0.0
      %5656 = vmatprep.subr.mxu0 0.0
      %5657 = vmatpush2.msra.mxu0 0.0
      %5658 = vmatprep.mubr.f32.mxu0 0.0
      %v5659 = vand.u32 %v5356, 4294901760
      %v5660 = vsub.f32 %v5356, %v5659
      %v5661 = vand.u32 %v5660, 4294901760
      %5662 = vmatmul.mubr.f32.gmra.mxu0 %v5661
      %v5663 = vpop.f32.mrf.mxu0
      %v5664 = vadd.f32 %v5589, %v5663
      %v5665 = vpop.f32.mrf.mxu0
      %5666 = vdwg.mxu0
      %5667 = vmatprep.subr.mxu0 0.0
      %5668 = vmatpush1.msra.mxu0 0.0
      %5669 = vmatprep.subr.mxu0 0.0
      %5670 = vmatpush1.msra.mxu0 0.0
      %5671 = vmatprep.subr.mxu0 0.0
      %5672 = vmatpush1.msra.mxu0 0.0
      %5673 = vmatprep.subr.mxu0 0.0
      %5674 = vmatpush1.msra.mxu0 0.0
      %5675 = vmatprep.subr.mxu0 0.0
      %5676 = vmatpush1.msra.mxu0 0.0
      %5677 = vmatprep.subr.mxu0 0.0
      %5678 = vmatpush1.msra.mxu0 0.0
      %5679 = vmatprep.subr.mxu0 0.0
      %5680 = vmatpush1.msra.mxu0 0.0
      %5681 = vmatprep.subr.mxu0 0.0
      %5682 = vmatpush1.msra.mxu0 0.0
      %5683 = vmatprep.subr.mxu0 0.0
      %5684 = vmatpush1.msra.mxu0 0.0
      %5685 = vmatprep.subr.mxu0 0.0
      %5686 = vmatpush1.msra.mxu0 0.0
      %5687 = vmatprep.subr.mxu0 0.0
      %5688 = vmatpush1.msra.mxu0 0.0
      %5689 = vmatprep.subr.mxu0 0.0
      %5690 = vmatpush1.msra.mxu0 0.0
      %5691 = vmatprep.subr.mxu0 0.0
      %5692 = vmatpush1.msra.mxu0 0.0
      %5693 = vmatprep.subr.mxu0 0.0
      %5694 = vmatpush1.msra.mxu0 0.0
      %5695 = vmatprep.subr.mxu0 0.0
      %v5696 = vand.u32 %v442, 4294901760
      %v5697 = vsub.f32 %v442, %v5696
      %v5698 = vand.u32 %v5697, 4294901760
      %5699 = vmatpush1.msra.mxu0 %v5698
      %5700 = vmatprep.subr.mxu0 0.0
      %v5701 = vand.u32 %v441, 4294901760
      %v5702 = vsub.f32 %v441, %v5701
      %v5703 = vand.u32 %v5702, 4294901760
      %5704 = vmatpush1.msra.mxu0 %v5703
      %5705 = vmatprep.subr.mxu0 0.0
      %5706 = vmatpush2.msra.mxu0 0.0
      %5707 = vmatprep.subr.mxu0 0.0
      %5708 = vmatpush2.msra.mxu0 0.0
      %5709 = vmatprep.subr.mxu0 0.0
      %5710 = vmatpush2.msra.mxu0 0.0
      %5711 = vmatprep.subr.mxu0 0.0
      %5712 = vmatpush2.msra.mxu0 0.0
      %5713 = vmatprep.subr.mxu0 0.0
      %5714 = vmatpush2.msra.mxu0 0.0
      %5715 = vmatprep.subr.mxu0 0.0
      %5716 = vmatpush2.msra.mxu0 0.0
      %5717 = vmatprep.subr.mxu0 0.0
      %5718 = vmatpush2.msra.mxu0 0.0
      %5719 = vmatprep.subr.mxu0 0.0
      %5720 = vmatpush2.msra.mxu0 0.0
      %5721 = vmatprep.subr.mxu0 0.0
      %5722 = vmatpush2.msra.mxu0 0.0
      %5723 = vmatprep.subr.mxu0 0.0
      %5724 = vmatpush2.msra.mxu0 0.0
      %5725 = vmatprep.subr.mxu0 0.0
      %5726 = vmatpush2.msra.mxu0 0.0
      %5727 = vmatprep.subr.mxu0 0.0
      %5728 = vmatpush2.msra.mxu0 0.0
      %5729 = vmatprep.subr.mxu0 0.0
      %5730 = vmatpush2.msra.mxu0 0.0
      %5731 = vmatprep.subr.mxu0 0.0
      %5732 = vmatpush2.msra.mxu0 0.0
      %5733 = vmatprep.subr.mxu0 0.0
      %5734 = vmatpush2.msra.mxu0 0.0
      %5735 = vmatprep.subr.mxu0 0.0
      %5736 = vmatpush2.msra.mxu0 0.0
      %5737 = vmatprep.mubr.f32.mxu0 0.0
      %v5738 = vand.u32 %v5356, 4294901760
      %5739 = vmatmul.mubr.f32.gmra.mxu0 %v5738
      %v5740 = vpop.f32.mrf.mxu0
      %v5741 = vadd.f32 %v5664, %v5740
      %v5742 = vpop.f32.mrf.mxu0
      %5743 = vdwg.mxu0
      %5744 = vmatprep.subr.mxu0 0.0
      %5745 = vmatpush1.msra.mxu0 0.0
      %5746 = vmatprep.subr.mxu0 0.0
      %5747 = vmatpush1.msra.mxu0 0.0
      %5748 = vmatprep.subr.mxu0 0.0
      %5749 = vmatpush1.msra.mxu0 0.0
      %5750 = vmatprep.subr.mxu0 0.0
      %5751 = vmatpush1.msra.mxu0 0.0
      %5752 = vmatprep.subr.mxu0 0.0
      %5753 = vmatpush1.msra.mxu0 0.0
      %5754 = vmatprep.subr.mxu0 0.0
      %5755 = vmatpush1.msra.mxu0 0.0
      %5756 = vmatprep.subr.mxu0 0.0
      %5757 = vmatpush1.msra.mxu0 0.0
      %5758 = vmatprep.subr.mxu0 0.0
      %5759 = vmatpush1.msra.mxu0 0.0
      %5760 = vmatprep.subr.mxu0 0.0
      %5761 = vmatpush1.msra.mxu0 0.0
      %5762 = vmatprep.subr.mxu0 0.0
      %5763 = vmatpush1.msra.mxu0 0.0
      %5764 = vmatprep.subr.mxu0 0.0
      %5765 = vmatpush1.msra.mxu0 0.0
      %5766 = vmatprep.subr.mxu0 0.0
      %5767 = vmatpush1.msra.mxu0 0.0
      %5768 = vmatprep.subr.mxu0 0.0
      %5769 = vmatpush1.msra.mxu0 0.0
      %5770 = vmatprep.subr.mxu0 0.0
      %5771 = vmatpush1.msra.mxu0 0.0
      %5772 = vmatprep.subr.mxu0 0.0
      %v5773 = vand.u32 %v442, 4294901760
      %5774 = vmatpush1.msra.mxu0 %v5773
      %5775 = vmatprep.subr.mxu0 0.0
      %v5776 = vand.u32 %v441, 4294901760
      %5777 = vmatpush1.msra.mxu0 %v5776
      %5778 = vmatprep.subr.mxu0 0.0
      %5779 = vmatpush2.msra.mxu0 0.0
      %5780 = vmatprep.subr.mxu0 0.0
      %5781 = vmatpush2.msra.mxu0 0.0
      %5782 = vmatprep.subr.mxu0 0.0
      %5783 = vmatpush2.msra.mxu0 0.0
      %5784 = vmatprep.subr.mxu0 0.0
      %5785 = vmatpush2.msra.mxu0 0.0
      %5786 = vmatprep.subr.mxu0 0.0
      %5787 = vmatpush2.msra.mxu0 0.0
      %5788 = vmatprep.subr.mxu0 0.0
      %5789 = vmatpush2.msra.mxu0 0.0
      %5790 = vmatprep.subr.mxu0 0.0
      %5791 = vmatpush2.msra.mxu0 0.0
      %5792 = vmatprep.subr.mxu0 0.0
      %5793 = vmatpush2.msra.mxu0 0.0
      %5794 = vmatprep.subr.mxu0 0.0
      %5795 = vmatpush2.msra.mxu0 0.0
      %5796 = vmatprep.subr.mxu0 0.0
      %5797 = vmatpush2.msra.mxu0 0.0
      %5798 = vmatprep.subr.mxu0 0.0
      %5799 = vmatpush2.msra.mxu0 0.0
      %5800 = vmatprep.subr.mxu0 0.0
      %5801 = vmatpush2.msra.mxu0 0.0
      %5802 = vmatprep.subr.mxu0 0.0
      %5803 = vmatpush2.msra.mxu0 0.0
      %5804 = vmatprep.subr.mxu0 0.0
      %5805 = vmatpush2.msra.mxu0 0.0
      %5806 = vmatprep.subr.mxu0 0.0
      %5807 = vmatpush2.msra.mxu0 0.0
      %5808 = vmatprep.subr.mxu0 0.0
      %5809 = vmatpush2.msra.mxu0 0.0
      %5810 = vmatprep.mubr.f32.mxu0 0.0
      %v5811 = vand.u32 %v5356, 4294901760
      %5812 = vmatmul.mubr.f32.gmra.mxu0 %v5811
      %v5813 = vpop.f32.mrf.mxu0
      %v5814 = vadd.f32 %v5741, %v5813
      %v5815 = vpop.f32.mrf.mxu0
      %5816 = vdwg.mxu0
      %5817 = vmatprep.subr.mxu0 0.0
      %5818 = vmatpush1.msra.mxu0 0.0
      %5819 = vmatprep.subr.mxu0 0.0
      %5820 = vmatpush1.msra.mxu0 0.0
      %5821 = vmatprep.subr.mxu0 0.0
      %5822 = vmatpush1.msra.mxu0 0.0
      %5823 = vmatprep.subr.mxu0 0.0
      %5824 = vmatpush1.msra.mxu0 0.0
      %5825 = vmatprep.subr.mxu0 0.0
      %5826 = vmatpush1.msra.mxu0 0.0
      %5827 = vmatprep.subr.mxu0 0.0
      %5828 = vmatpush1.msra.mxu0 0.0
      %5829 = vmatprep.subr.mxu0 0.0
      %5830 = vmatpush1.msra.mxu0 0.0
      %5831 = vmatprep.subr.mxu0 0.0
      %5832 = vmatpush1.msra.mxu0 0.0
      %5833 = vmatprep.subr.mxu0 0.0
      %5834 = vmatpush1.msra.mxu0 0.0
      %5835 = vmatprep.subr.mxu0 0.0
      %5836 = vmatpush1.msra.mxu0 0.0
      %5837 = vmatprep.subr.mxu0 0.0
      %5838 = vmatpush1.msra.mxu0 0.0
      %5839 = vmatprep.subr.mxu0 0.0
      %5840 = vmatpush1.msra.mxu0 0.0
      %5841 = vmatprep.subr.mxu0 0.0
      %5842 = vmatpush1.msra.mxu0 0.0
      %5843 = vmatprep.subr.mxu0 0.0
      %5844 = vmatpush1.msra.mxu0 0.0
      %5845 = vmatprep.subr.mxu0 0.0
      %v5846 = vand.u32 %v444, 4294901760
      %5847 = vmatpush1.msra.mxu0 %v5846
      %5848 = vmatprep.subr.mxu0 0.0
      %v5849 = vand.u32 %v443, 4294901760
      %5850 = vmatpush1.msra.mxu0 %v5849
      %5851 = vmatprep.subr.mxu0 0.0
      %5852 = vmatpush2.msra.mxu0 0.0
      %5853 = vmatprep.subr.mxu0 0.0
      %5854 = vmatpush2.msra.mxu0 0.0
      %5855 = vmatprep.subr.mxu0 0.0
      %5856 = vmatpush2.msra.mxu0 0.0
      %5857 = vmatprep.subr.mxu0 0.0
      %5858 = vmatpush2.msra.mxu0 0.0
      %5859 = vmatprep.subr.mxu0 0.0
      %5860 = vmatpush2.msra.mxu0 0.0
      %5861 = vmatprep.subr.mxu0 0.0
      %5862 = vmatpush2.msra.mxu0 0.0
      %5863 = vmatprep.subr.mxu0 0.0
      %5864 = vmatpush2.msra.mxu0 0.0
      %5865 = vmatprep.subr.mxu0 0.0
      %5866 = vmatpush2.msra.mxu0 0.0
      %5867 = vmatprep.subr.mxu0 0.0
      %5868 = vmatpush2.msra.mxu0 0.0
      %5869 = vmatprep.subr.mxu0 0.0
      %5870 = vmatpush2.msra.mxu0 0.0
      %5871 = vmatprep.subr.mxu0 0.0
      %5872 = vmatpush2.msra.mxu0 0.0
      %5873 = vmatprep.subr.mxu0 0.0
      %5874 = vmatpush2.msra.mxu0 0.0
      %5875 = vmatprep.subr.mxu0 0.0
      %5876 = vmatpush2.msra.mxu0 0.0
      %5877 = vmatprep.subr.mxu0 0.0
      %5878 = vmatpush2.msra.mxu0 0.0
      %5879 = vmatprep.subr.mxu0 0.0
      %5880 = vmatpush2.msra.mxu0 0.0
      %5881 = vmatprep.subr.mxu0 0.0
      %5882 = vmatpush2.msra.mxu0 0.0
      %5883 = vmatprep.mubr.f32.mxu0 0.0
      %v5884 = vand.u32 %v5356, 4294901760
      %v5885 = vsub.f32 %v5356, %v5884
      %v5886 = vand.u32 %v5885, 4294901760
      %v5887 = vsub.f32 %v5885, %v5886
      %v5888 = vand.u32 %v5887, 4294901760
      %5889 = vmatmul.mubr.f32.gmra.mxu0 %v5888
      %v5890 = vpop.f32.mrf.mxu0
      %v5891 = vadd.f32 0.0, %v5890
      %v5892 = vpop.f32.mrf.mxu0
      %5893 = vdwg.mxu0
      %5894 = vmatprep.subr.mxu0 0.0
      %5895 = vmatpush1.msra.mxu0 0.0
      %5896 = vmatprep.subr.mxu0 0.0
      %5897 = vmatpush1.msra.mxu0 0.0
      %5898 = vmatprep.subr.mxu0 0.0
      %5899 = vmatpush1.msra.mxu0 0.0
      %5900 = vmatprep.subr.mxu0 0.0
      %5901 = vmatpush1.msra.mxu0 0.0
      %5902 = vmatprep.subr.mxu0 0.0
      %5903 = vmatpush1.msra.mxu0 0.0
      %5904 = vmatprep.subr.mxu0 0.0
      %5905 = vmatpush1.msra.mxu0 0.0
      %5906 = vmatprep.subr.mxu0 0.0
      %5907 = vmatpush1.msra.mxu0 0.0
      %5908 = vmatprep.subr.mxu0 0.0
      %5909 = vmatpush1.msra.mxu0 0.0
      %5910 = vmatprep.subr.mxu0 0.0
      %5911 = vmatpush1.msra.mxu0 0.0
      %5912 = vmatprep.subr.mxu0 0.0
      %5913 = vmatpush1.msra.mxu0 0.0
      %5914 = vmatprep.subr.mxu0 0.0
      %5915 = vmatpush1.msra.mxu0 0.0
      %5916 = vmatprep.subr.mxu0 0.0
      %5917 = vmatpush1.msra.mxu0 0.0
      %5918 = vmatprep.subr.mxu0 0.0
      %5919 = vmatpush1.msra.mxu0 0.0
      %5920 = vmatprep.subr.mxu0 0.0
      %5921 = vmatpush1.msra.mxu0 0.0
      %5922 = vmatprep.subr.mxu0 0.0
      %v5923 = vand.u32 %v444, 4294901760
      %v5924 = vsub.f32 %v444, %v5923
      %v5925 = vand.u32 %v5924, 4294901760
      %v5926 = vsub.f32 %v5924, %v5925
      %v5927 = vand.u32 %v5926, 4294901760
      %5928 = vmatpush1.msra.mxu0 %v5927
      %5929 = vmatprep.subr.mxu0 0.0
      %v5930 = vand.u32 %v443, 4294901760
      %v5931 = vsub.f32 %v443, %v5930
      %v5932 = vand.u32 %v5931, 4294901760
      %v5933 = vsub.f32 %v5931, %v5932
      %v5934 = vand.u32 %v5933, 4294901760
      %5935 = vmatpush1.msra.mxu0 %v5934
      %5936 = vmatprep.subr.mxu0 0.0
      %5937 = vmatpush2.msra.mxu0 0.0
      %5938 = vmatprep.subr.mxu0 0.0
      %5939 = vmatpush2.msra.mxu0 0.0
      %5940 = vmatprep.subr.mxu0 0.0
      %5941 = vmatpush2.msra.mxu0 0.0
      %5942 = vmatprep.subr.mxu0 0.0
      %5943 = vmatpush2.msra.mxu0 0.0
      %5944 = vmatprep.subr.mxu0 0.0
      %5945 = vmatpush2.msra.mxu0 0.0
      %5946 = vmatprep.subr.mxu0 0.0
      %5947 = vmatpush2.msra.mxu0 0.0
      %5948 = vmatprep.subr.mxu0 0.0
      %5949 = vmatpush2.msra.mxu0 0.0
      %5950 = vmatprep.subr.mxu0 0.0
      %5951 = vmatpush2.msra.mxu0 0.0
      %5952 = vmatprep.subr.mxu0 0.0
      %5953 = vmatpush2.msra.mxu0 0.0
      %5954 = vmatprep.subr.mxu0 0.0
      %5955 = vmatpush2.msra.mxu0 0.0
      %5956 = vmatprep.subr.mxu0 0.0
      %5957 = vmatpush2.msra.mxu0 0.0
      %5958 = vmatprep.subr.mxu0 0.0
      %5959 = vmatpush2.msra.mxu0 0.0
      %5960 = vmatprep.subr.mxu0 0.0
      %5961 = vmatpush2.msra.mxu0 0.0
      %5962 = vmatprep.subr.mxu0 0.0
      %5963 = vmatpush2.msra.mxu0 0.0
      %5964 = vmatprep.subr.mxu0 0.0
      %5965 = vmatpush2.msra.mxu0 0.0
      %5966 = vmatprep.subr.mxu0 0.0
      %5967 = vmatpush2.msra.mxu0 0.0
      %5968 = vmatprep.mubr.f32.mxu0 0.0
      %v5969 = vand.u32 %v5356, 4294901760
      %5970 = vmatmul.mubr.f32.gmra.mxu0 %v5969
      %v5971 = vpop.f32.mrf.mxu0
      %v5972 = vadd.f32 %v5891, %v5971
      %v5973 = vpop.f32.mrf.mxu0
      %5974 = vdwg.mxu0
      %5975 = vmatprep.subr.mxu0 0.0
      %5976 = vmatpush1.msra.mxu0 0.0
      %5977 = vmatprep.subr.mxu0 0.0
      %5978 = vmatpush1.msra.mxu0 0.0
      %5979 = vmatprep.subr.mxu0 0.0
      %5980 = vmatpush1.msra.mxu0 0.0
      %5981 = vmatprep.subr.mxu0 0.0
      %5982 = vmatpush1.msra.mxu0 0.0
      %5983 = vmatprep.subr.mxu0 0.0
      %5984 = vmatpush1.msra.mxu0 0.0
      %5985 = vmatprep.subr.mxu0 0.0
      %5986 = vmatpush1.msra.mxu0 0.0
      %5987 = vmatprep.subr.mxu0 0.0
      %5988 = vmatpush1.msra.mxu0 0.0
      %5989 = vmatprep.subr.mxu0 0.0
      %5990 = vmatpush1.msra.mxu0 0.0
      %5991 = vmatprep.subr.mxu0 0.0
      %5992 = vmatpush1.msra.mxu0 0.0
      %5993 = vmatprep.subr.mxu0 0.0
      %5994 = vmatpush1.msra.mxu0 0.0
      %5995 = vmatprep.subr.mxu0 0.0
      %5996 = vmatpush1.msra.mxu0 0.0
      %5997 = vmatprep.subr.mxu0 0.0
      %5998 = vmatpush1.msra.mxu0 0.0
      %5999 = vmatprep.subr.mxu0 0.0
      %6000 = vmatpush1.msra.mxu0 0.0
      %6001 = vmatprep.subr.mxu0 0.0
      %6002 = vmatpush1.msra.mxu0 0.0
      %6003 = vmatprep.subr.mxu0 0.0
      %v6004 = vand.u32 %v444, 4294901760
      %v6005 = vsub.f32 %v444, %v6004
      %6006 = vmatpush1.msra.mxu0 %v6005
      %6007 = vmatprep.subr.mxu0 0.0
      %v6008 = vand.u32 %v443, 4294901760
      %v6009 = vsub.f32 %v443, %v6008
      %6010 = vmatpush1.msra.mxu0 %v6009
      %6011 = vmatprep.subr.mxu0 0.0
      %6012 = vmatpush2.msra.mxu0 0.0
      %6013 = vmatprep.subr.mxu0 0.0
      %6014 = vmatpush2.msra.mxu0 0.0
      %6015 = vmatprep.subr.mxu0 0.0
      %6016 = vmatpush2.msra.mxu0 0.0
      %6017 = vmatprep.subr.mxu0 0.0
      %6018 = vmatpush2.msra.mxu0 0.0
      %6019 = vmatprep.subr.mxu0 0.0
      %6020 = vmatpush2.msra.mxu0 0.0
      %6021 = vmatprep.subr.mxu0 0.0
      %6022 = vmatpush2.msra.mxu0 0.0
      %6023 = vmatprep.subr.mxu0 0.0
      %6024 = vmatpush2.msra.mxu0 0.0
      %6025 = vmatprep.subr.mxu0 0.0
      %6026 = vmatpush2.msra.mxu0 0.0
      %6027 = vmatprep.subr.mxu0 0.0
      %6028 = vmatpush2.msra.mxu0 0.0
      %6029 = vmatprep.subr.mxu0 0.0
      %6030 = vmatpush2.msra.mxu0 0.0
      %6031 = vmatprep.subr.mxu0 0.0
      %6032 = vmatpush2.msra.mxu0 0.0
      %6033 = vmatprep.subr.mxu0 0.0
      %6034 = vmatpush2.msra.mxu0 0.0
      %6035 = vmatprep.subr.mxu0 0.0
      %6036 = vmatpush2.msra.mxu0 0.0
      %6037 = vmatprep.subr.mxu0 0.0
      %6038 = vmatpush2.msra.mxu0 0.0
      %6039 = vmatprep.subr.mxu0 0.0
      %6040 = vmatpush2.msra.mxu0 0.0
      %6041 = vmatprep.subr.mxu0 0.0
      %6042 = vmatpush2.msra.mxu0 0.0
      %6043 = vmatprep.mubr.f32.mxu0 0.0
      %v6044 = vand.u32 %v5356, 4294901760
      %v6045 = vsub.f32 %v5356, %v6044
      %6046 = vmatmul.mubr.f32.gmra.mxu0 %v6045
      %v6047 = vpop.f32.mrf.mxu0
      %v6048 = vadd.f32 %v5972, %v6047
      %v6049 = vpop.f32.mrf.mxu0
      %6050 = vdwg.mxu0
      %6051 = vmatprep.subr.mxu0 0.0
      %6052 = vmatpush1.msra.mxu0 0.0
      %6053 = vmatprep.subr.mxu0 0.0
      %6054 = vmatpush1.msra.mxu0 0.0
      %6055 = vmatprep.subr.mxu0 0.0
      %6056 = vmatpush1.msra.mxu0 0.0
      %6057 = vmatprep.subr.mxu0 0.0
      %6058 = vmatpush1.msra.mxu0 0.0
      %6059 = vmatprep.subr.mxu0 0.0
      %6060 = vmatpush1.msra.mxu0 0.0
      %6061 = vmatprep.subr.mxu0 0.0
      %6062 = vmatpush1.msra.mxu0 0.0
      %6063 = vmatprep.subr.mxu0 0.0
      %6064 = vmatpush1.msra.mxu0 0.0
      %6065 = vmatprep.subr.mxu0 0.0
      %6066 = vmatpush1.msra.mxu0 0.0
      %6067 = vmatprep.subr.mxu0 0.0
      %6068 = vmatpush1.msra.mxu0 0.0
      %6069 = vmatprep.subr.mxu0 0.0
      %6070 = vmatpush1.msra.mxu0 0.0
      %6071 = vmatprep.subr.mxu0 0.0
      %6072 = vmatpush1.msra.mxu0 0.0
      %6073 = vmatprep.subr.mxu0 0.0
      %6074 = vmatpush1.msra.mxu0 0.0
      %6075 = vmatprep.subr.mxu0 0.0
      %6076 = vmatpush1.msra.mxu0 0.0
      %6077 = vmatprep.subr.mxu0 0.0
      %6078 = vmatpush1.msra.mxu0 0.0
      %6079 = vmatprep.subr.mxu0 0.0
      %v6080 = vand.u32 %v444, 4294901760
      %6081 = vmatpush1.msra.mxu0 %v6080
      %6082 = vmatprep.subr.mxu0 0.0
      %v6083 = vand.u32 %v443, 4294901760
      %6084 = vmatpush1.msra.mxu0 %v6083
      %6085 = vmatprep.subr.mxu0 0.0
      %6086 = vmatpush2.msra.mxu0 0.0
      %6087 = vmatprep.subr.mxu0 0.0
      %6088 = vmatpush2.msra.mxu0 0.0
      %6089 = vmatprep.subr.mxu0 0.0
      %6090 = vmatpush2.msra.mxu0 0.0
      %6091 = vmatprep.subr.mxu0 0.0
      %6092 = vmatpush2.msra.mxu0 0.0
      %6093 = vmatprep.subr.mxu0 0.0
      %6094 = vmatpush2.msra.mxu0 0.0
      %6095 = vmatprep.subr.mxu0 0.0
      %6096 = vmatpush2.msra.mxu0 0.0
      %6097 = vmatprep.subr.mxu0 0.0
      %6098 = vmatpush2.msra.mxu0 0.0
      %6099 = vmatprep.subr.mxu0 0.0
      %6100 = vmatpush2.msra.mxu0 0.0
      %6101 = vmatprep.subr.mxu0 0.0
      %6102 = vmatpush2.msra.mxu0 0.0
      %6103 = vmatprep.subr.mxu0 0.0
      %6104 = vmatpush2.msra.mxu0 0.0
      %6105 = vmatprep.subr.mxu0 0.0
      %6106 = vmatpush2.msra.mxu0 0.0
      %6107 = vmatprep.subr.mxu0 0.0
      %6108 = vmatpush2.msra.mxu0 0.0
      %6109 = vmatprep.subr.mxu0 0.0
      %6110 = vmatpush2.msra.mxu0 0.0
      %6111 = vmatprep.subr.mxu0 0.0
      %6112 = vmatpush2.msra.mxu0 0.0
      %6113 = vmatprep.subr.mxu0 0.0
      %6114 = vmatpush2.msra.mxu0 0.0
      %6115 = vmatprep.subr.mxu0 0.0
      %6116 = vmatpush2.msra.mxu0 0.0
      %6117 = vmatprep.mubr.f32.mxu0 0.0
      %v6118 = vand.u32 %v5356, 4294901760
      %v6119 = vsub.f32 %v5356, %v6118
      %v6120 = vand.u32 %v6119, 4294901760
      %6121 = vmatmul.mubr.f32.gmra.mxu0 %v6120
      %v6122 = vpop.f32.mrf.mxu0
      %v6123 = vadd.f32 %v6048, %v6122
      %v6124 = vpop.f32.mrf.mxu0
      %6125 = vdwg.mxu0
      %6126 = vmatprep.subr.mxu0 0.0
      %6127 = vmatpush1.msra.mxu0 0.0
      %6128 = vmatprep.subr.mxu0 0.0
      %6129 = vmatpush1.msra.mxu0 0.0
      %6130 = vmatprep.subr.mxu0 0.0
      %6131 = vmatpush1.msra.mxu0 0.0
      %6132 = vmatprep.subr.mxu0 0.0
      %6133 = vmatpush1.msra.mxu0 0.0
      %6134 = vmatprep.subr.mxu0 0.0
      %6135 = vmatpush1.msra.mxu0 0.0
      %6136 = vmatprep.subr.mxu0 0.0
      %6137 = vmatpush1.msra.mxu0 0.0
      %6138 = vmatprep.subr.mxu0 0.0
      %6139 = vmatpush1.msra.mxu0 0.0
      %6140 = vmatprep.subr.mxu0 0.0
      %6141 = vmatpush1.msra.mxu0 0.0
      %6142 = vmatprep.subr.mxu0 0.0
      %6143 = vmatpush1.msra.mxu0 0.0
      %6144 = vmatprep.subr.mxu0 0.0
      %6145 = vmatpush1.msra.mxu0 0.0
      %6146 = vmatprep.subr.mxu0 0.0
      %6147 = vmatpush1.msra.mxu0 0.0
      %6148 = vmatprep.subr.mxu0 0.0
      %6149 = vmatpush1.msra.mxu0 0.0
      %6150 = vmatprep.subr.mxu0 0.0
      %6151 = vmatpush1.msra.mxu0 0.0
      %6152 = vmatprep.subr.mxu0 0.0
      %6153 = vmatpush1.msra.mxu0 0.0
      %6154 = vmatprep.subr.mxu0 0.0
      %v6155 = vand.u32 %v444, 4294901760
      %v6156 = vsub.f32 %v444, %v6155
      %v6157 = vand.u32 %v6156, 4294901760
      %6158 = vmatpush1.msra.mxu0 %v6157
      %6159 = vmatprep.subr.mxu0 0.0
      %v6160 = vand.u32 %v443, 4294901760
      %v6161 = vsub.f32 %v443, %v6160
      %v6162 = vand.u32 %v6161, 4294901760
      %6163 = vmatpush1.msra.mxu0 %v6162
      %6164 = vmatprep.subr.mxu0 0.0
      %6165 = vmatpush2.msra.mxu0 0.0
      %6166 = vmatprep.subr.mxu0 0.0
      %6167 = vmatpush2.msra.mxu0 0.0
      %6168 = vmatprep.subr.mxu0 0.0
      %6169 = vmatpush2.msra.mxu0 0.0
      %6170 = vmatprep.subr.mxu0 0.0
      %6171 = vmatpush2.msra.mxu0 0.0
      %6172 = vmatprep.subr.mxu0 0.0
      %6173 = vmatpush2.msra.mxu0 0.0
      %6174 = vmatprep.subr.mxu0 0.0
      %6175 = vmatpush2.msra.mxu0 0.0
      %6176 = vmatprep.subr.mxu0 0.0
      %6177 = vmatpush2.msra.mxu0 0.0
      %6178 = vmatprep.subr.mxu0 0.0
      %6179 = vmatpush2.msra.mxu0 0.0
      %6180 = vmatprep.subr.mxu0 0.0
      %6181 = vmatpush2.msra.mxu0 0.0
      %6182 = vmatprep.subr.mxu0 0.0
      %6183 = vmatpush2.msra.mxu0 0.0
      %6184 = vmatprep.subr.mxu0 0.0
      %6185 = vmatpush2.msra.mxu0 0.0
      %6186 = vmatprep.subr.mxu0 0.0
      %6187 = vmatpush2.msra.mxu0 0.0
      %6188 = vmatprep.subr.mxu0 0.0
      %6189 = vmatpush2.msra.mxu0 0.0
      %6190 = vmatprep.subr.mxu0 0.0
      %6191 = vmatpush2.msra.mxu0 0.0
      %6192 = vmatprep.subr.mxu0 0.0
      %6193 = vmatpush2.msra.mxu0 0.0
      %6194 = vmatprep.subr.mxu0 0.0
      %6195 = vmatpush2.msra.mxu0 0.0
      %6196 = vmatprep.mubr.f32.mxu0 0.0
      %v6197 = vand.u32 %v5356, 4294901760
      %6198 = vmatmul.mubr.f32.gmra.mxu0 %v6197
      %v6199 = vpop.f32.mrf.mxu0
      %v6200 = vadd.f32 %v6123, %v6199
      %v6201 = vpop.f32.mrf.mxu0
      %6202 = vdwg.mxu0
      %6203 = vmatprep.subr.mxu0 0.0
      %6204 = vmatpush1.msra.mxu0 0.0
      %6205 = vmatprep.subr.mxu0 0.0
      %6206 = vmatpush1.msra.mxu0 0.0
      %6207 = vmatprep.subr.mxu0 0.0
      %6208 = vmatpush1.msra.mxu0 0.0
      %6209 = vmatprep.subr.mxu0 0.0
      %6210 = vmatpush1.msra.mxu0 0.0
      %6211 = vmatprep.subr.mxu0 0.0
      %6212 = vmatpush1.msra.mxu0 0.0
      %6213 = vmatprep.subr.mxu0 0.0
      %6214 = vmatpush1.msra.mxu0 0.0
      %6215 = vmatprep.subr.mxu0 0.0
      %6216 = vmatpush1.msra.mxu0 0.0
      %6217 = vmatprep.subr.mxu0 0.0
      %6218 = vmatpush1.msra.mxu0 0.0
      %6219 = vmatprep.subr.mxu0 0.0
      %6220 = vmatpush1.msra.mxu0 0.0
      %6221 = vmatprep.subr.mxu0 0.0
      %6222 = vmatpush1.msra.mxu0 0.0
      %6223 = vmatprep.subr.mxu0 0.0
      %6224 = vmatpush1.msra.mxu0 0.0
      %6225 = vmatprep.subr.mxu0 0.0
      %6226 = vmatpush1.msra.mxu0 0.0
      %6227 = vmatprep.subr.mxu0 0.0
      %6228 = vmatpush1.msra.mxu0 0.0
      %6229 = vmatprep.subr.mxu0 0.0
      %6230 = vmatpush1.msra.mxu0 0.0
      %6231 = vmatprep.subr.mxu0 0.0
      %v6232 = vand.u32 %v444, 4294901760
      %6233 = vmatpush1.msra.mxu0 %v6232
      %6234 = vmatprep.subr.mxu0 0.0
      %v6235 = vand.u32 %v443, 4294901760
      %6236 = vmatpush1.msra.mxu0 %v6235
      %6237 = vmatprep.subr.mxu0 0.0
      %6238 = vmatpush2.msra.mxu0 0.0
      %6239 = vmatprep.subr.mxu0 0.0
      %6240 = vmatpush2.msra.mxu0 0.0
      %6241 = vmatprep.subr.mxu0 0.0
      %6242 = vmatpush2.msra.mxu0 0.0
      %6243 = vmatprep.subr.mxu0 0.0
      %6244 = vmatpush2.msra.mxu0 0.0
      %6245 = vmatprep.subr.mxu0 0.0
      %6246 = vmatpush2.msra.mxu0 0.0
      %6247 = vmatprep.subr.mxu0 0.0
      %6248 = vmatpush2.msra.mxu0 0.0
      %6249 = vmatprep.subr.mxu0 0.0
      %6250 = vmatpush2.msra.mxu0 0.0
      %6251 = vmatprep.subr.mxu0 0.0
      %6252 = vmatpush2.msra.mxu0 0.0
      %6253 = vmatprep.subr.mxu0 0.0
      %6254 = vmatpush2.msra.mxu0 0.0
      %6255 = vmatprep.subr.mxu0 0.0
      %6256 = vmatpush2.msra.mxu0 0.0
      %6257 = vmatprep.subr.mxu0 0.0
      %6258 = vmatpush2.msra.mxu0 0.0
      %6259 = vmatprep.subr.mxu0 0.0
      %6260 = vmatpush2.msra.mxu0 0.0
      %6261 = vmatprep.subr.mxu0 0.0
      %6262 = vmatpush2.msra.mxu0 0.0
      %6263 = vmatprep.subr.mxu0 0.0
      %6264 = vmatpush2.msra.mxu0 0.0
      %6265 = vmatprep.subr.mxu0 0.0
      %6266 = vmatpush2.msra.mxu0 0.0
      %6267 = vmatprep.subr.mxu0 0.0
      %6268 = vmatpush2.msra.mxu0 0.0
      %6269 = vmatprep.mubr.f32.mxu0 0.0
      %v6270 = vand.u32 %v5356, 4294901760
      %6271 = vmatmul.mubr.f32.gmra.mxu0 %v6270
      %v6272 = vpop.f32.mrf.mxu0
      %v6273 = vadd.f32 %v6200, %v6272
      %v6274 = vpop.f32.mrf.mxu0
      %6275 = vdwg.mxu0
      %v6276 = vmax.f32 %v5814, %v6273
      %6277 = vxpose.xlu0.b32.start [1/16] %v6276, 128
      %6278 = vxpose.xlu0.b32.cont [2/16] 0.0, 128
      %6279 = vxpose.xlu0.b32.cont [3/16] 0.0, 128
      %6280 = vxpose.xlu0.b32.cont [4/16] 0.0, 128
      %6281 = vxpose.xlu0.b32.cont [5/16] 0.0, 128
      %6282 = vxpose.xlu0.b32.cont [6/16] 0.0, 128
      %6283 = vxpose.xlu0.b32.cont [7/16] 0.0, 128
      %6284 = vxpose.xlu0.b32.cont [8/16] 0.0, 128
      %6285 = vxpose.xlu0.b32.cont [9/16] 0.0, 128
      %6286 = vxpose.xlu0.b32.cont [10/16] 0.0, 128
      %6287 = vxpose.xlu0.b32.cont [11/16] 0.0, 128
      %6288 = vxpose.xlu0.b32.cont [12/16] 0.0, 128
      %6289 = vxpose.xlu0.b32.cont [13/16] 0.0, 128
      %6290 = vxpose.xlu0.b32.cont [14/16] 0.0, 128
      %6291 = vxpose.xlu0.b32.cont [15/16] 0.0, 128
      %6292 = vxpose.xlu0.b32.end [16/16] 0.0, 128
      %v6293 = vpop.trf.xlu0
      %v6294 = vpop.trf.xlu0
      %v6295 = vpop.trf.xlu0
      %v6296 = vpop.trf.xlu0
      %v6297 = vpop.trf.xlu0
      %v6298 = vpop.trf.xlu0
      %v6299 = vpop.trf.xlu0
      %v6300 = vpop.trf.xlu0
      %v6301 = vpop.trf.xlu0
      %v6302 = vpop.trf.xlu0
      %v6303 = vpop.trf.xlu0
      %v6304 = vpop.trf.xlu0
      %v6305 = vpop.trf.xlu0
      %v6306 = vpop.trf.xlu0
      %v6307 = vpop.trf.xlu0
      %v6308 = vpop.trf.xlu0
      %s6309 = scalar_lea.vmem [#allocation2], 96
      %6310 = vst.msk [vmem:[%s6309 + $0x1] sm:$0xff] %vm385, %v6293
      %v6311 = vld [vmem:[%s380 + $0xc] sm:$0x1]
      %v6312 = vld [vmem:[%s380 + $0x1c] sm:$0x1]
      %v6313 = vld [vmem:[%s380 + $0x2c] sm:$0x1]
      %v6314 = vld [vmem:[%s380 + $0x3c] sm:$0x1]
      %v6315 = vld [vmem:[%s380 + $0xd] sm:$0x1]
      %v6316 = vld [vmem:[%s380 + $0x1d] sm:$0x1]
      %v6317 = vld [vmem:[%s380 + $0x2d] sm:$0x1]
      %v6318 = vld [vmem:[%s380 + $0x3d] sm:$0x1]
      %v6319 = vmax.f32 %v6311, %v6315
      %v6320 = vmax.f32 %v6312, %v6316
      %v6321 = vmax.f32 %v6313, %v6317
      %v6322 = vmax.f32 %v6314, %v6318
      %v6327 = vrot.slane %v6320, 7
      %v6328 = vsel %vm462, %v6327, %v6319
      %v6329 = vrot.slane %v6321, 6
      %v6330 = vsel %vm465, %v6329, %v6328
      %v6331 = vrot.slane %v6322, 5
      %v6332 = vsel %vm468, %v6331, %v6330
      %v6333 = vsel %vm470, %v6332, 0
      %6335 = vmatprep.subr.mxu0 0.0
      %6336 = vmatpush1.msra.mxu0 0.0
      %6337 = vmatprep.subr.mxu0 0.0
      %6338 = vmatpush1.msra.mxu0 0.0
      %6339 = vmatprep.subr.mxu0 0.0
      %6340 = vmatpush1.msra.mxu0 0.0
      %6341 = vmatprep.subr.mxu0 0.0
      %6342 = vmatpush1.msra.mxu0 0.0
      %6343 = vmatprep.subr.mxu0 0.0
      %6344 = vmatpush1.msra.mxu0 0.0
      %6345 = vmatprep.subr.mxu0 0.0
      %6346 = vmatpush1.msra.mxu0 0.0
      %6347 = vmatprep.subr.mxu0 0.0
      %6348 = vmatpush1.msra.mxu0 0.0
      %6349 = vmatprep.subr.mxu0 0.0
      %6350 = vmatpush1.msra.mxu0 0.0
      %6351 = vmatprep.subr.mxu0 0.0
      %6352 = vmatpush1.msra.mxu0 0.0
      %6353 = vmatprep.subr.mxu0 0.0
      %6354 = vmatpush1.msra.mxu0 0.0
      %6355 = vmatprep.subr.mxu0 0.0
      %6356 = vmatpush1.msra.mxu0 0.0
      %6357 = vmatprep.subr.mxu0 0.0
      %6358 = vmatpush1.msra.mxu0 0.0
      %6359 = vmatprep.subr.mxu0 0.0
      %6360 = vmatpush1.msra.mxu0 0.0
      %6361 = vmatprep.subr.mxu0 0.0
      %6362 = vmatpush1.msra.mxu0 0.0
      %6363 = vmatprep.subr.mxu0 0.0
      %v6364 = vand.u32 %v442, 4294901760
      %6365 = vmatpush1.msra.mxu0 %v6364
      %6366 = vmatprep.subr.mxu0 0.0
      %v6367 = vand.u32 %v441, 4294901760
      %6368 = vmatpush1.msra.mxu0 %v6367
      %6369 = vmatprep.subr.mxu0 0.0
      %6370 = vmatpush2.msra.mxu0 0.0
      %6371 = vmatprep.subr.mxu0 0.0
      %6372 = vmatpush2.msra.mxu0 0.0
      %6373 = vmatprep.subr.mxu0 0.0
      %6374 = vmatpush2.msra.mxu0 0.0
      %6375 = vmatprep.subr.mxu0 0.0
      %6376 = vmatpush2.msra.mxu0 0.0
      %6377 = vmatprep.subr.mxu0 0.0
      %6378 = vmatpush2.msra.mxu0 0.0
      %6379 = vmatprep.subr.mxu0 0.0
      %6380 = vmatpush2.msra.mxu0 0.0
      %6381 = vmatprep.subr.mxu0 0.0
      %6382 = vmatpush2.msra.mxu0 0.0
      %6383 = vmatprep.subr.mxu0 0.0
      %6384 = vmatpush2.msra.mxu0 0.0
      %6385 = vmatprep.subr.mxu0 0.0
      %6386 = vmatpush2.msra.mxu0 0.0
      %6387 = vmatprep.subr.mxu0 0.0
      %6388 = vmatpush2.msra.mxu0 0.0
      %6389 = vmatprep.subr.mxu0 0.0
      %6390 = vmatpush2.msra.mxu0 0.0
      %6391 = vmatprep.subr.mxu0 0.0
      %6392 = vmatpush2.msra.mxu0 0.0
      %6393 = vmatprep.subr.mxu0 0.0
      %6394 = vmatpush2.msra.mxu0 0.0
      %6395 = vmatprep.subr.mxu0 0.0
      %6396 = vmatpush2.msra.mxu0 0.0
      %6397 = vmatprep.subr.mxu0 0.0
      %6398 = vmatpush2.msra.mxu0 0.0
      %6399 = vmatprep.subr.mxu0 0.0
      %6400 = vmatpush2.msra.mxu0 0.0
      %6401 = vmatprep.mubr.f32.mxu0 0.0
      %v6402 = vand.u32 %v6333, 4294901760
      %v6403 = vsub.f32 %v6333, %v6402
      %v6404 = vand.u32 %v6403, 4294901760
      %v6405 = vsub.f32 %v6403, %v6404
      %v6406 = vand.u32 %v6405, 4294901760
      %6407 = vmatmul.mubr.f32.gmra.mxu0 %v6406
      %v6408 = vpop.f32.mrf.mxu0
      %v6409 = vadd.f32 0.0, %v6408
      %v6410 = vpop.f32.mrf.mxu0
      %6411 = vdwg.mxu0
      %6412 = vmatprep.subr.mxu0 0.0
      %6413 = vmatpush1.msra.mxu0 0.0
      %6414 = vmatprep.subr.mxu0 0.0
      %6415 = vmatpush1.msra.mxu0 0.0
      %6416 = vmatprep.subr.mxu0 0.0
      %6417 = vmatpush1.msra.mxu0 0.0
      %6418 = vmatprep.subr.mxu0 0.0
      %6419 = vmatpush1.msra.mxu0 0.0
      %6420 = vmatprep.subr.mxu0 0.0
      %6421 = vmatpush1.msra.mxu0 0.0
      %6422 = vmatprep.subr.mxu0 0.0
      %6423 = vmatpush1.msra.mxu0 0.0
      %6424 = vmatprep.subr.mxu0 0.0
      %6425 = vmatpush1.msra.mxu0 0.0
      %6426 = vmatprep.subr.mxu0 0.0
      %6427 = vmatpush1.msra.mxu0 0.0
      %6428 = vmatprep.subr.mxu0 0.0
      %6429 = vmatpush1.msra.mxu0 0.0
      %6430 = vmatprep.subr.mxu0 0.0
      %6431 = vmatpush1.msra.mxu0 0.0
      %6432 = vmatprep.subr.mxu0 0.0
      %6433 = vmatpush1.msra.mxu0 0.0
      %6434 = vmatprep.subr.mxu0 0.0
      %6435 = vmatpush1.msra.mxu0 0.0
      %6436 = vmatprep.subr.mxu0 0.0
      %6437 = vmatpush1.msra.mxu0 0.0
      %6438 = vmatprep.subr.mxu0 0.0
      %6439 = vmatpush1.msra.mxu0 0.0
      %6440 = vmatprep.subr.mxu0 0.0
      %v6441 = vand.u32 %v442, 4294901760
      %v6442 = vsub.f32 %v442, %v6441
      %v6443 = vand.u32 %v6442, 4294901760
      %v6444 = vsub.f32 %v6442, %v6443
      %v6445 = vand.u32 %v6444, 4294901760
      %6446 = vmatpush1.msra.mxu0 %v6445
      %6447 = vmatprep.subr.mxu0 0.0
      %v6448 = vand.u32 %v441, 4294901760
      %v6449 = vsub.f32 %v441, %v6448
      %v6450 = vand.u32 %v6449, 4294901760
      %v6451 = vsub.f32 %v6449, %v6450
      %v6452 = vand.u32 %v6451, 4294901760
      %6453 = vmatpush1.msra.mxu0 %v6452
      %6454 = vmatprep.subr.mxu0 0.0
      %6455 = vmatpush2.msra.mxu0 0.0
      %6456 = vmatprep.subr.mxu0 0.0
      %6457 = vmatpush2.msra.mxu0 0.0
      %6458 = vmatprep.subr.mxu0 0.0
      %6459 = vmatpush2.msra.mxu0 0.0
      %6460 = vmatprep.subr.mxu0 0.0
      %6461 = vmatpush2.msra.mxu0 0.0
      %6462 = vmatprep.subr.mxu0 0.0
      %6463 = vmatpush2.msra.mxu0 0.0
      %6464 = vmatprep.subr.mxu0 0.0
      %6465 = vmatpush2.msra.mxu0 0.0
      %6466 = vmatprep.subr.mxu0 0.0
      %6467 = vmatpush2.msra.mxu0 0.0
      %6468 = vmatprep.subr.mxu0 0.0
      %6469 = vmatpush2.msra.mxu0 0.0
      %6470 = vmatprep.subr.mxu0 0.0
      %6471 = vmatpush2.msra.mxu0 0.0
      %6472 = vmatprep.subr.mxu0 0.0
      %6473 = vmatpush2.msra.mxu0 0.0
      %6474 = vmatprep.subr.mxu0 0.0
      %6475 = vmatpush2.msra.mxu0 0.0
      %6476 = vmatprep.subr.mxu0 0.0
      %6477 = vmatpush2.msra.mxu0 0.0
      %6478 = vmatprep.subr.mxu0 0.0
      %6479 = vmatpush2.msra.mxu0 0.0
      %6480 = vmatprep.subr.mxu0 0.0
      %6481 = vmatpush2.msra.mxu0 0.0
      %6482 = vmatprep.subr.mxu0 0.0
      %6483 = vmatpush2.msra.mxu0 0.0
      %6484 = vmatprep.subr.mxu0 0.0
      %6485 = vmatpush2.msra.mxu0 0.0
      %6486 = vmatprep.mubr.f32.mxu0 0.0
      %v6487 = vand.u32 %v6333, 4294901760
      %6488 = vmatmul.mubr.f32.gmra.mxu0 %v6487
      %v6489 = vpop.f32.mrf.mxu0
      %v6490 = vadd.f32 %v6409, %v6489
      %v6491 = vpop.f32.mrf.mxu0
      %6492 = vdwg.mxu0
      %6493 = vmatprep.subr.mxu0 0.0
      %6494 = vmatpush1.msra.mxu0 0.0
      %6495 = vmatprep.subr.mxu0 0.0
      %6496 = vmatpush1.msra.mxu0 0.0
      %6497 = vmatprep.subr.mxu0 0.0
      %6498 = vmatpush1.msra.mxu0 0.0
      %6499 = vmatprep.subr.mxu0 0.0
      %6500 = vmatpush1.msra.mxu0 0.0
      %6501 = vmatprep.subr.mxu0 0.0
      %6502 = vmatpush1.msra.mxu0 0.0
      %6503 = vmatprep.subr.mxu0 0.0
      %6504 = vmatpush1.msra.mxu0 0.0
      %6505 = vmatprep.subr.mxu0 0.0
      %6506 = vmatpush1.msra.mxu0 0.0
      %6507 = vmatprep.subr.mxu0 0.0
      %6508 = vmatpush1.msra.mxu0 0.0
      %6509 = vmatprep.subr.mxu0 0.0
      %6510 = vmatpush1.msra.mxu0 0.0
      %6511 = vmatprep.subr.mxu0 0.0
      %6512 = vmatpush1.msra.mxu0 0.0
      %6513 = vmatprep.subr.mxu0 0.0
      %6514 = vmatpush1.msra.mxu0 0.0
      %6515 = vmatprep.subr.mxu0 0.0
      %6516 = vmatpush1.msra.mxu0 0.0
      %6517 = vmatprep.subr.mxu0 0.0
      %6518 = vmatpush1.msra.mxu0 0.0
      %6519 = vmatprep.subr.mxu0 0.0
      %6520 = vmatpush1.msra.mxu0 0.0
      %6521 = vmatprep.subr.mxu0 0.0
      %v6522 = vand.u32 %v442, 4294901760
      %v6523 = vsub.f32 %v442, %v6522
      %6524 = vmatpush1.msra.mxu0 %v6523
      %6525 = vmatprep.subr.mxu0 0.0
      %v6526 = vand.u32 %v441, 4294901760
      %v6527 = vsub.f32 %v441, %v6526
      %6528 = vmatpush1.msra.mxu0 %v6527
      %6529 = vmatprep.subr.mxu0 0.0
      %6530 = vmatpush2.msra.mxu0 0.0
      %6531 = vmatprep.subr.mxu0 0.0
      %6532 = vmatpush2.msra.mxu0 0.0
      %6533 = vmatprep.subr.mxu0 0.0
      %6534 = vmatpush2.msra.mxu0 0.0
      %6535 = vmatprep.subr.mxu0 0.0
      %6536 = vmatpush2.msra.mxu0 0.0
      %6537 = vmatprep.subr.mxu0 0.0
      %6538 = vmatpush2.msra.mxu0 0.0
      %6539 = vmatprep.subr.mxu0 0.0
      %6540 = vmatpush2.msra.mxu0 0.0
      %6541 = vmatprep.subr.mxu0 0.0
      %6542 = vmatpush2.msra.mxu0 0.0
      %6543 = vmatprep.subr.mxu0 0.0
      %6544 = vmatpush2.msra.mxu0 0.0
      %6545 = vmatprep.subr.mxu0 0.0
      %6546 = vmatpush2.msra.mxu0 0.0
      %6547 = vmatprep.subr.mxu0 0.0
      %6548 = vmatpush2.msra.mxu0 0.0
      %6549 = vmatprep.subr.mxu0 0.0
      %6550 = vmatpush2.msra.mxu0 0.0
      %6551 = vmatprep.subr.mxu0 0.0
      %6552 = vmatpush2.msra.mxu0 0.0
      %6553 = vmatprep.subr.mxu0 0.0
      %6554 = vmatpush2.msra.mxu0 0.0
      %6555 = vmatprep.subr.mxu0 0.0
      %6556 = vmatpush2.msra.mxu0 0.0
      %6557 = vmatprep.subr.mxu0 0.0
      %6558 = vmatpush2.msra.mxu0 0.0
      %6559 = vmatprep.subr.mxu0 0.0
      %6560 = vmatpush2.msra.mxu0 0.0
      %6561 = vmatprep.mubr.f32.mxu0 0.0
      %v6562 = vand.u32 %v6333, 4294901760
      %v6563 = vsub.f32 %v6333, %v6562
      %6564 = vmatmul.mubr.f32.gmra.mxu0 %v6563
      %v6565 = vpop.f32.mrf.mxu0
      %v6566 = vadd.f32 %v6490, %v6565
      %v6567 = vpop.f32.mrf.mxu0
      %6568 = vdwg.mxu0
      %6569 = vmatprep.subr.mxu0 0.0
      %6570 = vmatpush1.msra.mxu0 0.0
      %6571 = vmatprep.subr.mxu0 0.0
      %6572 = vmatpush1.msra.mxu0 0.0
      %6573 = vmatprep.subr.mxu0 0.0
      %6574 = vmatpush1.msra.mxu0 0.0
      %6575 = vmatprep.subr.mxu0 0.0
      %6576 = vmatpush1.msra.mxu0 0.0
      %6577 = vmatprep.subr.mxu0 0.0
      %6578 = vmatpush1.msra.mxu0 0.0
      %6579 = vmatprep.subr.mxu0 0.0
      %6580 = vmatpush1.msra.mxu0 0.0
      %6581 = vmatprep.subr.mxu0 0.0
      %6582 = vmatpush1.msra.mxu0 0.0
      %6583 = vmatprep.subr.mxu0 0.0
      %6584 = vmatpush1.msra.mxu0 0.0
      %6585 = vmatprep.subr.mxu0 0.0
      %6586 = vmatpush1.msra.mxu0 0.0
      %6587 = vmatprep.subr.mxu0 0.0
      %6588 = vmatpush1.msra.mxu0 0.0
      %6589 = vmatprep.subr.mxu0 0.0
      %6590 = vmatpush1.msra.mxu0 0.0
      %6591 = vmatprep.subr.mxu0 0.0
      %6592 = vmatpush1.msra.mxu0 0.0
      %6593 = vmatprep.subr.mxu0 0.0
      %6594 = vmatpush1.msra.mxu0 0.0
      %6595 = vmatprep.subr.mxu0 0.0
      %6596 = vmatpush1.msra.mxu0 0.0
      %6597 = vmatprep.subr.mxu0 0.0
      %v6598 = vand.u32 %v442, 4294901760
      %6599 = vmatpush1.msra.mxu0 %v6598
      %6600 = vmatprep.subr.mxu0 0.0
      %v6601 = vand.u32 %v441, 4294901760
      %6602 = vmatpush1.msra.mxu0 %v6601
      %6603 = vmatprep.subr.mxu0 0.0
      %6604 = vmatpush2.msra.mxu0 0.0
      %6605 = vmatprep.subr.mxu0 0.0
      %6606 = vmatpush2.msra.mxu0 0.0
      %6607 = vmatprep.subr.mxu0 0.0
      %6608 = vmatpush2.msra.mxu0 0.0
      %6609 = vmatprep.subr.mxu0 0.0
      %6610 = vmatpush2.msra.mxu0 0.0
      %6611 = vmatprep.subr.mxu0 0.0
      %6612 = vmatpush2.msra.mxu0 0.0
      %6613 = vmatprep.subr.mxu0 0.0
      %6614 = vmatpush2.msra.mxu0 0.0
      %6615 = vmatprep.subr.mxu0 0.0
      %6616 = vmatpush2.msra.mxu0 0.0
      %6617 = vmatprep.subr.mxu0 0.0
      %6618 = vmatpush2.msra.mxu0 0.0
      %6619 = vmatprep.subr.mxu0 0.0
      %6620 = vmatpush2.msra.mxu0 0.0
      %6621 = vmatprep.subr.mxu0 0.0
      %6622 = vmatpush2.msra.mxu0 0.0
      %6623 = vmatprep.subr.mxu0 0.0
      %6624 = vmatpush2.msra.mxu0 0.0
      %6625 = vmatprep.subr.mxu0 0.0
      %6626 = vmatpush2.msra.mxu0 0.0
      %6627 = vmatprep.subr.mxu0 0.0
      %6628 = vmatpush2.msra.mxu0 0.0
      %6629 = vmatprep.subr.mxu0 0.0
      %6630 = vmatpush2.msra.mxu0 0.0
      %6631 = vmatprep.subr.mxu0 0.0
      %6632 = vmatpush2.msra.mxu0 0.0
      %6633 = vmatprep.subr.mxu0 0.0
      %6634 = vmatpush2.msra.mxu0 0.0
      %6635 = vmatprep.mubr.f32.mxu0 0.0
      %v6636 = vand.u32 %v6333, 4294901760
      %v6637 = vsub.f32 %v6333, %v6636
      %v6638 = vand.u32 %v6637, 4294901760
      %6639 = vmatmul.mubr.f32.gmra.mxu0 %v6638
      %v6640 = vpop.f32.mrf.mxu0
      %v6641 = vadd.f32 %v6566, %v6640
      %v6642 = vpop.f32.mrf.mxu0
      %6643 = vdwg.mxu0
      %6644 = vmatprep.subr.mxu0 0.0
      %6645 = vmatpush1.msra.mxu0 0.0
      %6646 = vmatprep.subr.mxu0 0.0
      %6647 = vmatpush1.msra.mxu0 0.0
      %6648 = vmatprep.subr.mxu0 0.0
      %6649 = vmatpush1.msra.mxu0 0.0
      %6650 = vmatprep.subr.mxu0 0.0
      %6651 = vmatpush1.msra.mxu0 0.0
      %6652 = vmatprep.subr.mxu0 0.0
      %6653 = vmatpush1.msra.mxu0 0.0
      %6654 = vmatprep.subr.mxu0 0.0
      %6655 = vmatpush1.msra.mxu0 0.0
      %6656 = vmatprep.subr.mxu0 0.0
      %6657 = vmatpush1.msra.mxu0 0.0
      %6658 = vmatprep.subr.mxu0 0.0
      %6659 = vmatpush1.msra.mxu0 0.0
      %6660 = vmatprep.subr.mxu0 0.0
      %6661 = vmatpush1.msra.mxu0 0.0
      %6662 = vmatprep.subr.mxu0 0.0
      %6663 = vmatpush1.msra.mxu0 0.0
      %6664 = vmatprep.subr.mxu0 0.0
      %6665 = vmatpush1.msra.mxu0 0.0
      %6666 = vmatprep.subr.mxu0 0.0
      %6667 = vmatpush1.msra.mxu0 0.0
      %6668 = vmatprep.subr.mxu0 0.0
      %6669 = vmatpush1.msra.mxu0 0.0
      %6670 = vmatprep.subr.mxu0 0.0
      %6671 = vmatpush1.msra.mxu0 0.0
      %6672 = vmatprep.subr.mxu0 0.0
      %v6673 = vand.u32 %v442, 4294901760
      %v6674 = vsub.f32 %v442, %v6673
      %v6675 = vand.u32 %v6674, 4294901760
      %6676 = vmatpush1.msra.mxu0 %v6675
      %6677 = vmatprep.subr.mxu0 0.0
      %v6678 = vand.u32 %v441, 4294901760
      %v6679 = vsub.f32 %v441, %v6678
      %v6680 = vand.u32 %v6679, 4294901760
      %6681 = vmatpush1.msra.mxu0 %v6680
      %6682 = vmatprep.subr.mxu0 0.0
      %6683 = vmatpush2.msra.mxu0 0.0
      %6684 = vmatprep.subr.mxu0 0.0
      %6685 = vmatpush2.msra.mxu0 0.0
      %6686 = vmatprep.subr.mxu0 0.0
      %6687 = vmatpush2.msra.mxu0 0.0
      %6688 = vmatprep.subr.mxu0 0.0
      %6689 = vmatpush2.msra.mxu0 0.0
      %6690 = vmatprep.subr.mxu0 0.0
      %6691 = vmatpush2.msra.mxu0 0.0
      %6692 = vmatprep.subr.mxu0 0.0
      %6693 = vmatpush2.msra.mxu0 0.0
      %6694 = vmatprep.subr.mxu0 0.0
      %6695 = vmatpush2.msra.mxu0 0.0
      %6696 = vmatprep.subr.mxu0 0.0
      %6697 = vmatpush2.msra.mxu0 0.0
      %6698 = vmatprep.subr.mxu0 0.0
      %6699 = vmatpush2.msra.mxu0 0.0
      %6700 = vmatprep.subr.mxu0 0.0
      %6701 = vmatpush2.msra.mxu0 0.0
      %6702 = vmatprep.subr.mxu0 0.0
      %6703 = vmatpush2.msra.mxu0 0.0
      %6704 = vmatprep.subr.mxu0 0.0
      %6705 = vmatpush2.msra.mxu0 0.0
      %6706 = vmatprep.subr.mxu0 0.0
      %6707 = vmatpush2.msra.mxu0 0.0
      %6708 = vmatprep.subr.mxu0 0.0
      %6709 = vmatpush2.msra.mxu0 0.0
      %6710 = vmatprep.subr.mxu0 0.0
      %6711 = vmatpush2.msra.mxu0 0.0
      %6712 = vmatprep.subr.mxu0 0.0
      %6713 = vmatpush2.msra.mxu0 0.0
      %6714 = vmatprep.mubr.f32.mxu0 0.0
      %v6715 = vand.u32 %v6333, 4294901760
      %6716 = vmatmul.mubr.f32.gmra.mxu0 %v6715
      %v6717 = vpop.f32.mrf.mxu0
      %v6718 = vadd.f32 %v6641, %v6717
      %v6719 = vpop.f32.mrf.mxu0
      %6720 = vdwg.mxu0
      %6721 = vmatprep.subr.mxu0 0.0
      %6722 = vmatpush1.msra.mxu0 0.0
      %6723 = vmatprep.subr.mxu0 0.0
      %6724 = vmatpush1.msra.mxu0 0.0
      %6725 = vmatprep.subr.mxu0 0.0
      %6726 = vmatpush1.msra.mxu0 0.0
      %6727 = vmatprep.subr.mxu0 0.0
      %6728 = vmatpush1.msra.mxu0 0.0
      %6729 = vmatprep.subr.mxu0 0.0
      %6730 = vmatpush1.msra.mxu0 0.0
      %6731 = vmatprep.subr.mxu0 0.0
      %6732 = vmatpush1.msra.mxu0 0.0
      %6733 = vmatprep.subr.mxu0 0.0
      %6734 = vmatpush1.msra.mxu0 0.0
      %6735 = vmatprep.subr.mxu0 0.0
      %6736 = vmatpush1.msra.mxu0 0.0
      %6737 = vmatprep.subr.mxu0 0.0
      %6738 = vmatpush1.msra.mxu0 0.0
      %6739 = vmatprep.subr.mxu0 0.0
      %6740 = vmatpush1.msra.mxu0 0.0
      %6741 = vmatprep.subr.mxu0 0.0
      %6742 = vmatpush1.msra.mxu0 0.0
      %6743 = vmatprep.subr.mxu0 0.0
      %6744 = vmatpush1.msra.mxu0 0.0
      %6745 = vmatprep.subr.mxu0 0.0
      %6746 = vmatpush1.msra.mxu0 0.0
      %6747 = vmatprep.subr.mxu0 0.0
      %6748 = vmatpush1.msra.mxu0 0.0
      %6749 = vmatprep.subr.mxu0 0.0
      %v6750 = vand.u32 %v442, 4294901760
      %6751 = vmatpush1.msra.mxu0 %v6750
      %6752 = vmatprep.subr.mxu0 0.0
      %v6753 = vand.u32 %v441, 4294901760
      %6754 = vmatpush1.msra.mxu0 %v6753
      %6755 = vmatprep.subr.mxu0 0.0
      %6756 = vmatpush2.msra.mxu0 0.0
      %6757 = vmatprep.subr.mxu0 0.0
      %6758 = vmatpush2.msra.mxu0 0.0
      %6759 = vmatprep.subr.mxu0 0.0
      %6760 = vmatpush2.msra.mxu0 0.0
      %6761 = vmatprep.subr.mxu0 0.0
      %6762 = vmatpush2.msra.mxu0 0.0
      %6763 = vmatprep.subr.mxu0 0.0
      %6764 = vmatpush2.msra.mxu0 0.0
      %6765 = vmatprep.subr.mxu0 0.0
      %6766 = vmatpush2.msra.mxu0 0.0
      %6767 = vmatprep.subr.mxu0 0.0
      %6768 = vmatpush2.msra.mxu0 0.0
      %6769 = vmatprep.subr.mxu0 0.0
      %6770 = vmatpush2.msra.mxu0 0.0
      %6771 = vmatprep.subr.mxu0 0.0
      %6772 = vmatpush2.msra.mxu0 0.0
      %6773 = vmatprep.subr.mxu0 0.0
      %6774 = vmatpush2.msra.mxu0 0.0
      %6775 = vmatprep.subr.mxu0 0.0
      %6776 = vmatpush2.msra.mxu0 0.0
      %6777 = vmatprep.subr.mxu0 0.0
      %6778 = vmatpush2.msra.mxu0 0.0
      %6779 = vmatprep.subr.mxu0 0.0
      %6780 = vmatpush2.msra.mxu0 0.0
      %6781 = vmatprep.subr.mxu0 0.0
      %6782 = vmatpush2.msra.mxu0 0.0
      %6783 = vmatprep.subr.mxu0 0.0
      %6784 = vmatpush2.msra.mxu0 0.0
      %6785 = vmatprep.subr.mxu0 0.0
      %6786 = vmatpush2.msra.mxu0 0.0
      %6787 = vmatprep.mubr.f32.mxu0 0.0
      %v6788 = vand.u32 %v6333, 4294901760
      %6789 = vmatmul.mubr.f32.gmra.mxu0 %v6788
      %v6790 = vpop.f32.mrf.mxu0
      %v6791 = vadd.f32 %v6718, %v6790
      %v6792 = vpop.f32.mrf.mxu0
      %6793 = vdwg.mxu0
      %6794 = vmatprep.subr.mxu0 0.0
      %6795 = vmatpush1.msra.mxu0 0.0
      %6796 = vmatprep.subr.mxu0 0.0
      %6797 = vmatpush1.msra.mxu0 0.0
      %6798 = vmatprep.subr.mxu0 0.0
      %6799 = vmatpush1.msra.mxu0 0.0
      %6800 = vmatprep.subr.mxu0 0.0
      %6801 = vmatpush1.msra.mxu0 0.0
      %6802 = vmatprep.subr.mxu0 0.0
      %6803 = vmatpush1.msra.mxu0 0.0
      %6804 = vmatprep.subr.mxu0 0.0
      %6805 = vmatpush1.msra.mxu0 0.0
      %6806 = vmatprep.subr.mxu0 0.0
      %6807 = vmatpush1.msra.mxu0 0.0
      %6808 = vmatprep.subr.mxu0 0.0
      %6809 = vmatpush1.msra.mxu0 0.0
      %6810 = vmatprep.subr.mxu0 0.0
      %6811 = vmatpush1.msra.mxu0 0.0
      %6812 = vmatprep.subr.mxu0 0.0
      %6813 = vmatpush1.msra.mxu0 0.0
      %6814 = vmatprep.subr.mxu0 0.0
      %6815 = vmatpush1.msra.mxu0 0.0
      %6816 = vmatprep.subr.mxu0 0.0
      %6817 = vmatpush1.msra.mxu0 0.0
      %6818 = vmatprep.subr.mxu0 0.0
      %6819 = vmatpush1.msra.mxu0 0.0
      %6820 = vmatprep.subr.mxu0 0.0
      %6821 = vmatpush1.msra.mxu0 0.0
      %6822 = vmatprep.subr.mxu0 0.0
      %v6823 = vand.u32 %v444, 4294901760
      %6824 = vmatpush1.msra.mxu0 %v6823
      %6825 = vmatprep.subr.mxu0 0.0
      %v6826 = vand.u32 %v443, 4294901760
      %6827 = vmatpush1.msra.mxu0 %v6826
      %6828 = vmatprep.subr.mxu0 0.0
      %6829 = vmatpush2.msra.mxu0 0.0
      %6830 = vmatprep.subr.mxu0 0.0
      %6831 = vmatpush2.msra.mxu0 0.0
      %6832 = vmatprep.subr.mxu0 0.0
      %6833 = vmatpush2.msra.mxu0 0.0
      %6834 = vmatprep.subr.mxu0 0.0
      %6835 = vmatpush2.msra.mxu0 0.0
      %6836 = vmatprep.subr.mxu0 0.0
      %6837 = vmatpush2.msra.mxu0 0.0
      %6838 = vmatprep.subr.mxu0 0.0
      %6839 = vmatpush2.msra.mxu0 0.0
      %6840 = vmatprep.subr.mxu0 0.0
      %6841 = vmatpush2.msra.mxu0 0.0
      %6842 = vmatprep.subr.mxu0 0.0
      %6843 = vmatpush2.msra.mxu0 0.0
      %6844 = vmatprep.subr.mxu0 0.0
      %6845 = vmatpush2.msra.mxu0 0.0
      %6846 = vmatprep.subr.mxu0 0.0
      %6847 = vmatpush2.msra.mxu0 0.0
      %6848 = vmatprep.subr.mxu0 0.0
      %6849 = vmatpush2.msra.mxu0 0.0
      %6850 = vmatprep.subr.mxu0 0.0
      %6851 = vmatpush2.msra.mxu0 0.0
      %6852 = vmatprep.subr.mxu0 0.0
      %6853 = vmatpush2.msra.mxu0 0.0
      %6854 = vmatprep.subr.mxu0 0.0
      %6855 = vmatpush2.msra.mxu0 0.0
      %6856 = vmatprep.subr.mxu0 0.0
      %6857 = vmatpush2.msra.mxu0 0.0
      %6858 = vmatprep.subr.mxu0 0.0
      %6859 = vmatpush2.msra.mxu0 0.0
      %6860 = vmatprep.mubr.f32.mxu0 0.0
      %v6861 = vand.u32 %v6333, 4294901760
      %v6862 = vsub.f32 %v6333, %v6861
      %v6863 = vand.u32 %v6862, 4294901760
      %v6864 = vsub.f32 %v6862, %v6863
      %v6865 = vand.u32 %v6864, 4294901760
      %6866 = vmatmul.mubr.f32.gmra.mxu0 %v6865
      %v6867 = vpop.f32.mrf.mxu0
      %v6868 = vadd.f32 0.0, %v6867
      %v6869 = vpop.f32.mrf.mxu0
      %6870 = vdwg.mxu0
      %6871 = vmatprep.subr.mxu0 0.0
      %6872 = vmatpush1.msra.mxu0 0.0
      %6873 = vmatprep.subr.mxu0 0.0
      %6874 = vmatpush1.msra.mxu0 0.0
      %6875 = vmatprep.subr.mxu0 0.0
      %6876 = vmatpush1.msra.mxu0 0.0
      %6877 = vmatprep.subr.mxu0 0.0
      %6878 = vmatpush1.msra.mxu0 0.0
      %6879 = vmatprep.subr.mxu0 0.0
      %6880 = vmatpush1.msra.mxu0 0.0
      %6881 = vmatprep.subr.mxu0 0.0
      %6882 = vmatpush1.msra.mxu0 0.0
      %6883 = vmatprep.subr.mxu0 0.0
      %6884 = vmatpush1.msra.mxu0 0.0
      %6885 = vmatprep.subr.mxu0 0.0
      %6886 = vmatpush1.msra.mxu0 0.0
      %6887 = vmatprep.subr.mxu0 0.0
      %6888 = vmatpush1.msra.mxu0 0.0
      %6889 = vmatprep.subr.mxu0 0.0
      %6890 = vmatpush1.msra.mxu0 0.0
      %6891 = vmatprep.subr.mxu0 0.0
      %6892 = vmatpush1.msra.mxu0 0.0
      %6893 = vmatprep.subr.mxu0 0.0
      %6894 = vmatpush1.msra.mxu0 0.0
      %6895 = vmatprep.subr.mxu0 0.0
      %6896 = vmatpush1.msra.mxu0 0.0
      %6897 = vmatprep.subr.mxu0 0.0
      %6898 = vmatpush1.msra.mxu0 0.0
      %6899 = vmatprep.subr.mxu0 0.0
      %v6900 = vand.u32 %v444, 4294901760
      %v6901 = vsub.f32 %v444, %v6900
      %v6902 = vand.u32 %v6901, 4294901760
      %v6903 = vsub.f32 %v6901, %v6902
      %v6904 = vand.u32 %v6903, 4294901760
      %6905 = vmatpush1.msra.mxu0 %v6904
      %6906 = vmatprep.subr.mxu0 0.0
      %v6907 = vand.u32 %v443, 4294901760
      %v6908 = vsub.f32 %v443, %v6907
      %v6909 = vand.u32 %v6908, 4294901760
      %v6910 = vsub.f32 %v6908, %v6909
      %v6911 = vand.u32 %v6910, 4294901760
      %6912 = vmatpush1.msra.mxu0 %v6911
      %6913 = vmatprep.subr.mxu0 0.0
      %6914 = vmatpush2.msra.mxu0 0.0
      %6915 = vmatprep.subr.mxu0 0.0
      %6916 = vmatpush2.msra.mxu0 0.0
      %6917 = vmatprep.subr.mxu0 0.0
      %6918 = vmatpush2.msra.mxu0 0.0
      %6919 = vmatprep.subr.mxu0 0.0
      %6920 = vmatpush2.msra.mxu0 0.0
      %6921 = vmatprep.subr.mxu0 0.0
      %6922 = vmatpush2.msra.mxu0 0.0
      %6923 = vmatprep.subr.mxu0 0.0
      %6924 = vmatpush2.msra.mxu0 0.0
      %6925 = vmatprep.subr.mxu0 0.0
      %6926 = vmatpush2.msra.mxu0 0.0
      %6927 = vmatprep.subr.mxu0 0.0
      %6928 = vmatpush2.msra.mxu0 0.0
      %6929 = vmatprep.subr.mxu0 0.0
      %6930 = vmatpush2.msra.mxu0 0.0
      %6931 = vmatprep.subr.mxu0 0.0
      %6932 = vmatpush2.msra.mxu0 0.0
      %6933 = vmatprep.subr.mxu0 0.0
      %6934 = vmatpush2.msra.mxu0 0.0
      %6935 = vmatprep.subr.mxu0 0.0
      %6936 = vmatpush2.msra.mxu0 0.0
      %6937 = vmatprep.subr.mxu0 0.0
      %6938 = vmatpush2.msra.mxu0 0.0
      %6939 = vmatprep.subr.mxu0 0.0
      %6940 = vmatpush2.msra.mxu0 0.0
      %6941 = vmatprep.subr.mxu0 0.0
      %6942 = vmatpush2.msra.mxu0 0.0
      %6943 = vmatprep.subr.mxu0 0.0
      %6944 = vmatpush2.msra.mxu0 0.0
      %6945 = vmatprep.mubr.f32.mxu0 0.0
      %v6946 = vand.u32 %v6333, 4294901760
      %6947 = vmatmul.mubr.f32.gmra.mxu0 %v6946
      %v6948 = vpop.f32.mrf.mxu0
      %v6949 = vadd.f32 %v6868, %v6948
      %v6950 = vpop.f32.mrf.mxu0
      %6951 = vdwg.mxu0
      %6952 = vmatprep.subr.mxu0 0.0
      %6953 = vmatpush1.msra.mxu0 0.0
      %6954 = vmatprep.subr.mxu0 0.0
      %6955 = vmatpush1.msra.mxu0 0.0
      %6956 = vmatprep.subr.mxu0 0.0
      %6957 = vmatpush1.msra.mxu0 0.0
      %6958 = vmatprep.subr.mxu0 0.0
      %6959 = vmatpush1.msra.mxu0 0.0
      %6960 = vmatprep.subr.mxu0 0.0
      %6961 = vmatpush1.msra.mxu0 0.0
      %6962 = vmatprep.subr.mxu0 0.0
      %6963 = vmatpush1.msra.mxu0 0.0
      %6964 = vmatprep.subr.mxu0 0.0
      %6965 = vmatpush1.msra.mxu0 0.0
      %6966 = vmatprep.subr.mxu0 0.0
      %6967 = vmatpush1.msra.mxu0 0.0
      %6968 = vmatprep.subr.mxu0 0.0
      %6969 = vmatpush1.msra.mxu0 0.0
      %6970 = vmatprep.subr.mxu0 0.0
      %6971 = vmatpush1.msra.mxu0 0.0
      %6972 = vmatprep.subr.mxu0 0.0
      %6973 = vmatpush1.msra.mxu0 0.0
      %6974 = vmatprep.subr.mxu0 0.0
      %6975 = vmatpush1.msra.mxu0 0.0
      %6976 = vmatprep.subr.mxu0 0.0
      %6977 = vmatpush1.msra.mxu0 0.0
      %6978 = vmatprep.subr.mxu0 0.0
      %6979 = vmatpush1.msra.mxu0 0.0
      %6980 = vmatprep.subr.mxu0 0.0
      %v6981 = vand.u32 %v444, 4294901760
      %v6982 = vsub.f32 %v444, %v6981
      %6983 = vmatpush1.msra.mxu0 %v6982
      %6984 = vmatprep.subr.mxu0 0.0
      %v6985 = vand.u32 %v443, 4294901760
      %v6986 = vsub.f32 %v443, %v6985
      %6987 = vmatpush1.msra.mxu0 %v6986
      %6988 = vmatprep.subr.mxu0 0.0
      %6989 = vmatpush2.msra.mxu0 0.0
      %6990 = vmatprep.subr.mxu0 0.0
      %6991 = vmatpush2.msra.mxu0 0.0
      %6992 = vmatprep.subr.mxu0 0.0
      %6993 = vmatpush2.msra.mxu0 0.0
      %6994 = vmatprep.subr.mxu0 0.0
      %6995 = vmatpush2.msra.mxu0 0.0
      %6996 = vmatprep.subr.mxu0 0.0
      %6997 = vmatpush2.msra.mxu0 0.0
      %6998 = vmatprep.subr.mxu0 0.0
      %6999 = vmatpush2.msra.mxu0 0.0
      %7000 = vmatprep.subr.mxu0 0.0
      %7001 = vmatpush2.msra.mxu0 0.0
      %7002 = vmatprep.subr.mxu0 0.0
      %7003 = vmatpush2.msra.mxu0 0.0
      %7004 = vmatprep.subr.mxu0 0.0
      %7005 = vmatpush2.msra.mxu0 0.0
      %7006 = vmatprep.subr.mxu0 0.0
      %7007 = vmatpush2.msra.mxu0 0.0
      %7008 = vmatprep.subr.mxu0 0.0
      %7009 = vmatpush2.msra.mxu0 0.0
      %7010 = vmatprep.subr.mxu0 0.0
      %7011 = vmatpush2.msra.mxu0 0.0
      %7012 = vmatprep.subr.mxu0 0.0
      %7013 = vmatpush2.msra.mxu0 0.0
      %7014 = vmatprep.subr.mxu0 0.0
      %7015 = vmatpush2.msra.mxu0 0.0
      %7016 = vmatprep.subr.mxu0 0.0
      %7017 = vmatpush2.msra.mxu0 0.0
      %7018 = vmatprep.subr.mxu0 0.0
      %7019 = vmatpush2.msra.mxu0 0.0
      %7020 = vmatprep.mubr.f32.mxu0 0.0
      %v7021 = vand.u32 %v6333, 4294901760
      %v7022 = vsub.f32 %v6333, %v7021
      %7023 = vmatmul.mubr.f32.gmra.mxu0 %v7022
      %v7024 = vpop.f32.mrf.mxu0
      %v7025 = vadd.f32 %v6949, %v7024
      %v7026 = vpop.f32.mrf.mxu0
      %7027 = vdwg.mxu0
      %7028 = vmatprep.subr.mxu0 0.0
      %7029 = vmatpush1.msra.mxu0 0.0
      %7030 = vmatprep.subr.mxu0 0.0
      %7031 = vmatpush1.msra.mxu0 0.0
      %7032 = vmatprep.subr.mxu0 0.0
      %7033 = vmatpush1.msra.mxu0 0.0
      %7034 = vmatprep.subr.mxu0 0.0
      %7035 = vmatpush1.msra.mxu0 0.0
      %7036 = vmatprep.subr.mxu0 0.0
      %7037 = vmatpush1.msra.mxu0 0.0
      %7038 = vmatprep.subr.mxu0 0.0
      %7039 = vmatpush1.msra.mxu0 0.0
      %7040 = vmatprep.subr.mxu0 0.0
      %7041 = vmatpush1.msra.mxu0 0.0
      %7042 = vmatprep.subr.mxu0 0.0
      %7043 = vmatpush1.msra.mxu0 0.0
      %7044 = vmatprep.subr.mxu0 0.0
      %7045 = vmatpush1.msra.mxu0 0.0
      %7046 = vmatprep.subr.mxu0 0.0
      %7047 = vmatpush1.msra.mxu0 0.0
      %7048 = vmatprep.subr.mxu0 0.0
      %7049 = vmatpush1.msra.mxu0 0.0
      %7050 = vmatprep.subr.mxu0 0.0
      %7051 = vmatpush1.msra.mxu0 0.0
      %7052 = vmatprep.subr.mxu0 0.0
      %7053 = vmatpush1.msra.mxu0 0.0
      %7054 = vmatprep.subr.mxu0 0.0
      %7055 = vmatpush1.msra.mxu0 0.0
      %7056 = vmatprep.subr.mxu0 0.0
      %v7057 = vand.u32 %v444, 4294901760
      %7058 = vmatpush1.msra.mxu0 %v7057
      %7059 = vmatprep.subr.mxu0 0.0
      %v7060 = vand.u32 %v443, 4294901760
      %7061 = vmatpush1.msra.mxu0 %v7060
      %7062 = vmatprep.subr.mxu0 0.0
      %7063 = vmatpush2.msra.mxu0 0.0
      %7064 = vmatprep.subr.mxu0 0.0
      %7065 = vmatpush2.msra.mxu0 0.0
      %7066 = vmatprep.subr.mxu0 0.0
      %7067 = vmatpush2.msra.mxu0 0.0
      %7068 = vmatprep.subr.mxu0 0.0
      %7069 = vmatpush2.msra.mxu0 0.0
      %7070 = vmatprep.subr.mxu0 0.0
      %7071 = vmatpush2.msra.mxu0 0.0
      %7072 = vmatprep.subr.mxu0 0.0
      %7073 = vmatpush2.msra.mxu0 0.0
      %7074 = vmatprep.subr.mxu0 0.0
      %7075 = vmatpush2.msra.mxu0 0.0
      %7076 = vmatprep.subr.mxu0 0.0
      %7077 = vmatpush2.msra.mxu0 0.0
      %7078 = vmatprep.subr.mxu0 0.0
      %7079 = vmatpush2.msra.mxu0 0.0
      %7080 = vmatprep.subr.mxu0 0.0
      %7081 = vmatpush2.msra.mxu0 0.0
      %7082 = vmatprep.subr.mxu0 0.0
      %7083 = vmatpush2.msra.mxu0 0.0
      %7084 = vmatprep.subr.mxu0 0.0
      %7085 = vmatpush2.msra.mxu0 0.0
      %7086 = vmatprep.subr.mxu0 0.0
      %7087 = vmatpush2.msra.mxu0 0.0
      %7088 = vmatprep.subr.mxu0 0.0
      %7089 = vmatpush2.msra.mxu0 0.0
      %7090 = vmatprep.subr.mxu0 0.0
      %7091 = vmatpush2.msra.mxu0 0.0
      %7092 = vmatprep.subr.mxu0 0.0
      %7093 = vmatpush2.msra.mxu0 0.0
      %7094 = vmatprep.mubr.f32.mxu0 0.0
      %v7095 = vand.u32 %v6333, 4294901760
      %v7096 = vsub.f32 %v6333, %v7095
      %v7097 = vand.u32 %v7096, 4294901760
      %7098 = vmatmul.mubr.f32.gmra.mxu0 %v7097
      %v7099 = vpop.f32.mrf.mxu0
      %v7100 = vadd.f32 %v7025, %v7099
      %v7101 = vpop.f32.mrf.mxu0
      %7102 = vdwg.mxu0
      %7103 = vmatprep.subr.mxu0 0.0
      %7104 = vmatpush1.msra.mxu0 0.0
      %7105 = vmatprep.subr.mxu0 0.0
      %7106 = vmatpush1.msra.mxu0 0.0
      %7107 = vmatprep.subr.mxu0 0.0
      %7108 = vmatpush1.msra.mxu0 0.0
      %7109 = vmatprep.subr.mxu0 0.0
      %7110 = vmatpush1.msra.mxu0 0.0
      %7111 = vmatprep.subr.mxu0 0.0
      %7112 = vmatpush1.msra.mxu0 0.0
      %7113 = vmatprep.subr.mxu0 0.0
      %7114 = vmatpush1.msra.mxu0 0.0
      %7115 = vmatprep.subr.mxu0 0.0
      %7116 = vmatpush1.msra.mxu0 0.0
      %7117 = vmatprep.subr.mxu0 0.0
      %7118 = vmatpush1.msra.mxu0 0.0
      %7119 = vmatprep.subr.mxu0 0.0
      %7120 = vmatpush1.msra.mxu0 0.0
      %7121 = vmatprep.subr.mxu0 0.0
      %7122 = vmatpush1.msra.mxu0 0.0
      %7123 = vmatprep.subr.mxu0 0.0
      %7124 = vmatpush1.msra.mxu0 0.0
      %7125 = vmatprep.subr.mxu0 0.0
      %7126 = vmatpush1.msra.mxu0 0.0
      %7127 = vmatprep.subr.mxu0 0.0
      %7128 = vmatpush1.msra.mxu0 0.0
      %7129 = vmatprep.subr.mxu0 0.0
      %7130 = vmatpush1.msra.mxu0 0.0
      %7131 = vmatprep.subr.mxu0 0.0
      %v7132 = vand.u32 %v444, 4294901760
      %v7133 = vsub.f32 %v444, %v7132
      %v7134 = vand.u32 %v7133, 4294901760
      %7135 = vmatpush1.msra.mxu0 %v7134
      %7136 = vmatprep.subr.mxu0 0.0
      %v7137 = vand.u32 %v443, 4294901760
      %v7138 = vsub.f32 %v443, %v7137
      %v7139 = vand.u32 %v7138, 4294901760
      %7140 = vmatpush1.msra.mxu0 %v7139
      %7141 = vmatprep.subr.mxu0 0.0
      %7142 = vmatpush2.msra.mxu0 0.0
      %7143 = vmatprep.subr.mxu0 0.0
      %7144 = vmatpush2.msra.mxu0 0.0
      %7145 = vmatprep.subr.mxu0 0.0
      %7146 = vmatpush2.msra.mxu0 0.0
      %7147 = vmatprep.subr.mxu0 0.0
      %7148 = vmatpush2.msra.mxu0 0.0
      %7149 = vmatprep.subr.mxu0 0.0
      %7150 = vmatpush2.msra.mxu0 0.0
      %7151 = vmatprep.subr.mxu0 0.0
      %7152 = vmatpush2.msra.mxu0 0.0
      %7153 = vmatprep.subr.mxu0 0.0
      %7154 = vmatpush2.msra.mxu0 0.0
      %7155 = vmatprep.subr.mxu0 0.0
      %7156 = vmatpush2.msra.mxu0 0.0
      %7157 = vmatprep.subr.mxu0 0.0
      %7158 = vmatpush2.msra.mxu0 0.0
      %7159 = vmatprep.subr.mxu0 0.0
      %7160 = vmatpush2.msra.mxu0 0.0
      %7161 = vmatprep.subr.mxu0 0.0
      %7162 = vmatpush2.msra.mxu0 0.0
      %7163 = vmatprep.subr.mxu0 0.0
      %7164 = vmatpush2.msra.mxu0 0.0
      %7165 = vmatprep.subr.mxu0 0.0
      %7166 = vmatpush2.msra.mxu0 0.0
      %7167 = vmatprep.subr.mxu0 0.0
      %7168 = vmatpush2.msra.mxu0 0.0
      %7169 = vmatprep.subr.mxu0 0.0
      %7170 = vmatpush2.msra.mxu0 0.0
      %7171 = vmatprep.subr.mxu0 0.0
      %7172 = vmatpush2.msra.mxu0 0.0
      %7173 = vmatprep.mubr.f32.mxu0 0.0
      %v7174 = vand.u32 %v6333, 4294901760
      %7175 = vmatmul.mubr.f32.gmra.mxu0 %v7174
      %v7176 = vpop.f32.mrf.mxu0
      %v7177 = vadd.f32 %v7100, %v7176
      %v7178 = vpop.f32.mrf.mxu0
      %7179 = vdwg.mxu0
      %7180 = vmatprep.subr.mxu0 0.0
      %7181 = vmatpush1.msra.mxu0 0.0
      %7182 = vmatprep.subr.mxu0 0.0
      %7183 = vmatpush1.msra.mxu0 0.0
      %7184 = vmatprep.subr.mxu0 0.0
      %7185 = vmatpush1.msra.mxu0 0.0
      %7186 = vmatprep.subr.mxu0 0.0
      %7187 = vmatpush1.msra.mxu0 0.0
      %7188 = vmatprep.subr.mxu0 0.0
      %7189 = vmatpush1.msra.mxu0 0.0
      %7190 = vmatprep.subr.mxu0 0.0
      %7191 = vmatpush1.msra.mxu0 0.0
      %7192 = vmatprep.subr.mxu0 0.0
      %7193 = vmatpush1.msra.mxu0 0.0
      %7194 = vmatprep.subr.mxu0 0.0
      %7195 = vmatpush1.msra.mxu0 0.0
      %7196 = vmatprep.subr.mxu0 0.0
      %7197 = vmatpush1.msra.mxu0 0.0
      %7198 = vmatprep.subr.mxu0 0.0
      %7199 = vmatpush1.msra.mxu0 0.0
      %7200 = vmatprep.subr.mxu0 0.0
      %7201 = vmatpush1.msra.mxu0 0.0
      %7202 = vmatprep.subr.mxu0 0.0
      %7203 = vmatpush1.msra.mxu0 0.0
      %7204 = vmatprep.subr.mxu0 0.0
      %7205 = vmatpush1.msra.mxu0 0.0
      %7206 = vmatprep.subr.mxu0 0.0
      %7207 = vmatpush1.msra.mxu0 0.0
      %7208 = vmatprep.subr.mxu0 0.0
      %v7209 = vand.u32 %v444, 4294901760
      %7210 = vmatpush1.msra.mxu0 %v7209
      %7211 = vmatprep.subr.mxu0 0.0
      %v7212 = vand.u32 %v443, 4294901760
      %7213 = vmatpush1.msra.mxu0 %v7212
      %7214 = vmatprep.subr.mxu0 0.0
      %7215 = vmatpush2.msra.mxu0 0.0
      %7216 = vmatprep.subr.mxu0 0.0
      %7217 = vmatpush2.msra.mxu0 0.0
      %7218 = vmatprep.subr.mxu0 0.0
      %7219 = vmatpush2.msra.mxu0 0.0
      %7220 = vmatprep.subr.mxu0 0.0
      %7221 = vmatpush2.msra.mxu0 0.0
      %7222 = vmatprep.subr.mxu0 0.0
      %7223 = vmatpush2.msra.mxu0 0.0
      %7224 = vmatprep.subr.mxu0 0.0
      %7225 = vmatpush2.msra.mxu0 0.0
      %7226 = vmatprep.subr.mxu0 0.0
      %7227 = vmatpush2.msra.mxu0 0.0
      %7228 = vmatprep.subr.mxu0 0.0
      %7229 = vmatpush2.msra.mxu0 0.0
      %7230 = vmatprep.subr.mxu0 0.0
      %7231 = vmatpush2.msra.mxu0 0.0
      %7232 = vmatprep.subr.mxu0 0.0
      %7233 = vmatpush2.msra.mxu0 0.0
      %7234 = vmatprep.subr.mxu0 0.0
      %7235 = vmatpush2.msra.mxu0 0.0
      %7236 = vmatprep.subr.mxu0 0.0
      %7237 = vmatpush2.msra.mxu0 0.0
      %7238 = vmatprep.subr.mxu0 0.0
      %7239 = vmatpush2.msra.mxu0 0.0
      %7240 = vmatprep.subr.mxu0 0.0
      %7241 = vmatpush2.msra.mxu0 0.0
      %7242 = vmatprep.subr.mxu0 0.0
      %7243 = vmatpush2.msra.mxu0 0.0
      %7244 = vmatprep.subr.mxu0 0.0
      %7245 = vmatpush2.msra.mxu0 0.0
      %7246 = vmatprep.mubr.f32.mxu0 0.0
      %v7247 = vand.u32 %v6333, 4294901760
      %7248 = vmatmul.mubr.f32.gmra.mxu0 %v7247
      %v7249 = vpop.f32.mrf.mxu0
      %v7250 = vadd.f32 %v7177, %v7249
      %v7251 = vpop.f32.mrf.mxu0
      %7252 = vdwg.mxu0
      %v7253 = vmax.f32 %v6791, %v7250
      %7254 = vxpose.xlu0.b32.start [1/16] %v7253, 128
      %7255 = vxpose.xlu0.b32.cont [2/16] 0.0, 128
      %7256 = vxpose.xlu0.b32.cont [3/16] 0.0, 128
      %7257 = vxpose.xlu0.b32.cont [4/16] 0.0, 128
      %7258 = vxpose.xlu0.b32.cont [5/16] 0.0, 128
      %7259 = vxpose.xlu0.b32.cont [6/16] 0.0, 128
      %7260 = vxpose.xlu0.b32.cont [7/16] 0.0, 128
      %7261 = vxpose.xlu0.b32.cont [8/16] 0.0, 128
      %7262 = vxpose.xlu0.b32.cont [9/16] 0.0, 128
      %7263 = vxpose.xlu0.b32.cont [10/16] 0.0, 128
      %7264 = vxpose.xlu0.b32.cont [11/16] 0.0, 128
      %7265 = vxpose.xlu0.b32.cont [12/16] 0.0, 128
      %7266 = vxpose.xlu0.b32.cont [13/16] 0.0, 128
      %7267 = vxpose.xlu0.b32.cont [14/16] 0.0, 128
      %7268 = vxpose.xlu0.b32.cont [15/16] 0.0, 128
      %7269 = vxpose.xlu0.b32.end [16/16] 0.0, 128
      %v7270 = vpop.trf.xlu0
      %v7271 = vpop.trf.xlu0
      %v7272 = vpop.trf.xlu0
      %v7273 = vpop.trf.xlu0
      %v7274 = vpop.trf.xlu0
      %v7275 = vpop.trf.xlu0
      %v7276 = vpop.trf.xlu0
      %v7277 = vpop.trf.xlu0
      %v7278 = vpop.trf.xlu0
      %v7279 = vpop.trf.xlu0
      %v7280 = vpop.trf.xlu0
      %v7281 = vpop.trf.xlu0
      %v7282 = vpop.trf.xlu0
      %v7283 = vpop.trf.xlu0
      %v7284 = vpop.trf.xlu0
      %v7285 = vpop.trf.xlu0
      %s7286 = scalar_lea.vmem [#allocation2], 112
      %7287 = vst.msk [vmem:[%s7286 + $0x1] sm:$0xff] %vm385, %v7270
      %v7288 = vld [vmem:[%s380 + $0xe] sm:$0x1]
      %v7289 = vld [vmem:[%s380 + $0x1e] sm:$0x1]
      %v7290 = vld [vmem:[%s380 + $0x2e] sm:$0x1]
      %v7291 = vld [vmem:[%s380 + $0x3e] sm:$0x1]
      %v7292 = vld [vmem:[%s380 + $0xf] sm:$0x1]
      %v7293 = vld [vmem:[%s380 + $0x1f] sm:$0x1]
      %v7294 = vld [vmem:[%s380 + $0x2f] sm:$0x1]
      %v7295 = vld [vmem:[%s380 + $0x3f] sm:$0x1]
      %v7296 = vmax.f32 %v7288, %v7292
      %v7297 = vmax.f32 %v7289, %v7293
      %v7298 = vmax.f32 %v7290, %v7294
      %v7299 = vmax.f32 %v7291, %v7295
      %v7304 = vrot.slane %v7297, 7
      %v7305 = vsel %vm462, %v7304, %v7296
      %v7306 = vrot.slane %v7298, 6
      %v7307 = vsel %vm465, %v7306, %v7305
      %v7308 = vrot.slane %v7299, 5
      %v7309 = vsel %vm468, %v7308, %v7307
      %v7310 = vsel %vm470, %v7309, 0
      %7312 = vmatprep.subr.mxu0 0.0
      %7313 = vmatpush1.msra.mxu0 0.0
      %7314 = vmatprep.subr.mxu0 0.0
      %7315 = vmatpush1.msra.mxu0 0.0
      %7316 = vmatprep.subr.mxu0 0.0
      %7317 = vmatpush1.msra.mxu0 0.0
      %7318 = vmatprep.subr.mxu0 0.0
      %7319 = vmatpush1.msra.mxu0 0.0
      %7320 = vmatprep.subr.mxu0 0.0
      %7321 = vmatpush1.msra.mxu0 0.0
      %7322 = vmatprep.subr.mxu0 0.0
      %7323 = vmatpush1.msra.mxu0 0.0
      %7324 = vmatprep.subr.mxu0 0.0
      %7325 = vmatpush1.msra.mxu0 0.0
      %7326 = vmatprep.subr.mxu0 0.0
      %7327 = vmatpush1.msra.mxu0 0.0
      %7328 = vmatprep.subr.mxu0 0.0
      %7329 = vmatpush1.msra.mxu0 0.0
      %7330 = vmatprep.subr.mxu0 0.0
      %7331 = vmatpush1.msra.mxu0 0.0
      %7332 = vmatprep.subr.mxu0 0.0
      %7333 = vmatpush1.msra.mxu0 0.0
      %7334 = vmatprep.subr.mxu0 0.0
      %7335 = vmatpush1.msra.mxu0 0.0
      %7336 = vmatprep.subr.mxu0 0.0
      %7337 = vmatpush1.msra.mxu0 0.0
      %7338 = vmatprep.subr.mxu0 0.0
      %7339 = vmatpush1.msra.mxu0 0.0
      %7340 = vmatprep.subr.mxu0 0.0
      %v7341 = vand.u32 %v442, 4294901760
      %7342 = vmatpush1.msra.mxu0 %v7341
      %7343 = vmatprep.subr.mxu0 0.0
      %v7344 = vand.u32 %v441, 4294901760
      %7345 = vmatpush1.msra.mxu0 %v7344
      %7346 = vmatprep.subr.mxu0 0.0
      %7347 = vmatpush2.msra.mxu0 0.0
      %7348 = vmatprep.subr.mxu0 0.0
      %7349 = vmatpush2.msra.mxu0 0.0
      %7350 = vmatprep.subr.mxu0 0.0
      %7351 = vmatpush2.msra.mxu0 0.0
      %7352 = vmatprep.subr.mxu0 0.0
      %7353 = vmatpush2.msra.mxu0 0.0
      %7354 = vmatprep.subr.mxu0 0.0
      %7355 = vmatpush2.msra.mxu0 0.0
      %7356 = vmatprep.subr.mxu0 0.0
      %7357 = vmatpush2.msra.mxu0 0.0
      %7358 = vmatprep.subr.mxu0 0.0
      %7359 = vmatpush2.msra.mxu0 0.0
      %7360 = vmatprep.subr.mxu0 0.0
      %7361 = vmatpush2.msra.mxu0 0.0
      %7362 = vmatprep.subr.mxu0 0.0
      %7363 = vmatpush2.msra.mxu0 0.0
      %7364 = vmatprep.subr.mxu0 0.0
      %7365 = vmatpush2.msra.mxu0 0.0
      %7366 = vmatprep.subr.mxu0 0.0
      %7367 = vmatpush2.msra.mxu0 0.0
      %7368 = vmatprep.subr.mxu0 0.0
      %7369 = vmatpush2.msra.mxu0 0.0
      %7370 = vmatprep.subr.mxu0 0.0
      %7371 = vmatpush2.msra.mxu0 0.0
      %7372 = vmatprep.subr.mxu0 0.0
      %7373 = vmatpush2.msra.mxu0 0.0
      %7374 = vmatprep.subr.mxu0 0.0
      %7375 = vmatpush2.msra.mxu0 0.0
      %7376 = vmatprep.subr.mxu0 0.0
      %7377 = vmatpush2.msra.mxu0 0.0
      %7378 = vmatprep.mubr.f32.mxu0 0.0
      %v7379 = vand.u32 %v7310, 4294901760
      %v7380 = vsub.f32 %v7310, %v7379
      %v7381 = vand.u32 %v7380, 4294901760
      %v7382 = vsub.f32 %v7380, %v7381
      %v7383 = vand.u32 %v7382, 4294901760
      %7384 = vmatmul.mubr.f32.gmra.mxu0 %v7383
      %v7385 = vpop.f32.mrf.mxu0
      %v7386 = vadd.f32 0.0, %v7385
      %v7387 = vpop.f32.mrf.mxu0
      %7388 = vdwg.mxu0
      %7389 = vmatprep.subr.mxu0 0.0
      %7390 = vmatpush1.msra.mxu0 0.0
      %7391 = vmatprep.subr.mxu0 0.0
      %7392 = vmatpush1.msra.mxu0 0.0
      %7393 = vmatprep.subr.mxu0 0.0
      %7394 = vmatpush1.msra.mxu0 0.0
      %7395 = vmatprep.subr.mxu0 0.0
      %7396 = vmatpush1.msra.mxu0 0.0
      %7397 = vmatprep.subr.mxu0 0.0
      %7398 = vmatpush1.msra.mxu0 0.0
      %7399 = vmatprep.subr.mxu0 0.0
      %7400 = vmatpush1.msra.mxu0 0.0
      %7401 = vmatprep.subr.mxu0 0.0
      %7402 = vmatpush1.msra.mxu0 0.0
      %7403 = vmatprep.subr.mxu0 0.0
      %7404 = vmatpush1.msra.mxu0 0.0
      %7405 = vmatprep.subr.mxu0 0.0
      %7406 = vmatpush1.msra.mxu0 0.0
      %7407 = vmatprep.subr.mxu0 0.0
      %7408 = vmatpush1.msra.mxu0 0.0
      %7409 = vmatprep.subr.mxu0 0.0
      %7410 = vmatpush1.msra.mxu0 0.0
      %7411 = vmatprep.subr.mxu0 0.0
      %7412 = vmatpush1.msra.mxu0 0.0
      %7413 = vmatprep.subr.mxu0 0.0
      %7414 = vmatpush1.msra.mxu0 0.0
      %7415 = vmatprep.subr.mxu0 0.0
      %7416 = vmatpush1.msra.mxu0 0.0
      %7417 = vmatprep.subr.mxu0 0.0
      %v7418 = vand.u32 %v442, 4294901760
      %v7419 = vsub.f32 %v442, %v7418
      %v7420 = vand.u32 %v7419, 4294901760
      %v7421 = vsub.f32 %v7419, %v7420
      %v7422 = vand.u32 %v7421, 4294901760
      %7423 = vmatpush1.msra.mxu0 %v7422
      %7424 = vmatprep.subr.mxu0 0.0
      %v7425 = vand.u32 %v441, 4294901760
      %v7426 = vsub.f32 %v441, %v7425
      %v7427 = vand.u32 %v7426, 4294901760
      %v7428 = vsub.f32 %v7426, %v7427
      %v7429 = vand.u32 %v7428, 4294901760
      %7430 = vmatpush1.msra.mxu0 %v7429
      %7431 = vmatprep.subr.mxu0 0.0
      %7432 = vmatpush2.msra.mxu0 0.0
      %7433 = vmatprep.subr.mxu0 0.0
      %7434 = vmatpush2.msra.mxu0 0.0
      %7435 = vmatprep.subr.mxu0 0.0
      %7436 = vmatpush2.msra.mxu0 0.0
      %7437 = vmatprep.subr.mxu0 0.0
      %7438 = vmatpush2.msra.mxu0 0.0
      %7439 = vmatprep.subr.mxu0 0.0
      %7440 = vmatpush2.msra.mxu0 0.0
      %7441 = vmatprep.subr.mxu0 0.0
      %7442 = vmatpush2.msra.mxu0 0.0
      %7443 = vmatprep.subr.mxu0 0.0
      %7444 = vmatpush2.msra.mxu0 0.0
      %7445 = vmatprep.subr.mxu0 0.0
      %7446 = vmatpush2.msra.mxu0 0.0
      %7447 = vmatprep.subr.mxu0 0.0
      %7448 = vmatpush2.msra.mxu0 0.0
      %7449 = vmatprep.subr.mxu0 0.0
      %7450 = vmatpush2.msra.mxu0 0.0
      %7451 = vmatprep.subr.mxu0 0.0
      %7452 = vmatpush2.msra.mxu0 0.0
      %7453 = vmatprep.subr.mxu0 0.0
      %7454 = vmatpush2.msra.mxu0 0.0
      %7455 = vmatprep.subr.mxu0 0.0
      %7456 = vmatpush2.msra.mxu0 0.0
      %7457 = vmatprep.subr.mxu0 0.0
      %7458 = vmatpush2.msra.mxu0 0.0
      %7459 = vmatprep.subr.mxu0 0.0
      %7460 = vmatpush2.msra.mxu0 0.0
      %7461 = vmatprep.subr.mxu0 0.0
      %7462 = vmatpush2.msra.mxu0 0.0
      %7463 = vmatprep.mubr.f32.mxu0 0.0
      %v7464 = vand.u32 %v7310, 4294901760
      %7465 = vmatmul.mubr.f32.gmra.mxu0 %v7464
      %v7466 = vpop.f32.mrf.mxu0
      %v7467 = vadd.f32 %v7386, %v7466
      %v7468 = vpop.f32.mrf.mxu0
      %7469 = vdwg.mxu0
      %7470 = vmatprep.subr.mxu0 0.0
      %7471 = vmatpush1.msra.mxu0 0.0
      %7472 = vmatprep.subr.mxu0 0.0
      %7473 = vmatpush1.msra.mxu0 0.0
      %7474 = vmatprep.subr.mxu0 0.0
      %7475 = vmatpush1.msra.mxu0 0.0
      %7476 = vmatprep.subr.mxu0 0.0
      %7477 = vmatpush1.msra.mxu0 0.0
      %7478 = vmatprep.subr.mxu0 0.0
      %7479 = vmatpush1.msra.mxu0 0.0
      %7480 = vmatprep.subr.mxu0 0.0
      %7481 = vmatpush1.msra.mxu0 0.0
      %7482 = vmatprep.subr.mxu0 0.0
      %7483 = vmatpush1.msra.mxu0 0.0
      %7484 = vmatprep.subr.mxu0 0.0
      %7485 = vmatpush1.msra.mxu0 0.0
      %7486 = vmatprep.subr.mxu0 0.0
      %7487 = vmatpush1.msra.mxu0 0.0
      %7488 = vmatprep.subr.mxu0 0.0
      %7489 = vmatpush1.msra.mxu0 0.0
      %7490 = vmatprep.subr.mxu0 0.0
      %7491 = vmatpush1.msra.mxu0 0.0
      %7492 = vmatprep.subr.mxu0 0.0
      %7493 = vmatpush1.msra.mxu0 0.0
      %7494 = vmatprep.subr.mxu0 0.0
      %7495 = vmatpush1.msra.mxu0 0.0
      %7496 = vmatprep.subr.mxu0 0.0
      %7497 = vmatpush1.msra.mxu0 0.0
      %7498 = vmatprep.subr.mxu0 0.0
      %v7499 = vand.u32 %v442, 4294901760
      %v7500 = vsub.f32 %v442, %v7499
      %7501 = vmatpush1.msra.mxu0 %v7500
      %7502 = vmatprep.subr.mxu0 0.0
      %v7503 = vand.u32 %v441, 4294901760
      %v7504 = vsub.f32 %v441, %v7503
      %7505 = vmatpush1.msra.mxu0 %v7504
      %7506 = vmatprep.subr.mxu0 0.0
      %7507 = vmatpush2.msra.mxu0 0.0
      %7508 = vmatprep.subr.mxu0 0.0
      %7509 = vmatpush2.msra.mxu0 0.0
      %7510 = vmatprep.subr.mxu0 0.0
      %7511 = vmatpush2.msra.mxu0 0.0
      %7512 = vmatprep.subr.mxu0 0.0
      %7513 = vmatpush2.msra.mxu0 0.0
      %7514 = vmatprep.subr.mxu0 0.0
      %7515 = vmatpush2.msra.mxu0 0.0
      %7516 = vmatprep.subr.mxu0 0.0
      %7517 = vmatpush2.msra.mxu0 0.0
      %7518 = vmatprep.subr.mxu0 0.0
      %7519 = vmatpush2.msra.mxu0 0.0
      %7520 = vmatprep.subr.mxu0 0.0
      %7521 = vmatpush2.msra.mxu0 0.0
      %7522 = vmatprep.subr.mxu0 0.0
      %7523 = vmatpush2.msra.mxu0 0.0
      %7524 = vmatprep.subr.mxu0 0.0
      %7525 = vmatpush2.msra.mxu0 0.0
      %7526 = vmatprep.subr.mxu0 0.0
      %7527 = vmatpush2.msra.mxu0 0.0
      %7528 = vmatprep.subr.mxu0 0.0
      %7529 = vmatpush2.msra.mxu0 0.0
      %7530 = vmatprep.subr.mxu0 0.0
      %7531 = vmatpush2.msra.mxu0 0.0
      %7532 = vmatprep.subr.mxu0 0.0
      %7533 = vmatpush2.msra.mxu0 0.0
      %7534 = vmatprep.subr.mxu0 0.0
      %7535 = vmatpush2.msra.mxu0 0.0
      %7536 = vmatprep.subr.mxu0 0.0
      %7537 = vmatpush2.msra.mxu0 0.0
      %7538 = vmatprep.mubr.f32.mxu0 0.0
      %v7539 = vand.u32 %v7310, 4294901760
      %v7540 = vsub.f32 %v7310, %v7539
      %7541 = vmatmul.mubr.f32.gmra.mxu0 %v7540
      %v7542 = vpop.f32.mrf.mxu0
      %v7543 = vadd.f32 %v7467, %v7542
      %v7544 = vpop.f32.mrf.mxu0
      %7545 = vdwg.mxu0
      %7546 = vmatprep.subr.mxu0 0.0
      %7547 = vmatpush1.msra.mxu0 0.0
      %7548 = vmatprep.subr.mxu0 0.0
      %7549 = vmatpush1.msra.mxu0 0.0
      %7550 = vmatprep.subr.mxu0 0.0
      %7551 = vmatpush1.msra.mxu0 0.0
      %7552 = vmatprep.subr.mxu0 0.0
      %7553 = vmatpush1.msra.mxu0 0.0
      %7554 = vmatprep.subr.mxu0 0.0
      %7555 = vmatpush1.msra.mxu0 0.0
      %7556 = vmatprep.subr.mxu0 0.0
      %7557 = vmatpush1.msra.mxu0 0.0
      %7558 = vmatprep.subr.mxu0 0.0
      %7559 = vmatpush1.msra.mxu0 0.0
      %7560 = vmatprep.subr.mxu0 0.0
      %7561 = vmatpush1.msra.mxu0 0.0
      %7562 = vmatprep.subr.mxu0 0.0
      %7563 = vmatpush1.msra.mxu0 0.0
      %7564 = vmatprep.subr.mxu0 0.0
      %7565 = vmatpush1.msra.mxu0 0.0
      %7566 = vmatprep.subr.mxu0 0.0
      %7567 = vmatpush1.msra.mxu0 0.0
      %7568 = vmatprep.subr.mxu0 0.0
      %7569 = vmatpush1.msra.mxu0 0.0
      %7570 = vmatprep.subr.mxu0 0.0
      %7571 = vmatpush1.msra.mxu0 0.0
      %7572 = vmatprep.subr.mxu0 0.0
      %7573 = vmatpush1.msra.mxu0 0.0
      %7574 = vmatprep.subr.mxu0 0.0
      %v7575 = vand.u32 %v442, 4294901760
      %7576 = vmatpush1.msra.mxu0 %v7575
      %7577 = vmatprep.subr.mxu0 0.0
      %v7578 = vand.u32 %v441, 4294901760
      %7579 = vmatpush1.msra.mxu0 %v7578
      %7580 = vmatprep.subr.mxu0 0.0
      %7581 = vmatpush2.msra.mxu0 0.0
      %7582 = vmatprep.subr.mxu0 0.0
      %7583 = vmatpush2.msra.mxu0 0.0
      %7584 = vmatprep.subr.mxu0 0.0
      %7585 = vmatpush2.msra.mxu0 0.0
      %7586 = vmatprep.subr.mxu0 0.0
      %7587 = vmatpush2.msra.mxu0 0.0
      %7588 = vmatprep.subr.mxu0 0.0
      %7589 = vmatpush2.msra.mxu0 0.0
      %7590 = vmatprep.subr.mxu0 0.0
      %7591 = vmatpush2.msra.mxu0 0.0
      %7592 = vmatprep.subr.mxu0 0.0
      %7593 = vmatpush2.msra.mxu0 0.0
      %7594 = vmatprep.subr.mxu0 0.0
      %7595 = vmatpush2.msra.mxu0 0.0
      %7596 = vmatprep.subr.mxu0 0.0
      %7597 = vmatpush2.msra.mxu0 0.0
      %7598 = vmatprep.subr.mxu0 0.0
      %7599 = vmatpush2.msra.mxu0 0.0
      %7600 = vmatprep.subr.mxu0 0.0
      %7601 = vmatpush2.msra.mxu0 0.0
      %7602 = vmatprep.subr.mxu0 0.0
      %7603 = vmatpush2.msra.mxu0 0.0
      %7604 = vmatprep.subr.mxu0 0.0
      %7605 = vmatpush2.msra.mxu0 0.0
      %7606 = vmatprep.subr.mxu0 0.0
      %7607 = vmatpush2.msra.mxu0 0.0
      %7608 = vmatprep.subr.mxu0 0.0
      %7609 = vmatpush2.msra.mxu0 0.0
      %7610 = vmatprep.subr.mxu0 0.0
      %7611 = vmatpush2.msra.mxu0 0.0
      %7612 = vmatprep.mubr.f32.mxu0 0.0
      %v7613 = vand.u32 %v7310, 4294901760
      %v7614 = vsub.f32 %v7310, %v7613
      %v7615 = vand.u32 %v7614, 4294901760
      %7616 = vmatmul.mubr.f32.gmra.mxu0 %v7615
      %v7617 = vpop.f32.mrf.mxu0
      %v7618 = vadd.f32 %v7543, %v7617
      %v7619 = vpop.f32.mrf.mxu0
      %7620 = vdwg.mxu0
      %7621 = vmatprep.subr.mxu0 0.0
      %7622 = vmatpush1.msra.mxu0 0.0
      %7623 = vmatprep.subr.mxu0 0.0
      %7624 = vmatpush1.msra.mxu0 0.0
      %7625 = vmatprep.subr.mxu0 0.0
      %7626 = vmatpush1.msra.mxu0 0.0
      %7627 = vmatprep.subr.mxu0 0.0
      %7628 = vmatpush1.msra.mxu0 0.0
      %7629 = vmatprep.subr.mxu0 0.0
      %7630 = vmatpush1.msra.mxu0 0.0
      %7631 = vmatprep.subr.mxu0 0.0
      %7632 = vmatpush1.msra.mxu0 0.0
      %7633 = vmatprep.subr.mxu0 0.0
      %7634 = vmatpush1.msra.mxu0 0.0
      %7635 = vmatprep.subr.mxu0 0.0
      %7636 = vmatpush1.msra.mxu0 0.0
      %7637 = vmatprep.subr.mxu0 0.0
      %7638 = vmatpush1.msra.mxu0 0.0
      %7639 = vmatprep.subr.mxu0 0.0
      %7640 = vmatpush1.msra.mxu0 0.0
      %7641 = vmatprep.subr.mxu0 0.0
      %7642 = vmatpush1.msra.mxu0 0.0
      %7643 = vmatprep.subr.mxu0 0.0
      %7644 = vmatpush1.msra.mxu0 0.0
      %7645 = vmatprep.subr.mxu0 0.0
      %7646 = vmatpush1.msra.mxu0 0.0
      %7647 = vmatprep.subr.mxu0 0.0
      %7648 = vmatpush1.msra.mxu0 0.0
      %7649 = vmatprep.subr.mxu0 0.0
      %v7650 = vand.u32 %v442, 4294901760
      %v7651 = vsub.f32 %v442, %v7650
      %v7652 = vand.u32 %v7651, 4294901760
      %7653 = vmatpush1.msra.mxu0 %v7652
      %7654 = vmatprep.subr.mxu0 0.0
      %v7655 = vand.u32 %v441, 4294901760
      %v7656 = vsub.f32 %v441, %v7655
      %v7657 = vand.u32 %v7656, 4294901760
      %7658 = vmatpush1.msra.mxu0 %v7657
      %7659 = vmatprep.subr.mxu0 0.0
      %7660 = vmatpush2.msra.mxu0 0.0
      %7661 = vmatprep.subr.mxu0 0.0
      %7662 = vmatpush2.msra.mxu0 0.0
      %7663 = vmatprep.subr.mxu0 0.0
      %7664 = vmatpush2.msra.mxu0 0.0
      %7665 = vmatprep.subr.mxu0 0.0
      %7666 = vmatpush2.msra.mxu0 0.0
      %7667 = vmatprep.subr.mxu0 0.0
      %7668 = vmatpush2.msra.mxu0 0.0
      %7669 = vmatprep.subr.mxu0 0.0
      %7670 = vmatpush2.msra.mxu0 0.0
      %7671 = vmatprep.subr.mxu0 0.0
      %7672 = vmatpush2.msra.mxu0 0.0
      %7673 = vmatprep.subr.mxu0 0.0
      %7674 = vmatpush2.msra.mxu0 0.0
      %7675 = vmatprep.subr.mxu0 0.0
      %7676 = vmatpush2.msra.mxu0 0.0
      %7677 = vmatprep.subr.mxu0 0.0
      %7678 = vmatpush2.msra.mxu0 0.0
      %7679 = vmatprep.subr.mxu0 0.0
      %7680 = vmatpush2.msra.mxu0 0.0
      %7681 = vmatprep.subr.mxu0 0.0
      %7682 = vmatpush2.msra.mxu0 0.0
      %7683 = vmatprep.subr.mxu0 0.0
      %7684 = vmatpush2.msra.mxu0 0.0
      %7685 = vmatprep.subr.mxu0 0.0
      %7686 = vmatpush2.msra.mxu0 0.0
      %7687 = vmatprep.subr.mxu0 0.0
      %7688 = vmatpush2.msra.mxu0 0.0
      %7689 = vmatprep.subr.mxu0 0.0
      %7690 = vmatpush2.msra.mxu0 0.0
      %7691 = vmatprep.mubr.f32.mxu0 0.0
      %v7692 = vand.u32 %v7310, 4294901760
      %7693 = vmatmul.mubr.f32.gmra.mxu0 %v7692
      %v7694 = vpop.f32.mrf.mxu0
      %v7695 = vadd.f32 %v7618, %v7694
      %v7696 = vpop.f32.mrf.mxu0
      %7697 = vdwg.mxu0
      %7698 = vmatprep.subr.mxu0 0.0
      %7699 = vmatpush1.msra.mxu0 0.0
      %7700 = vmatprep.subr.mxu0 0.0
      %7701 = vmatpush1.msra.mxu0 0.0
      %7702 = vmatprep.subr.mxu0 0.0
      %7703 = vmatpush1.msra.mxu0 0.0
      %7704 = vmatprep.subr.mxu0 0.0
      %7705 = vmatpush1.msra.mxu0 0.0
      %7706 = vmatprep.subr.mxu0 0.0
      %7707 = vmatpush1.msra.mxu0 0.0
      %7708 = vmatprep.subr.mxu0 0.0
      %7709 = vmatpush1.msra.mxu0 0.0
      %7710 = vmatprep.subr.mxu0 0.0
      %7711 = vmatpush1.msra.mxu0 0.0
      %7712 = vmatprep.subr.mxu0 0.0
      %7713 = vmatpush1.msra.mxu0 0.0
      %7714 = vmatprep.subr.mxu0 0.0
      %7715 = vmatpush1.msra.mxu0 0.0
      %7716 = vmatprep.subr.mxu0 0.0
      %7717 = vmatpush1.msra.mxu0 0.0
      %7718 = vmatprep.subr.mxu0 0.0
      %7719 = vmatpush1.msra.mxu0 0.0
      %7720 = vmatprep.subr.mxu0 0.0
      %7721 = vmatpush1.msra.mxu0 0.0
      %7722 = vmatprep.subr.mxu0 0.0
      %7723 = vmatpush1.msra.mxu0 0.0
      %7724 = vmatprep.subr.mxu0 0.0
      %7725 = vmatpush1.msra.mxu0 0.0
      %7726 = vmatprep.subr.mxu0 0.0
      %v7727 = vand.u32 %v442, 4294901760
      %7728 = vmatpush1.msra.mxu0 %v7727
      %7729 = vmatprep.subr.mxu0 0.0
      %v7730 = vand.u32 %v441, 4294901760
      %7731 = vmatpush1.msra.mxu0 %v7730
      %7732 = vmatprep.subr.mxu0 0.0
      %7733 = vmatpush2.msra.mxu0 0.0
      %7734 = vmatprep.subr.mxu0 0.0
      %7735 = vmatpush2.msra.mxu0 0.0
      %7736 = vmatprep.subr.mxu0 0.0
      %7737 = vmatpush2.msra.mxu0 0.0
      %7738 = vmatprep.subr.mxu0 0.0
      %7739 = vmatpush2.msra.mxu0 0.0
      %7740 = vmatprep.subr.mxu0 0.0
      %7741 = vmatpush2.msra.mxu0 0.0
      %7742 = vmatprep.subr.mxu0 0.0
      %7743 = vmatpush2.msra.mxu0 0.0
      %7744 = vmatprep.subr.mxu0 0.0
      %7745 = vmatpush2.msra.mxu0 0.0
      %7746 = vmatprep.subr.mxu0 0.0
      %7747 = vmatpush2.msra.mxu0 0.0
      %7748 = vmatprep.subr.mxu0 0.0
      %7749 = vmatpush2.msra.mxu0 0.0
      %7750 = vmatprep.subr.mxu0 0.0
      %7751 = vmatpush2.msra.mxu0 0.0
      %7752 = vmatprep.subr.mxu0 0.0
      %7753 = vmatpush2.msra.mxu0 0.0
      %7754 = vmatprep.subr.mxu0 0.0
      %7755 = vmatpush2.msra.mxu0 0.0
      %7756 = vmatprep.subr.mxu0 0.0
      %7757 = vmatpush2.msra.mxu0 0.0
      %7758 = vmatprep.subr.mxu0 0.0
      %7759 = vmatpush2.msra.mxu0 0.0
      %7760 = vmatprep.subr.mxu0 0.0
      %7761 = vmatpush2.msra.mxu0 0.0
      %7762 = vmatprep.subr.mxu0 0.0
      %7763 = vmatpush2.msra.mxu0 0.0
      %7764 = vmatprep.mubr.f32.mxu0 0.0
      %v7765 = vand.u32 %v7310, 4294901760
      %7766 = vmatmul.mubr.f32.gmra.mxu0 %v7765
      %v7767 = vpop.f32.mrf.mxu0
      %v7768 = vadd.f32 %v7695, %v7767
      %v7769 = vpop.f32.mrf.mxu0
      %7770 = vdwg.mxu0
      %7771 = vmatprep.subr.mxu0 0.0
      %7772 = vmatpush1.msra.mxu0 0.0
      %7773 = vmatprep.subr.mxu0 0.0
      %7774 = vmatpush1.msra.mxu0 0.0
      %7775 = vmatprep.subr.mxu0 0.0
      %7776 = vmatpush1.msra.mxu0 0.0
      %7777 = vmatprep.subr.mxu0 0.0
      %7778 = vmatpush1.msra.mxu0 0.0
      %7779 = vmatprep.subr.mxu0 0.0
      %7780 = vmatpush1.msra.mxu0 0.0
      %7781 = vmatprep.subr.mxu0 0.0
      %7782 = vmatpush1.msra.mxu0 0.0
      %7783 = vmatprep.subr.mxu0 0.0
      %7784 = vmatpush1.msra.mxu0 0.0
      %7785 = vmatprep.subr.mxu0 0.0
      %7786 = vmatpush1.msra.mxu0 0.0
      %7787 = vmatprep.subr.mxu0 0.0
      %7788 = vmatpush1.msra.mxu0 0.0
      %7789 = vmatprep.subr.mxu0 0.0
      %7790 = vmatpush1.msra.mxu0 0.0
      %7791 = vmatprep.subr.mxu0 0.0
      %7792 = vmatpush1.msra.mxu0 0.0
      %7793 = vmatprep.subr.mxu0 0.0
      %7794 = vmatpush1.msra.mxu0 0.0
      %7795 = vmatprep.subr.mxu0 0.0
      %7796 = vmatpush1.msra.mxu0 0.0
      %7797 = vmatprep.subr.mxu0 0.0
      %7798 = vmatpush1.msra.mxu0 0.0
      %7799 = vmatprep.subr.mxu0 0.0
      %v7800 = vand.u32 %v444, 4294901760
      %7801 = vmatpush1.msra.mxu0 %v7800
      %7802 = vmatprep.subr.mxu0 0.0
      %v7803 = vand.u32 %v443, 4294901760
      %7804 = vmatpush1.msra.mxu0 %v7803
      %7805 = vmatprep.subr.mxu0 0.0
      %7806 = vmatpush2.msra.mxu0 0.0
      %7807 = vmatprep.subr.mxu0 0.0
      %7808 = vmatpush2.msra.mxu0 0.0
      %7809 = vmatprep.subr.mxu0 0.0
      %7810 = vmatpush2.msra.mxu0 0.0
      %7811 = vmatprep.subr.mxu0 0.0
      %7812 = vmatpush2.msra.mxu0 0.0
      %7813 = vmatprep.subr.mxu0 0.0
      %7814 = vmatpush2.msra.mxu0 0.0
      %7815 = vmatprep.subr.mxu0 0.0
      %7816 = vmatpush2.msra.mxu0 0.0
      %7817 = vmatprep.subr.mxu0 0.0
      %7818 = vmatpush2.msra.mxu0 0.0
      %7819 = vmatprep.subr.mxu0 0.0
      %7820 = vmatpush2.msra.mxu0 0.0
      %7821 = vmatprep.subr.mxu0 0.0
      %7822 = vmatpush2.msra.mxu0 0.0
      %7823 = vmatprep.subr.mxu0 0.0
      %7824 = vmatpush2.msra.mxu0 0.0
      %7825 = vmatprep.subr.mxu0 0.0
      %7826 = vmatpush2.msra.mxu0 0.0
      %7827 = vmatprep.subr.mxu0 0.0
      %7828 = vmatpush2.msra.mxu0 0.0
      %7829 = vmatprep.subr.mxu0 0.0
      %7830 = vmatpush2.msra.mxu0 0.0
      %7831 = vmatprep.subr.mxu0 0.0
      %7832 = vmatpush2.msra.mxu0 0.0
      %7833 = vmatprep.subr.mxu0 0.0
      %7834 = vmatpush2.msra.mxu0 0.0
      %7835 = vmatprep.subr.mxu0 0.0
      %7836 = vmatpush2.msra.mxu0 0.0
      %7837 = vmatprep.mubr.f32.mxu0 0.0
      %v7838 = vand.u32 %v7310, 4294901760
      %v7839 = vsub.f32 %v7310, %v7838
      %v7840 = vand.u32 %v7839, 4294901760
      %v7841 = vsub.f32 %v7839, %v7840
      %v7842 = vand.u32 %v7841, 4294901760
      %7843 = vmatmul.mubr.f32.gmra.mxu0 %v7842
      %v7844 = vpop.f32.mrf.mxu0
      %v7845 = vadd.f32 0.0, %v7844
      %v7846 = vpop.f32.mrf.mxu0
      %7847 = vdwg.mxu0
      %7848 = vmatprep.subr.mxu0 0.0
      %7849 = vmatpush1.msra.mxu0 0.0
      %7850 = vmatprep.subr.mxu0 0.0
      %7851 = vmatpush1.msra.mxu0 0.0
      %7852 = vmatprep.subr.mxu0 0.0
      %7853 = vmatpush1.msra.mxu0 0.0
      %7854 = vmatprep.subr.mxu0 0.0
      %7855 = vmatpush1.msra.mxu0 0.0
      %7856 = vmatprep.subr.mxu0 0.0
      %7857 = vmatpush1.msra.mxu0 0.0
      %7858 = vmatprep.subr.mxu0 0.0
      %7859 = vmatpush1.msra.mxu0 0.0
      %7860 = vmatprep.subr.mxu0 0.0
      %7861 = vmatpush1.msra.mxu0 0.0
      %7862 = vmatprep.subr.mxu0 0.0
      %7863 = vmatpush1.msra.mxu0 0.0
      %7864 = vmatprep.subr.mxu0 0.0
      %7865 = vmatpush1.msra.mxu0 0.0
      %7866 = vmatprep.subr.mxu0 0.0
      %7867 = vmatpush1.msra.mxu0 0.0
      %7868 = vmatprep.subr.mxu0 0.0
      %7869 = vmatpush1.msra.mxu0 0.0
      %7870 = vmatprep.subr.mxu0 0.0
      %7871 = vmatpush1.msra.mxu0 0.0
      %7872 = vmatprep.subr.mxu0 0.0
      %7873 = vmatpush1.msra.mxu0 0.0
      %7874 = vmatprep.subr.mxu0 0.0
      %7875 = vmatpush1.msra.mxu0 0.0
      %7876 = vmatprep.subr.mxu0 0.0
      %v7877 = vand.u32 %v444, 4294901760
      %v7878 = vsub.f32 %v444, %v7877
      %v7879 = vand.u32 %v7878, 4294901760
      %v7880 = vsub.f32 %v7878, %v7879
      %v7881 = vand.u32 %v7880, 4294901760
      %7882 = vmatpush1.msra.mxu0 %v7881
      %7883 = vmatprep.subr.mxu0 0.0
      %v7884 = vand.u32 %v443, 4294901760
      %v7885 = vsub.f32 %v443, %v7884
      %v7886 = vand.u32 %v7885, 4294901760
      %v7887 = vsub.f32 %v7885, %v7886
      %v7888 = vand.u32 %v7887, 4294901760
      %7889 = vmatpush1.msra.mxu0 %v7888
      %7890 = vmatprep.subr.mxu0 0.0
      %7891 = vmatpush2.msra.mxu0 0.0
      %7892 = vmatprep.subr.mxu0 0.0
      %7893 = vmatpush2.msra.mxu0 0.0
      %7894 = vmatprep.subr.mxu0 0.0
      %7895 = vmatpush2.msra.mxu0 0.0
      %7896 = vmatprep.subr.mxu0 0.0
      %7897 = vmatpush2.msra.mxu0 0.0
      %7898 = vmatprep.subr.mxu0 0.0
      %7899 = vmatpush2.msra.mxu0 0.0
      %7900 = vmatprep.subr.mxu0 0.0
      %7901 = vmatpush2.msra.mxu0 0.0
      %7902 = vmatprep.subr.mxu0 0.0
      %7903 = vmatpush2.msra.mxu0 0.0
      %7904 = vmatprep.subr.mxu0 0.0
      %7905 = vmatpush2.msra.mxu0 0.0
      %7906 = vmatprep.subr.mxu0 0.0
      %7907 = vmatpush2.msra.mxu0 0.0
      %7908 = vmatprep.subr.mxu0 0.0
      %7909 = vmatpush2.msra.mxu0 0.0
      %7910 = vmatprep.subr.mxu0 0.0
      %7911 = vmatpush2.msra.mxu0 0.0
      %7912 = vmatprep.subr.mxu0 0.0
      %7913 = vmatpush2.msra.mxu0 0.0
      %7914 = vmatprep.subr.mxu0 0.0
      %7915 = vmatpush2.msra.mxu0 0.0
      %7916 = vmatprep.subr.mxu0 0.0
      %7917 = vmatpush2.msra.mxu0 0.0
      %7918 = vmatprep.subr.mxu0 0.0
      %7919 = vmatpush2.msra.mxu0 0.0
      %7920 = vmatprep.subr.mxu0 0.0
      %7921 = vmatpush2.msra.mxu0 0.0
      %7922 = vmatprep.mubr.f32.mxu0 0.0
      %v7923 = vand.u32 %v7310, 4294901760
      %7924 = vmatmul.mubr.f32.gmra.mxu0 %v7923
      %v7925 = vpop.f32.mrf.mxu0
      %v7926 = vadd.f32 %v7845, %v7925
      %v7927 = vpop.f32.mrf.mxu0
      %7928 = vdwg.mxu0
      %7929 = vmatprep.subr.mxu0 0.0
      %7930 = vmatpush1.msra.mxu0 0.0
      %7931 = vmatprep.subr.mxu0 0.0
      %7932 = vmatpush1.msra.mxu0 0.0
      %7933 = vmatprep.subr.mxu0 0.0
      %7934 = vmatpush1.msra.mxu0 0.0
      %7935 = vmatprep.subr.mxu0 0.0
      %7936 = vmatpush1.msra.mxu0 0.0
      %7937 = vmatprep.subr.mxu0 0.0
      %7938 = vmatpush1.msra.mxu0 0.0
      %7939 = vmatprep.subr.mxu0 0.0
      %7940 = vmatpush1.msra.mxu0 0.0
      %7941 = vmatprep.subr.mxu0 0.0
      %7942 = vmatpush1.msra.mxu0 0.0
      %7943 = vmatprep.subr.mxu0 0.0
      %7944 = vmatpush1.msra.mxu0 0.0
      %7945 = vmatprep.subr.mxu0 0.0
      %7946 = vmatpush1.msra.mxu0 0.0
      %7947 = vmatprep.subr.mxu0 0.0
      %7948 = vmatpush1.msra.mxu0 0.0
      %7949 = vmatprep.subr.mxu0 0.0
      %7950 = vmatpush1.msra.mxu0 0.0
      %7951 = vmatprep.subr.mxu0 0.0
      %7952 = vmatpush1.msra.mxu0 0.0
      %7953 = vmatprep.subr.mxu0 0.0
      %7954 = vmatpush1.msra.mxu0 0.0
      %7955 = vmatprep.subr.mxu0 0.0
      %7956 = vmatpush1.msra.mxu0 0.0
      %7957 = vmatprep.subr.mxu0 0.0
      %v7958 = vand.u32 %v444, 4294901760
      %v7959 = vsub.f32 %v444, %v7958
      %7960 = vmatpush1.msra.mxu0 %v7959
      %7961 = vmatprep.subr.mxu0 0.0
      %v7962 = vand.u32 %v443, 4294901760
      %v7963 = vsub.f32 %v443, %v7962
      %7964 = vmatpush1.msra.mxu0 %v7963
      %7965 = vmatprep.subr.mxu0 0.0
      %7966 = vmatpush2.msra.mxu0 0.0
      %7967 = vmatprep.subr.mxu0 0.0
      %7968 = vmatpush2.msra.mxu0 0.0
      %7969 = vmatprep.subr.mxu0 0.0
      %7970 = vmatpush2.msra.mxu0 0.0
      %7971 = vmatprep.subr.mxu0 0.0
      %7972 = vmatpush2.msra.mxu0 0.0
      %7973 = vmatprep.subr.mxu0 0.0
      %7974 = vmatpush2.msra.mxu0 0.0
      %7975 = vmatprep.subr.mxu0 0.0
      %7976 = vmatpush2.msra.mxu0 0.0
      %7977 = vmatprep.subr.mxu0 0.0
      %7978 = vmatpush2.msra.mxu0 0.0
      %7979 = vmatprep.subr.mxu0 0.0
      %7980 = vmatpush2.msra.mxu0 0.0
      %7981 = vmatprep.subr.mxu0 0.0
      %7982 = vmatpush2.msra.mxu0 0.0
      %7983 = vmatprep.subr.mxu0 0.0
      %7984 = vmatpush2.msra.mxu0 0.0
      %7985 = vmatprep.subr.mxu0 0.0
      %7986 = vmatpush2.msra.mxu0 0.0
      %7987 = vmatprep.subr.mxu0 0.0
      %7988 = vmatpush2.msra.mxu0 0.0
      %7989 = vmatprep.subr.mxu0 0.0
      %7990 = vmatpush2.msra.mxu0 0.0
      %7991 = vmatprep.subr.mxu0 0.0
      %7992 = vmatpush2.msra.mxu0 0.0
      %7993 = vmatprep.subr.mxu0 0.0
      %7994 = vmatpush2.msra.mxu0 0.0
      %7995 = vmatprep.subr.mxu0 0.0
      %7996 = vmatpush2.msra.mxu0 0.0
      %7997 = vmatprep.mubr.f32.mxu0 0.0
      %v7998 = vand.u32 %v7310, 4294901760
      %v7999 = vsub.f32 %v7310, %v7998
      %8000 = vmatmul.mubr.f32.gmra.mxu0 %v7999
      %v8001 = vpop.f32.mrf.mxu0
      %v8002 = vadd.f32 %v7926, %v8001
      %v8003 = vpop.f32.mrf.mxu0
      %8004 = vdwg.mxu0
      %8005 = vmatprep.subr.mxu0 0.0
      %8006 = vmatpush1.msra.mxu0 0.0
      %8007 = vmatprep.subr.mxu0 0.0
      %8008 = vmatpush1.msra.mxu0 0.0
      %8009 = vmatprep.subr.mxu0 0.0
      %8010 = vmatpush1.msra.mxu0 0.0
      %8011 = vmatprep.subr.mxu0 0.0
      %8012 = vmatpush1.msra.mxu0 0.0
      %8013 = vmatprep.subr.mxu0 0.0
      %8014 = vmatpush1.msra.mxu0 0.0
      %8015 = vmatprep.subr.mxu0 0.0
      %8016 = vmatpush1.msra.mxu0 0.0
      %8017 = vmatprep.subr.mxu0 0.0
      %8018 = vmatpush1.msra.mxu0 0.0
      %8019 = vmatprep.subr.mxu0 0.0
      %8020 = vmatpush1.msra.mxu0 0.0
      %8021 = vmatprep.subr.mxu0 0.0
      %8022 = vmatpush1.msra.mxu0 0.0
      %8023 = vmatprep.subr.mxu0 0.0
      %8024 = vmatpush1.msra.mxu0 0.0
      %8025 = vmatprep.subr.mxu0 0.0
      %8026 = vmatpush1.msra.mxu0 0.0
      %8027 = vmatprep.subr.mxu0 0.0
      %8028 = vmatpush1.msra.mxu0 0.0
      %8029 = vmatprep.subr.mxu0 0.0
      %8030 = vmatpush1.msra.mxu0 0.0
      %8031 = vmatprep.subr.mxu0 0.0
      %8032 = vmatpush1.msra.mxu0 0.0
      %8033 = vmatprep.subr.mxu0 0.0
      %v8034 = vand.u32 %v444, 4294901760
      %8035 = vmatpush1.msra.mxu0 %v8034
      %8036 = vmatprep.subr.mxu0 0.0
      %v8037 = vand.u32 %v443, 4294901760
      %8038 = vmatpush1.msra.mxu0 %v8037
      %8039 = vmatprep.subr.mxu0 0.0
      %8040 = vmatpush2.msra.mxu0 0.0
      %8041 = vmatprep.subr.mxu0 0.0
      %8042 = vmatpush2.msra.mxu0 0.0
      %8043 = vmatprep.subr.mxu0 0.0
      %8044 = vmatpush2.msra.mxu0 0.0
      %8045 = vmatprep.subr.mxu0 0.0
      %8046 = vmatpush2.msra.mxu0 0.0
      %8047 = vmatprep.subr.mxu0 0.0
      %8048 = vmatpush2.msra.mxu0 0.0
      %8049 = vmatprep.subr.mxu0 0.0
      %8050 = vmatpush2.msra.mxu0 0.0
      %8051 = vmatprep.subr.mxu0 0.0
      %8052 = vmatpush2.msra.mxu0 0.0
      %8053 = vmatprep.subr.mxu0 0.0
      %8054 = vmatpush2.msra.mxu0 0.0
      %8055 = vmatprep.subr.mxu0 0.0
      %8056 = vmatpush2.msra.mxu0 0.0
      %8057 = vmatprep.subr.mxu0 0.0
      %8058 = vmatpush2.msra.mxu0 0.0
      %8059 = vmatprep.subr.mxu0 0.0
      %8060 = vmatpush2.msra.mxu0 0.0
      %8061 = vmatprep.subr.mxu0 0.0
      %8062 = vmatpush2.msra.mxu0 0.0
      %8063 = vmatprep.subr.mxu0 0.0
      %8064 = vmatpush2.msra.mxu0 0.0
      %8065 = vmatprep.subr.mxu0 0.0
      %8066 = vmatpush2.msra.mxu0 0.0
      %8067 = vmatprep.subr.mxu0 0.0
      %8068 = vmatpush2.msra.mxu0 0.0
      %8069 = vmatprep.subr.mxu0 0.0
      %8070 = vmatpush2.msra.mxu0 0.0
      %8071 = vmatprep.mubr.f32.mxu0 0.0
      %v8072 = vand.u32 %v7310, 4294901760
      %v8073 = vsub.f32 %v7310, %v8072
      %v8074 = vand.u32 %v8073, 4294901760
      %8075 = vmatmul.mubr.f32.gmra.mxu0 %v8074
      %v8076 = vpop.f32.mrf.mxu0
      %v8077 = vadd.f32 %v8002, %v8076
      %v8078 = vpop.f32.mrf.mxu0
      %8079 = vdwg.mxu0
      %8080 = vmatprep.subr.mxu0 0.0
      %8081 = vmatpush1.msra.mxu0 0.0
      %8082 = vmatprep.subr.mxu0 0.0
      %8083 = vmatpush1.msra.mxu0 0.0
      %8084 = vmatprep.subr.mxu0 0.0
      %8085 = vmatpush1.msra.mxu0 0.0
      %8086 = vmatprep.subr.mxu0 0.0
      %8087 = vmatpush1.msra.mxu0 0.0
      %8088 = vmatprep.subr.mxu0 0.0
      %8089 = vmatpush1.msra.mxu0 0.0
      %8090 = vmatprep.subr.mxu0 0.0
      %8091 = vmatpush1.msra.mxu0 0.0
      %8092 = vmatprep.subr.mxu0 0.0
      %8093 = vmatpush1.msra.mxu0 0.0
      %8094 = vmatprep.subr.mxu0 0.0
      %8095 = vmatpush1.msra.mxu0 0.0
      %8096 = vmatprep.subr.mxu0 0.0
      %8097 = vmatpush1.msra.mxu0 0.0
      %8098 = vmatprep.subr.mxu0 0.0
      %8099 = vmatpush1.msra.mxu0 0.0
      %8100 = vmatprep.subr.mxu0 0.0
      %8101 = vmatpush1.msra.mxu0 0.0
      %8102 = vmatprep.subr.mxu0 0.0
      %8103 = vmatpush1.msra.mxu0 0.0
      %8104 = vmatprep.subr.mxu0 0.0
      %8105 = vmatpush1.msra.mxu0 0.0
      %8106 = vmatprep.subr.mxu0 0.0
      %8107 = vmatpush1.msra.mxu0 0.0
      %8108 = vmatprep.subr.mxu0 0.0
      %v8109 = vand.u32 %v444, 4294901760
      %v8110 = vsub.f32 %v444, %v8109
      %v8111 = vand.u32 %v8110, 4294901760
      %8112 = vmatpush1.msra.mxu0 %v8111
      %8113 = vmatprep.subr.mxu0 0.0
      %v8114 = vand.u32 %v443, 4294901760
      %v8115 = vsub.f32 %v443, %v8114
      %v8116 = vand.u32 %v8115, 4294901760
      %8117 = vmatpush1.msra.mxu0 %v8116
      %8118 = vmatprep.subr.mxu0 0.0
      %8119 = vmatpush2.msra.mxu0 0.0
      %8120 = vmatprep.subr.mxu0 0.0
      %8121 = vmatpush2.msra.mxu0 0.0
      %8122 = vmatprep.subr.mxu0 0.0
      %8123 = vmatpush2.msra.mxu0 0.0
      %8124 = vmatprep.subr.mxu0 0.0
      %8125 = vmatpush2.msra.mxu0 0.0
      %8126 = vmatprep.subr.mxu0 0.0
      %8127 = vmatpush2.msra.mxu0 0.0
      %8128 = vmatprep.subr.mxu0 0.0
      %8129 = vmatpush2.msra.mxu0 0.0
      %8130 = vmatprep.subr.mxu0 0.0
      %8131 = vmatpush2.msra.mxu0 0.0
      %8132 = vmatprep.subr.mxu0 0.0
      %8133 = vmatpush2.msra.mxu0 0.0
      %8134 = vmatprep.subr.mxu0 0.0
      %8135 = vmatpush2.msra.mxu0 0.0
      %8136 = vmatprep.subr.mxu0 0.0
      %8137 = vmatpush2.msra.mxu0 0.0
      %8138 = vmatprep.subr.mxu0 0.0
      %8139 = vmatpush2.msra.mxu0 0.0
      %8140 = vmatprep.subr.mxu0 0.0
      %8141 = vmatpush2.msra.mxu0 0.0
      %8142 = vmatprep.subr.mxu0 0.0
      %8143 = vmatpush2.msra.mxu0 0.0
      %8144 = vmatprep.subr.mxu0 0.0
      %8145 = vmatpush2.msra.mxu0 0.0
      %8146 = vmatprep.subr.mxu0 0.0
      %8147 = vmatpush2.msra.mxu0 0.0
      %8148 = vmatprep.subr.mxu0 0.0
      %8149 = vmatpush2.msra.mxu0 0.0
      %8150 = vmatprep.mubr.f32.mxu0 0.0
      %v8151 = vand.u32 %v7310, 4294901760
      %8152 = vmatmul.mubr.f32.gmra.mxu0 %v8151
      %v8153 = vpop.f32.mrf.mxu0
      %v8154 = vadd.f32 %v8077, %v8153
      %v8155 = vpop.f32.mrf.mxu0
      %8156 = vdwg.mxu0
      %8157 = vmatprep.subr.mxu0 0.0
      %8158 = vmatpush1.msra.mxu0 0.0
      %8159 = vmatprep.subr.mxu0 0.0
      %8160 = vmatpush1.msra.mxu0 0.0
      %8161 = vmatprep.subr.mxu0 0.0
      %8162 = vmatpush1.msra.mxu0 0.0
      %8163 = vmatprep.subr.mxu0 0.0
      %8164 = vmatpush1.msra.mxu0 0.0
      %8165 = vmatprep.subr.mxu0 0.0
      %8166 = vmatpush1.msra.mxu0 0.0
      %8167 = vmatprep.subr.mxu0 0.0
      %8168 = vmatpush1.msra.mxu0 0.0
      %8169 = vmatprep.subr.mxu0 0.0
      %8170 = vmatpush1.msra.mxu0 0.0
      %8171 = vmatprep.subr.mxu0 0.0
      %8172 = vmatpush1.msra.mxu0 0.0
      %8173 = vmatprep.subr.mxu0 0.0
      %8174 = vmatpush1.msra.mxu0 0.0
      %8175 = vmatprep.subr.mxu0 0.0
      %8176 = vmatpush1.msra.mxu0 0.0
      %8177 = vmatprep.subr.mxu0 0.0
      %8178 = vmatpush1.msra.mxu0 0.0
      %8179 = vmatprep.subr.mxu0 0.0
      %8180 = vmatpush1.msra.mxu0 0.0
      %8181 = vmatprep.subr.mxu0 0.0
      %8182 = vmatpush1.msra.mxu0 0.0
      %8183 = vmatprep.subr.mxu0 0.0
      %8184 = vmatpush1.msra.mxu0 0.0
      %8185 = vmatprep.subr.mxu0 0.0
      %v8186 = vand.u32 %v444, 4294901760
      %8187 = vmatpush1.msra.mxu0 %v8186
      %8188 = vmatprep.subr.mxu0 0.0
      %v8189 = vand.u32 %v443, 4294901760
      %8190 = vmatpush1.msra.mxu0 %v8189
      %8191 = vmatprep.subr.mxu0 0.0
      %8192 = vmatpush2.msra.mxu0 0.0
      %8193 = vmatprep.subr.mxu0 0.0
      %8194 = vmatpush2.msra.mxu0 0.0
      %8195 = vmatprep.subr.mxu0 0.0
      %8196 = vmatpush2.msra.mxu0 0.0
      %8197 = vmatprep.subr.mxu0 0.0
      %8198 = vmatpush2.msra.mxu0 0.0
      %8199 = vmatprep.subr.mxu0 0.0
      %8200 = vmatpush2.msra.mxu0 0.0
      %8201 = vmatprep.subr.mxu0 0.0
      %8202 = vmatpush2.msra.mxu0 0.0
      %8203 = vmatprep.subr.mxu0 0.0
      %8204 = vmatpush2.msra.mxu0 0.0
      %8205 = vmatprep.subr.mxu0 0.0
      %8206 = vmatpush2.msra.mxu0 0.0
      %8207 = vmatprep.subr.mxu0 0.0
      %8208 = vmatpush2.msra.mxu0 0.0
      %8209 = vmatprep.subr.mxu0 0.0
      %8210 = vmatpush2.msra.mxu0 0.0
      %8211 = vmatprep.subr.mxu0 0.0
      %8212 = vmatpush2.msra.mxu0 0.0
      %8213 = vmatprep.subr.mxu0 0.0
      %8214 = vmatpush2.msra.mxu0 0.0
      %8215 = vmatprep.subr.mxu0 0.0
      %8216 = vmatpush2.msra.mxu0 0.0
      %8217 = vmatprep.subr.mxu0 0.0
      %8218 = vmatpush2.msra.mxu0 0.0
      %8219 = vmatprep.subr.mxu0 0.0
      %8220 = vmatpush2.msra.mxu0 0.0
      %8221 = vmatprep.subr.mxu0 0.0
      %8222 = vmatpush2.msra.mxu0 0.0
      %8223 = vmatprep.mubr.f32.mxu0 0.0
      %v8224 = vand.u32 %v7310, 4294901760
      %8225 = vmatmul.mubr.f32.gmra.mxu0 %v8224
      %v8226 = vpop.f32.mrf.mxu0
      %v8227 = vadd.f32 %v8154, %v8226
      %v8228 = vpop.f32.mrf.mxu0
      %8229 = vdwg.mxu0
      %v8230 = vmax.f32 %v7768, %v8227
      %8231 = vxpose.xlu0.b32.start [1/16] %v8230, 128
      %8232 = vxpose.xlu0.b32.cont [2/16] 0.0, 128
      %8233 = vxpose.xlu0.b32.cont [3/16] 0.0, 128
      %8234 = vxpose.xlu0.b32.cont [4/16] 0.0, 128
      %8235 = vxpose.xlu0.b32.cont [5/16] 0.0, 128
      %8236 = vxpose.xlu0.b32.cont [6/16] 0.0, 128
      %8237 = vxpose.xlu0.b32.cont [7/16] 0.0, 128
      %8238 = vxpose.xlu0.b32.cont [8/16] 0.0, 128
      %8239 = vxpose.xlu0.b32.cont [9/16] 0.0, 128
      %8240 = vxpose.xlu0.b32.cont [10/16] 0.0, 128
      %8241 = vxpose.xlu0.b32.cont [11/16] 0.0, 128
      %8242 = vxpose.xlu0.b32.cont [12/16] 0.0, 128
      %8243 = vxpose.xlu0.b32.cont [13/16] 0.0, 128
      %8244 = vxpose.xlu0.b32.cont [14/16] 0.0, 128
      %8245 = vxpose.xlu0.b32.cont [15/16] 0.0, 128
      %8246 = vxpose.xlu0.b32.end [16/16] 0.0, 128
      %v8247 = vpop.trf.xlu0
      %v8248 = vpop.trf.xlu0
      %v8249 = vpop.trf.xlu0
      %v8250 = vpop.trf.xlu0
      %v8251 = vpop.trf.xlu0
      %v8252 = vpop.trf.xlu0
      %v8253 = vpop.trf.xlu0
      %v8254 = vpop.trf.xlu0
      %v8255 = vpop.trf.xlu0
      %v8256 = vpop.trf.xlu0
      %v8257 = vpop.trf.xlu0
      %v8258 = vpop.trf.xlu0
      %v8259 = vpop.trf.xlu0
      %v8260 = vpop.trf.xlu0
      %v8261 = vpop.trf.xlu0
      %v8262 = vpop.trf.xlu0
      %s8263 = scalar_lea.vmem [#allocation2], 128
      %8264 = vst.msk [vmem:[%s8263 + $0x1] sm:$0xff] %vm385, %v8247
      %v8265 = vld [vmem:[#allocation2] sm:$0xff]
      %v8266 = vld [vmem:[#allocation2 + $0x10] sm:$0xff]
      %v8267 = vld [vmem:[#allocation2 + $0x20] sm:$0xff]
      %v8268 = vld [vmem:[#allocation2 + $0x30] sm:$0xff]
      %v8269 = vld [vmem:[#allocation2 + $0x40] sm:$0xff]
      %v8270 = vld [vmem:[#allocation2 + $0x50] sm:$0xff]
      %v8271 = vld [vmem:[#allocation2 + $0x60] sm:$0xff]
      %v8272 = vld [vmem:[#allocation2 + $0x70] sm:$0xff]
      %8273 = vst.msk [vmem:[#allocation4] sm:$0xff] %vm385, %v8265
      %8274 = vst.msk [vmem:[#allocation4 + $0x8] sm:$0xff] %vm385, %v8266
      %8275 = vst.msk [vmem:[#allocation4 + $0x10] sm:$0xff] %vm385, %v8267
      %8276 = vst.msk [vmem:[#allocation4 + $0x18] sm:$0xff] %vm385, %v8268
      %8277 = vst.msk [vmem:[#allocation4 + $0x20] sm:$0xff] %vm385, %v8269
      %8278 = vst.msk [vmem:[#allocation4 + $0x28] sm:$0xff] %vm385, %v8270
      %8279 = vst.msk [vmem:[#allocation4 + $0x30] sm:$0xff] %vm385, %v8271
      %8280 = vst.msk [vmem:[#allocation4 + $0x38] sm:$0xff] %vm385, %v8272
      %v8281 = vld [vmem:[#allocation2 + $0x1] sm:$0xff]
      %v8282 = vld [vmem:[#allocation2 + $0x11] sm:$0xff]
      %v8283 = vld [vmem:[#allocation2 + $0x21] sm:$0xff]
      %v8284 = vld [vmem:[#allocation2 + $0x31] sm:$0xff]
      %v8285 = vld [vmem:[#allocation2 + $0x41] sm:$0xff]
      %v8286 = vld [vmem:[#allocation2 + $0x51] sm:$0xff]
      %v8287 = vld [vmem:[#allocation2 + $0x61] sm:$0xff]
      %v8288 = vld [vmem:[#allocation2 + $0x71] sm:$0xff]
      %8297 = vrot.lane.b32.xlu0 %v8281, 4
      %v8298 = vpop.permute.xlu0 %8297
      %8299 = vrot.lane.b32.xlu0 %v8282, 4
      %v8300 = vpop.permute.xlu0 %8299
      %8301 = vrot.lane.b32.xlu0 %v8283, 4
      %v8302 = vpop.permute.xlu0 %8301
      %8303 = vrot.lane.b32.xlu0 %v8284, 4
      %v8304 = vpop.permute.xlu0 %8303
      %8305 = vrot.lane.b32.xlu0 %v8285, 4
      %v8306 = vpop.permute.xlu0 %8305
      %8307 = vrot.lane.b32.xlu0 %v8286, 4
      %v8308 = vpop.permute.xlu0 %8307
      %8309 = vrot.lane.b32.xlu0 %v8287, 4
      %v8310 = vpop.permute.xlu0 %8309
      %8311 = vrot.lane.b32.xlu0 %v8288, 4
      %v8312 = vpop.permute.xlu0 %8311
      %vm8321 = vcmask 64544
      %8322 = vst.msk [vmem:[#allocation4] sm:$0xff] %vm8321, %v8298
      %8323 = vst.msk [vmem:[#allocation4 + $0x8] sm:$0xff] %vm8321, %v8300
      %8324 = vst.msk [vmem:[#allocation4 + $0x10] sm:$0xff] %vm8321, %v8302
      %8325 = vst.msk [vmem:[#allocation4 + $0x18] sm:$0xff] %vm8321, %v8304
      %8326 = vst.msk [vmem:[#allocation4 + $0x20] sm:$0xff] %vm8321, %v8306
      %8327 = vst.msk [vmem:[#allocation4 + $0x28] sm:$0xff] %vm8321, %v8308
      %8328 = vst.msk [vmem:[#allocation4 + $0x30] sm:$0xff] %vm8321, %v8310
      %8329 = vst.msk [vmem:[#allocation4 + $0x38] sm:$0xff] %vm8321, %v8312
      %v8330 = vld [vmem:[#allocation2 + $0x2] sm:$0xff]
      %v8331 = vld [vmem:[#allocation2 + $0x12] sm:$0xff]
      %v8332 = vld [vmem:[#allocation2 + $0x22] sm:$0xff]
      %v8333 = vld [vmem:[#allocation2 + $0x32] sm:$0xff]
      %v8334 = vld [vmem:[#allocation2 + $0x42] sm:$0xff]
      %v8335 = vld [vmem:[#allocation2 + $0x52] sm:$0xff]
      %v8336 = vld [vmem:[#allocation2 + $0x62] sm:$0xff]
      %v8337 = vld [vmem:[#allocation2 + $0x72] sm:$0xff]
      %8346 = vrot.lane.b32.xlu0 %v8330, 8
      %v8347 = vpop.permute.xlu0 %8346
      %8348 = vrot.lane.b32.xlu0 %v8331, 8
      %v8349 = vpop.permute.xlu0 %8348
      %8350 = vrot.lane.b32.xlu0 %v8332, 8
      %v8351 = vpop.permute.xlu0 %8350
      %8352 = vrot.lane.b32.xlu0 %v8333, 8
      %v8353 = vpop.permute.xlu0 %8352
      %8354 = vrot.lane.b32.xlu0 %v8334, 8
      %v8355 = vpop.permute.xlu0 %8354
      %8356 = vrot.lane.b32.xlu0 %v8335, 8
      %v8357 = vpop.permute.xlu0 %8356
      %8358 = vrot.lane.b32.xlu0 %v8336, 8
      %v8359 = vpop.permute.xlu0 %8358
      %8360 = vrot.lane.b32.xlu0 %v8337, 8
      %v8361 = vpop.permute.xlu0 %8360
      %vm8370 = vcmask 97344
      %8371 = vst.msk [vmem:[#allocation4] sm:$0xff] %vm8370, %v8347
      %8372 = vst.msk [vmem:[#allocation4 + $0x8] sm:$0xff] %vm8370, %v8349
      %8373 = vst.msk [vmem:[#allocation4 + $0x10] sm:$0xff] %vm8370, %v8351
      %8374 = vst.msk [vmem:[#allocation4 + $0x18] sm:$0xff] %vm8370, %v8353
      %8375 = vst.msk [vmem:[#allocation4 + $0x20] sm:$0xff] %vm8370, %v8355
      %8376 = vst.msk [vmem:[#allocation4 + $0x28] sm:$0xff] %vm8370, %v8357
      %8377 = vst.msk [vmem:[#allocation4 + $0x30] sm:$0xff] %vm8370, %v8359
      %8378 = vst.msk [vmem:[#allocation4 + $0x38] sm:$0xff] %vm8370, %v8361
      %v8379 = vld [vmem:[%s1424] sm:$0xff]
      %v8380 = vld [vmem:[%s1424 + $0x10] sm:$0xff]
      %v8381 = vld [vmem:[%s1424 + $0x20] sm:$0xff]
      %v8382 = vld [vmem:[%s1424 + $0x30] sm:$0xff]
      %v8383 = vld [vmem:[%s1424 + $0x40] sm:$0xff]
      %v8384 = vld [vmem:[%s1424 + $0x50] sm:$0xff]
      %v8385 = vld [vmem:[%s1424 + $0x60] sm:$0xff]
      %v8386 = vld [vmem:[%s1424 + $0x70] sm:$0xff]
      %8395 = vrot.lane.b32.xlu0 %v8379, 12
      %v8396 = vpop.permute.xlu0 %8395
      %8397 = vrot.lane.b32.xlu0 %v8380, 12
      %v8398 = vpop.permute.xlu0 %8397
      %8399 = vrot.lane.b32.xlu0 %v8381, 12
      %v8400 = vpop.permute.xlu0 %8399
      %8401 = vrot.lane.b32.xlu0 %v8382, 12
      %v8402 = vpop.permute.xlu0 %8401
      %8403 = vrot.lane.b32.xlu0 %v8383, 12
      %v8404 = vpop.permute.xlu0 %8403
      %8405 = vrot.lane.b32.xlu0 %v8384, 12
      %v8406 = vpop.permute.xlu0 %8405
      %8407 = vrot.lane.b32.xlu0 %v8385, 12
      %v8408 = vpop.permute.xlu0 %8407
      %8409 = vrot.lane.b32.xlu0 %v8386, 12
      %v8410 = vpop.permute.xlu0 %8409
      %vm8419 = vcmask 130144
      %8420 = vst.msk [vmem:[#allocation4] sm:$0xff] %vm8419, %v8396
      %8421 = vst.msk [vmem:[#allocation4 + $0x8] sm:$0xff] %vm8419, %v8398
      %8422 = vst.msk [vmem:[#allocation4 + $0x10] sm:$0xff] %vm8419, %v8400
      %8423 = vst.msk [vmem:[#allocation4 + $0x18] sm:$0xff] %vm8419, %v8402
      %8424 = vst.msk [vmem:[#allocation4 + $0x20] sm:$0xff] %vm8419, %v8404
      %8425 = vst.msk [vmem:[#allocation4 + $0x28] sm:$0xff] %vm8419, %v8406
      %8426 = vst.msk [vmem:[#allocation4 + $0x30] sm:$0xff] %vm8419, %v8408
      %8427 = vst.msk [vmem:[#allocation4 + $0x38] sm:$0xff] %vm8419, %v8410
      %v8428 = vld [vmem:[%s1424 + $0x1] sm:$0xff]
      %v8429 = vld [vmem:[%s1424 + $0x11] sm:$0xff]
      %v8430 = vld [vmem:[%s1424 + $0x21] sm:$0xff]
      %v8431 = vld [vmem:[%s1424 + $0x31] sm:$0xff]
      %v8432 = vld [vmem:[%s1424 + $0x41] sm:$0xff]
      %v8433 = vld [vmem:[%s1424 + $0x51] sm:$0xff]
      %v8434 = vld [vmem:[%s1424 + $0x61] sm:$0xff]
      %v8435 = vld [vmem:[%s1424 + $0x71] sm:$0xff]
      %8444 = vrot.lane.b32.xlu0 %v8428, 16
      %v8445 = vpop.permute.xlu0 %8444
      %8446 = vrot.lane.b32.xlu0 %v8429, 16
      %v8447 = vpop.permute.xlu0 %8446
      %8448 = vrot.lane.b32.xlu0 %v8430, 16
      %v8449 = vpop.permute.xlu0 %8448
      %8450 = vrot.lane.b32.xlu0 %v8431, 16
      %v8451 = vpop.permute.xlu0 %8450
      %8452 = vrot.lane.b32.xlu0 %v8432, 16
      %v8453 = vpop.permute.xlu0 %8452
      %8454 = vrot.lane.b32.xlu0 %v8433, 16
      %v8455 = vpop.permute.xlu0 %8454
      %8456 = vrot.lane.b32.xlu0 %v8434, 16
      %v8457 = vpop.permute.xlu0 %8456
      %8458 = vrot.lane.b32.xlu0 %v8435, 16
      %v8459 = vpop.permute.xlu0 %8458
      %vm8468 = vcmask 162944
      %8469 = vst.msk [vmem:[#allocation4] sm:$0xff] %vm8468, %v8445
      %8470 = vst.msk [vmem:[#allocation4 + $0x8] sm:$0xff] %vm8468, %v8447
      %8471 = vst.msk [vmem:[#allocation4 + $0x10] sm:$0xff] %vm8468, %v8449
      %8472 = vst.msk [vmem:[#allocation4 + $0x18] sm:$0xff] %vm8468, %v8451
      %8473 = vst.msk [vmem:[#allocation4 + $0x20] sm:$0xff] %vm8468, %v8453
      %8474 = vst.msk [vmem:[#allocation4 + $0x28] sm:$0xff] %vm8468, %v8455
      %8475 = vst.msk [vmem:[#allocation4 + $0x30] sm:$0xff] %vm8468, %v8457
      %8476 = vst.msk [vmem:[#allocation4 + $0x38] sm:$0xff] %vm8468, %v8459
      %v8477 = vld [vmem:[%s1424 + $0x2] sm:$0xff]
      %v8478 = vld [vmem:[%s1424 + $0x12] sm:$0xff]
      %v8479 = vld [vmem:[%s1424 + $0x22] sm:$0xff]
      %v8480 = vld [vmem:[%s1424 + $0x32] sm:$0xff]
      %v8481 = vld [vmem:[%s1424 + $0x42] sm:$0xff]
      %v8482 = vld [vmem:[%s1424 + $0x52] sm:$0xff]
      %v8483 = vld [vmem:[%s1424 + $0x62] sm:$0xff]
      %v8484 = vld [vmem:[%s1424 + $0x72] sm:$0xff]
      %8493 = vrot.lane.b32.xlu0 %v8477, 20
      %v8494 = vpop.permute.xlu0 %8493
      %8495 = vrot.lane.b32.xlu0 %v8478, 20
      %v8496 = vpop.permute.xlu0 %8495
      %8497 = vrot.lane.b32.xlu0 %v8479, 20
      %v8498 = vpop.permute.xlu0 %8497
      %8499 = vrot.lane.b32.xlu0 %v8480, 20
      %v8500 = vpop.permute.xlu0 %8499
      %8501 = vrot.lane.b32.xlu0 %v8481, 20
      %v8502 = vpop.permute.xlu0 %8501
      %8503 = vrot.lane.b32.xlu0 %v8482, 20
      %v8504 = vpop.permute.xlu0 %8503
      %8505 = vrot.lane.b32.xlu0 %v8483, 20
      %v8506 = vpop.permute.xlu0 %8505
      %8507 = vrot.lane.b32.xlu0 %v8484, 20
      %v8508 = vpop.permute.xlu0 %8507
      %vm8517 = vcmask 195744
      %8518 = vst.msk [vmem:[#allocation4] sm:$0xff] %vm8517, %v8494
      %8519 = vst.msk [vmem:[#allocation4 + $0x8] sm:$0xff] %vm8517, %v8496
      %8520 = vst.msk [vmem:[#allocation4 + $0x10] sm:$0xff] %vm8517, %v8498
      %8521 = vst.msk [vmem:[#allocation4 + $0x18] sm:$0xff] %vm8517, %v8500
      %8522 = vst.msk [vmem:[#allocation4 + $0x20] sm:$0xff] %vm8517, %v8502
      %8523 = vst.msk [vmem:[#allocation4 + $0x28] sm:$0xff] %vm8517, %v8504
      %8524 = vst.msk [vmem:[#allocation4 + $0x30] sm:$0xff] %vm8517, %v8506
      %8525 = vst.msk [vmem:[#allocation4 + $0x38] sm:$0xff] %vm8517, %v8508
      %v8526 = vld [vmem:[%s2401] sm:$0xff]
      %v8527 = vld [vmem:[%s2401 + $0x10] sm:$0xff]
      %v8528 = vld [vmem:[%s2401 + $0x20] sm:$0xff]
      %v8529 = vld [vmem:[%s2401 + $0x30] sm:$0xff]
      %v8530 = vld [vmem:[%s2401 + $0x40] sm:$0xff]
      %v8531 = vld [vmem:[%s2401 + $0x50] sm:$0xff]
      %v8532 = vld [vmem:[%s2401 + $0x60] sm:$0xff]
      %v8533 = vld [vmem:[%s2401 + $0x70] sm:$0xff]
      %8542 = vrot.lane.b32.xlu0 %v8526, 24
      %v8543 = vpop.permute.xlu0 %8542
      %8544 = vrot.lane.b32.xlu0 %v8527, 24
      %v8545 = vpop.permute.xlu0 %8544
      %8546 = vrot.lane.b32.xlu0 %v8528, 24
      %v8547 = vpop.permute.xlu0 %8546
      %8548 = vrot.lane.b32.xlu0 %v8529, 24
      %v8549 = vpop.permute.xlu0 %8548
      %8550 = vrot.lane.b32.xlu0 %v8530, 24
      %v8551 = vpop.permute.xlu0 %8550
      %8552 = vrot.lane.b32.xlu0 %v8531, 24
      %v8553 = vpop.permute.xlu0 %8552
      %8554 = vrot.lane.b32.xlu0 %v8532, 24
      %v8555 = vpop.permute.xlu0 %8554
      %8556 = vrot.lane.b32.xlu0 %v8533, 24
      %v8557 = vpop.permute.xlu0 %8556
      %vm8566 = vcmask 228544
      %8567 = vst.msk [vmem:[#allocation4] sm:$0xff] %vm8566, %v8543
      %8568 = vst.msk [vmem:[#allocation4 + $0x8] sm:$0xff] %vm8566, %v8545
      %8569 = vst.msk [vmem:[#allocation4 + $0x10] sm:$0xff] %vm8566, %v8547
      %8570 = vst.msk [vmem:[#allocation4 + $0x18] sm:$0xff] %vm8566, %v8549
      %8571 = vst.msk [vmem:[#allocation4 + $0x20] sm:$0xff] %vm8566, %v8551
      %8572 = vst.msk [vmem:[#allocation4 + $0x28] sm:$0xff] %vm8566, %v8553
      %8573 = vst.msk [vmem:[#allocation4 + $0x30] sm:$0xff] %vm8566, %v8555
      %8574 = vst.msk [vmem:[#allocation4 + $0x38] sm:$0xff] %vm8566, %v8557
      %v8575 = vld [vmem:[%s2401 + $0x1] sm:$0xff]
      %v8576 = vld [vmem:[%s2401 + $0x11] sm:$0xff]
      %v8577 = vld [vmem:[%s2401 + $0x21] sm:$0xff]
      %v8578 = vld [vmem:[%s2401 + $0x31] sm:$0xff]
      %v8579 = vld [vmem:[%s2401 + $0x41] sm:$0xff]
      %v8580 = vld [vmem:[%s2401 + $0x51] sm:$0xff]
      %v8581 = vld [vmem:[%s2401 + $0x61] sm:$0xff]
      %v8582 = vld [vmem:[%s2401 + $0x71] sm:$0xff]
      %8591 = vrot.lane.b32.xlu0 %v8575, 28
      %v8592 = vpop.permute.xlu0 %8591
      %8593 = vrot.lane.b32.xlu0 %v8576, 28
      %v8594 = vpop.permute.xlu0 %8593
      %8595 = vrot.lane.b32.xlu0 %v8577, 28
      %v8596 = vpop.permute.xlu0 %8595
      %8597 = vrot.lane.b32.xlu0 %v8578, 28
      %v8598 = vpop.permute.xlu0 %8597
      %8599 = vrot.lane.b32.xlu0 %v8579, 28
      %v8600 = vpop.permute.xlu0 %8599
      %8601 = vrot.lane.b32.xlu0 %v8580, 28
      %v8602 = vpop.permute.xlu0 %8601
      %8603 = vrot.lane.b32.xlu0 %v8581, 28
      %v8604 = vpop.permute.xlu0 %8603
      %8605 = vrot.lane.b32.xlu0 %v8582, 28
      %v8606 = vpop.permute.xlu0 %8605
      %vm8615 = vcmask 261344
      %8616 = vst.msk [vmem:[#allocation4] sm:$0xff] %vm8615, %v8592
      %8617 = vst.msk [vmem:[#allocation4 + $0x8] sm:$0xff] %vm8615, %v8594
      %8618 = vst.msk [vmem:[#allocation4 + $0x10] sm:$0xff] %vm8615, %v8596
      %8619 = vst.msk [vmem:[#allocation4 + $0x18] sm:$0xff] %vm8615, %v8598
      %8620 = vst.msk [vmem:[#allocation4 + $0x20] sm:$0xff] %vm8615, %v8600
      %8621 = vst.msk [vmem:[#allocation4 + $0x28] sm:$0xff] %vm8615, %v8602
      %8622 = vst.msk [vmem:[#allocation4 + $0x30] sm:$0xff] %vm8615, %v8604
      %8623 = vst.msk [vmem:[#allocation4 + $0x38] sm:$0xff] %vm8615, %v8606
      %v8624 = vld [vmem:[%s2401 + $0x2] sm:$0xff]
      %v8625 = vld [vmem:[%s2401 + $0x12] sm:$0xff]
      %v8626 = vld [vmem:[%s2401 + $0x22] sm:$0xff]
      %v8627 = vld [vmem:[%s2401 + $0x32] sm:$0xff]
      %v8628 = vld [vmem:[%s2401 + $0x42] sm:$0xff]
      %v8629 = vld [vmem:[%s2401 + $0x52] sm:$0xff]
      %v8630 = vld [vmem:[%s2401 + $0x62] sm:$0xff]
      %v8631 = vld [vmem:[%s2401 + $0x72] sm:$0xff]
      %8640 = vrot.lane.b32.xlu0 %v8624, 32
      %v8641 = vpop.permute.xlu0 %8640
      %8642 = vrot.lane.b32.xlu0 %v8625, 32
      %v8643 = vpop.permute.xlu0 %8642
      %8644 = vrot.lane.b32.xlu0 %v8626, 32
      %v8645 = vpop.permute.xlu0 %8644
      %8646 = vrot.lane.b32.xlu0 %v8627, 32
      %v8647 = vpop.permute.xlu0 %8646
      %8648 = vrot.lane.b32.xlu0 %v8628, 32
      %v8649 = vpop.permute.xlu0 %8648
      %8650 = vrot.lane.b32.xlu0 %v8629, 32
      %v8651 = vpop.permute.xlu0 %8650
      %8652 = vrot.lane.b32.xlu0 %v8630, 32
      %v8653 = vpop.permute.xlu0 %8652
      %8654 = vrot.lane.b32.xlu0 %v8631, 32
      %v8655 = vpop.permute.xlu0 %8654
      %vm8664 = vcmask 294144
      %8665 = vst.msk [vmem:[#allocation4] sm:$0xff] %vm8664, %v8641
      %8666 = vst.msk [vmem:[#allocation4 + $0x8] sm:$0xff] %vm8664, %v8643
      %8667 = vst.msk [vmem:[#allocation4 + $0x10] sm:$0xff] %vm8664, %v8645
      %8668 = vst.msk [vmem:[#allocation4 + $0x18] sm:$0xff] %vm8664, %v8647
      %8669 = vst.msk [vmem:[#allocation4 + $0x20] sm:$0xff] %vm8664, %v8649
      %8670 = vst.msk [vmem:[#allocation4 + $0x28] sm:$0xff] %vm8664, %v8651
      %8671 = vst.msk [vmem:[#allocation4 + $0x30] sm:$0xff] %vm8664, %v8653
      %8672 = vst.msk [vmem:[#allocation4 + $0x38] sm:$0xff] %vm8664, %v8655
      %v8673 = vld [vmem:[#allocation4] sm:$0xff]
      %v8674 = vld [vmem:[#allocation4 + $0x8] sm:$0xff]
      %v8675 = vld [vmem:[#allocation4 + $0x10] sm:$0xff]
      %v8676 = vld [vmem:[#allocation4 + $0x18] sm:$0xff]
      %v8677 = vld [vmem:[#allocation4 + $0x20] sm:$0xff]
      %v8678 = vld [vmem:[#allocation4 + $0x28] sm:$0xff]
      %v8679 = vld [vmem:[#allocation4 + $0x30] sm:$0xff]
      %v8680 = vld [vmem:[#allocation4 + $0x38] sm:$0xff]
      %v8681 = vld [vmem:[%s3] sm:$0xff]
      %v8682 = vld [vmem:[%s3 + $0x8] sm:$0xff]
      %v8683 = vld [vmem:[%s3 + $0x10] sm:$0xff]
      %v8684 = vld [vmem:[%s3 + $0x18] sm:$0xff]
      %v8685 = vld [vmem:[%s3 + $0x20] sm:$0xf]
      %vm8686 = vcmask 293888
      %v8688 = vsel %vm8686, %v8673, 0
      %v8691 = vsel %vm8686, %v8674, 0
      %v8694 = vsel %vm8686, %v8675, 0
      %v8697 = vsel %vm8686, %v8676, 0
      %v8700 = vsel %vm8686, %v8677, 0
      %v8703 = vsel %vm8686, %v8678, 0
      %v8706 = vsel %vm8686, %v8679, 0
      %v8709 = vsel %vm8686, %v8680, 0
      %vm8711 = vcmask 1043456
      %v8713 = vsel %vm8711, %v8685, 0
      %8715 = vmatprep.subr.mxu0 0.0
      %8716 = vmatpush1.msra.mxu0 0.0
      %8717 = vmatprep.subr.mxu0 0.0
      %8718 = vmatpush1.msra.mxu0 0.0
      %8719 = vmatprep.subr.mxu0 0.0
      %8720 = vmatpush1.msra.mxu0 0.0
      %8721 = vmatprep.subr.mxu0 0.0
      %8722 = vmatpush1.msra.mxu0 0.0
      %8723 = vmatprep.subr.mxu0 0.0
      %8724 = vmatpush1.msra.mxu0 0.0
      %8725 = vmatprep.subr.mxu0 0.0
      %8726 = vmatpush1.msra.mxu0 0.0
      %8727 = vmatprep.subr.mxu0 0.0
      %8728 = vmatpush1.msra.mxu0 0.0
      %8729 = vmatprep.subr.mxu0 0.0
      %8730 = vmatpush1.msra.mxu0 0.0
      %8731 = vmatprep.subr.mxu0 0.0
      %8732 = vmatpush1.msra.mxu0 0.0
      %8733 = vmatprep.subr.mxu0 0.0
      %8734 = vmatpush1.msra.mxu0 0.0
      %8735 = vmatprep.subr.mxu0 0.0
      %8736 = vmatpush1.msra.mxu0 0.0
      %8737 = vmatprep.subr.mxu0 0.0
      %v8738 = vand.u32 %v8713, 4294901760
      %8739 = vmatpush1.msra.mxu0 %v8738
      %8740 = vmatprep.subr.mxu0 0.0
      %v8741 = vand.u32 %v8684, 4294901760
      %8742 = vmatpush1.msra.mxu0 %v8741
      %8743 = vmatprep.subr.mxu0 0.0
      %v8744 = vand.u32 %v8683, 4294901760
      %8745 = vmatpush1.msra.mxu0 %v8744
      %8746 = vmatprep.subr.mxu0 0.0
      %v8747 = vand.u32 %v8682, 4294901760
      %8748 = vmatpush1.msra.mxu0 %v8747
      %8749 = vmatprep.subr.mxu0 0.0
      %v8750 = vand.u32 %v8681, 4294901760
      %8751 = vmatpush1.msra.mxu0 %v8750
      %8752 = vmatprep.subr.mxu0 0.0
      %8753 = vmatpush2.msra.mxu0 0.0
      %8754 = vmatprep.subr.mxu0 0.0
      %8755 = vmatpush2.msra.mxu0 0.0
      %8756 = vmatprep.subr.mxu0 0.0
      %8757 = vmatpush2.msra.mxu0 0.0
      %8758 = vmatprep.subr.mxu0 0.0
      %8759 = vmatpush2.msra.mxu0 0.0
      %8760 = vmatprep.subr.mxu0 0.0
      %8761 = vmatpush2.msra.mxu0 0.0
      %8762 = vmatprep.subr.mxu0 0.0
      %8763 = vmatpush2.msra.mxu0 0.0
      %8764 = vmatprep.subr.mxu0 0.0
      %8765 = vmatpush2.msra.mxu0 0.0
      %8766 = vmatprep.subr.mxu0 0.0
      %8767 = vmatpush2.msra.mxu0 0.0
      %8768 = vmatprep.subr.mxu0 0.0
      %8769 = vmatpush2.msra.mxu0 0.0
      %8770 = vmatprep.subr.mxu0 0.0
      %8771 = vmatpush2.msra.mxu0 0.0
      %8772 = vmatprep.subr.mxu0 0.0
      %8773 = vmatpush2.msra.mxu0 0.0
      %8774 = vmatprep.subr.mxu0 0.0
      %8775 = vmatpush2.msra.mxu0 0.0
      %8776 = vmatprep.subr.mxu0 0.0
      %8777 = vmatpush2.msra.mxu0 0.0
      %8778 = vmatprep.subr.mxu0 0.0
      %8779 = vmatpush2.msra.mxu0 0.0
      %8780 = vmatprep.subr.mxu0 0.0
      %8781 = vmatpush2.msra.mxu0 0.0
      %8782 = vmatprep.subr.mxu0 0.0
      %8783 = vmatpush2.msra.mxu0 0.0
      %8784 = vmatprep.mubr.f32.mxu0 0.0
      %v8785 = vand.u32 %v8688, 4294901760
      %v8786 = vsub.f32 %v8688, %v8785
      %v8787 = vand.u32 %v8786, 4294901760
      %v8788 = vsub.f32 %v8786, %v8787
      %v8789 = vand.u32 %v8788, 4294901760
      %8790 = vmatmul.mubr.f32.gmra.mxu0 %v8789
      %v8791 = vpop.f32.mrf.mxu0
      %v8792 = vadd.f32 0.0, %v8791
      %v8793 = vpop.f32.mrf.mxu0
      %8794 = vmatprep.mubr.f32.mxu0 0.0
      %v8795 = vand.u32 %v8691, 4294901760
      %v8796 = vsub.f32 %v8691, %v8795
      %v8797 = vand.u32 %v8796, 4294901760
      %v8798 = vsub.f32 %v8796, %v8797
      %v8799 = vand.u32 %v8798, 4294901760
      %8800 = vmatmul.mubr.f32.gmra.mxu0 %v8799
      %v8801 = vpop.f32.mrf.mxu0
      %v8802 = vadd.f32 0.0, %v8801
      %v8803 = vpop.f32.mrf.mxu0
      %8804 = vmatprep.mubr.f32.mxu0 0.0
      %v8805 = vand.u32 %v8694, 4294901760
      %v8806 = vsub.f32 %v8694, %v8805
      %v8807 = vand.u32 %v8806, 4294901760
      %v8808 = vsub.f32 %v8806, %v8807
      %v8809 = vand.u32 %v8808, 4294901760
      %8810 = vmatmul.mubr.f32.gmra.mxu0 %v8809
      %v8811 = vpop.f32.mrf.mxu0
      %v8812 = vadd.f32 0.0, %v8811
      %v8813 = vpop.f32.mrf.mxu0
      %8814 = vmatprep.mubr.f32.mxu0 0.0
      %v8815 = vand.u32 %v8697, 4294901760
      %v8816 = vsub.f32 %v8697, %v8815
      %v8817 = vand.u32 %v8816, 4294901760
      %v8818 = vsub.f32 %v8816, %v8817
      %v8819 = vand.u32 %v8818, 4294901760
      %8820 = vmatmul.mubr.f32.gmra.mxu0 %v8819
      %v8821 = vpop.f32.mrf.mxu0
      %v8822 = vadd.f32 0.0, %v8821
      %v8823 = vpop.f32.mrf.mxu0
      %8824 = vmatprep.mubr.f32.mxu0 0.0
      %v8825 = vand.u32 %v8700, 4294901760
      %v8826 = vsub.f32 %v8700, %v8825
      %v8827 = vand.u32 %v8826, 4294901760
      %v8828 = vsub.f32 %v8826, %v8827
      %v8829 = vand.u32 %v8828, 4294901760
      %8830 = vmatmul.mubr.f32.gmra.mxu0 %v8829
      %v8831 = vpop.f32.mrf.mxu0
      %v8832 = vadd.f32 0.0, %v8831
      %v8833 = vpop.f32.mrf.mxu0
      %8834 = vmatprep.mubr.f32.mxu0 0.0
      %v8835 = vand.u32 %v8703, 4294901760
      %v8836 = vsub.f32 %v8703, %v8835
      %v8837 = vand.u32 %v8836, 4294901760
      %v8838 = vsub.f32 %v8836, %v8837
      %v8839 = vand.u32 %v8838, 4294901760
      %8840 = vmatmul.mubr.f32.gmra.mxu0 %v8839
      %v8841 = vpop.f32.mrf.mxu0
      %v8842 = vadd.f32 0.0, %v8841
      %v8843 = vpop.f32.mrf.mxu0
      %8844 = vmatprep.mubr.f32.mxu0 0.0
      %v8845 = vand.u32 %v8706, 4294901760
      %v8846 = vsub.f32 %v8706, %v8845
      %v8847 = vand.u32 %v8846, 4294901760
      %v8848 = vsub.f32 %v8846, %v8847
      %v8849 = vand.u32 %v8848, 4294901760
      %8850 = vmatmul.mubr.f32.gmra.mxu0 %v8849
      %v8851 = vpop.f32.mrf.mxu0
      %v8852 = vadd.f32 0.0, %v8851
      %v8853 = vpop.f32.mrf.mxu0
      %8854 = vmatprep.mubr.f32.mxu0 0.0
      %v8855 = vand.u32 %v8709, 4294901760
      %v8856 = vsub.f32 %v8709, %v8855
      %v8857 = vand.u32 %v8856, 4294901760
      %v8858 = vsub.f32 %v8856, %v8857
      %v8859 = vand.u32 %v8858, 4294901760
      %8860 = vmatmul.mubr.f32.gmra.mxu0 %v8859
      %v8861 = vpop.f32.mrf.mxu0
      %v8862 = vadd.f32 0.0, %v8861
      %v8863 = vpop.f32.mrf.mxu0
      %8864 = vdwg.mxu0
      %8865 = vmatprep.subr.mxu0 0.0
      %8866 = vmatpush1.msra.mxu0 0.0
      %8867 = vmatprep.subr.mxu0 0.0
      %8868 = vmatpush1.msra.mxu0 0.0
      %8869 = vmatprep.subr.mxu0 0.0
      %8870 = vmatpush1.msra.mxu0 0.0
      %8871 = vmatprep.subr.mxu0 0.0
      %8872 = vmatpush1.msra.mxu0 0.0
      %8873 = vmatprep.subr.mxu0 0.0
      %8874 = vmatpush1.msra.mxu0 0.0
      %8875 = vmatprep.subr.mxu0 0.0
      %8876 = vmatpush1.msra.mxu0 0.0
      %8877 = vmatprep.subr.mxu0 0.0
      %8878 = vmatpush1.msra.mxu0 0.0
      %8879 = vmatprep.subr.mxu0 0.0
      %8880 = vmatpush1.msra.mxu0 0.0
      %8881 = vmatprep.subr.mxu0 0.0
      %8882 = vmatpush1.msra.mxu0 0.0
      %8883 = vmatprep.subr.mxu0 0.0
      %8884 = vmatpush1.msra.mxu0 0.0
      %8885 = vmatprep.subr.mxu0 0.0
      %8886 = vmatpush1.msra.mxu0 0.0
      %8887 = vmatprep.subr.mxu0 0.0
      %v8888 = vand.u32 %v8713, 4294901760
      %v8889 = vsub.f32 %v8713, %v8888
      %v8890 = vand.u32 %v8889, 4294901760
      %v8891 = vsub.f32 %v8889, %v8890
      %v8892 = vand.u32 %v8891, 4294901760
      %8893 = vmatpush1.msra.mxu0 %v8892
      %8894 = vmatprep.subr.mxu0 0.0
      %v8895 = vand.u32 %v8684, 4294901760
      %v8896 = vsub.f32 %v8684, %v8895
      %v8897 = vand.u32 %v8896, 4294901760
      %v8898 = vsub.f32 %v8896, %v8897
      %v8899 = vand.u32 %v8898, 4294901760
      %8900 = vmatpush1.msra.mxu0 %v8899
      %8901 = vmatprep.subr.mxu0 0.0
      %v8902 = vand.u32 %v8683, 4294901760
      %v8903 = vsub.f32 %v8683, %v8902
      %v8904 = vand.u32 %v8903, 4294901760
      %v8905 = vsub.f32 %v8903, %v8904
      %v8906 = vand.u32 %v8905, 4294901760
      %8907 = vmatpush1.msra.mxu0 %v8906
      %8908 = vmatprep.subr.mxu0 0.0
      %v8909 = vand.u32 %v8682, 4294901760
      %v8910 = vsub.f32 %v8682, %v8909
      %v8911 = vand.u32 %v8910, 4294901760
      %v8912 = vsub.f32 %v8910, %v8911
      %v8913 = vand.u32 %v8912, 4294901760
      %8914 = vmatpush1.msra.mxu0 %v8913
      %8915 = vmatprep.subr.mxu0 0.0
      %v8916 = vand.u32 %v8681, 4294901760
      %v8917 = vsub.f32 %v8681, %v8916
      %v8918 = vand.u32 %v8917, 4294901760
      %v8919 = vsub.f32 %v8917, %v8918
      %v8920 = vand.u32 %v8919, 4294901760
      %8921 = vmatpush1.msra.mxu0 %v8920
      %8922 = vmatprep.subr.mxu0 0.0
      %8923 = vmatpush2.msra.mxu0 0.0
      %8924 = vmatprep.subr.mxu0 0.0
      %8925 = vmatpush2.msra.mxu0 0.0
      %8926 = vmatprep.subr.mxu0 0.0
      %8927 = vmatpush2.msra.mxu0 0.0
      %8928 = vmatprep.subr.mxu0 0.0
      %8929 = vmatpush2.msra.mxu0 0.0
      %8930 = vmatprep.subr.mxu0 0.0
      %8931 = vmatpush2.msra.mxu0 0.0
      %8932 = vmatprep.subr.mxu0 0.0
      %8933 = vmatpush2.msra.mxu0 0.0
      %8934 = vmatprep.subr.mxu0 0.0
      %8935 = vmatpush2.msra.mxu0 0.0
      %8936 = vmatprep.subr.mxu0 0.0
      %8937 = vmatpush2.msra.mxu0 0.0
      %8938 = vmatprep.subr.mxu0 0.0
      %8939 = vmatpush2.msra.mxu0 0.0
      %8940 = vmatprep.subr.mxu0 0.0
      %8941 = vmatpush2.msra.mxu0 0.0
      %8942 = vmatprep.subr.mxu0 0.0
      %8943 = vmatpush2.msra.mxu0 0.0
      %8944 = vmatprep.subr.mxu0 0.0
      %8945 = vmatpush2.msra.mxu0 0.0
      %8946 = vmatprep.subr.mxu0 0.0
      %8947 = vmatpush2.msra.mxu0 0.0
      %8948 = vmatprep.subr.mxu0 0.0
      %8949 = vmatpush2.msra.mxu0 0.0
      %8950 = vmatprep.subr.mxu0 0.0
      %8951 = vmatpush2.msra.mxu0 0.0
      %8952 = vmatprep.subr.mxu0 0.0
      %8953 = vmatpush2.msra.mxu0 0.0
      %8954 = vmatprep.mubr.f32.mxu0 0.0
      %v8955 = vand.u32 %v8688, 4294901760
      %8956 = vmatmul.mubr.f32.gmra.mxu0 %v8955
      %v8957 = vpop.f32.mrf.mxu0
      %v8958 = vadd.f32 %v8792, %v8957
      %v8959 = vpop.f32.mrf.mxu0
      %8960 = vmatprep.mubr.f32.mxu0 0.0
      %v8961 = vand.u32 %v8691, 4294901760
      %8962 = vmatmul.mubr.f32.gmra.mxu0 %v8961
      %v8963 = vpop.f32.mrf.mxu0
      %v8964 = vadd.f32 %v8802, %v8963
      %v8965 = vpop.f32.mrf.mxu0
      %8966 = vmatprep.mubr.f32.mxu0 0.0
      %v8967 = vand.u32 %v8694, 4294901760
      %8968 = vmatmul.mubr.f32.gmra.mxu0 %v8967
      %v8969 = vpop.f32.mrf.mxu0
      %v8970 = vadd.f32 %v8812, %v8969
      %v8971 = vpop.f32.mrf.mxu0
      %8972 = vmatprep.mubr.f32.mxu0 0.0
      %v8973 = vand.u32 %v8697, 4294901760
      %8974 = vmatmul.mubr.f32.gmra.mxu0 %v8973
      %v8975 = vpop.f32.mrf.mxu0
      %v8976 = vadd.f32 %v8822, %v8975
      %v8977 = vpop.f32.mrf.mxu0
      %8978 = vmatprep.mubr.f32.mxu0 0.0
      %v8979 = vand.u32 %v8700, 4294901760
      %8980 = vmatmul.mubr.f32.gmra.mxu0 %v8979
      %v8981 = vpop.f32.mrf.mxu0
      %v8982 = vadd.f32 %v8832, %v8981
      %v8983 = vpop.f32.mrf.mxu0
      %8984 = vmatprep.mubr.f32.mxu0 0.0
      %v8985 = vand.u32 %v8703, 4294901760
      %8986 = vmatmul.mubr.f32.gmra.mxu0 %v8985
      %v8987 = vpop.f32.mrf.mxu0
      %v8988 = vadd.f32 %v8842, %v8987
      %v8989 = vpop.f32.mrf.mxu0
      %8990 = vmatprep.mubr.f32.mxu0 0.0
      %v8991 = vand.u32 %v8706, 4294901760
      %8992 = vmatmul.mubr.f32.gmra.mxu0 %v8991
      %v8993 = vpop.f32.mrf.mxu0
      %v8994 = vadd.f32 %v8852, %v8993
      %v8995 = vpop.f32.mrf.mxu0
      %8996 = vmatprep.mubr.f32.mxu0 0.0
      %v8997 = vand.u32 %v8709, 4294901760
      %8998 = vmatmul.mubr.f32.gmra.mxu0 %v8997
      %v8999 = vpop.f32.mrf.mxu0
      %v9000 = vadd.f32 %v8862, %v8999
      %v9001 = vpop.f32.mrf.mxu0
      %9002 = vdwg.mxu0
      %9003 = vmatprep.subr.mxu0 0.0
      %9004 = vmatpush1.msra.mxu0 0.0
      %9005 = vmatprep.subr.mxu0 0.0
      %9006 = vmatpush1.msra.mxu0 0.0
      %9007 = vmatprep.subr.mxu0 0.0
      %9008 = vmatpush1.msra.mxu0 0.0
      %9009 = vmatprep.subr.mxu0 0.0
      %9010 = vmatpush1.msra.mxu0 0.0
      %9011 = vmatprep.subr.mxu0 0.0
      %9012 = vmatpush1.msra.mxu0 0.0
      %9013 = vmatprep.subr.mxu0 0.0
      %9014 = vmatpush1.msra.mxu0 0.0
      %9015 = vmatprep.subr.mxu0 0.0
      %9016 = vmatpush1.msra.mxu0 0.0
      %9017 = vmatprep.subr.mxu0 0.0
      %9018 = vmatpush1.msra.mxu0 0.0
      %9019 = vmatprep.subr.mxu0 0.0
      %9020 = vmatpush1.msra.mxu0 0.0
      %9021 = vmatprep.subr.mxu0 0.0
      %9022 = vmatpush1.msra.mxu0 0.0
      %9023 = vmatprep.subr.mxu0 0.0
      %9024 = vmatpush1.msra.mxu0 0.0
      %9025 = vmatprep.subr.mxu0 0.0
      %v9026 = vand.u32 %v8713, 4294901760
      %v9027 = vsub.f32 %v8713, %v9026
      %9028 = vmatpush1.msra.mxu0 %v9027
      %9029 = vmatprep.subr.mxu0 0.0
      %v9030 = vand.u32 %v8684, 4294901760
      %v9031 = vsub.f32 %v8684, %v9030
      %9032 = vmatpush1.msra.mxu0 %v9031
      %9033 = vmatprep.subr.mxu0 0.0
      %v9034 = vand.u32 %v8683, 4294901760
      %v9035 = vsub.f32 %v8683, %v9034
      %9036 = vmatpush1.msra.mxu0 %v9035
      %9037 = vmatprep.subr.mxu0 0.0
      %v9038 = vand.u32 %v8682, 4294901760
      %v9039 = vsub.f32 %v8682, %v9038
      %9040 = vmatpush1.msra.mxu0 %v9039
      %9041 = vmatprep.subr.mxu0 0.0
      %v9042 = vand.u32 %v8681, 4294901760
      %v9043 = vsub.f32 %v8681, %v9042
      %9044 = vmatpush1.msra.mxu0 %v9043
      %9045 = vmatprep.subr.mxu0 0.0
      %9046 = vmatpush2.msra.mxu0 0.0
      %9047 = vmatprep.subr.mxu0 0.0
      %9048 = vmatpush2.msra.mxu0 0.0
      %9049 = vmatprep.subr.mxu0 0.0
      %9050 = vmatpush2.msra.mxu0 0.0
      %9051 = vmatprep.subr.mxu0 0.0
      %9052 = vmatpush2.msra.mxu0 0.0
      %9053 = vmatprep.subr.mxu0 0.0
      %9054 = vmatpush2.msra.mxu0 0.0
      %9055 = vmatprep.subr.mxu0 0.0
      %9056 = vmatpush2.msra.mxu0 0.0
      %9057 = vmatprep.subr.mxu0 0.0
      %9058 = vmatpush2.msra.mxu0 0.0
      %9059 = vmatprep.subr.mxu0 0.0
      %9060 = vmatpush2.msra.mxu0 0.0
      %9061 = vmatprep.subr.mxu0 0.0
      %9062 = vmatpush2.msra.mxu0 0.0
      %9063 = vmatprep.subr.mxu0 0.0
      %9064 = vmatpush2.msra.mxu0 0.0
      %9065 = vmatprep.subr.mxu0 0.0
      %9066 = vmatpush2.msra.mxu0 0.0
      %9067 = vmatprep.subr.mxu0 0.0
      %9068 = vmatpush2.msra.mxu0 0.0
      %9069 = vmatprep.subr.mxu0 0.0
      %9070 = vmatpush2.msra.mxu0 0.0
      %9071 = vmatprep.subr.mxu0 0.0
      %9072 = vmatpush2.msra.mxu0 0.0
      %9073 = vmatprep.subr.mxu0 0.0
      %9074 = vmatpush2.msra.mxu0 0.0
      %9075 = vmatprep.subr.mxu0 0.0
      %9076 = vmatpush2.msra.mxu0 0.0
      %9077 = vmatprep.mubr.f32.mxu0 0.0
      %v9078 = vand.u32 %v8688, 4294901760
      %v9079 = vsub.f32 %v8688, %v9078
      %9080 = vmatmul.mubr.f32.gmra.mxu0 %v9079
      %v9081 = vpop.f32.mrf.mxu0
      %v9082 = vadd.f32 %v8958, %v9081
      %v9083 = vpop.f32.mrf.mxu0
      %9084 = vmatprep.mubr.f32.mxu0 0.0
      %v9085 = vand.u32 %v8691, 4294901760
      %v9086 = vsub.f32 %v8691, %v9085
      %9087 = vmatmul.mubr.f32.gmra.mxu0 %v9086
      %v9088 = vpop.f32.mrf.mxu0
      %v9089 = vadd.f32 %v8964, %v9088
      %v9090 = vpop.f32.mrf.mxu0
      %9091 = vmatprep.mubr.f32.mxu0 0.0
      %v9092 = vand.u32 %v8694, 4294901760
      %v9093 = vsub.f32 %v8694, %v9092
      %9094 = vmatmul.mubr.f32.gmra.mxu0 %v9093
      %v9095 = vpop.f32.mrf.mxu0
      %v9096 = vadd.f32 %v8970, %v9095
      %v9097 = vpop.f32.mrf.mxu0
      %9098 = vmatprep.mubr.f32.mxu0 0.0
      %v9099 = vand.u32 %v8697, 4294901760
      %v9100 = vsub.f32 %v8697, %v9099
      %9101 = vmatmul.mubr.f32.gmra.mxu0 %v9100
      %v9102 = vpop.f32.mrf.mxu0
      %v9103 = vadd.f32 %v8976, %v9102
      %v9104 = vpop.f32.mrf.mxu0
      %9105 = vmatprep.mubr.f32.mxu0 0.0
      %v9106 = vand.u32 %v8700, 4294901760
      %v9107 = vsub.f32 %v8700, %v9106
      %9108 = vmatmul.mubr.f32.gmra.mxu0 %v9107
      %v9109 = vpop.f32.mrf.mxu0
      %v9110 = vadd.f32 %v8982, %v9109
      %v9111 = vpop.f32.mrf.mxu0
      %9112 = vmatprep.mubr.f32.mxu0 0.0
      %v9113 = vand.u32 %v8703, 4294901760
      %v9114 = vsub.f32 %v8703, %v9113
      %9115 = vmatmul.mubr.f32.gmra.mxu0 %v9114
      %v9116 = vpop.f32.mrf.mxu0
      %v9117 = vadd.f32 %v8988, %v9116
      %v9118 = vpop.f32.mrf.mxu0
      %9119 = vmatprep.mubr.f32.mxu0 0.0
      %v9120 = vand.u32 %v8706, 4294901760
      %v9121 = vsub.f32 %v8706, %v9120
      %9122 = vmatmul.mubr.f32.gmra.mxu0 %v9121
      %v9123 = vpop.f32.mrf.mxu0
      %v9124 = vadd.f32 %v8994, %v9123
      %v9125 = vpop.f32.mrf.mxu0
      %9126 = vmatprep.mubr.f32.mxu0 0.0
      %v9127 = vand.u32 %v8709, 4294901760
      %v9128 = vsub.f32 %v8709, %v9127
      %9129 = vmatmul.mubr.f32.gmra.mxu0 %v9128
      %v9130 = vpop.f32.mrf.mxu0
      %v9131 = vadd.f32 %v9000, %v9130
      %v9132 = vpop.f32.mrf.mxu0
      %9133 = vdwg.mxu0
      %9134 = vmatprep.subr.mxu0 0.0
      %9135 = vmatpush1.msra.mxu0 0.0
      %9136 = vmatprep.subr.mxu0 0.0
      %9137 = vmatpush1.msra.mxu0 0.0
      %9138 = vmatprep.subr.mxu0 0.0
      %9139 = vmatpush1.msra.mxu0 0.0
      %9140 = vmatprep.subr.mxu0 0.0
      %9141 = vmatpush1.msra.mxu0 0.0
      %9142 = vmatprep.subr.mxu0 0.0
      %9143 = vmatpush1.msra.mxu0 0.0
      %9144 = vmatprep.subr.mxu0 0.0
      %9145 = vmatpush1.msra.mxu0 0.0
      %9146 = vmatprep.subr.mxu0 0.0
      %9147 = vmatpush1.msra.mxu0 0.0
      %9148 = vmatprep.subr.mxu0 0.0
      %9149 = vmatpush1.msra.mxu0 0.0
      %9150 = vmatprep.subr.mxu0 0.0
      %9151 = vmatpush1.msra.mxu0 0.0
      %9152 = vmatprep.subr.mxu0 0.0
      %9153 = vmatpush1.msra.mxu0 0.0
      %9154 = vmatprep.subr.mxu0 0.0
      %9155 = vmatpush1.msra.mxu0 0.0
      %9156 = vmatprep.subr.mxu0 0.0
      %v9157 = vand.u32 %v8713, 4294901760
      %9158 = vmatpush1.msra.mxu0 %v9157
      %9159 = vmatprep.subr.mxu0 0.0
      %v9160 = vand.u32 %v8684, 4294901760
      %9161 = vmatpush1.msra.mxu0 %v9160
      %9162 = vmatprep.subr.mxu0 0.0
      %v9163 = vand.u32 %v8683, 4294901760
      %9164 = vmatpush1.msra.mxu0 %v9163
      %9165 = vmatprep.subr.mxu0 0.0
      %v9166 = vand.u32 %v8682, 4294901760
      %9167 = vmatpush1.msra.mxu0 %v9166
      %9168 = vmatprep.subr.mxu0 0.0
      %v9169 = vand.u32 %v8681, 4294901760
      %9170 = vmatpush1.msra.mxu0 %v9169
      %9171 = vmatprep.subr.mxu0 0.0
      %9172 = vmatpush2.msra.mxu0 0.0
      %9173 = vmatprep.subr.mxu0 0.0
      %9174 = vmatpush2.msra.mxu0 0.0
      %9175 = vmatprep.subr.mxu0 0.0
      %9176 = vmatpush2.msra.mxu0 0.0
      %9177 = vmatprep.subr.mxu0 0.0
      %9178 = vmatpush2.msra.mxu0 0.0
      %9179 = vmatprep.subr.mxu0 0.0
      %9180 = vmatpush2.msra.mxu0 0.0
      %9181 = vmatprep.subr.mxu0 0.0
      %9182 = vmatpush2.msra.mxu0 0.0
      %9183 = vmatprep.subr.mxu0 0.0
      %9184 = vmatpush2.msra.mxu0 0.0
      %9185 = vmatprep.subr.mxu0 0.0
      %9186 = vmatpush2.msra.mxu0 0.0
      %9187 = vmatprep.subr.mxu0 0.0
      %9188 = vmatpush2.msra.mxu0 0.0
      %9189 = vmatprep.subr.mxu0 0.0
      %9190 = vmatpush2.msra.mxu0 0.0
      %9191 = vmatprep.subr.mxu0 0.0
      %9192 = vmatpush2.msra.mxu0 0.0
      %9193 = vmatprep.subr.mxu0 0.0
      %9194 = vmatpush2.msra.mxu0 0.0
      %9195 = vmatprep.subr.mxu0 0.0
      %9196 = vmatpush2.msra.mxu0 0.0
      %9197 = vmatprep.subr.mxu0 0.0
      %9198 = vmatpush2.msra.mxu0 0.0
      %9199 = vmatprep.subr.mxu0 0.0
      %9200 = vmatpush2.msra.mxu0 0.0
      %9201 = vmatprep.subr.mxu0 0.0
      %9202 = vmatpush2.msra.mxu0 0.0
      %9203 = vmatprep.mubr.f32.mxu0 0.0
      %v9204 = vand.u32 %v8688, 4294901760
      %v9205 = vsub.f32 %v8688, %v9204
      %v9206 = vand.u32 %v9205, 4294901760
      %9207 = vmatmul.mubr.f32.gmra.mxu0 %v9206
      %v9208 = vpop.f32.mrf.mxu0
      %v9209 = vadd.f32 %v9082, %v9208
      %v9210 = vpop.f32.mrf.mxu0
      %9211 = vmatprep.mubr.f32.mxu0 0.0
      %v9212 = vand.u32 %v8691, 4294901760
      %v9213 = vsub.f32 %v8691, %v9212
      %v9214 = vand.u32 %v9213, 4294901760
      %9215 = vmatmul.mubr.f32.gmra.mxu0 %v9214
      %v9216 = vpop.f32.mrf.mxu0
      %v9217 = vadd.f32 %v9089, %v9216
      %v9218 = vpop.f32.mrf.mxu0
      %9219 = vmatprep.mubr.f32.mxu0 0.0
      %v9220 = vand.u32 %v8694, 4294901760
      %v9221 = vsub.f32 %v8694, %v9220
      %v9222 = vand.u32 %v9221, 4294901760
      %9223 = vmatmul.mubr.f32.gmra.mxu0 %v9222
      %v9224 = vpop.f32.mrf.mxu0
      %v9225 = vadd.f32 %v9096, %v9224
      %v9226 = vpop.f32.mrf.mxu0
      %9227 = vmatprep.mubr.f32.mxu0 0.0
      %v9228 = vand.u32 %v8697, 4294901760
      %v9229 = vsub.f32 %v8697, %v9228
      %v9230 = vand.u32 %v9229, 4294901760
      %9231 = vmatmul.mubr.f32.gmra.mxu0 %v9230
      %v9232 = vpop.f32.mrf.mxu0
      %v9233 = vadd.f32 %v9103, %v9232
      %v9234 = vpop.f32.mrf.mxu0
      %9235 = vmatprep.mubr.f32.mxu0 0.0
      %v9236 = vand.u32 %v8700, 4294901760
      %v9237 = vsub.f32 %v8700, %v9236
      %v9238 = vand.u32 %v9237, 4294901760
      %9239 = vmatmul.mubr.f32.gmra.mxu0 %v9238
      %v9240 = vpop.f32.mrf.mxu0
      %v9241 = vadd.f32 %v9110, %v9240
      %v9242 = vpop.f32.mrf.mxu0
      %9243 = vmatprep.mubr.f32.mxu0 0.0
      %v9244 = vand.u32 %v8703, 4294901760
      %v9245 = vsub.f32 %v8703, %v9244
      %v9246 = vand.u32 %v9245, 4294901760
      %9247 = vmatmul.mubr.f32.gmra.mxu0 %v9246
      %v9248 = vpop.f32.mrf.mxu0
      %v9249 = vadd.f32 %v9117, %v9248
      %v9250 = vpop.f32.mrf.mxu0
      %9251 = vmatprep.mubr.f32.mxu0 0.0
      %v9252 = vand.u32 %v8706, 4294901760
      %v9253 = vsub.f32 %v8706, %v9252
      %v9254 = vand.u32 %v9253, 4294901760
      %9255 = vmatmul.mubr.f32.gmra.mxu0 %v9254
      %v9256 = vpop.f32.mrf.mxu0
      %v9257 = vadd.f32 %v9124, %v9256
      %v9258 = vpop.f32.mrf.mxu0
      %9259 = vmatprep.mubr.f32.mxu0 0.0
      %v9260 = vand.u32 %v8709, 4294901760
      %v9261 = vsub.f32 %v8709, %v9260
      %v9262 = vand.u32 %v9261, 4294901760
      %9263 = vmatmul.mubr.f32.gmra.mxu0 %v9262
      %v9264 = vpop.f32.mrf.mxu0
      %v9265 = vadd.f32 %v9131, %v9264
      %v9266 = vpop.f32.mrf.mxu0
      %9267 = vdwg.mxu0
      %9268 = vmatprep.subr.mxu0 0.0
      %9269 = vmatpush1.msra.mxu0 0.0
      %9270 = vmatprep.subr.mxu0 0.0
      %9271 = vmatpush1.msra.mxu0 0.0
      %9272 = vmatprep.subr.mxu0 0.0
      %9273 = vmatpush1.msra.mxu0 0.0
      %9274 = vmatprep.subr.mxu0 0.0
      %9275 = vmatpush1.msra.mxu0 0.0
      %9276 = vmatprep.subr.mxu0 0.0
      %9277 = vmatpush1.msra.mxu0 0.0
      %9278 = vmatprep.subr.mxu0 0.0
      %9279 = vmatpush1.msra.mxu0 0.0
      %9280 = vmatprep.subr.mxu0 0.0
      %9281 = vmatpush1.msra.mxu0 0.0
      %9282 = vmatprep.subr.mxu0 0.0
      %9283 = vmatpush1.msra.mxu0 0.0
      %9284 = vmatprep.subr.mxu0 0.0
      %9285 = vmatpush1.msra.mxu0 0.0
      %9286 = vmatprep.subr.mxu0 0.0
      %9287 = vmatpush1.msra.mxu0 0.0
      %9288 = vmatprep.subr.mxu0 0.0
      %9289 = vmatpush1.msra.mxu0 0.0
      %9290 = vmatprep.subr.mxu0 0.0
      %v9291 = vand.u32 %v8713, 4294901760
      %v9292 = vsub.f32 %v8713, %v9291
      %v9293 = vand.u32 %v9292, 4294901760
      %9294 = vmatpush1.msra.mxu0 %v9293
      %9295 = vmatprep.subr.mxu0 0.0
      %v9296 = vand.u32 %v8684, 4294901760
      %v9297 = vsub.f32 %v8684, %v9296
      %v9298 = vand.u32 %v9297, 4294901760
      %9299 = vmatpush1.msra.mxu0 %v9298
      %9300 = vmatprep.subr.mxu0 0.0
      %v9301 = vand.u32 %v8683, 4294901760
      %v9302 = vsub.f32 %v8683, %v9301
      %v9303 = vand.u32 %v9302, 4294901760
      %9304 = vmatpush1.msra.mxu0 %v9303
      %9305 = vmatprep.subr.mxu0 0.0
      %v9306 = vand.u32 %v8682, 4294901760
      %v9307 = vsub.f32 %v8682, %v9306
      %v9308 = vand.u32 %v9307, 4294901760
      %9309 = vmatpush1.msra.mxu0 %v9308
      %9310 = vmatprep.subr.mxu0 0.0
      %v9311 = vand.u32 %v8681, 4294901760
      %v9312 = vsub.f32 %v8681, %v9311
      %v9313 = vand.u32 %v9312, 4294901760
      %9314 = vmatpush1.msra.mxu0 %v9313
      %9315 = vmatprep.subr.mxu0 0.0
      %9316 = vmatpush2.msra.mxu0 0.0
      %9317 = vmatprep.subr.mxu0 0.0
      %9318 = vmatpush2.msra.mxu0 0.0
      %9319 = vmatprep.subr.mxu0 0.0
      %9320 = vmatpush2.msra.mxu0 0.0
      %9321 = vmatprep.subr.mxu0 0.0
      %9322 = vmatpush2.msra.mxu0 0.0
      %9323 = vmatprep.subr.mxu0 0.0
      %9324 = vmatpush2.msra.mxu0 0.0
      %9325 = vmatprep.subr.mxu0 0.0
      %9326 = vmatpush2.msra.mxu0 0.0
      %9327 = vmatprep.subr.mxu0 0.0
      %9328 = vmatpush2.msra.mxu0 0.0
      %9329 = vmatprep.subr.mxu0 0.0
      %9330 = vmatpush2.msra.mxu0 0.0
      %9331 = vmatprep.subr.mxu0 0.0
      %9332 = vmatpush2.msra.mxu0 0.0
      %9333 = vmatprep.subr.mxu0 0.0
      %9334 = vmatpush2.msra.mxu0 0.0
      %9335 = vmatprep.subr.mxu0 0.0
      %9336 = vmatpush2.msra.mxu0 0.0
      %9337 = vmatprep.subr.mxu0 0.0
      %9338 = vmatpush2.msra.mxu0 0.0
      %9339 = vmatprep.subr.mxu0 0.0
      %9340 = vmatpush2.msra.mxu0 0.0
      %9341 = vmatprep.subr.mxu0 0.0
      %9342 = vmatpush2.msra.mxu0 0.0
      %9343 = vmatprep.subr.mxu0 0.0
      %9344 = vmatpush2.msra.mxu0 0.0
      %9345 = vmatprep.subr.mxu0 0.0
      %9346 = vmatpush2.msra.mxu0 0.0
      %9347 = vmatprep.mubr.f32.mxu0 0.0
      %v9348 = vand.u32 %v8688, 4294901760
      %9349 = vmatmul.mubr.f32.gmra.mxu0 %v9348
      %v9350 = vpop.f32.mrf.mxu0
      %v9351 = vadd.f32 %v9209, %v9350
      %v9352 = vpop.f32.mrf.mxu0
      %9353 = vmatprep.mubr.f32.mxu0 0.0
      %v9354 = vand.u32 %v8691, 4294901760
      %9355 = vmatmul.mubr.f32.gmra.mxu0 %v9354
      %v9356 = vpop.f32.mrf.mxu0
      %v9357 = vadd.f32 %v9217, %v9356
      %v9358 = vpop.f32.mrf.mxu0
      %9359 = vmatprep.mubr.f32.mxu0 0.0
      %v9360 = vand.u32 %v8694, 4294901760
      %9361 = vmatmul.mubr.f32.gmra.mxu0 %v9360
      %v9362 = vpop.f32.mrf.mxu0
      %v9363 = vadd.f32 %v9225, %v9362
      %v9364 = vpop.f32.mrf.mxu0
      %9365 = vmatprep.mubr.f32.mxu0 0.0
      %v9366 = vand.u32 %v8697, 4294901760
      %9367 = vmatmul.mubr.f32.gmra.mxu0 %v9366
      %v9368 = vpop.f32.mrf.mxu0
      %v9369 = vadd.f32 %v9233, %v9368
      %v9370 = vpop.f32.mrf.mxu0
      %9371 = vmatprep.mubr.f32.mxu0 0.0
      %v9372 = vand.u32 %v8700, 4294901760
      %9373 = vmatmul.mubr.f32.gmra.mxu0 %v9372
      %v9374 = vpop.f32.mrf.mxu0
      %v9375 = vadd.f32 %v9241, %v9374
      %v9376 = vpop.f32.mrf.mxu0
      %9377 = vmatprep.mubr.f32.mxu0 0.0
      %v9378 = vand.u32 %v8703, 4294901760
      %9379 = vmatmul.mubr.f32.gmra.mxu0 %v9378
      %v9380 = vpop.f32.mrf.mxu0
      %v9381 = vadd.f32 %v9249, %v9380
      %v9382 = vpop.f32.mrf.mxu0
      %9383 = vmatprep.mubr.f32.mxu0 0.0
      %v9384 = vand.u32 %v8706, 4294901760
      %9385 = vmatmul.mubr.f32.gmra.mxu0 %v9384
      %v9386 = vpop.f32.mrf.mxu0
      %v9387 = vadd.f32 %v9257, %v9386
      %v9388 = vpop.f32.mrf.mxu0
      %9389 = vmatprep.mubr.f32.mxu0 0.0
      %v9390 = vand.u32 %v8709, 4294901760
      %9391 = vmatmul.mubr.f32.gmra.mxu0 %v9390
      %v9392 = vpop.f32.mrf.mxu0
      %v9393 = vadd.f32 %v9265, %v9392
      %v9394 = vpop.f32.mrf.mxu0
      %9395 = vdwg.mxu0
      %9396 = vmatprep.subr.mxu0 0.0
      %9397 = vmatpush1.msra.mxu0 0.0
      %9398 = vmatprep.subr.mxu0 0.0
      %9399 = vmatpush1.msra.mxu0 0.0
      %9400 = vmatprep.subr.mxu0 0.0
      %9401 = vmatpush1.msra.mxu0 0.0
      %9402 = vmatprep.subr.mxu0 0.0
      %9403 = vmatpush1.msra.mxu0 0.0
      %9404 = vmatprep.subr.mxu0 0.0
      %9405 = vmatpush1.msra.mxu0 0.0
      %9406 = vmatprep.subr.mxu0 0.0
      %9407 = vmatpush1.msra.mxu0 0.0
      %9408 = vmatprep.subr.mxu0 0.0
      %9409 = vmatpush1.msra.mxu0 0.0
      %9410 = vmatprep.subr.mxu0 0.0
      %9411 = vmatpush1.msra.mxu0 0.0
      %9412 = vmatprep.subr.mxu0 0.0
      %9413 = vmatpush1.msra.mxu0 0.0
      %9414 = vmatprep.subr.mxu0 0.0
      %9415 = vmatpush1.msra.mxu0 0.0
      %9416 = vmatprep.subr.mxu0 0.0
      %9417 = vmatpush1.msra.mxu0 0.0
      %9418 = vmatprep.subr.mxu0 0.0
      %v9419 = vand.u32 %v8713, 4294901760
      %9420 = vmatpush1.msra.mxu0 %v9419
      %9421 = vmatprep.subr.mxu0 0.0
      %v9422 = vand.u32 %v8684, 4294901760
      %9423 = vmatpush1.msra.mxu0 %v9422
      %9424 = vmatprep.subr.mxu0 0.0
      %v9425 = vand.u32 %v8683, 4294901760
      %9426 = vmatpush1.msra.mxu0 %v9425
      %9427 = vmatprep.subr.mxu0 0.0
      %v9428 = vand.u32 %v8682, 4294901760
      %9429 = vmatpush1.msra.mxu0 %v9428
      %9430 = vmatprep.subr.mxu0 0.0
      %v9431 = vand.u32 %v8681, 4294901760
      %9432 = vmatpush1.msra.mxu0 %v9431
      %9433 = vmatprep.subr.mxu0 0.0
      %9434 = vmatpush2.msra.mxu0 0.0
      %9435 = vmatprep.subr.mxu0 0.0
      %9436 = vmatpush2.msra.mxu0 0.0
      %9437 = vmatprep.subr.mxu0 0.0
      %9438 = vmatpush2.msra.mxu0 0.0
      %9439 = vmatprep.subr.mxu0 0.0
      %9440 = vmatpush2.msra.mxu0 0.0
      %9441 = vmatprep.subr.mxu0 0.0
      %9442 = vmatpush2.msra.mxu0 0.0
      %9443 = vmatprep.subr.mxu0 0.0
      %9444 = vmatpush2.msra.mxu0 0.0
      %9445 = vmatprep.subr.mxu0 0.0
      %9446 = vmatpush2.msra.mxu0 0.0
      %9447 = vmatprep.subr.mxu0 0.0
      %9448 = vmatpush2.msra.mxu0 0.0
      %9449 = vmatprep.subr.mxu0 0.0
      %9450 = vmatpush2.msra.mxu0 0.0
      %9451 = vmatprep.subr.mxu0 0.0
      %9452 = vmatpush2.msra.mxu0 0.0
      %9453 = vmatprep.subr.mxu0 0.0
      %9454 = vmatpush2.msra.mxu0 0.0
      %9455 = vmatprep.subr.mxu0 0.0
      %9456 = vmatpush2.msra.mxu0 0.0
      %9457 = vmatprep.subr.mxu0 0.0
      %9458 = vmatpush2.msra.mxu0 0.0
      %9459 = vmatprep.subr.mxu0 0.0
      %9460 = vmatpush2.msra.mxu0 0.0
      %9461 = vmatprep.subr.mxu0 0.0
      %9462 = vmatpush2.msra.mxu0 0.0
      %9463 = vmatprep.subr.mxu0 0.0
      %9464 = vmatpush2.msra.mxu0 0.0
      %9465 = vmatprep.mubr.f32.mxu0 0.0
      %v9466 = vand.u32 %v8688, 4294901760
      %9467 = vmatmul.mubr.f32.gmra.mxu0 %v9466
      %v9468 = vpop.f32.mrf.mxu0
      %v9469 = vadd.f32 %v9351, %v9468
      %v9470 = vpop.f32.mrf.mxu0
      %9471 = vmatprep.mubr.f32.mxu0 0.0
      %v9472 = vand.u32 %v8691, 4294901760
      %9473 = vmatmul.mubr.f32.gmra.mxu0 %v9472
      %v9474 = vpop.f32.mrf.mxu0
      %v9475 = vadd.f32 %v9357, %v9474
      %v9476 = vpop.f32.mrf.mxu0
      %9477 = vmatprep.mubr.f32.mxu0 0.0
      %v9478 = vand.u32 %v8694, 4294901760
      %9479 = vmatmul.mubr.f32.gmra.mxu0 %v9478
      %v9480 = vpop.f32.mrf.mxu0
      %v9481 = vadd.f32 %v9363, %v9480
      %v9482 = vpop.f32.mrf.mxu0
      %9483 = vmatprep.mubr.f32.mxu0 0.0
      %v9484 = vand.u32 %v8697, 4294901760
      %9485 = vmatmul.mubr.f32.gmra.mxu0 %v9484
      %v9486 = vpop.f32.mrf.mxu0
      %v9487 = vadd.f32 %v9369, %v9486
      %v9488 = vpop.f32.mrf.mxu0
      %9489 = vmatprep.mubr.f32.mxu0 0.0
      %v9490 = vand.u32 %v8700, 4294901760
      %9491 = vmatmul.mubr.f32.gmra.mxu0 %v9490
      %v9492 = vpop.f32.mrf.mxu0
      %v9493 = vadd.f32 %v9375, %v9492
      %v9494 = vpop.f32.mrf.mxu0
      %9495 = vmatprep.mubr.f32.mxu0 0.0
      %v9496 = vand.u32 %v8703, 4294901760
      %9497 = vmatmul.mubr.f32.gmra.mxu0 %v9496
      %v9498 = vpop.f32.mrf.mxu0
      %v9499 = vadd.f32 %v9381, %v9498
      %v9500 = vpop.f32.mrf.mxu0
      %9501 = vmatprep.mubr.f32.mxu0 0.0
      %v9502 = vand.u32 %v8706, 4294901760
      %9503 = vmatmul.mubr.f32.gmra.mxu0 %v9502
      %v9504 = vpop.f32.mrf.mxu0
      %v9505 = vadd.f32 %v9387, %v9504
      %v9506 = vpop.f32.mrf.mxu0
      %9507 = vmatprep.mubr.f32.mxu0 0.0
      %v9508 = vand.u32 %v8709, 4294901760
      %9509 = vmatmul.mubr.f32.gmra.mxu0 %v9508
      %v9510 = vpop.f32.mrf.mxu0
      %v9511 = vadd.f32 %v9393, %v9510
      %v9512 = vpop.f32.mrf.mxu0
      %9513 = vdwg.mxu0
      %v9514 = vld [vmem:[%s4] sm:$0x1]
      %v9516 = vlaneseq
      %v9517 = vshrl.u32 %v9516, 7
      %v9518 = vsub.s32 0, %v9517
      %v9519 = vrot.slane %v9514, %v9518
      %v9521 = vmul.f32 %v9469, %v9519
      %v9522 = vmul.f32 %v9475, %v9519
      %v9523 = vmul.f32 %v9481, %v9519
      %v9524 = vmul.f32 %v9487, %v9519
      %v9525 = vmul.f32 %v9493, %v9519
      %v9526 = vmul.f32 %v9499, %v9519
      %v9527 = vmul.f32 %v9505, %v9519
      %v9528 = vmul.f32 %v9511, %v9519
      %v9529 = vld [vmem:[%s5] sm:$0x1]
      %v9531 = vlaneseq
      %v9532 = vshrl.u32 %v9531, 7
      %v9533 = vsub.s32 0, %v9532
      %v9534 = vrot.slane %v9529, %v9533
      %v9536 = vadd.f32 %v9521, %v9534
      %v9537 = vadd.f32 %v9522, %v9534
      %v9538 = vadd.f32 %v9523, %v9534
      %v9539 = vadd.f32 %v9524, %v9534
      %v9540 = vadd.f32 %v9525, %v9534
      %v9541 = vadd.f32 %v9526, %v9534
      %v9542 = vadd.f32 %v9527, %v9534
      %v9543 = vadd.f32 %v9528, %v9534
      %vm9544 = vcmp.gt.f32.partialorder %v9536, 0.0
      %vm9545 = vcmp.gt.f32.partialorder %v9537, 0.0
      %vm9546 = vcmp.gt.f32.partialorder %v9538, 0.0
      %vm9547 = vcmp.gt.f32.partialorder %v9539, 0.0
      %vm9548 = vcmp.gt.f32.partialorder %v9540, 0.0
      %vm9549 = vcmp.gt.f32.partialorder %v9541, 0.0
      %vm9550 = vcmp.gt.f32.partialorder %v9542, 0.0
      %vm9551 = vcmp.gt.f32.partialorder %v9543, 0.0
      %v9552 = vld [vmem:[%s6] sm:$0x1]
      %v9554 = vlaneseq
      %v9555 = vshrl.u32 %v9554, 7
      %v9556 = vsub.s32 0, %v9555
      %v9557 = vrot.slane %v9552, %v9556
      %v9559 = vmul.f32 %v9557, %v9536
      %v9560 = vmul.f32 %v9557, %v9537
      %v9561 = vmul.f32 %v9557, %v9538
      %v9562 = vmul.f32 %v9557, %v9539
      %v9563 = vmul.f32 %v9557, %v9540
      %v9564 = vmul.f32 %v9557, %v9541
      %v9565 = vmul.f32 %v9557, %v9542
      %v9566 = vmul.f32 %v9557, %v9543
      %v9567 = vsel %vm9544, %v9536, %v9559
      %v9568 = vsel %vm9545, %v9537, %v9560
      %v9569 = vsel %vm9546, %v9538, %v9561
      %v9570 = vsel %vm9547, %v9539, %v9562
      %v9571 = vsel %vm9548, %v9540, %v9563
      %v9572 = vsel %vm9549, %v9541, %v9564
      %v9573 = vsel %vm9550, %v9542, %v9565
      %v9574 = vsel %vm9551, %v9543, %v9566
      %s9575 = scalar_lea.vmem [#allocation3], 16
      %9576 = vst.msk [vmem:[%s9575 + $0x1] sm:$0xff] %vm413, %v9567
      %9577 = vst.msk [vmem:[%s9575 + $0x11] sm:$0xff] %vm413, %v9568
      %9578 = vst.msk [vmem:[%s9575 + $0x21] sm:$0xff] %vm413, %v9569
      %9579 = vst.msk [vmem:[%s9575 + $0x31] sm:$0xff] %vm413, %v9570
      %9580 = vst.msk [vmem:[%s9575 + $0x41] sm:$0xff] %vm413, %v9571
      %9581 = vst.msk [vmem:[%s9575 + $0x51] sm:$0xff] %vm413, %v9572
      %9582 = vst.msk [vmem:[%s9575 + $0x61] sm:$0xff] %vm413, %v9573
      %9583 = vst.msk [vmem:[%s9575 + $0x71] sm:$0xff] %vm413, %v9574
      %v9584 = vld [vmem:[#allocation3] sm:$0xff]
      %v9585 = vld [vmem:[#allocation3 + $0x10] sm:$0xff]
      %v9586 = vld [vmem:[#allocation3 + $0x20] sm:$0xff]
      %v9587 = vld [vmem:[#allocation3 + $0x30] sm:$0xff]
      %v9588 = vld [vmem:[#allocation3 + $0x40] sm:$0xff]
      %v9589 = vld [vmem:[#allocation3 + $0x50] sm:$0xff]
      %v9590 = vld [vmem:[#allocation3 + $0x60] sm:$0xff]
      %v9591 = vld [vmem:[#allocation3 + $0x70] sm:$0xff]
      %9592 = vst.msk [vmem:[#allocation5] sm:$0xff] %vm413, %v9584
      %9593 = vst.msk [vmem:[#allocation5 + $0x8] sm:$0xff] %vm413, %v9585
      %9594 = vst.msk [vmem:[#allocation5 + $0x10] sm:$0xff] %vm413, %v9586
      %9595 = vst.msk [vmem:[#allocation5 + $0x18] sm:$0xff] %vm413, %v9587
      %9596 = vst.msk [vmem:[#allocation5 + $0x20] sm:$0xff] %vm413, %v9588
      %9597 = vst.msk [vmem:[#allocation5 + $0x28] sm:$0xff] %vm413, %v9589
      %9598 = vst.msk [vmem:[#allocation5 + $0x30] sm:$0xff] %vm413, %v9590
      %9599 = vst.msk [vmem:[#allocation5 + $0x38] sm:$0xff] %vm413, %v9591
      %v9600 = vld [vmem:[#allocation3 + $0x1] sm:$0xff]
      %v9601 = vld [vmem:[#allocation3 + $0x11] sm:$0xff]
      %v9602 = vld [vmem:[#allocation3 + $0x21] sm:$0xff]
      %v9603 = vld [vmem:[#allocation3 + $0x31] sm:$0xff]
      %v9604 = vld [vmem:[#allocation3 + $0x41] sm:$0xff]
      %v9605 = vld [vmem:[#allocation3 + $0x51] sm:$0xff]
      %v9606 = vld [vmem:[#allocation3 + $0x61] sm:$0xff]
      %v9607 = vld [vmem:[#allocation3 + $0x71] sm:$0xff]
      %9616 = vrot.lane.b32.xlu0 %v9600, 8
      %v9617 = vpop.permute.xlu0 %9616
      %9618 = vrot.lane.b32.xlu0 %v9601, 8
      %v9619 = vpop.permute.xlu0 %9618
      %9620 = vrot.lane.b32.xlu0 %v9602, 8
      %v9621 = vpop.permute.xlu0 %9620
      %9622 = vrot.lane.b32.xlu0 %v9603, 8
      %v9623 = vpop.permute.xlu0 %9622
      %9624 = vrot.lane.b32.xlu0 %v9604, 8
      %v9625 = vpop.permute.xlu0 %9624
      %9626 = vrot.lane.b32.xlu0 %v9605, 8
      %v9627 = vpop.permute.xlu0 %9626
      %9628 = vrot.lane.b32.xlu0 %v9606, 8
      %v9629 = vpop.permute.xlu0 %9628
      %9630 = vrot.lane.b32.xlu0 %v9607, 8
      %v9631 = vpop.permute.xlu0 %9630
      %vm9640 = vcmask 130112
      %9641 = vst.msk [vmem:[#allocation5] sm:$0xff] %vm9640, %v9617
      %9642 = vst.msk [vmem:[#allocation5 + $0x8] sm:$0xff] %vm9640, %v9619
      %9643 = vst.msk [vmem:[#allocation5 + $0x10] sm:$0xff] %vm9640, %v9621
      %9644 = vst.msk [vmem:[#allocation5 + $0x18] sm:$0xff] %vm9640, %v9623
      %9645 = vst.msk [vmem:[#allocation5 + $0x20] sm:$0xff] %vm9640, %v9625
      %9646 = vst.msk [vmem:[#allocation5 + $0x28] sm:$0xff] %vm9640, %v9627
      %9647 = vst.msk [vmem:[#allocation5 + $0x30] sm:$0xff] %vm9640, %v9629
      %9648 = vst.msk [vmem:[#allocation5 + $0x38] sm:$0xff] %vm9640, %v9631
      %v9649 = vld [vmem:[#allocation3 + $0x2] sm:$0xff]
      %v9650 = vld [vmem:[#allocation3 + $0x12] sm:$0xff]
      %v9651 = vld [vmem:[#allocation3 + $0x22] sm:$0xff]
      %v9652 = vld [vmem:[#allocation3 + $0x32] sm:$0xff]
      %v9653 = vld [vmem:[#allocation3 + $0x42] sm:$0xff]
      %v9654 = vld [vmem:[#allocation3 + $0x52] sm:$0xff]
      %v9655 = vld [vmem:[#allocation3 + $0x62] sm:$0xff]
      %v9656 = vld [vmem:[#allocation3 + $0x72] sm:$0xff]
      %9665 = vrot.lane.b32.xlu0 %v9649, 16
      %v9666 = vpop.permute.xlu0 %9665
      %9667 = vrot.lane.b32.xlu0 %v9650, 16
      %v9668 = vpop.permute.xlu0 %9667
      %9669 = vrot.lane.b32.xlu0 %v9651, 16
      %v9670 = vpop.permute.xlu0 %9669
      %9671 = vrot.lane.b32.xlu0 %v9652, 16
      %v9672 = vpop.permute.xlu0 %9671
      %9673 = vrot.lane.b32.xlu0 %v9653, 16
      %v9674 = vpop.permute.xlu0 %9673
      %9675 = vrot.lane.b32.xlu0 %v9654, 16
      %v9676 = vpop.permute.xlu0 %9675
      %9677 = vrot.lane.b32.xlu0 %v9655, 16
      %v9678 = vpop.permute.xlu0 %9677
      %9679 = vrot.lane.b32.xlu0 %v9656, 16
      %v9680 = vpop.permute.xlu0 %9679
      %vm9689 = vcmask 195712
      %9690 = vst.msk [vmem:[#allocation5] sm:$0xff] %vm9689, %v9666
      %9691 = vst.msk [vmem:[#allocation5 + $0x8] sm:$0xff] %vm9689, %v9668
      %9692 = vst.msk [vmem:[#allocation5 + $0x10] sm:$0xff] %vm9689, %v9670
      %9693 = vst.msk [vmem:[#allocation5 + $0x18] sm:$0xff] %vm9689, %v9672
      %9694 = vst.msk [vmem:[#allocation5 + $0x20] sm:$0xff] %vm9689, %v9674
      %9695 = vst.msk [vmem:[#allocation5 + $0x28] sm:$0xff] %vm9689, %v9676
      %9696 = vst.msk [vmem:[#allocation5 + $0x30] sm:$0xff] %vm9689, %v9678
      %9697 = vst.msk [vmem:[#allocation5 + $0x38] sm:$0xff] %vm9689, %v9680
      %v9698 = vld [vmem:[%s9575] sm:$0xff]
      %v9699 = vld [vmem:[%s9575 + $0x10] sm:$0xff]
      %v9700 = vld [vmem:[%s9575 + $0x20] sm:$0xff]
      %v9701 = vld [vmem:[%s9575 + $0x30] sm:$0xff]
      %v9702 = vld [vmem:[%s9575 + $0x40] sm:$0xff]
      %v9703 = vld [vmem:[%s9575 + $0x50] sm:$0xff]
      %v9704 = vld [vmem:[%s9575 + $0x60] sm:$0xff]
      %v9705 = vld [vmem:[%s9575 + $0x70] sm:$0xff]
      %9714 = vrot.lane.b32.xlu0 %v9698, 24
      %v9715 = vpop.permute.xlu0 %9714
      %9716 = vrot.lane.b32.xlu0 %v9699, 24
      %v9717 = vpop.permute.xlu0 %9716
      %9718 = vrot.lane.b32.xlu0 %v9700, 24
      %v9719 = vpop.permute.xlu0 %9718
      %9720 = vrot.lane.b32.xlu0 %v9701, 24
      %v9721 = vpop.permute.xlu0 %9720
      %9722 = vrot.lane.b32.xlu0 %v9702, 24
      %v9723 = vpop.permute.xlu0 %9722
      %9724 = vrot.lane.b32.xlu0 %v9703, 24
      %v9725 = vpop.permute.xlu0 %9724
      %9726 = vrot.lane.b32.xlu0 %v9704, 24
      %v9727 = vpop.permute.xlu0 %9726
      %9728 = vrot.lane.b32.xlu0 %v9705, 24
      %v9729 = vpop.permute.xlu0 %9728
      %vm9738 = vcmask 261312
      %9739 = vst.msk [vmem:[#allocation5] sm:$0xff] %vm9738, %v9715
      %9740 = vst.msk [vmem:[#allocation5 + $0x8] sm:$0xff] %vm9738, %v9717
      %9741 = vst.msk [vmem:[#allocation5 + $0x10] sm:$0xff] %vm9738, %v9719
      %9742 = vst.msk [vmem:[#allocation5 + $0x18] sm:$0xff] %vm9738, %v9721
      %9743 = vst.msk [vmem:[#allocation5 + $0x20] sm:$0xff] %vm9738, %v9723
      %9744 = vst.msk [vmem:[#allocation5 + $0x28] sm:$0xff] %vm9738, %v9725
      %9745 = vst.msk [vmem:[#allocation5 + $0x30] sm:$0xff] %vm9738, %v9727
      %9746 = vst.msk [vmem:[#allocation5 + $0x38] sm:$0xff] %vm9738, %v9729
      %v9747 = vld [vmem:[%s9575 + $0x1] sm:$0xff]
      %v9748 = vld [vmem:[%s9575 + $0x11] sm:$0xff]
      %v9749 = vld [vmem:[%s9575 + $0x21] sm:$0xff]
      %v9750 = vld [vmem:[%s9575 + $0x31] sm:$0xff]
      %v9751 = vld [vmem:[%s9575 + $0x41] sm:$0xff]
      %v9752 = vld [vmem:[%s9575 + $0x51] sm:$0xff]
      %v9753 = vld [vmem:[%s9575 + $0x61] sm:$0xff]
      %v9754 = vld [vmem:[%s9575 + $0x71] sm:$0xff]
      %9763 = vrot.lane.b32.xlu0 %v9747, 32
      %v9764 = vpop.permute.xlu0 %9763
      %9765 = vrot.lane.b32.xlu0 %v9748, 32
      %v9766 = vpop.permute.xlu0 %9765
      %9767 = vrot.lane.b32.xlu0 %v9749, 32
      %v9768 = vpop.permute.xlu0 %9767
      %9769 = vrot.lane.b32.xlu0 %v9750, 32
      %v9770 = vpop.permute.xlu0 %9769
      %9771 = vrot.lane.b32.xlu0 %v9751, 32
      %v9772 = vpop.permute.xlu0 %9771
      %9773 = vrot.lane.b32.xlu0 %v9752, 32
      %v9774 = vpop.permute.xlu0 %9773
      %9775 = vrot.lane.b32.xlu0 %v9753, 32
      %v9776 = vpop.permute.xlu0 %9775
      %9777 = vrot.lane.b32.xlu0 %v9754, 32
      %v9778 = vpop.permute.xlu0 %9777
      %vm9787 = vcmask 326912
      %9788 = vst.msk [vmem:[#allocation5] sm:$0xff] %vm9787, %v9764
      %9789 = vst.msk [vmem:[#allocation5 + $0x8] sm:$0xff] %vm9787, %v9766
      %9790 = vst.msk [vmem:[#allocation5 + $0x10] sm:$0xff] %vm9787, %v9768
      %9791 = vst.msk [vmem:[#allocation5 + $0x18] sm:$0xff] %vm9787, %v9770
      %9792 = vst.msk [vmem:[#allocation5 + $0x20] sm:$0xff] %vm9787, %v9772
      %9793 = vst.msk [vmem:[#allocation5 + $0x28] sm:$0xff] %vm9787, %v9774
      %9794 = vst.msk [vmem:[#allocation5 + $0x30] sm:$0xff] %vm9787, %v9776
      %9795 = vst.msk [vmem:[#allocation5 + $0x38] sm:$0xff] %vm9787, %v9778
      %v9796 = vld [vmem:[%s9575 + $0x2] sm:$0xff]
      %v9797 = vld [vmem:[%s9575 + $0x12] sm:$0xff]
      %v9798 = vld [vmem:[%s9575 + $0x22] sm:$0xff]
      %v9799 = vld [vmem:[%s9575 + $0x32] sm:$0xff]
      %v9800 = vld [vmem:[%s9575 + $0x42] sm:$0xff]
      %v9801 = vld [vmem:[%s9575 + $0x52] sm:$0xff]
      %v9802 = vld [vmem:[%s9575 + $0x62] sm:$0xff]
      %v9803 = vld [vmem:[%s9575 + $0x72] sm:$0xff]
      %9812 = vrot.lane.b32.xlu0 %v9796, 40
      %v9813 = vpop.permute.xlu0 %9812
      %9814 = vrot.lane.b32.xlu0 %v9797, 40
      %v9815 = vpop.permute.xlu0 %9814
      %9816 = vrot.lane.b32.xlu0 %v9798, 40
      %v9817 = vpop.permute.xlu0 %9816
      %9818 = vrot.lane.b32.xlu0 %v9799, 40
      %v9819 = vpop.permute.xlu0 %9818
      %9820 = vrot.lane.b32.xlu0 %v9800, 40
      %v9821 = vpop.permute.xlu0 %9820
      %9822 = vrot.lane.b32.xlu0 %v9801, 40
      %v9823 = vpop.permute.xlu0 %9822
      %9824 = vrot.lane.b32.xlu0 %v9802, 40
      %v9825 = vpop.permute.xlu0 %9824
      %9826 = vrot.lane.b32.xlu0 %v9803, 40
      %v9827 = vpop.permute.xlu0 %9826
      %vm9836 = vcmask 392512
      %9837 = vst.msk [vmem:[#allocation5] sm:$0xff] %vm9836, %v9813
      %9838 = vst.msk [vmem:[#allocation5 + $0x8] sm:$0xff] %vm9836, %v9815
      %9839 = vst.msk [vmem:[#allocation5 + $0x10] sm:$0xff] %vm9836, %v9817
      %9840 = vst.msk [vmem:[#allocation5 + $0x18] sm:$0xff] %vm9836, %v9819
      %9841 = vst.msk [vmem:[#allocation5 + $0x20] sm:$0xff] %vm9836, %v9821
      %9842 = vst.msk [vmem:[#allocation5 + $0x28] sm:$0xff] %vm9836, %v9823
      %9843 = vst.msk [vmem:[#allocation5 + $0x30] sm:$0xff] %vm9836, %v9825
      %9844 = vst.msk [vmem:[#allocation5 + $0x38] sm:$0xff] %vm9836, %v9827
      %s9845 = scalar_lea.vmem [#allocation3], 32
      %v9846 = vld [vmem:[%s9845] sm:$0xff]
      %v9847 = vld [vmem:[%s9845 + $0x10] sm:$0xff]
      %v9848 = vld [vmem:[%s9845 + $0x20] sm:$0xff]
      %v9849 = vld [vmem:[%s9845 + $0x30] sm:$0xff]
      %v9850 = vld [vmem:[%s9845 + $0x40] sm:$0xff]
      %v9851 = vld [vmem:[%s9845 + $0x50] sm:$0xff]
      %v9852 = vld [vmem:[%s9845 + $0x60] sm:$0xff]
      %v9853 = vld [vmem:[%s9845 + $0x70] sm:$0xff]
      %9862 = vrot.lane.b32.xlu0 %v9846, 48
      %v9863 = vpop.permute.xlu0 %9862
      %9864 = vrot.lane.b32.xlu0 %v9847, 48
      %v9865 = vpop.permute.xlu0 %9864
      %9866 = vrot.lane.b32.xlu0 %v9848, 48
      %v9867 = vpop.permute.xlu0 %9866
      %9868 = vrot.lane.b32.xlu0 %v9849, 48
      %v9869 = vpop.permute.xlu0 %9868
      %9870 = vrot.lane.b32.xlu0 %v9850, 48
      %v9871 = vpop.permute.xlu0 %9870
      %9872 = vrot.lane.b32.xlu0 %v9851, 48
      %v9873 = vpop.permute.xlu0 %9872
      %9874 = vrot.lane.b32.xlu0 %v9852, 48
      %v9875 = vpop.permute.xlu0 %9874
      %9876 = vrot.lane.b32.xlu0 %v9853, 48
      %v9877 = vpop.permute.xlu0 %9876
      %vm9886 = vcmask 458112
      %9887 = vst.msk [vmem:[#allocation5] sm:$0xff] %vm9886, %v9863
      %9888 = vst.msk [vmem:[#allocation5 + $0x8] sm:$0xff] %vm9886, %v9865
      %9889 = vst.msk [vmem:[#allocation5 + $0x10] sm:$0xff] %vm9886, %v9867
      %9890 = vst.msk [vmem:[#allocation5 + $0x18] sm:$0xff] %vm9886, %v9869
      %9891 = vst.msk [vmem:[#allocation5 + $0x20] sm:$0xff] %vm9886, %v9871
      %9892 = vst.msk [vmem:[#allocation5 + $0x28] sm:$0xff] %vm9886, %v9873
      %9893 = vst.msk [vmem:[#allocation5 + $0x30] sm:$0xff] %vm9886, %v9875
      %9894 = vst.msk [vmem:[#allocation5 + $0x38] sm:$0xff] %vm9886, %v9877
      %v9895 = vld [vmem:[%s9845 + $0x1] sm:$0xff]
      %v9896 = vld [vmem:[%s9845 + $0x11] sm:$0xff]
      %v9897 = vld [vmem:[%s9845 + $0x21] sm:$0xff]
      %v9898 = vld [vmem:[%s9845 + $0x31] sm:$0xff]
      %v9899 = vld [vmem:[%s9845 + $0x41] sm:$0xff]
      %v9900 = vld [vmem:[%s9845 + $0x51] sm:$0xff]
      %v9901 = vld [vmem:[%s9845 + $0x61] sm:$0xff]
      %v9902 = vld [vmem:[%s9845 + $0x71] sm:$0xff]
      %9911 = vrot.lane.b32.xlu0 %v9895, 56
      %v9912 = vpop.permute.xlu0 %9911
      %9913 = vrot.lane.b32.xlu0 %v9896, 56
      %v9914 = vpop.permute.xlu0 %9913
      %9915 = vrot.lane.b32.xlu0 %v9897, 56
      %v9916 = vpop.permute.xlu0 %9915
      %9917 = vrot.lane.b32.xlu0 %v9898, 56
      %v9918 = vpop.permute.xlu0 %9917
      %9919 = vrot.lane.b32.xlu0 %v9899, 56
      %v9920 = vpop.permute.xlu0 %9919
      %9921 = vrot.lane.b32.xlu0 %v9900, 56
      %v9922 = vpop.permute.xlu0 %9921
      %9923 = vrot.lane.b32.xlu0 %v9901, 56
      %v9924 = vpop.permute.xlu0 %9923
      %9925 = vrot.lane.b32.xlu0 %v9902, 56
      %v9926 = vpop.permute.xlu0 %9925
      %vm9935 = vcmask 523712
      %9936 = vst.msk [vmem:[#allocation5] sm:$0xff] %vm9935, %v9912
      %9937 = vst.msk [vmem:[#allocation5 + $0x8] sm:$0xff] %vm9935, %v9914
      %9938 = vst.msk [vmem:[#allocation5 + $0x10] sm:$0xff] %vm9935, %v9916
      %9939 = vst.msk [vmem:[#allocation5 + $0x18] sm:$0xff] %vm9935, %v9918
      %9940 = vst.msk [vmem:[#allocation5 + $0x20] sm:$0xff] %vm9935, %v9920
      %9941 = vst.msk [vmem:[#allocation5 + $0x28] sm:$0xff] %vm9935, %v9922
      %9942 = vst.msk [vmem:[#allocation5 + $0x30] sm:$0xff] %vm9935, %v9924
      %9943 = vst.msk [vmem:[#allocation5 + $0x38] sm:$0xff] %vm9935, %v9926
      %v9944 = vld [vmem:[%s9845 + $0x2] sm:$0xff]
      %v9945 = vld [vmem:[%s9845 + $0x12] sm:$0xff]
      %v9946 = vld [vmem:[%s9845 + $0x22] sm:$0xff]
      %v9947 = vld [vmem:[%s9845 + $0x32] sm:$0xff]
      %v9948 = vld [vmem:[%s9845 + $0x42] sm:$0xff]
      %v9949 = vld [vmem:[%s9845 + $0x52] sm:$0xff]
      %v9950 = vld [vmem:[%s9845 + $0x62] sm:$0xff]
      %v9951 = vld [vmem:[%s9845 + $0x72] sm:$0xff]
      %9960 = vrot.lane.b32.xlu0 %v9944, 64
      %v9961 = vpop.permute.xlu0 %9960
      %9962 = vrot.lane.b32.xlu0 %v9945, 64
      %v9963 = vpop.permute.xlu0 %9962
      %9964 = vrot.lane.b32.xlu0 %v9946, 64
      %v9965 = vpop.permute.xlu0 %9964
      %9966 = vrot.lane.b32.xlu0 %v9947, 64
      %v9967 = vpop.permute.xlu0 %9966
      %9968 = vrot.lane.b32.xlu0 %v9948, 64
      %v9969 = vpop.permute.xlu0 %9968
      %9970 = vrot.lane.b32.xlu0 %v9949, 64
      %v9971 = vpop.permute.xlu0 %9970
      %9972 = vrot.lane.b32.xlu0 %v9950, 64
      %v9973 = vpop.permute.xlu0 %9972
      %9974 = vrot.lane.b32.xlu0 %v9951, 64
      %v9975 = vpop.permute.xlu0 %9974
      %vm9984 = vcmask 589312
      %9985 = vst.msk [vmem:[#allocation5] sm:$0xff] %vm9984, %v9961
      %9986 = vst.msk [vmem:[#allocation5 + $0x8] sm:$0xff] %vm9984, %v9963
      %9987 = vst.msk [vmem:[#allocation5 + $0x10] sm:$0xff] %vm9984, %v9965
      %9988 = vst.msk [vmem:[#allocation5 + $0x18] sm:$0xff] %vm9984, %v9967
      %9989 = vst.msk [vmem:[#allocation5 + $0x20] sm:$0xff] %vm9984, %v9969
      %9990 = vst.msk [vmem:[#allocation5 + $0x28] sm:$0xff] %vm9984, %v9971
      %9991 = vst.msk [vmem:[#allocation5 + $0x30] sm:$0xff] %vm9984, %v9973
      %9992 = vst.msk [vmem:[#allocation5 + $0x38] sm:$0xff] %vm9984, %v9975
      %v9993 = vld [vmem:[#allocation5] sm:$0xff]
      %v9994 = vld [vmem:[#allocation5 + $0x8] sm:$0xff]
      %v9995 = vld [vmem:[#allocation5 + $0x10] sm:$0xff]
      %v9996 = vld [vmem:[#allocation5 + $0x18] sm:$0xff]
      %v9997 = vld [vmem:[#allocation5 + $0x20] sm:$0xff]
      %v9998 = vld [vmem:[#allocation5 + $0x28] sm:$0xff]
      %v9999 = vld [vmem:[#allocation5 + $0x30] sm:$0xff]
      %v10000 = vld [vmem:[#allocation5 + $0x38] sm:$0xff]
      %v10001 = vld [vmem:[%s7] sm:$0xff]
      %v10002 = vld [vmem:[%s7 + $0x8] sm:$0xff]
      %v10003 = vld [vmem:[%s7 + $0x10] sm:$0xff]
      %v10004 = vld [vmem:[%s7 + $0x18] sm:$0xff]
      %v10005 = vld [vmem:[%s7 + $0x20] sm:$0xff]
      %v10006 = vld [vmem:[%s7 + $0x28] sm:$0xff]
      %v10007 = vld [vmem:[%s7 + $0x30] sm:$0xff]
      %v10008 = vld [vmem:[%s7 + $0x38] sm:$0xff]
      %v10009 = vld [vmem:[%s7 + $0x40] sm:$0xff]
      %vm10010 = vcmask 588800
      %v10012 = vsel %vm10010, %v9993, 0
      %v10015 = vsel %vm10010, %v9994, 0
      %v10018 = vsel %vm10010, %v9995, 0
      %v10021 = vsel %vm10010, %v9996, 0
      %v10024 = vsel %vm10010, %v9997, 0
      %v10027 = vsel %vm10010, %v9998, 0
      %v10030 = vsel %vm10010, %v9999, 0
      %v10033 = vsel %vm10010, %v10000, 0
      %10035 = vmatprep.subr.mxu0 0.0
      %10036 = vmatpush1.msra.mxu0 0.0
      %10037 = vmatprep.subr.mxu0 0.0
      %10038 = vmatpush1.msra.mxu0 0.0
      %10039 = vmatprep.subr.mxu0 0.0
      %10040 = vmatpush1.msra.mxu0 0.0
      %10041 = vmatprep.subr.mxu0 0.0
      %10042 = vmatpush1.msra.mxu0 0.0
      %10043 = vmatprep.subr.mxu0 0.0
      %10044 = vmatpush1.msra.mxu0 0.0
      %10045 = vmatprep.subr.mxu0 0.0
      %10046 = vmatpush1.msra.mxu0 0.0
      %10047 = vmatprep.subr.mxu0 0.0
      %10048 = vmatpush1.msra.mxu0 0.0
      %10049 = vmatprep.subr.mxu0 0.0
      %v10050 = vand.u32 %v10009, 4294901760
      %10051 = vmatpush1.msra.mxu0 %v10050
      %10052 = vmatprep.subr.mxu0 0.0
      %v10053 = vand.u32 %v10008, 4294901760
      %10054 = vmatpush1.msra.mxu0 %v10053
      %10055 = vmatprep.subr.mxu0 0.0
      %v10056 = vand.u32 %v10007, 4294901760
      %10057 = vmatpush1.msra.mxu0 %v10056
      %10058 = vmatprep.subr.mxu0 0.0
      %v10059 = vand.u32 %v10006, 4294901760
      %10060 = vmatpush1.msra.mxu0 %v10059
      %10061 = vmatprep.subr.mxu0 0.0
      %v10062 = vand.u32 %v10005, 4294901760
      %10063 = vmatpush1.msra.mxu0 %v10062
      %10064 = vmatprep.subr.mxu0 0.0
      %v10065 = vand.u32 %v10004, 4294901760
      %10066 = vmatpush1.msra.mxu0 %v10065
      %10067 = vmatprep.subr.mxu0 0.0
      %v10068 = vand.u32 %v10003, 4294901760
      %10069 = vmatpush1.msra.mxu0 %v10068
      %10070 = vmatprep.subr.mxu0 0.0
      %v10071 = vand.u32 %v10002, 4294901760
      %10072 = vmatpush1.msra.mxu0 %v10071
      %10073 = vmatprep.subr.mxu0 0.0
      %v10074 = vand.u32 %v10001, 4294901760
      %10075 = vmatpush1.msra.mxu0 %v10074
      %10076 = vmatprep.subr.mxu0 0.0
      %10077 = vmatpush2.msra.mxu0 0.0
      %10078 = vmatprep.subr.mxu0 0.0
      %10079 = vmatpush2.msra.mxu0 0.0
      %10080 = vmatprep.subr.mxu0 0.0
      %10081 = vmatpush2.msra.mxu0 0.0
      %10082 = vmatprep.subr.mxu0 0.0
      %10083 = vmatpush2.msra.mxu0 0.0
      %10084 = vmatprep.subr.mxu0 0.0
      %10085 = vmatpush2.msra.mxu0 0.0
      %10086 = vmatprep.subr.mxu0 0.0
      %10087 = vmatpush2.msra.mxu0 0.0
      %10088 = vmatprep.subr.mxu0 0.0
      %10089 = vmatpush2.msra.mxu0 0.0
      %10090 = vmatprep.subr.mxu0 0.0
      %10091 = vmatpush2.msra.mxu0 0.0
      %10092 = vmatprep.subr.mxu0 0.0
      %10093 = vmatpush2.msra.mxu0 0.0
      %10094 = vmatprep.subr.mxu0 0.0
      %10095 = vmatpush2.msra.mxu0 0.0
      %10096 = vmatprep.subr.mxu0 0.0
      %10097 = vmatpush2.msra.mxu0 0.0
      %10098 = vmatprep.subr.mxu0 0.0
      %10099 = vmatpush2.msra.mxu0 0.0
      %10100 = vmatprep.subr.mxu0 0.0
      %10101 = vmatpush2.msra.mxu0 0.0
      %10102 = vmatprep.subr.mxu0 0.0
      %10103 = vmatpush2.msra.mxu0 0.0
      %10104 = vmatprep.subr.mxu0 0.0
      %10105 = vmatpush2.msra.mxu0 0.0
      %10106 = vmatprep.subr.mxu0 0.0
      %10107 = vmatpush2.msra.mxu0 0.0
      %10108 = vmatprep.mubr.f32.mxu0 0.0
      %v10109 = vand.u32 %v10012, 4294901760
      %v10110 = vsub.f32 %v10012, %v10109
      %v10111 = vand.u32 %v10110, 4294901760
      %v10112 = vsub.f32 %v10110, %v10111
      %v10113 = vand.u32 %v10112, 4294901760
      %10114 = vmatmul.mubr.f32.gmra.mxu0 %v10113
      %v10115 = vpop.f32.mrf.mxu0
      %v10116 = vadd.f32 0.0, %v10115
      %v10117 = vpop.f32.mrf.mxu0
      %10118 = vmatprep.mubr.f32.mxu0 0.0
      %v10119 = vand.u32 %v10015, 4294901760
      %v10120 = vsub.f32 %v10015, %v10119
      %v10121 = vand.u32 %v10120, 4294901760
      %v10122 = vsub.f32 %v10120, %v10121
      %v10123 = vand.u32 %v10122, 4294901760
      %10124 = vmatmul.mubr.f32.gmra.mxu0 %v10123
      %v10125 = vpop.f32.mrf.mxu0
      %v10126 = vadd.f32 0.0, %v10125
      %v10127 = vpop.f32.mrf.mxu0
      %10128 = vmatprep.mubr.f32.mxu0 0.0
      %v10129 = vand.u32 %v10018, 4294901760
      %v10130 = vsub.f32 %v10018, %v10129
      %v10131 = vand.u32 %v10130, 4294901760
      %v10132 = vsub.f32 %v10130, %v10131
      %v10133 = vand.u32 %v10132, 4294901760
      %10134 = vmatmul.mubr.f32.gmra.mxu0 %v10133
      %v10135 = vpop.f32.mrf.mxu0
      %v10136 = vadd.f32 0.0, %v10135
      %v10137 = vpop.f32.mrf.mxu0
      %10138 = vmatprep.mubr.f32.mxu0 0.0
      %v10139 = vand.u32 %v10021, 4294901760
      %v10140 = vsub.f32 %v10021, %v10139
      %v10141 = vand.u32 %v10140, 4294901760
      %v10142 = vsub.f32 %v10140, %v10141
      %v10143 = vand.u32 %v10142, 4294901760
      %10144 = vmatmul.mubr.f32.gmra.mxu0 %v10143
      %v10145 = vpop.f32.mrf.mxu0
      %v10146 = vadd.f32 0.0, %v10145
      %v10147 = vpop.f32.mrf.mxu0
      %10148 = vmatprep.mubr.f32.mxu0 0.0
      %v10149 = vand.u32 %v10024, 4294901760
      %v10150 = vsub.f32 %v10024, %v10149
      %v10151 = vand.u32 %v10150, 4294901760
      %v10152 = vsub.f32 %v10150, %v10151
      %v10153 = vand.u32 %v10152, 4294901760
      %10154 = vmatmul.mubr.f32.gmra.mxu0 %v10153
      %v10155 = vpop.f32.mrf.mxu0
      %v10156 = vadd.f32 0.0, %v10155
      %v10157 = vpop.f32.mrf.mxu0
      %10158 = vmatprep.mubr.f32.mxu0 0.0
      %v10159 = vand.u32 %v10027, 4294901760
      %v10160 = vsub.f32 %v10027, %v10159
      %v10161 = vand.u32 %v10160, 4294901760
      %v10162 = vsub.f32 %v10160, %v10161
      %v10163 = vand.u32 %v10162, 4294901760
      %10164 = vmatmul.mubr.f32.gmra.mxu0 %v10163
      %v10165 = vpop.f32.mrf.mxu0
      %v10166 = vadd.f32 0.0, %v10165
      %v10167 = vpop.f32.mrf.mxu0
      %10168 = vmatprep.mubr.f32.mxu0 0.0
      %v10169 = vand.u32 %v10030, 4294901760
      %v10170 = vsub.f32 %v10030, %v10169
      %v10171 = vand.u32 %v10170, 4294901760
      %v10172 = vsub.f32 %v10170, %v10171
      %v10173 = vand.u32 %v10172, 4294901760
      %10174 = vmatmul.mubr.f32.gmra.mxu0 %v10173
      %v10175 = vpop.f32.mrf.mxu0
      %v10176 = vadd.f32 0.0, %v10175
      %v10177 = vpop.f32.mrf.mxu0
      %10178 = vmatprep.mubr.f32.mxu0 0.0
      %v10179 = vand.u32 %v10033, 4294901760
      %v10180 = vsub.f32 %v10033, %v10179
      %v10181 = vand.u32 %v10180, 4294901760
      %v10182 = vsub.f32 %v10180, %v10181
      %v10183 = vand.u32 %v10182, 4294901760
      %10184 = vmatmul.mubr.f32.gmra.mxu0 %v10183
      %v10185 = vpop.f32.mrf.mxu0
      %v10186 = vadd.f32 0.0, %v10185
      %v10187 = vpop.f32.mrf.mxu0
      %10188 = vdwg.mxu0
      %10189 = vmatprep.subr.mxu0 0.0
      %10190 = vmatpush1.msra.mxu0 0.0
      %10191 = vmatprep.subr.mxu0 0.0
      %10192 = vmatpush1.msra.mxu0 0.0
      %10193 = vmatprep.subr.mxu0 0.0
      %10194 = vmatpush1.msra.mxu0 0.0
      %10195 = vmatprep.subr.mxu0 0.0
      %10196 = vmatpush1.msra.mxu0 0.0
      %10197 = vmatprep.subr.mxu0 0.0
      %10198 = vmatpush1.msra.mxu0 0.0
      %10199 = vmatprep.subr.mxu0 0.0
      %10200 = vmatpush1.msra.mxu0 0.0
      %10201 = vmatprep.subr.mxu0 0.0
      %10202 = vmatpush1.msra.mxu0 0.0
      %10203 = vmatprep.subr.mxu0 0.0
      %v10204 = vand.u32 %v10009, 4294901760
      %v10205 = vsub.f32 %v10009, %v10204
      %v10206 = vand.u32 %v10205, 4294901760
      %v10207 = vsub.f32 %v10205, %v10206
      %v10208 = vand.u32 %v10207, 4294901760
      %10209 = vmatpush1.msra.mxu0 %v10208
      %10210 = vmatprep.subr.mxu0 0.0
      %v10211 = vand.u32 %v10008, 4294901760
      %v10212 = vsub.f32 %v10008, %v10211
      %v10213 = vand.u32 %v10212, 4294901760
      %v10214 = vsub.f32 %v10212, %v10213
      %v10215 = vand.u32 %v10214, 4294901760
      %10216 = vmatpush1.msra.mxu0 %v10215
      %10217 = vmatprep.subr.mxu0 0.0
      %v10218 = vand.u32 %v10007, 4294901760
      %v10219 = vsub.f32 %v10007, %v10218
      %v10220 = vand.u32 %v10219, 4294901760
      %v10221 = vsub.f32 %v10219, %v10220
      %v10222 = vand.u32 %v10221, 4294901760
      %10223 = vmatpush1.msra.mxu0 %v10222
      %10224 = vmatprep.subr.mxu0 0.0
      %v10225 = vand.u32 %v10006, 4294901760
      %v10226 = vsub.f32 %v10006, %v10225
      %v10227 = vand.u32 %v10226, 4294901760
      %v10228 = vsub.f32 %v10226, %v10227
      %v10229 = vand.u32 %v10228, 4294901760
      %10230 = vmatpush1.msra.mxu0 %v10229
      %10231 = vmatprep.subr.mxu0 0.0
      %v10232 = vand.u32 %v10005, 4294901760
      %v10233 = vsub.f32 %v10005, %v10232
      %v10234 = vand.u32 %v10233, 4294901760
      %v10235 = vsub.f32 %v10233, %v10234
      %v10236 = vand.u32 %v10235, 4294901760
      %10237 = vmatpush1.msra.mxu0 %v10236
      %10238 = vmatprep.subr.mxu0 0.0
      %v10239 = vand.u32 %v10004, 4294901760
      %v10240 = vsub.f32 %v10004, %v10239
      %v10241 = vand.u32 %v10240, 4294901760
      %v10242 = vsub.f32 %v10240, %v10241
      %v10243 = vand.u32 %v10242, 4294901760
      %10244 = vmatpush1.msra.mxu0 %v10243
      %10245 = vmatprep.subr.mxu0 0.0
      %v10246 = vand.u32 %v10003, 4294901760
      %v10247 = vsub.f32 %v10003, %v10246
      %v10248 = vand.u32 %v10247, 4294901760
      %v10249 = vsub.f32 %v10247, %v10248
      %v10250 = vand.u32 %v10249, 4294901760
      %10251 = vmatpush1.msra.mxu0 %v10250
      %10252 = vmatprep.subr.mxu0 0.0
      %v10253 = vand.u32 %v10002, 4294901760
      %v10254 = vsub.f32 %v10002, %v10253
      %v10255 = vand.u32 %v10254, 4294901760
      %v10256 = vsub.f32 %v10254, %v10255
      %v10257 = vand.u32 %v10256, 4294901760
      %10258 = vmatpush1.msra.mxu0 %v10257
      %10259 = vmatprep.subr.mxu0 0.0
      %v10260 = vand.u32 %v10001, 4294901760
      %v10261 = vsub.f32 %v10001, %v10260
      %v10262 = vand.u32 %v10261, 4294901760
      %v10263 = vsub.f32 %v10261, %v10262
      %v10264 = vand.u32 %v10263, 4294901760
      %10265 = vmatpush1.msra.mxu0 %v10264
      %10266 = vmatprep.subr.mxu0 0.0
      %10267 = vmatpush2.msra.mxu0 0.0
      %10268 = vmatprep.subr.mxu0 0.0
      %10269 = vmatpush2.msra.mxu0 0.0
      %10270 = vmatprep.subr.mxu0 0.0
      %10271 = vmatpush2.msra.mxu0 0.0
      %10272 = vmatprep.subr.mxu0 0.0
      %10273 = vmatpush2.msra.mxu0 0.0
      %10274 = vmatprep.subr.mxu0 0.0
      %10275 = vmatpush2.msra.mxu0 0.0
      %10276 = vmatprep.subr.mxu0 0.0
      %10277 = vmatpush2.msra.mxu0 0.0
      %10278 = vmatprep.subr.mxu0 0.0
      %10279 = vmatpush2.msra.mxu0 0.0
      %10280 = vmatprep.subr.mxu0 0.0
      %10281 = vmatpush2.msra.mxu0 0.0
      %10282 = vmatprep.subr.mxu0 0.0
      %10283 = vmatpush2.msra.mxu0 0.0
      %10284 = vmatprep.subr.mxu0 0.0
      %10285 = vmatpush2.msra.mxu0 0.0
      %10286 = vmatprep.subr.mxu0 0.0
      %10287 = vmatpush2.msra.mxu0 0.0
      %10288 = vmatprep.subr.mxu0 0.0
      %10289 = vmatpush2.msra.mxu0 0.0
      %10290 = vmatprep.subr.mxu0 0.0
      %10291 = vmatpush2.msra.mxu0 0.0
      %10292 = vmatprep.subr.mxu0 0.0
      %10293 = vmatpush2.msra.mxu0 0.0
      %10294 = vmatprep.subr.mxu0 0.0
      %10295 = vmatpush2.msra.mxu0 0.0
      %10296 = vmatprep.subr.mxu0 0.0
      %10297 = vmatpush2.msra.mxu0 0.0
      %10298 = vmatprep.mubr.f32.mxu0 0.0
      %v10299 = vand.u32 %v10012, 4294901760
      %10300 = vmatmul.mubr.f32.gmra.mxu0 %v10299
      %v10301 = vpop.f32.mrf.mxu0
      %v10302 = vadd.f32 %v10116, %v10301
      %v10303 = vpop.f32.mrf.mxu0
      %10304 = vmatprep.mubr.f32.mxu0 0.0
      %v10305 = vand.u32 %v10015, 4294901760
      %10306 = vmatmul.mubr.f32.gmra.mxu0 %v10305
      %v10307 = vpop.f32.mrf.mxu0
      %v10308 = vadd.f32 %v10126, %v10307
      %v10309 = vpop.f32.mrf.mxu0
      %10310 = vmatprep.mubr.f32.mxu0 0.0
      %v10311 = vand.u32 %v10018, 4294901760
      %10312 = vmatmul.mubr.f32.gmra.mxu0 %v10311
      %v10313 = vpop.f32.mrf.mxu0
      %v10314 = vadd.f32 %v10136, %v10313
      %v10315 = vpop.f32.mrf.mxu0
      %10316 = vmatprep.mubr.f32.mxu0 0.0
      %v10317 = vand.u32 %v10021, 4294901760
      %10318 = vmatmul.mubr.f32.gmra.mxu0 %v10317
      %v10319 = vpop.f32.mrf.mxu0
      %v10320 = vadd.f32 %v10146, %v10319
      %v10321 = vpop.f32.mrf.mxu0
      %10322 = vmatprep.mubr.f32.mxu0 0.0
      %v10323 = vand.u32 %v10024, 4294901760
      %10324 = vmatmul.mubr.f32.gmra.mxu0 %v10323
      %v10325 = vpop.f32.mrf.mxu0
      %v10326 = vadd.f32 %v10156, %v10325
      %v10327 = vpop.f32.mrf.mxu0
      %10328 = vmatprep.mubr.f32.mxu0 0.0
      %v10329 = vand.u32 %v10027, 4294901760
      %10330 = vmatmul.mubr.f32.gmra.mxu0 %v10329
      %v10331 = vpop.f32.mrf.mxu0
      %v10332 = vadd.f32 %v10166, %v10331
      %v10333 = vpop.f32.mrf.mxu0
      %10334 = vmatprep.mubr.f32.mxu0 0.0
      %v10335 = vand.u32 %v10030, 4294901760
      %10336 = vmatmul.mubr.f32.gmra.mxu0 %v10335
      %v10337 = vpop.f32.mrf.mxu0
      %v10338 = vadd.f32 %v10176, %v10337
      %v10339 = vpop.f32.mrf.mxu0
      %10340 = vmatprep.mubr.f32.mxu0 0.0
      %v10341 = vand.u32 %v10033, 4294901760
      %10342 = vmatmul.mubr.f32.gmra.mxu0 %v10341
      %v10343 = vpop.f32.mrf.mxu0
      %v10344 = vadd.f32 %v10186, %v10343
      %v10345 = vpop.f32.mrf.mxu0
      %10346 = vdwg.mxu0
      %10347 = vmatprep.subr.mxu0 0.0
      %10348 = vmatpush1.msra.mxu0 0.0
      %10349 = vmatprep.subr.mxu0 0.0
      %10350 = vmatpush1.msra.mxu0 0.0
      %10351 = vmatprep.subr.mxu0 0.0
      %10352 = vmatpush1.msra.mxu0 0.0
      %10353 = vmatprep.subr.mxu0 0.0
      %10354 = vmatpush1.msra.mxu0 0.0
      %10355 = vmatprep.subr.mxu0 0.0
      %10356 = vmatpush1.msra.mxu0 0.0
      %10357 = vmatprep.subr.mxu0 0.0
      %10358 = vmatpush1.msra.mxu0 0.0
      %10359 = vmatprep.subr.mxu0 0.0
      %10360 = vmatpush1.msra.mxu0 0.0
      %10361 = vmatprep.subr.mxu0 0.0
      %v10362 = vand.u32 %v10009, 4294901760
      %v10363 = vsub.f32 %v10009, %v10362
      %10364 = vmatpush1.msra.mxu0 %v10363
      %10365 = vmatprep.subr.mxu0 0.0
      %v10366 = vand.u32 %v10008, 4294901760
      %v10367 = vsub.f32 %v10008, %v10366
      %10368 = vmatpush1.msra.mxu0 %v10367
      %10369 = vmatprep.subr.mxu0 0.0
      %v10370 = vand.u32 %v10007, 4294901760
      %v10371 = vsub.f32 %v10007, %v10370
      %10372 = vmatpush1.msra.mxu0 %v10371
      %10373 = vmatprep.subr.mxu0 0.0
      %v10374 = vand.u32 %v10006, 4294901760
      %v10375 = vsub.f32 %v10006, %v10374
      %10376 = vmatpush1.msra.mxu0 %v10375
      %10377 = vmatprep.subr.mxu0 0.0
      %v10378 = vand.u32 %v10005, 4294901760
      %v10379 = vsub.f32 %v10005, %v10378
      %10380 = vmatpush1.msra.mxu0 %v10379
      %10381 = vmatprep.subr.mxu0 0.0
      %v10382 = vand.u32 %v10004, 4294901760
      %v10383 = vsub.f32 %v10004, %v10382
      %10384 = vmatpush1.msra.mxu0 %v10383
      %10385 = vmatprep.subr.mxu0 0.0
      %v10386 = vand.u32 %v10003, 4294901760
      %v10387 = vsub.f32 %v10003, %v10386
      %10388 = vmatpush1.msra.mxu0 %v10387
      %10389 = vmatprep.subr.mxu0 0.0
      %v10390 = vand.u32 %v10002, 4294901760
      %v10391 = vsub.f32 %v10002, %v10390
      %10392 = vmatpush1.msra.mxu0 %v10391
      %10393 = vmatprep.subr.mxu0 0.0
      %v10394 = vand.u32 %v10001, 4294901760
      %v10395 = vsub.f32 %v10001, %v10394
      %10396 = vmatpush1.msra.mxu0 %v10395
      %10397 = vmatprep.subr.mxu0 0.0
      %10398 = vmatpush2.msra.mxu0 0.0
      %10399 = vmatprep.subr.mxu0 0.0
      %10400 = vmatpush2.msra.mxu0 0.0
      %10401 = vmatprep.subr.mxu0 0.0
      %10402 = vmatpush2.msra.mxu0 0.0
      %10403 = vmatprep.subr.mxu0 0.0
      %10404 = vmatpush2.msra.mxu0 0.0
      %10405 = vmatprep.subr.mxu0 0.0
      %10406 = vmatpush2.msra.mxu0 0.0
      %10407 = vmatprep.subr.mxu0 0.0
      %10408 = vmatpush2.msra.mxu0 0.0
      %10409 = vmatprep.subr.mxu0 0.0
      %10410 = vmatpush2.msra.mxu0 0.0
      %10411 = vmatprep.subr.mxu0 0.0
      %10412 = vmatpush2.msra.mxu0 0.0
      %10413 = vmatprep.subr.mxu0 0.0
      %10414 = vmatpush2.msra.mxu0 0.0
      %10415 = vmatprep.subr.mxu0 0.0
      %10416 = vmatpush2.msra.mxu0 0.0
      %10417 = vmatprep.subr.mxu0 0.0
      %10418 = vmatpush2.msra.mxu0 0.0
      %10419 = vmatprep.subr.mxu0 0.0
      %10420 = vmatpush2.msra.mxu0 0.0
      %10421 = vmatprep.subr.mxu0 0.0
      %10422 = vmatpush2.msra.mxu0 0.0
      %10423 = vmatprep.subr.mxu0 0.0
      %10424 = vmatpush2.msra.mxu0 0.0
      %10425 = vmatprep.subr.mxu0 0.0
      %10426 = vmatpush2.msra.mxu0 0.0
      %10427 = vmatprep.subr.mxu0 0.0
      %10428 = vmatpush2.msra.mxu0 0.0
      %10429 = vmatprep.mubr.f32.mxu0 0.0
      %v10430 = vand.u32 %v10012, 4294901760
      %v10431 = vsub.f32 %v10012, %v10430
      %10432 = vmatmul.mubr.f32.gmra.mxu0 %v10431
      %v10433 = vpop.f32.mrf.mxu0
      %v10434 = vadd.f32 %v10302, %v10433
      %v10435 = vpop.f32.mrf.mxu0
      %10436 = vmatprep.mubr.f32.mxu0 0.0
      %v10437 = vand.u32 %v10015, 4294901760
      %v10438 = vsub.f32 %v10015, %v10437
      %10439 = vmatmul.mubr.f32.gmra.mxu0 %v10438
      %v10440 = vpop.f32.mrf.mxu0
      %v10441 = vadd.f32 %v10308, %v10440
      %v10442 = vpop.f32.mrf.mxu0
      %10443 = vmatprep.mubr.f32.mxu0 0.0
      %v10444 = vand.u32 %v10018, 4294901760
      %v10445 = vsub.f32 %v10018, %v10444
      %10446 = vmatmul.mubr.f32.gmra.mxu0 %v10445
      %v10447 = vpop.f32.mrf.mxu0
      %v10448 = vadd.f32 %v10314, %v10447
      %v10449 = vpop.f32.mrf.mxu0
      %10450 = vmatprep.mubr.f32.mxu0 0.0
      %v10451 = vand.u32 %v10021, 4294901760
      %v10452 = vsub.f32 %v10021, %v10451
      %10453 = vmatmul.mubr.f32.gmra.mxu0 %v10452
      %v10454 = vpop.f32.mrf.mxu0
      %v10455 = vadd.f32 %v10320, %v10454
      %v10456 = vpop.f32.mrf.mxu0
      %10457 = vmatprep.mubr.f32.mxu0 0.0
      %v10458 = vand.u32 %v10024, 4294901760
      %v10459 = vsub.f32 %v10024, %v10458
      %10460 = vmatmul.mubr.f32.gmra.mxu0 %v10459
      %v10461 = vpop.f32.mrf.mxu0
      %v10462 = vadd.f32 %v10326, %v10461
      %v10463 = vpop.f32.mrf.mxu0
      %10464 = vmatprep.mubr.f32.mxu0 0.0
      %v10465 = vand.u32 %v10027, 4294901760
      %v10466 = vsub.f32 %v10027, %v10465
      %10467 = vmatmul.mubr.f32.gmra.mxu0 %v10466
      %v10468 = vpop.f32.mrf.mxu0
      %v10469 = vadd.f32 %v10332, %v10468
      %v10470 = vpop.f32.mrf.mxu0
      %10471 = vmatprep.mubr.f32.mxu0 0.0
      %v10472 = vand.u32 %v10030, 4294901760
      %v10473 = vsub.f32 %v10030, %v10472
      %10474 = vmatmul.mubr.f32.gmra.mxu0 %v10473
      %v10475 = vpop.f32.mrf.mxu0
      %v10476 = vadd.f32 %v10338, %v10475
      %v10477 = vpop.f32.mrf.mxu0
      %10478 = vmatprep.mubr.f32.mxu0 0.0
      %v10479 = vand.u32 %v10033, 4294901760
      %v10480 = vsub.f32 %v10033, %v10479
      %10481 = vmatmul.mubr.f32.gmra.mxu0 %v10480
      %v10482 = vpop.f32.mrf.mxu0
      %v10483 = vadd.f32 %v10344, %v10482
      %v10484 = vpop.f32.mrf.mxu0
      %10485 = vdwg.mxu0
      %10486 = vmatprep.subr.mxu0 0.0
      %10487 = vmatpush1.msra.mxu0 0.0
      %10488 = vmatprep.subr.mxu0 0.0
      %10489 = vmatpush1.msra.mxu0 0.0
      %10490 = vmatprep.subr.mxu0 0.0
      %10491 = vmatpush1.msra.mxu0 0.0
      %10492 = vmatprep.subr.mxu0 0.0
      %10493 = vmatpush1.msra.mxu0 0.0
      %10494 = vmatprep.subr.mxu0 0.0
      %10495 = vmatpush1.msra.mxu0 0.0
      %10496 = vmatprep.subr.mxu0 0.0
      %10497 = vmatpush1.msra.mxu0 0.0
      %10498 = vmatprep.subr.mxu0 0.0
      %10499 = vmatpush1.msra.mxu0 0.0
      %10500 = vmatprep.subr.mxu0 0.0
      %v10501 = vand.u32 %v10009, 4294901760
      %10502 = vmatpush1.msra.mxu0 %v10501
      %10503 = vmatprep.subr.mxu0 0.0
      %v10504 = vand.u32 %v10008, 4294901760
      %10505 = vmatpush1.msra.mxu0 %v10504
      %10506 = vmatprep.subr.mxu0 0.0
      %v10507 = vand.u32 %v10007, 4294901760
      %10508 = vmatpush1.msra.mxu0 %v10507
      %10509 = vmatprep.subr.mxu0 0.0
      %v10510 = vand.u32 %v10006, 4294901760
      %10511 = vmatpush1.msra.mxu0 %v10510
      %10512 = vmatprep.subr.mxu0 0.0
      %v10513 = vand.u32 %v10005, 4294901760
      %10514 = vmatpush1.msra.mxu0 %v10513
      %10515 = vmatprep.subr.mxu0 0.0
      %v10516 = vand.u32 %v10004, 4294901760
      %10517 = vmatpush1.msra.mxu0 %v10516
      %10518 = vmatprep.subr.mxu0 0.0
      %v10519 = vand.u32 %v10003, 4294901760
      %10520 = vmatpush1.msra.mxu0 %v10519
      %10521 = vmatprep.subr.mxu0 0.0
      %v10522 = vand.u32 %v10002, 4294901760
      %10523 = vmatpush1.msra.mxu0 %v10522
      %10524 = vmatprep.subr.mxu0 0.0
      %v10525 = vand.u32 %v10001, 4294901760
      %10526 = vmatpush1.msra.mxu0 %v10525
      %10527 = vmatprep.subr.mxu0 0.0
      %10528 = vmatpush2.msra.mxu0 0.0
      %10529 = vmatprep.subr.mxu0 0.0
      %10530 = vmatpush2.msra.mxu0 0.0
      %10531 = vmatprep.subr.mxu0 0.0
      %10532 = vmatpush2.msra.mxu0 0.0
      %10533 = vmatprep.subr.mxu0 0.0
      %10534 = vmatpush2.msra.mxu0 0.0
      %10535 = vmatprep.subr.mxu0 0.0
      %10536 = vmatpush2.msra.mxu0 0.0
      %10537 = vmatprep.subr.mxu0 0.0
      %10538 = vmatpush2.msra.mxu0 0.0
      %10539 = vmatprep.subr.mxu0 0.0
      %10540 = vmatpush2.msra.mxu0 0.0
      %10541 = vmatprep.subr.mxu0 0.0
      %10542 = vmatpush2.msra.mxu0 0.0
      %10543 = vmatprep.subr.mxu0 0.0
      %10544 = vmatpush2.msra.mxu0 0.0
      %10545 = vmatprep.subr.mxu0 0.0
      %10546 = vmatpush2.msra.mxu0 0.0
      %10547 = vmatprep.subr.mxu0 0.0
      %10548 = vmatpush2.msra.mxu0 0.0
      %10549 = vmatprep.subr.mxu0 0.0
      %10550 = vmatpush2.msra.mxu0 0.0
      %10551 = vmatprep.subr.mxu0 0.0
      %10552 = vmatpush2.msra.mxu0 0.0
      %10553 = vmatprep.subr.mxu0 0.0
      %10554 = vmatpush2.msra.mxu0 0.0
      %10555 = vmatprep.subr.mxu0 0.0
      %10556 = vmatpush2.msra.mxu0 0.0
      %10557 = vmatprep.subr.mxu0 0.0
      %10558 = vmatpush2.msra.mxu0 0.0
      %10559 = vmatprep.mubr.f32.mxu0 0.0
      %v10560 = vand.u32 %v10012, 4294901760
      %v10561 = vsub.f32 %v10012, %v10560
      %v10562 = vand.u32 %v10561, 4294901760
      %10563 = vmatmul.mubr.f32.gmra.mxu0 %v10562
      %v10564 = vpop.f32.mrf.mxu0
      %v10565 = vadd.f32 %v10434, %v10564
      %v10566 = vpop.f32.mrf.mxu0
      %10567 = vmatprep.mubr.f32.mxu0 0.0
      %v10568 = vand.u32 %v10015, 4294901760
      %v10569 = vsub.f32 %v10015, %v10568
      %v10570 = vand.u32 %v10569, 4294901760
      %10571 = vmatmul.mubr.f32.gmra.mxu0 %v10570
      %v10572 = vpop.f32.mrf.mxu0
      %v10573 = vadd.f32 %v10441, %v10572
      %v10574 = vpop.f32.mrf.mxu0
      %10575 = vmatprep.mubr.f32.mxu0 0.0
      %v10576 = vand.u32 %v10018, 4294901760
      %v10577 = vsub.f32 %v10018, %v10576
      %v10578 = vand.u32 %v10577, 4294901760
      %10579 = vmatmul.mubr.f32.gmra.mxu0 %v10578
      %v10580 = vpop.f32.mrf.mxu0
      %v10581 = vadd.f32 %v10448, %v10580
      %v10582 = vpop.f32.mrf.mxu0
      %10583 = vmatprep.mubr.f32.mxu0 0.0
      %v10584 = vand.u32 %v10021, 4294901760
      %v10585 = vsub.f32 %v10021, %v10584
      %v10586 = vand.u32 %v10585, 4294901760
      %10587 = vmatmul.mubr.f32.gmra.mxu0 %v10586
      %v10588 = vpop.f32.mrf.mxu0
      %v10589 = vadd.f32 %v10455, %v10588
      %v10590 = vpop.f32.mrf.mxu0
      %10591 = vmatprep.mubr.f32.mxu0 0.0
      %v10592 = vand.u32 %v10024, 4294901760
      %v10593 = vsub.f32 %v10024, %v10592
      %v10594 = vand.u32 %v10593, 4294901760
      %10595 = vmatmul.mubr.f32.gmra.mxu0 %v10594
      %v10596 = vpop.f32.mrf.mxu0
      %v10597 = vadd.f32 %v10462, %v10596
      %v10598 = vpop.f32.mrf.mxu0
      %10599 = vmatprep.mubr.f32.mxu0 0.0
      %v10600 = vand.u32 %v10027, 4294901760
      %v10601 = vsub.f32 %v10027, %v10600
      %v10602 = vand.u32 %v10601, 4294901760
      %10603 = vmatmul.mubr.f32.gmra.mxu0 %v10602
      %v10604 = vpop.f32.mrf.mxu0
      %v10605 = vadd.f32 %v10469, %v10604
      %v10606 = vpop.f32.mrf.mxu0
      %10607 = vmatprep.mubr.f32.mxu0 0.0
      %v10608 = vand.u32 %v10030, 4294901760
      %v10609 = vsub.f32 %v10030, %v10608
      %v10610 = vand.u32 %v10609, 4294901760
      %10611 = vmatmul.mubr.f32.gmra.mxu0 %v10610
      %v10612 = vpop.f32.mrf.mxu0
      %v10613 = vadd.f32 %v10476, %v10612
      %v10614 = vpop.f32.mrf.mxu0
      %10615 = vmatprep.mubr.f32.mxu0 0.0
      %v10616 = vand.u32 %v10033, 4294901760
      %v10617 = vsub.f32 %v10033, %v10616
      %v10618 = vand.u32 %v10617, 4294901760
      %10619 = vmatmul.mubr.f32.gmra.mxu0 %v10618
      %v10620 = vpop.f32.mrf.mxu0
      %v10621 = vadd.f32 %v10483, %v10620
      %v10622 = vpop.f32.mrf.mxu0
      %10623 = vdwg.mxu0
      %10624 = vmatprep.subr.mxu0 0.0
      %10625 = vmatpush1.msra.mxu0 0.0
      %10626 = vmatprep.subr.mxu0 0.0
      %10627 = vmatpush1.msra.mxu0 0.0
      %10628 = vmatprep.subr.mxu0 0.0
      %10629 = vmatpush1.msra.mxu0 0.0
      %10630 = vmatprep.subr.mxu0 0.0
      %10631 = vmatpush1.msra.mxu0 0.0
      %10632 = vmatprep.subr.mxu0 0.0
      %10633 = vmatpush1.msra.mxu0 0.0
      %10634 = vmatprep.subr.mxu0 0.0
      %10635 = vmatpush1.msra.mxu0 0.0
      %10636 = vmatprep.subr.mxu0 0.0
      %10637 = vmatpush1.msra.mxu0 0.0
      %10638 = vmatprep.subr.mxu0 0.0
      %v10639 = vand.u32 %v10009, 4294901760
      %v10640 = vsub.f32 %v10009, %v10639
      %v10641 = vand.u32 %v10640, 4294901760
      %10642 = vmatpush1.msra.mxu0 %v10641
      %10643 = vmatprep.subr.mxu0 0.0
      %v10644 = vand.u32 %v10008, 4294901760
      %v10645 = vsub.f32 %v10008, %v10644
      %v10646 = vand.u32 %v10645, 4294901760
      %10647 = vmatpush1.msra.mxu0 %v10646
      %10648 = vmatprep.subr.mxu0 0.0
      %v10649 = vand.u32 %v10007, 4294901760
      %v10650 = vsub.f32 %v10007, %v10649
      %v10651 = vand.u32 %v10650, 4294901760
      %10652 = vmatpush1.msra.mxu0 %v10651
      %10653 = vmatprep.subr.mxu0 0.0
      %v10654 = vand.u32 %v10006, 4294901760
      %v10655 = vsub.f32 %v10006, %v10654
      %v10656 = vand.u32 %v10655, 4294901760
      %10657 = vmatpush1.msra.mxu0 %v10656
      %10658 = vmatprep.subr.mxu0 0.0
      %v10659 = vand.u32 %v10005, 4294901760
      %v10660 = vsub.f32 %v10005, %v10659
      %v10661 = vand.u32 %v10660, 4294901760
      %10662 = vmatpush1.msra.mxu0 %v10661
      %10663 = vmatprep.subr.mxu0 0.0
      %v10664 = vand.u32 %v10004, 4294901760
      %v10665 = vsub.f32 %v10004, %v10664
      %v10666 = vand.u32 %v10665, 4294901760
      %10667 = vmatpush1.msra.mxu0 %v10666
      %10668 = vmatprep.subr.mxu0 0.0
      %v10669 = vand.u32 %v10003, 4294901760
      %v10670 = vsub.f32 %v10003, %v10669
      %v10671 = vand.u32 %v10670, 4294901760
      %10672 = vmatpush1.msra.mxu0 %v10671
      %10673 = vmatprep.subr.mxu0 0.0
      %v10674 = vand.u32 %v10002, 4294901760
      %v10675 = vsub.f32 %v10002, %v10674
      %v10676 = vand.u32 %v10675, 4294901760
      %10677 = vmatpush1.msra.mxu0 %v10676
      %10678 = vmatprep.subr.mxu0 0.0
      %v10679 = vand.u32 %v10001, 4294901760
      %v10680 = vsub.f32 %v10001, %v10679
      %v10681 = vand.u32 %v10680, 4294901760
      %10682 = vmatpush1.msra.mxu0 %v10681
      %10683 = vmatprep.subr.mxu0 0.0
      %10684 = vmatpush2.msra.mxu0 0.0
      %10685 = vmatprep.subr.mxu0 0.0
      %10686 = vmatpush2.msra.mxu0 0.0
      %10687 = vmatprep.subr.mxu0 0.0
      %10688 = vmatpush2.msra.mxu0 0.0
      %10689 = vmatprep.subr.mxu0 0.0
      %10690 = vmatpush2.msra.mxu0 0.0
      %10691 = vmatprep.subr.mxu0 0.0
      %10692 = vmatpush2.msra.mxu0 0.0
      %10693 = vmatprep.subr.mxu0 0.0
      %10694 = vmatpush2.msra.mxu0 0.0
      %10695 = vmatprep.subr.mxu0 0.0
      %10696 = vmatpush2.msra.mxu0 0.0
      %10697 = vmatprep.subr.mxu0 0.0
      %10698 = vmatpush2.msra.mxu0 0.0
      %10699 = vmatprep.subr.mxu0 0.0
      %10700 = vmatpush2.msra.mxu0 0.0
      %10701 = vmatprep.subr.mxu0 0.0
      %10702 = vmatpush2.msra.mxu0 0.0
      %10703 = vmatprep.subr.mxu0 0.0
      %10704 = vmatpush2.msra.mxu0 0.0
      %10705 = vmatprep.subr.mxu0 0.0
      %10706 = vmatpush2.msra.mxu0 0.0
      %10707 = vmatprep.subr.mxu0 0.0
      %10708 = vmatpush2.msra.mxu0 0.0
      %10709 = vmatprep.subr.mxu0 0.0
      %10710 = vmatpush2.msra.mxu0 0.0
      %10711 = vmatprep.subr.mxu0 0.0
      %10712 = vmatpush2.msra.mxu0 0.0
      %10713 = vmatprep.subr.mxu0 0.0
      %10714 = vmatpush2.msra.mxu0 0.0
      %10715 = vmatprep.mubr.f32.mxu0 0.0
      %v10716 = vand.u32 %v10012, 4294901760
      %10717 = vmatmul.mubr.f32.gmra.mxu0 %v10716
      %v10718 = vpop.f32.mrf.mxu0
      %v10719 = vadd.f32 %v10565, %v10718
      %v10720 = vpop.f32.mrf.mxu0
      %10721 = vmatprep.mubr.f32.mxu0 0.0
      %v10722 = vand.u32 %v10015, 4294901760
      %10723 = vmatmul.mubr.f32.gmra.mxu0 %v10722
      %v10724 = vpop.f32.mrf.mxu0
      %v10725 = vadd.f32 %v10573, %v10724
      %v10726 = vpop.f32.mrf.mxu0
      %10727 = vmatprep.mubr.f32.mxu0 0.0
      %v10728 = vand.u32 %v10018, 4294901760
      %10729 = vmatmul.mubr.f32.gmra.mxu0 %v10728
      %v10730 = vpop.f32.mrf.mxu0
      %v10731 = vadd.f32 %v10581, %v10730
      %v10732 = vpop.f32.mrf.mxu0
      %10733 = vmatprep.mubr.f32.mxu0 0.0
      %v10734 = vand.u32 %v10021, 4294901760
      %10735 = vmatmul.mubr.f32.gmra.mxu0 %v10734
      %v10736 = vpop.f32.mrf.mxu0
      %v10737 = vadd.f32 %v10589, %v10736
      %v10738 = vpop.f32.mrf.mxu0
      %10739 = vmatprep.mubr.f32.mxu0 0.0
      %v10740 = vand.u32 %v10024, 4294901760
      %10741 = vmatmul.mubr.f32.gmra.mxu0 %v10740
      %v10742 = vpop.f32.mrf.mxu0
      %v10743 = vadd.f32 %v10597, %v10742
      %v10744 = vpop.f32.mrf.mxu0
      %10745 = vmatprep.mubr.f32.mxu0 0.0
      %v10746 = vand.u32 %v10027, 4294901760
      %10747 = vmatmul.mubr.f32.gmra.mxu0 %v10746
      %v10748 = vpop.f32.mrf.mxu0
      %v10749 = vadd.f32 %v10605, %v10748
      %v10750 = vpop.f32.mrf.mxu0
      %10751 = vmatprep.mubr.f32.mxu0 0.0
      %v10752 = vand.u32 %v10030, 4294901760
      %10753 = vmatmul.mubr.f32.gmra.mxu0 %v10752
      %v10754 = vpop.f32.mrf.mxu0
      %v10755 = vadd.f32 %v10613, %v10754
      %v10756 = vpop.f32.mrf.mxu0
      %10757 = vmatprep.mubr.f32.mxu0 0.0
      %v10758 = vand.u32 %v10033, 4294901760
      %10759 = vmatmul.mubr.f32.gmra.mxu0 %v10758
      %v10760 = vpop.f32.mrf.mxu0
      %v10761 = vadd.f32 %v10621, %v10760
      %v10762 = vpop.f32.mrf.mxu0
      %10763 = vdwg.mxu0
      %10764 = vmatprep.subr.mxu0 0.0
      %10765 = vmatpush1.msra.mxu0 0.0
      %10766 = vmatprep.subr.mxu0 0.0
      %10767 = vmatpush1.msra.mxu0 0.0
      %10768 = vmatprep.subr.mxu0 0.0
      %10769 = vmatpush1.msra.mxu0 0.0
      %10770 = vmatprep.subr.mxu0 0.0
      %10771 = vmatpush1.msra.mxu0 0.0
      %10772 = vmatprep.subr.mxu0 0.0
      %10773 = vmatpush1.msra.mxu0 0.0
      %10774 = vmatprep.subr.mxu0 0.0
      %10775 = vmatpush1.msra.mxu0 0.0
      %10776 = vmatprep.subr.mxu0 0.0
      %10777 = vmatpush1.msra.mxu0 0.0
      %10778 = vmatprep.subr.mxu0 0.0
      %v10779 = vand.u32 %v10009, 4294901760
      %10780 = vmatpush1.msra.mxu0 %v10779
      %10781 = vmatprep.subr.mxu0 0.0
      %v10782 = vand.u32 %v10008, 4294901760
      %10783 = vmatpush1.msra.mxu0 %v10782
      %10784 = vmatprep.subr.mxu0 0.0
      %v10785 = vand.u32 %v10007, 4294901760
      %10786 = vmatpush1.msra.mxu0 %v10785
      %10787 = vmatprep.subr.mxu0 0.0
      %v10788 = vand.u32 %v10006, 4294901760
      %10789 = vmatpush1.msra.mxu0 %v10788
      %10790 = vmatprep.subr.mxu0 0.0
      %v10791 = vand.u32 %v10005, 4294901760
      %10792 = vmatpush1.msra.mxu0 %v10791
      %10793 = vmatprep.subr.mxu0 0.0
      %v10794 = vand.u32 %v10004, 4294901760
      %10795 = vmatpush1.msra.mxu0 %v10794
      %10796 = vmatprep.subr.mxu0 0.0
      %v10797 = vand.u32 %v10003, 4294901760
      %10798 = vmatpush1.msra.mxu0 %v10797
      %10799 = vmatprep.subr.mxu0 0.0
      %v10800 = vand.u32 %v10002, 4294901760
      %10801 = vmatpush1.msra.mxu0 %v10800
      %10802 = vmatprep.subr.mxu0 0.0
      %v10803 = vand.u32 %v10001, 4294901760
      %10804 = vmatpush1.msra.mxu0 %v10803
      %10805 = vmatprep.subr.mxu0 0.0
      %10806 = vmatpush2.msra.mxu0 0.0
      %10807 = vmatprep.subr.mxu0 0.0
      %10808 = vmatpush2.msra.mxu0 0.0
      %10809 = vmatprep.subr.mxu0 0.0
      %10810 = vmatpush2.msra.mxu0 0.0
      %10811 = vmatprep.subr.mxu0 0.0
      %10812 = vmatpush2.msra.mxu0 0.0
      %10813 = vmatprep.subr.mxu0 0.0
      %10814 = vmatpush2.msra.mxu0 0.0
      %10815 = vmatprep.subr.mxu0 0.0
      %10816 = vmatpush2.msra.mxu0 0.0
      %10817 = vmatprep.subr.mxu0 0.0
      %10818 = vmatpush2.msra.mxu0 0.0
      %10819 = vmatprep.subr.mxu0 0.0
      %10820 = vmatpush2.msra.mxu0 0.0
      %10821 = vmatprep.subr.mxu0 0.0
      %10822 = vmatpush2.msra.mxu0 0.0
      %10823 = vmatprep.subr.mxu0 0.0
      %10824 = vmatpush2.msra.mxu0 0.0
      %10825 = vmatprep.subr.mxu0 0.0
      %10826 = vmatpush2.msra.mxu0 0.0
      %10827 = vmatprep.subr.mxu0 0.0
      %10828 = vmatpush2.msra.mxu0 0.0
      %10829 = vmatprep.subr.mxu0 0.0
      %10830 = vmatpush2.msra.mxu0 0.0
      %10831 = vmatprep.subr.mxu0 0.0
      %10832 = vmatpush2.msra.mxu0 0.0
      %10833 = vmatprep.subr.mxu0 0.0
      %10834 = vmatpush2.msra.mxu0 0.0
      %10835 = vmatprep.subr.mxu0 0.0
      %10836 = vmatpush2.msra.mxu0 0.0
      %10837 = vmatprep.mubr.f32.mxu0 0.0
      %v10838 = vand.u32 %v10012, 4294901760
      %10839 = vmatmul.mubr.f32.gmra.mxu0 %v10838
      %v10840 = vpop.f32.mrf.mxu0
      %v10841 = vadd.f32 %v10719, %v10840
      %v10842 = vpop.f32.mrf.mxu0
      %10843 = vmatprep.mubr.f32.mxu0 0.0
      %v10844 = vand.u32 %v10015, 4294901760
      %10845 = vmatmul.mubr.f32.gmra.mxu0 %v10844
      %v10846 = vpop.f32.mrf.mxu0
      %v10847 = vadd.f32 %v10725, %v10846
      %v10848 = vpop.f32.mrf.mxu0
      %10849 = vmatprep.mubr.f32.mxu0 0.0
      %v10850 = vand.u32 %v10018, 4294901760
      %10851 = vmatmul.mubr.f32.gmra.mxu0 %v10850
      %v10852 = vpop.f32.mrf.mxu0
      %v10853 = vadd.f32 %v10731, %v10852
      %v10854 = vpop.f32.mrf.mxu0
      %10855 = vmatprep.mubr.f32.mxu0 0.0
      %v10856 = vand.u32 %v10021, 4294901760
      %10857 = vmatmul.mubr.f32.gmra.mxu0 %v10856
      %v10858 = vpop.f32.mrf.mxu0
      %v10859 = vadd.f32 %v10737, %v10858
      %v10860 = vpop.f32.mrf.mxu0
      %10861 = vmatprep.mubr.f32.mxu0 0.0
      %v10862 = vand.u32 %v10024, 4294901760
      %10863 = vmatmul.mubr.f32.gmra.mxu0 %v10862
      %v10864 = vpop.f32.mrf.mxu0
      %v10865 = vadd.f32 %v10743, %v10864
      %v10866 = vpop.f32.mrf.mxu0
      %10867 = vmatprep.mubr.f32.mxu0 0.0
      %v10868 = vand.u32 %v10027, 4294901760
      %10869 = vmatmul.mubr.f32.gmra.mxu0 %v10868
      %v10870 = vpop.f32.mrf.mxu0
      %v10871 = vadd.f32 %v10749, %v10870
      %v10872 = vpop.f32.mrf.mxu0
      %10873 = vmatprep.mubr.f32.mxu0 0.0
      %v10874 = vand.u32 %v10030, 4294901760
      %10875 = vmatmul.mubr.f32.gmra.mxu0 %v10874
      %v10876 = vpop.f32.mrf.mxu0
      %v10877 = vadd.f32 %v10755, %v10876
      %v10878 = vpop.f32.mrf.mxu0
      %10879 = vmatprep.mubr.f32.mxu0 0.0
      %v10880 = vand.u32 %v10033, 4294901760
      %10881 = vmatmul.mubr.f32.gmra.mxu0 %v10880
      %v10882 = vpop.f32.mrf.mxu0
      %v10883 = vadd.f32 %v10761, %v10882
      %v10884 = vpop.f32.mrf.mxu0
      %10885 = vdwg.mxu0
      %v10886 = vld [vmem:[%s8] sm:$0x1]
      %v10888 = vlaneseq
      %v10889 = vshrl.u32 %v10888, 7
      %v10890 = vsub.s32 0, %v10889
      %v10891 = vrot.slane %v10886, %v10890
      %v10893 = vmul.f32 %v10841, %v10891
      %v10894 = vmul.f32 %v10847, %v10891
      %v10895 = vmul.f32 %v10853, %v10891
      %v10896 = vmul.f32 %v10859, %v10891
      %v10897 = vmul.f32 %v10865, %v10891
      %v10898 = vmul.f32 %v10871, %v10891
      %v10899 = vmul.f32 %v10877, %v10891
      %v10900 = vmul.f32 %v10883, %v10891
      %v10901 = vld [vmem:[%s9] sm:$0x1]
      %v10903 = vlaneseq
      %v10904 = vshrl.u32 %v10903, 7
      %v10905 = vsub.s32 0, %v10904
      %v10906 = vrot.slane %v10901, %v10905
      %v10908 = vadd.f32 %v10893, %v10906
      %v10909 = vadd.f32 %v10894, %v10906
      %v10910 = vadd.f32 %v10895, %v10906
      %v10911 = vadd.f32 %v10896, %v10906
      %v10912 = vadd.f32 %v10897, %v10906
      %v10913 = vadd.f32 %v10898, %v10906
      %v10914 = vadd.f32 %v10899, %v10906
      %v10915 = vadd.f32 %v10900, %v10906
      %vm10916 = vcmp.gt.f32.partialorder %v10908, 0.0
      %vm10917 = vcmp.gt.f32.partialorder %v10909, 0.0
      %vm10918 = vcmp.gt.f32.partialorder %v10910, 0.0
      %vm10919 = vcmp.gt.f32.partialorder %v10911, 0.0
      %vm10920 = vcmp.gt.f32.partialorder %v10912, 0.0
      %vm10921 = vcmp.gt.f32.partialorder %v10913, 0.0
      %vm10922 = vcmp.gt.f32.partialorder %v10914, 0.0
      %vm10923 = vcmp.gt.f32.partialorder %v10915, 0.0
      %v10924 = vld [vmem:[%s10] sm:$0x1]
      %v10926 = vlaneseq
      %v10927 = vshrl.u32 %v10926, 7
      %v10928 = vsub.s32 0, %v10927
      %v10929 = vrot.slane %v10924, %v10928
      %v10931 = vmul.f32 %v10929, %v10908
      %v10932 = vmul.f32 %v10929, %v10909
      %v10933 = vmul.f32 %v10929, %v10910
      %v10934 = vmul.f32 %v10929, %v10911
      %v10935 = vmul.f32 %v10929, %v10912
      %v10936 = vmul.f32 %v10929, %v10913
      %v10937 = vmul.f32 %v10929, %v10914
      %v10938 = vmul.f32 %v10929, %v10915
      %v10939 = vsel %vm10916, %v10908, %v10931
      %v10940 = vsel %vm10917, %v10909, %v10932
      %v10941 = vsel %vm10918, %v10910, %v10933
      %v10942 = vsel %vm10919, %v10911, %v10934
      %v10943 = vsel %vm10920, %v10912, %v10935
      %v10944 = vsel %vm10921, %v10913, %v10936
      %v10945 = vsel %vm10922, %v10914, %v10937
      %v10946 = vsel %vm10923, %v10915, %v10938
      %10947 = vxpose.xlu0.b32.start [1/16] %v10939, 128
      %10948 = vxpose.xlu0.b32.cont [2/16] %v10940, 128
      %10949 = vxpose.xlu0.b32.cont [3/16] %v10941, 128
      %10950 = vxpose.xlu0.b32.cont [4/16] %v10942, 128
      %10951 = vxpose.xlu0.b32.cont [5/16] %v10943, 128
      %10952 = vxpose.xlu0.b32.cont [6/16] %v10944, 128
      %10953 = vxpose.xlu0.b32.cont [7/16] %v10945, 128
      %10954 = vxpose.xlu0.b32.cont [8/16] %v10946, 128
      %10955 = vxpose.xlu0.b32.cont [9/16] 0.0, 128
      %10956 = vxpose.xlu0.b32.cont [10/16] 0.0, 128
      %10957 = vxpose.xlu0.b32.cont [11/16] 0.0, 128
      %10958 = vxpose.xlu0.b32.cont [12/16] 0.0, 128
      %10959 = vxpose.xlu0.b32.cont [13/16] 0.0, 128
      %10960 = vxpose.xlu0.b32.cont [14/16] 0.0, 128
      %10961 = vxpose.xlu0.b32.cont [15/16] 0.0, 128
      %10962 = vxpose.xlu0.b32.end [16/16] 0.0, 128
      %v10963 = vpop.trf.xlu0
      %v10964 = vpop.trf.xlu0
      %v10965 = vpop.trf.xlu0
      %v10966 = vpop.trf.xlu0
      %v10967 = vpop.trf.xlu0
      %v10968 = vpop.trf.xlu0
      %v10969 = vpop.trf.xlu0
      %v10970 = vpop.trf.xlu0
      %v10971 = vpop.trf.xlu0
      %v10972 = vpop.trf.xlu0
      %v10973 = vpop.trf.xlu0
      %v10974 = vpop.trf.xlu0
      %v10975 = vpop.trf.xlu0
      %v10976 = vpop.trf.xlu0
      %v10977 = vpop.trf.xlu0
      %v10978 = vpop.trf.xlu0
      %vm10979 = vcmask 523264
      %10980 = vst.msk [vmem:[%s384] sm:$0xff] %vm10979, %v10963
      %p10981 = scmp.lt.s32.totalorder %s22, 1
      %s10982 = scalar_select %p10981, %s22, 1
      %s10983 = smul.addr %s10982, 8
      %s10984 = scalar_lea.vmem %s11, %s10983
      // Predicated region
      $region65: #{down_forward.1} parent=63 // pred_check
        %p10985 = pneg %p276
      $region66: #{down_forward.1} parent=63 // pred_check_branch
        %10987 = sbr.rel (%p10985) target = $region68
      $region67: #{down_forward.1} parent=63 // pred_region
        _
      $region68: #{down_forward.1} parent=63 // pred_fallthru
        _
    $region64: #{down_forward.1} parent=5 // pred_fallthru
      _
    %p10988 = scmp.le.s32.totalorder 2, %s17
    // Predicated region
    $region69: #{down_forward.1} parent=5 // pred_check
      %p10989 = pneg %p10988
    $region70: #{down_forward.1} parent=5 // pred_check_branch
      %10991 = sbr.rel (%p10989) target = $region72
    $region71: #{down_forward.1} parent=5 // pred_region
      %s10992 = ssub.s32 %s17, 2
      // Predicated region
      $region73: #{down_forward.1} parent=71 // pred_check
        %p10993 = pneg %p282
      $region74: #{down_forward.1} parent=71 // pred_check_branch
        %10995 = sbr.rel (%p10993) target = $region76
      $region75: #{down_forward.1} parent=71 // pred_region
        %p10996 = scmp.lt.s32.totalorder %s23, 1
        %s10997 = scalar_select %p10996, %s23, 1
        %s10998 = smul.addr %s10997, 8
        %s10999 = scalar_lea.vmem %s11, %s10998
      $region76: #{down_forward.1} parent=71 // pred_fallthru
        _
    $region72: #{down_forward.1} parent=5 // pred_fallthru
      _
  $region6: #{down_forward.1} parent=0 // loop_footer
    %s21 = sadd.s32 1, %s17
  $region7: #{down_forward.1} parent=0 // loop_footer_branch
    %16 = sbr.rel target = $region3
  $region8: #{down_forward.1} parent=0 // loop_exit
    _

</llo_original>
